<compile_context>
chip_gen: v7x
topology: tpu7x:2x2x1
jax: 0.10.0
libtpu: 0.0.40
codegen_flags: <defaults>
</compile_context>

<pallas_src>
import functools

import numpy as np

import jax
import jax.numpy as jnp
from jax.experimental import pallas as pl
from jax.experimental.pallas import tpu as pltpu

LATENT_DIM = 8

# ConvTranspose2d(k=4, s=2, p=1) sub-pixel decomposition: output row y = 2a + u
# reads input row a + dm through kernel row ky, for (dm, ky) in _S_ROW[u].
_S_ROW = {0: ((0, 1), (-1, 3)), 1: ((0, 2), (1, 0))}


# ----------------------------------------------------------------------------
# Parameter init (PyTorch layouts), identical to the original module structure.
# ----------------------------------------------------------------------------
def init_params(key):
    def conv_w(key, co, ci, kh, kw):
        return 0.05 * jax.random.normal(key, (co, ci, kh, kw), jnp.float32)

    def convt_w(key, ci, co, kh, kw):
        return 0.05 * jax.random.normal(key, (ci, co, kh, kw), jnp.float32)

    keys = jax.random.split(key, 10)
    return {
        "e1_w": conv_w(keys[0], 32, 3, 4, 4),    "e1_b": jnp.zeros((32,), jnp.float32),
        "e2_w": conv_w(keys[1], 64, 32, 4, 4),   "e2_b": jnp.zeros((64,), jnp.float32),
        "e3_w": conv_w(keys[2], 128, 64, 4, 4),  "e3_b": jnp.zeros((128,), jnp.float32),
        "e4_w": conv_w(keys[3], 256, 128, 4, 4), "e4_b": jnp.zeros((256,), jnp.float32),
        "e5_w": conv_w(keys[4], LATENT_DIM, 256, 1, 1),
        "e5_b": jnp.zeros((LATENT_DIM,), jnp.float32),
        "d1_w": conv_w(keys[5], 256, LATENT_DIM, 1, 1),
        "d1_b": jnp.zeros((256,), jnp.float32),
        "d2_w": convt_w(keys[6], 256, 128, 4, 4), "d2_b": jnp.zeros((128,), jnp.float32),
        "d3_w": convt_w(keys[7], 128, 64, 4, 4),  "d3_b": jnp.zeros((64,), jnp.float32),
        "d4_w": convt_w(keys[8], 64, 32, 4, 4),   "d4_b": jnp.zeros((32,), jnp.float32),
        "d5_w": convt_w(keys[9], 32, 3, 4, 4),    "d5_b": jnp.zeros((3,), jnp.float32),
    }


# ----------------------------------------------------------------------------
# One-time parameter / gather-matrix preparation (numpy, runs once at init).
# ----------------------------------------------------------------------------
def _prepare(params, n):
    bf16, f32 = jnp.bfloat16, jnp.float32

    def npa(x):
        return np.asarray(jax.device_get(x), np.float32)

    arrays, is_any, plan, stage_shapes = [], [], [], []

    def add_arr(a, any_=False):
        arrays.append(a)
        is_any.append(any_)
        return len(arrays) - 1

    def add_stage(shape):
        stage_shapes.append(pltpu.VMEM(shape, jnp.bfloat16))
        return len(stage_shapes) - 1

    def std_index(H, W):
        return lambda nn, h, w: nn * H * W + h * W + w

    def phase_index(Hs, Ws):
        # Row layout produced by the convt phase staging: phase-major blocks.
        def idx(nn, y, x):
            return ((2 * (y % 2) + (x % 2)) * (n * Hs * Ws)
                    + nn * Hs * Ws + (y // 2) * Ws + (x // 2))
        return idx

    def add_dense(w2d, b1d, act, out=None):
        i_w = add_arr(jnp.asarray(np.asarray(w2d, np.float32), bf16))
        i_b = add_arr(jnp.asarray(np.asarray(b1d, np.float32).reshape(1, -1), f32))
        plan.append(dict(kind="dense", w=i_w, b=i_b, act=act, out=out))

    def add_conv(wkey, bkey, H, W, row_in):
        # Conv2d k=4 s=2 p=1 on logical (n, H, W, Cin) stored via row_in.
        w = npa(params[wkey])                              # (Cout, Cin, 4, 4)
        Cout, Cin = w.shape[0], w.shape[1]
        Ho, Wo = H // 2, W // 2
        Mo, Mi = n * Ho * Wo, n * H * W
        taps = [(i, j) for i in range(4) for j in range(4)
                if any(0 <= 2 * r + i - 1 < H for r in range(Ho))
                and any(0 <= 2 * c + j - 1 < W for c in range(Wo))]
        T = len(taps)
        G = np.zeros((T * Mo, Mi), np.float32)             # tap-major row blocks
        Wst = np.zeros((T * Cin, Cout), np.float32)        # taps stacked along K
        for t, (i, j) in enumerate(taps):
            Wst[t * Cin:(t + 1) * Cin, :] = w[:, :, i, j].T
            for nn in range(n):
                for r in range(Ho):
                    for c in range(Wo):
                        h, ww = 2 * r + i - 1, 2 * c + j - 1
                        if 0 <= h < H and 0 <= ww < W:
                            G[t * Mo + nn * Ho * Wo + r * Wo + c,
                              row_in(nn, h, ww)] = 1.0
        i_g = add_arr(jnp.asarray(G, bf16))
        i_w = add_arr(jnp.asarray(Wst, bf16))
        i_b = add_arr(jnp.asarray(npa(params[bkey]).reshape(1, -1), f32))
        i_x = add_stage((Mo, T * Cin))
        plan.append(dict(kind="conv", g=i_g, w=i_w, b=i_b, x=i_x,
                         M=Mo, T=T, Cin=Cin))

    def add_convt(wkey, bkey, H, W, row_in, act, cout_pad=None, final=False,
                  w_any=False, g_any=False):
        # ConvTranspose2d k=4 s=2 p=1; all 4 output phases packed along lanes.
        w = npa(params[wkey])                              # (Cin, Cout, 4, 4)
        Cin, Cout = w.shape[0], w.shape[1]
        Cp = Cout if cout_pad is None else cout_pad
        M = n * H * W

        def vd(d, L):
            return any(0 <= a + d < L for a in range(L))

        offsets = [(dm, dn) for dm in (0, -1, 1) for dn in (0, -1, 1)
                   if vd(dm, H) and vd(dn, W)]
        T = len(offsets)

        Wall = np.zeros((T * Cin, 4 * Cp), np.float32)     # taps stacked along K
        for u in range(2):
            for v in range(2):
                ph = 2 * u + v
                for dm, ky in _S_ROW[u]:
                    for dn, kx in _S_ROW[v]:
                        if (dm, dn) in offsets:
                            o = offsets.index((dm, dn))
                            Wall[o * Cin:(o + 1) * Cin,
                                 ph * Cp:ph * Cp + Cout] = w[:, :, ky, kx]
        ball = np.zeros((1, 4 * Cp), np.float32)
        for ph in range(4):
            ball[0, ph * Cp:ph * Cp + Cout] = npa(params[bkey])

        i_g, i_x = None, None
        if T > 1:
            G = np.zeros((T * M, M), np.float32)           # offset-major row blocks
            for o, (dm, dn) in enumerate(offsets):
                for nn in range(n):
                    for a_ in range(H):
                        for b_ in range(W):
                            sa, sb = a_ + dm, b_ + dn
                            if 0 <= sa < H and 0 <= sb < W:
                                G[o * M + nn * H * W + a_ * W + b_,
                                  row_in(nn, sa, sb)] = 1.0
            i_g = add_arr(jnp.asarray(G, bf16), any_=g_any)
            i_x = add_stage((M, T * Cin))
        i_w = add_arr(jnp.asarray(Wall, bf16), any_=w_any)
        i_b = add_arr(jnp.asarray(ball, f32))
        i_a = None if final else add_stage((4 * M, Cp))
        plan.append(dict(kind="convt", g=i_g, w=i_w, b=i_b, x=i_x, abuf=i_a,
                         M=M, T=T, Cin=Cin, Cp=Cp, act=act, final=final))

    # --- encoder ---
    w1 = npa(params["e1_w"]).transpose(2, 3, 1, 0).reshape(48, 32)   # im2col weight
    add_dense(w1, npa(params["e1_b"]), "relu")
    add_conv("e2_w", "e2_b", 8, 8, std_index(8, 8))
    add_conv("e3_w", "e3_b", 4, 4, std_index(4, 4))
    add_conv("e4_w", "e4_b", 2, 2, std_index(2, 2))
    add_dense(npa(params["e5_w"])[:, :, 0, 0].T, npa(params["e5_b"]), "none", out="z")

    # --- decoder (large operands flagged ANY -> manually DMA'd, overlapped) ---
    add_dense(npa(params["d1_w"])[:, :, 0, 0].T, npa(params["d1_b"]), "relu")
    add_convt("d2_w", "d2_b", 1, 1, std_index(1, 1), "relu", w_any=True)
    add_convt("d3_w", "d3_b", 2, 2, phase_index(1, 1), "relu", w_any=True)
    add_convt("d4_w", "d4_b", 4, 4, phase_index(2, 2), "relu", w_any=True)
    add_convt("d5_w", "d5_b", 8, 8, phase_index(4, 4), "sigmoid",
              cout_pad=8, final=True, g_any=True)

    return arrays, tuple(is_any), tuple(plan), tuple(stage_shapes)


# ----------------------------------------------------------------------------
# The fused Pallas kernel: whole encode + decode; ~17 MXU matmuls total.
# ----------------------------------------------------------------------------
def _vae_kernel(*refs, plan, n_arr, any_idx, n_stage):
    bf16, f32 = jnp.bfloat16, jnp.float32
    n_any = len(any_idx)

    patches_ref = refs[0]
    arr_refs = refs[1:1 + n_arr]
    z_ref = refs[1 + n_arr]
    recon_ref = refs[2 + n_arr]
    stage_refs = refs[3 + n_arr:3 + n_arr + n_stage]
    dma_refs = refs[3 + n_arr + n_stage:3 + n_arr + n_stage + n_any]
    sem = refs[3 + n_arr + n_stage + n_any] if n_any else None

    # Kick off the big decoder-operand HBM->VMEM copies now so they overlap the
    # encoder compute; each is waited on right before its first (and only) use.
    copies = {}
    for s, i in enumerate(any_idx):
        cp = pltpu.make_async_copy(arr_refs[i], dma_refs[s], sem.at[s])
        cp.start()
        copies[i] = (dma_refs[s], cp)

    def get(i):
        if i in copies:
            buf, cp = copies[i]
            cp.wait()
            return buf[...]
        return arr_refs[i][...]

    def act_fn(x, kind):
        if kind == "relu":
            return jnp.maximum(x, 0.0)
        if kind == "sigmoid":
            return jax.nn.sigmoid(x)
        return x

    def mm(x, y):
        return jnp.dot(x, y, preferred_element_type=f32)

    def gather_stack(g, a, xref, M, T, Cin):
        # One MXU matmul gathers every tap (one-hot rows => exact selection),
        # then taps are re-laid out along the contraction axis through VMEM
        # scratch (static slices / static stores only).
        y = mm(g, a).astype(bf16)                        # (T*M, Cin), tap-major
        for t in range(T):
            xref[:, t * Cin:(t + 1) * Cin] = y[t * M:(t + 1) * M, :]
        return xref[...]                                 # (M, T*Cin)

    a = patches_ref[...]                                 # (n*64, 48) bf16

    for layer in plan:
        kind = layer["kind"]
        if kind == "dense":
            out = act_fn(mm(a, get(layer["w"])) + get(layer["b"]), layer["act"])
            if layer["out"] == "z":
                z_ref[...] = out
            a = out.astype(bf16)
        elif kind == "conv":
            x = gather_stack(get(layer["g"]), a, stage_refs[layer["x"]],
                             layer["M"], layer["T"], layer["Cin"])
            out = act_fn(mm(x, get(layer["w"])) + get(layer["b"]), "relu")
            a = out.astype(bf16)
        else:  # convt: all 4 sub-pixel phases from one stacked-K matmul
            M, Cp = layer["M"], layer["Cp"]
            if layer["g"] is None:                       # 1x1 input: no gather
                x = a
            else:
                x = gather_stack(get(layer["g"]), a, stage_refs[layer["x"]],
                                 M, layer["T"], layer["Cin"])
            out = act_fn(mm(x, get(layer["w"])) + get(layer["b"]), layer["act"])
            if layer["final"]:
                recon_ref[...] = out                     # lane-dense (n*64, 32) f32
            else:
                ab = stage_refs[layer["abuf"]]           # (4*M, Cp) bf16
                ob = out.astype(bf16)
                for ph in range(4):
                    ab[ph * M:(ph + 1) * M, :] = ob[:, ph * Cp:(ph + 1) * Cp]
                a = ab[...]


def _make_call(arrays, is_any, plan, stage_shapes, n):
    vmem = pl.BlockSpec(memory_space=pltpu.MemorySpace.VMEM)
    anyspec = pl.BlockSpec(memory_space=pl.ANY)
    any_idx = tuple(i for i, f in enumerate(is_any) if f)

    in_specs = [vmem] + [anyspec if f else vmem for f in is_any]
    scratch = list(stage_shapes)
    scratch += [pltpu.VMEM(arrays[i].shape, arrays[i].dtype) for i in any_idx]
    if any_idx:
        scratch.append(pltpu.SemaphoreType.DMA((len(any_idx),)))

    kernel = functools.partial(_vae_kernel, plan=plan, n_arr=len(arrays),
                               any_idx=any_idx, n_stage=len(stage_shapes))
    return pl.pallas_call(
        kernel,
        out_shape=(
            jax.ShapeDtypeStruct((n, LATENT_DIM), jnp.float32),  # latent z
            jax.ShapeDtypeStruct((n * 64, 32), jnp.float32),     # recon phase slab
        ),
        in_specs=in_specs,
        out_specs=(vmem, vmem),
        scratch_shapes=scratch,
        compiler_params=pltpu.CompilerParams(vmem_limit_bytes=8 * 1024 * 1024),
    )


def make_vae_forward(params, n):
    arrays, is_any, plan, stage_shapes = _prepare(params, n)
    call = _make_call(arrays, is_any, plan, stage_shapes, n)

    def fwd(x_nchw, arrs):
        # tiny XLA glue: NCHW->NHWC + 12 KB im2col for the first layer
        xh = jnp.transpose(x_nchw, (0, 2, 3, 1)).astype(jnp.float32)
        xp = jnp.pad(xh, ((0, 0), (1, 1), (1, 1), (0, 0)))
        cols = [xp[:, i:i + 16:2, j:j + 16:2, :] for i in range(4) for j in range(4)]
        patches = jnp.stack(cols, axis=3).reshape(n * 64, 48).astype(jnp.bfloat16)

        z2, rp = call(patches, *arrs)

        z = z2.reshape(n, LATENT_DIM, 1, 1)
        # rp row = nn*64 + a*8 + b ; col = (2u+v)*8 + c  ->  (n, 3, 16, 16)
        r = rp.reshape(n, 8, 8, 2, 2, 8)[..., :3]          # (nn, a, b, u, v, c)
        recon = jnp.transpose(r, (0, 5, 1, 3, 2, 4)).reshape(n, 3, 16, 16)
        return recon, z

    jitted = jax.jit(fwd)
    return lambda x: jitted(x, arrays)


# ----------------------------------------------------------------------------
# Pure-JAX f32 reference (lax convolutions) for a correctness check.
# ----------------------------------------------------------------------------
def vae_reference(params, x):
    dn = ("NCHW", "OIHW", "NCHW")

    def conv(x, w, b, stride, pad):
        y = jax.lax.conv_general_dilated(
            x, w, (stride, stride), [(pad, pad), (pad, pad)], dimension_numbers=dn)
        return y + b.reshape(1, -1, 1, 1)

    def convT(x, w, b):
        wf = jnp.transpose(w[:, :, ::-1, ::-1], (1, 0, 2, 3))
        y = jax.lax.conv_general_dilated(
            x, wf, (1, 1), [(2, 2), (2, 2)], lhs_dilation=(2, 2), dimension_numbers=dn)
        return y + b.reshape(1, -1, 1, 1)

    relu = jax.nn.relu
    h = relu(conv(x, params["e1_w"], params["e1_b"], 2, 1))
    h = relu(conv(h, params["e2_w"], params["e2_b"], 2, 1))
    h = relu(conv(h, params["e3_w"], params["e3_b"], 2, 1))
    h = relu(conv(h, params["e4_w"], params["e4_b"], 2, 1))
    z = conv(h, params["e5_w"], params["e5_b"], 1, 0)
    h = relu(conv(z, params["d1_w"], params["d1_b"], 1, 0))
    h = relu(convT(h, params["d2_w"], params["d2_b"]))
    h = relu(convT(h, params["d3_w"], params["d3_b"]))
    h = relu(convT(h, params["d4_w"], params["d4_b"]))
    recon = jax.nn.sigmoid(convT(h, params["d5_w"], params["d5_b"]))
    return recon, z


if __name__ == "__main__":
    key = jax.random.PRNGKey(0)
    x = jax.random.uniform(key, (2, 3, 16, 16), jnp.float32)   # NCHW input
    params = init_params(jax.random.PRNGKey(1))

    forward = make_vae_forward(params, 2)
    recon, z = forward(x)
    jax.block_until_ready((recon, z))

    assert recon.shape == (2, 3, 16, 16), recon.shape
    assert z.shape == (2, LATENT_DIM, 1, 1), z.shape
    assert bool(jnp.all(jnp.isfinite(recon))) and bool(jnp.all(jnp.isfinite(z)))
    assert bool(jnp.all(recon >= 0.0)) and bool(jnp.all(recon <= 1.0))

    # numerical check against an f32 XLA reference (bf16 MXU operands => loose tol)
    recon_ref, z_ref = jax.jit(lambda xx: vae_reference(params, xx))(x)
    err_r = float(jnp.max(jnp.abs(recon - recon_ref)))
    err_z = float(jnp.max(jnp.abs(z - z_ref) / (1.0 + jnp.abs(z_ref))))
    assert err_r < 0.1, f"recon mismatch {err_r}"
    assert err_z < 0.1, f"latent mismatch {err_z}"

    print("KERNEL_OK")
</pallas_src>

<mosaic_0001>
module attributes {stable_mosaic.version = 11 : i64} {
  func.func @_vae_kernel(%arg0: memref<128x48xbf16, #tpu.memory_space<vmem>>, %arg1: memref<48x32xbf16, #tpu.memory_space<vmem>>, %arg2: memref<1x32xf32, #tpu.memory_space<vmem>>, %arg3: memref<512x128xbf16, #tpu.memory_space<vmem>>, %arg4: memref<512x64xbf16, #tpu.memory_space<vmem>>, %arg5: memref<1x64xf32, #tpu.memory_space<vmem>>, %arg6: memref<128x32xbf16, #tpu.memory_space<vmem>>, %arg7: memref<1024x128xbf16, #tpu.memory_space<vmem>>, %arg8: memref<1x128xf32, #tpu.memory_space<vmem>>, %arg9: memref<8x8xbf16, #tpu.memory_space<vmem>>, %arg10: memref<512x256xbf16, #tpu.memory_space<vmem>>, %arg11: memref<1x256xf32, #tpu.memory_space<vmem>>, %arg12: memref<256x8xbf16, #tpu.memory_space<vmem>>, %arg13: memref<1x8xf32, #tpu.memory_space<vmem>>, %arg14: memref<8x256xbf16, #tpu.memory_space<vmem>>, %arg15: memref<1x256xf32, #tpu.memory_space<vmem>>, %arg16: memref<256x512xbf16, #tpu.memory_space<any>>, %arg17: memref<1x512xf32, #tpu.memory_space<vmem>>, %arg18: memref<72x8xbf16, #tpu.memory_space<vmem>>, %arg19: memref<1152x256xbf16, #tpu.memory_space<any>>, %arg20: memref<1x256xf32, #tpu.memory_space<vmem>>, %arg21: memref<288x32xbf16, #tpu.memory_space<vmem>>, %arg22: memref<576x128xbf16, #tpu.memory_space<any>>, %arg23: memref<1x128xf32, #tpu.memory_space<vmem>>, %arg24: memref<1152x128xbf16, #tpu.memory_space<any>>, %arg25: memref<288x32xbf16, #tpu.memory_space<vmem>>, %arg26: memref<1x32xf32, #tpu.memory_space<vmem>>, %arg27: memref<2x8xf32, #tpu.memory_space<vmem>>, %arg28: memref<128x32xf32, #tpu.memory_space<vmem>>, %arg29: memref<32x512xbf16, #tpu.memory_space<vmem>>, %arg30: memref<8x1024xbf16, #tpu.memory_space<vmem>>, %arg31: memref<2x512xbf16, #tpu.memory_space<vmem>>, %arg32: memref<8x128xbf16, #tpu.memory_space<vmem>>, %arg33: memref<8x1152xbf16, #tpu.memory_space<vmem>>, %arg34: memref<32x64xbf16, #tpu.memory_space<vmem>>, %arg35: memref<32x576xbf16, #tpu.memory_space<vmem>>, %arg36: memref<128x32xbf16, #tpu.memory_space<vmem>>, %arg37: memref<128x288xbf16, #tpu.memory_space<vmem>>, %arg38: memref<256x512xbf16, #tpu.memory_space<vmem>>, %arg39: memref<1152x256xbf16, #tpu.memory_space<vmem>>, %arg40: memref<576x128xbf16, #tpu.memory_space<vmem>>, %arg41: memref<1152x128xbf16, #tpu.memory_space<vmem>>, %arg42: memref<4x!tpu.dma_semaphore, #tpu.memory_space<semaphore_mem>>) attributes {dimension_semantics = [], scalar_prefetch = 0 : i64, scratch_operands = 14 : i64, tpu.core_type = #tpu.core_type<tc>} {
    %c0_i32 = arith.constant 0 : i32
    %0 = tpu.memref_slice %arg42[%c0_i32] : memref<4x!tpu.dma_semaphore, #tpu.memory_space<semaphore_mem>> -> memref<1x!tpu.dma_semaphore, #tpu.memory_space<semaphore_mem>>
    %1 = tpu.memref_squeeze %0 : memref<1x!tpu.dma_semaphore, #tpu.memory_space<semaphore_mem>> -> memref<!tpu.dma_semaphore, #tpu.memory_space<semaphore_mem>>
    tpu.enqueue_dma source(%arg16 : memref<256x512xbf16, #tpu.memory_space<any>>) target(%arg38 : memref<256x512xbf16, #tpu.memory_space<vmem>>) target_semaphore(%1 : memref<!tpu.dma_semaphore, #tpu.memory_space<semaphore_mem>>)
    %c1_i32 = arith.constant 1 : i32
    %2 = tpu.memref_slice %arg42[%c1_i32] : memref<4x!tpu.dma_semaphore, #tpu.memory_space<semaphore_mem>> -> memref<1x!tpu.dma_semaphore, #tpu.memory_space<semaphore_mem>>
    %3 = tpu.memref_squeeze %2 : memref<1x!tpu.dma_semaphore, #tpu.memory_space<semaphore_mem>> -> memref<!tpu.dma_semaphore, #tpu.memory_space<semaphore_mem>>
    tpu.enqueue_dma source(%arg19 : memref<1152x256xbf16, #tpu.memory_space<any>>) target(%arg39 : memref<1152x256xbf16, #tpu.memory_space<vmem>>) target_semaphore(%3 : memref<!tpu.dma_semaphore, #tpu.memory_space<semaphore_mem>>)
    %c2_i32 = arith.constant 2 : i32
    %4 = tpu.memref_slice %arg42[%c2_i32] : memref<4x!tpu.dma_semaphore, #tpu.memory_space<semaphore_mem>> -> memref<1x!tpu.dma_semaphore, #tpu.memory_space<semaphore_mem>>
    %5 = tpu.memref_squeeze %4 : memref<1x!tpu.dma_semaphore, #tpu.memory_space<semaphore_mem>> -> memref<!tpu.dma_semaphore, #tpu.memory_space<semaphore_mem>>
    tpu.enqueue_dma source(%arg22 : memref<576x128xbf16, #tpu.memory_space<any>>) target(%arg40 : memref<576x128xbf16, #tpu.memory_space<vmem>>) target_semaphore(%5 : memref<!tpu.dma_semaphore, #tpu.memory_space<semaphore_mem>>)
    %c3_i32 = arith.constant 3 : i32
    %6 = tpu.memref_slice %arg42[%c3_i32] : memref<4x!tpu.dma_semaphore, #tpu.memory_space<semaphore_mem>> -> memref<1x!tpu.dma_semaphore, #tpu.memory_space<semaphore_mem>>
    %7 = tpu.memref_squeeze %6 : memref<1x!tpu.dma_semaphore, #tpu.memory_space<semaphore_mem>> -> memref<!tpu.dma_semaphore, #tpu.memory_space<semaphore_mem>>
    tpu.enqueue_dma source(%arg24 : memref<1152x128xbf16, #tpu.memory_space<any>>) target(%arg41 : memref<1152x128xbf16, #tpu.memory_space<vmem>>) target_semaphore(%7 : memref<!tpu.dma_semaphore, #tpu.memory_space<semaphore_mem>>)
    %c0 = arith.constant 0 : index
    %c0_0 = arith.constant 0 : index
    %8 = vector.load %arg0[%c0, %c0_0] : memref<128x48xbf16, #tpu.memory_space<vmem>>, vector<128x48xbf16>
    %c0_1 = arith.constant 0 : index
    %c0_2 = arith.constant 0 : index
    %9 = vector.load %arg1[%c0_1, %c0_2] : memref<48x32xbf16, #tpu.memory_space<vmem>>, vector<48x32xbf16>
    %cst = arith.constant dense<0.000000e+00> : vector<128x32xf32>
    %10 = tpu.matmul %8, %9, %cst {dimension_numbers = #tpu.dot_dimension_numbers<[1], [0], [0], [1], [0, 0, 1, 1], [], []>} : vector<128x48xbf16>, vector<48x32xbf16>, vector<128x32xf32> -> vector<128x32xf32>
    %c0_3 = arith.constant 0 : index
    %c0_4 = arith.constant 0 : index
    %11 = vector.load %arg2[%c0_3, %c0_4] : memref<1x32xf32, #tpu.memory_space<vmem>>, vector<1x32xf32>
    %12 = vector.broadcast %11 : vector<1x32xf32> to vector<128x32xf32>
    %13 = arith.addf %10, %12 : vector<128x32xf32>
    %cst_5 = arith.constant 0.000000e+00 : f32
    %14 = vector.broadcast %cst_5 : f32 to vector<128x32xf32>
    %15 = arith.maximumf %13, %14 : vector<128x32xf32>
    %16 = arith.truncf %15 : vector<128x32xf32> to vector<128x32xbf16>
    %c0_6 = arith.constant 0 : index
    %c0_7 = arith.constant 0 : index
    %17 = vector.load %arg3[%c0_6, %c0_7] : memref<512x128xbf16, #tpu.memory_space<vmem>>, vector<512x128xbf16>
    %cst_8 = arith.constant dense<0.000000e+00> : vector<512x32xf32>
    %18 = tpu.matmul %17, %16, %cst_8 {dimension_numbers = #tpu.dot_dimension_numbers<[1], [0], [0], [1], [0, 0, 1, 1], [], []>} : vector<512x128xbf16>, vector<128x32xbf16>, vector<512x32xf32> -> vector<512x32xf32>
    %19 = arith.truncf %18 : vector<512x32xf32> to vector<512x32xbf16>
    %20 = vector.extract_strided_slice %19 {offsets = [0, 0], sizes = [32, 32], strides = [1, 1]} : vector<512x32xbf16> to vector<32x32xbf16>
    %c0_9 = arith.constant 0 : index
    %c0_10 = arith.constant 0 : index
    %21 = vector.load %arg29[%c0_9, %c0_10] : memref<32x512xbf16, #tpu.memory_space<vmem>>, vector<32x32xbf16>
    tpu.vector_store %arg29[%c0_9, %c0_10], %20 {strides = array<i32>} : memref<32x512xbf16, #tpu.memory_space<vmem>>, vector<32x32xbf16>,
    %22 = vector.extract_strided_slice %19 {offsets = [32, 0], sizes = [32, 32], strides = [1, 1]} : vector<512x32xbf16> to vector<32x32xbf16>
    %c0_11 = arith.constant 0 : index
    %c32 = arith.constant 32 : index
    %23 = vector.load %arg29[%c0_11, %c32] : memref<32x512xbf16, #tpu.memory_space<vmem>>, vector<32x32xbf16>
    tpu.vector_store %arg29[%c0_11, %c32], %22 {strides = array<i32>} : memref<32x512xbf16, #tpu.memory_space<vmem>>, vector<32x32xbf16>,
    %24 = vector.extract_strided_slice %19 {offsets = [64, 0], sizes = [32, 32], strides = [1, 1]} : vector<512x32xbf16> to vector<32x32xbf16>
    %c0_12 = arith.constant 0 : index
    %c64 = arith.constant 64 : index
    %25 = vector.load %arg29[%c0_12, %c64] : memref<32x512xbf16, #tpu.memory_space<vmem>>, vector<32x32xbf16>
    tpu.vector_store %arg29[%c0_12, %c64], %24 {strides = array<i32>} : memref<32x512xbf16, #tpu.memory_space<vmem>>, vector<32x32xbf16>,
    %26 = vector.extract_strided_slice %19 {offsets = [96, 0], sizes = [32, 32], strides = [1, 1]} : vector<512x32xbf16> to vector<32x32xbf16>
    %c0_13 = arith.constant 0 : index
    %c96 = arith.constant 96 : index
    %27 = vector.load %arg29[%c0_13, %c96] : memref<32x512xbf16, #tpu.memory_space<vmem>>, vector<32x32xbf16>
    tpu.vector_store %arg29[%c0_13, %c96], %26 {strides = array<i32>} : memref<32x512xbf16, #tpu.memory_space<vmem>>, vector<32x32xbf16>,
    %28 = vector.extract_strided_slice %19 {offsets = [128, 0], sizes = [32, 32], strides = [1, 1]} : vector<512x32xbf16> to vector<32x32xbf16>
    %c0_14 = arith.constant 0 : index
    %c128 = arith.constant 128 : index
    %29 = vector.load %arg29[%c0_14, %c128] : memref<32x512xbf16, #tpu.memory_space<vmem>>, vector<32x32xbf16>
    tpu.vector_store %arg29[%c0_14, %c128], %28 {strides = array<i32>} : memref<32x512xbf16, #tpu.memory_space<vmem>>, vector<32x32xbf16>,
    %30 = vector.extract_strided_slice %19 {offsets = [160, 0], sizes = [32, 32], strides = [1, 1]} : vector<512x32xbf16> to vector<32x32xbf16>
    %c0_15 = arith.constant 0 : index
    %c160 = arith.constant 160 : index
    %31 = vector.load %arg29[%c0_15, %c160] : memref<32x512xbf16, #tpu.memory_space<vmem>>, vector<32x32xbf16>
    tpu.vector_store %arg29[%c0_15, %c160], %30 {strides = array<i32>} : memref<32x512xbf16, #tpu.memory_space<vmem>>, vector<32x32xbf16>,
    %32 = vector.extract_strided_slice %19 {offsets = [192, 0], sizes = [32, 32], strides = [1, 1]} : vector<512x32xbf16> to vector<32x32xbf16>
    %c0_16 = arith.constant 0 : index
    %c192 = arith.constant 192 : index
    %33 = vector.load %arg29[%c0_16, %c192] : memref<32x512xbf16, #tpu.memory_space<vmem>>, vector<32x32xbf16>
    tpu.vector_store %arg29[%c0_16, %c192], %32 {strides = array<i32>} : memref<32x512xbf16, #tpu.memory_space<vmem>>, vector<32x32xbf16>,
    %34 = vector.extract_strided_slice %19 {offsets = [224, 0], sizes = [32, 32], strides = [1, 1]} : vector<512x32xbf16> to vector<32x32xbf16>
    %c0_17 = arith.constant 0 : index
    %c224 = arith.constant 224 : index
    %35 = vector.load %arg29[%c0_17, %c224] : memref<32x512xbf16, #tpu.memory_space<vmem>>, vector<32x32xbf16>
    tpu.vector_store %arg29[%c0_17, %c224], %34 {strides = array<i32>} : memref<32x512xbf16, #tpu.memory_space<vmem>>, vector<32x32xbf16>,
    %36 = vector.extract_strided_slice %19 {offsets = [256, 0], sizes = [32, 32], strides = [1, 1]} : vector<512x32xbf16> to vector<32x32xbf16>
    %c0_18 = arith.constant 0 : index
    %c256 = arith.constant 256 : index
    %37 = vector.load %arg29[%c0_18, %c256] : memref<32x512xbf16, #tpu.memory_space<vmem>>, vector<32x32xbf16>
    tpu.vector_store %arg29[%c0_18, %c256], %36 {strides = array<i32>} : memref<32x512xbf16, #tpu.memory_space<vmem>>, vector<32x32xbf16>,
    %38 = vector.extract_strided_slice %19 {offsets = [288, 0], sizes = [32, 32], strides = [1, 1]} : vector<512x32xbf16> to vector<32x32xbf16>
    %c0_19 = arith.constant 0 : index
    %c288 = arith.constant 288 : index
    %39 = vector.load %arg29[%c0_19, %c288] : memref<32x512xbf16, #tpu.memory_space<vmem>>, vector<32x32xbf16>
    tpu.vector_store %arg29[%c0_19, %c288], %38 {strides = array<i32>} : memref<32x512xbf16, #tpu.memory_space<vmem>>, vector<32x32xbf16>,
    %40 = vector.extract_strided_slice %19 {offsets = [320, 0], sizes = [32, 32], strides = [1, 1]} : vector<512x32xbf16> to vector<32x32xbf16>
    %c0_20 = arith.constant 0 : index
    %c320 = arith.constant 320 : index
    %41 = vector.load %arg29[%c0_20, %c320] : memref<32x512xbf16, #tpu.memory_space<vmem>>, vector<32x32xbf16>
    tpu.vector_store %arg29[%c0_20, %c320], %40 {strides = array<i32>} : memref<32x512xbf16, #tpu.memory_space<vmem>>, vector<32x32xbf16>,
    %42 = vector.extract_strided_slice %19 {offsets = [352, 0], sizes = [32, 32], strides = [1, 1]} : vector<512x32xbf16> to vector<32x32xbf16>
    %c0_21 = arith.constant 0 : index
    %c352 = arith.constant 352 : index
    %43 = vector.load %arg29[%c0_21, %c352] : memref<32x512xbf16, #tpu.memory_space<vmem>>, vector<32x32xbf16>
    tpu.vector_store %arg29[%c0_21, %c352], %42 {strides = array<i32>} : memref<32x512xbf16, #tpu.memory_space<vmem>>, vector<32x32xbf16>,
    %44 = vector.extract_strided_slice %19 {offsets = [384, 0], sizes = [32, 32], strides = [1, 1]} : vector<512x32xbf16> to vector<32x32xbf16>
    %c0_22 = arith.constant 0 : index
    %c384 = arith.constant 384 : index
    %45 = vector.load %arg29[%c0_22, %c384] : memref<32x512xbf16, #tpu.memory_space<vmem>>, vector<32x32xbf16>
    tpu.vector_store %arg29[%c0_22, %c384], %44 {strides = array<i32>} : memref<32x512xbf16, #tpu.memory_space<vmem>>, vector<32x32xbf16>,
    %46 = vector.extract_strided_slice %19 {offsets = [416, 0], sizes = [32, 32], strides = [1, 1]} : vector<512x32xbf16> to vector<32x32xbf16>
    %c0_23 = arith.constant 0 : index
    %c416 = arith.constant 416 : index
    %47 = vector.load %arg29[%c0_23, %c416] : memref<32x512xbf16, #tpu.memory_space<vmem>>, vector<32x32xbf16>
    tpu.vector_store %arg29[%c0_23, %c416], %46 {strides = array<i32>} : memref<32x512xbf16, #tpu.memory_space<vmem>>, vector<32x32xbf16>,
    %48 = vector.extract_strided_slice %19 {offsets = [448, 0], sizes = [32, 32], strides = [1, 1]} : vector<512x32xbf16> to vector<32x32xbf16>
    %c0_24 = arith.constant 0 : index
    %c448 = arith.constant 448 : index
    %49 = vector.load %arg29[%c0_24, %c448] : memref<32x512xbf16, #tpu.memory_space<vmem>>, vector<32x32xbf16>
    tpu.vector_store %arg29[%c0_24, %c448], %48 {strides = array<i32>} : memref<32x512xbf16, #tpu.memory_space<vmem>>, vector<32x32xbf16>,
    %50 = vector.extract_strided_slice %19 {offsets = [480, 0], sizes = [32, 32], strides = [1, 1]} : vector<512x32xbf16> to vector<32x32xbf16>
    %c0_25 = arith.constant 0 : index
    %c480 = arith.constant 480 : index
    %51 = vector.load %arg29[%c0_25, %c480] : memref<32x512xbf16, #tpu.memory_space<vmem>>, vector<32x32xbf16>
    tpu.vector_store %arg29[%c0_25, %c480], %50 {strides = array<i32>} : memref<32x512xbf16, #tpu.memory_space<vmem>>, vector<32x32xbf16>,
    %c0_26 = arith.constant 0 : index
    %c0_27 = arith.constant 0 : index
    %52 = vector.load %arg29[%c0_26, %c0_27] : memref<32x512xbf16, #tpu.memory_space<vmem>>, vector<32x512xbf16>
    %c0_28 = arith.constant 0 : index
    %c0_29 = arith.constant 0 : index
    %53 = vector.load %arg4[%c0_28, %c0_29] : memref<512x64xbf16, #tpu.memory_space<vmem>>, vector<512x64xbf16>
    %cst_30 = arith.constant dense<0.000000e+00> : vector<32x64xf32>
    %54 = tpu.matmul %52, %53, %cst_30 {dimension_numbers = #tpu.dot_dimension_numbers<[1], [0], [0], [1], [0, 0, 1, 1], [], []>} : vector<32x512xbf16>, vector<512x64xbf16>, vector<32x64xf32> -> vector<32x64xf32>
    %c0_31 = arith.constant 0 : index
    %c0_32 = arith.constant 0 : index
    %55 = vector.load %arg5[%c0_31, %c0_32] : memref<1x64xf32, #tpu.memory_space<vmem>>, vector<1x64xf32>
    %56 = vector.broadcast %55 : vector<1x64xf32> to vector<32x64xf32>
    %57 = arith.addf %54, %56 : vector<32x64xf32>
    %cst_33 = arith.constant 0.000000e+00 : f32
    %58 = vector.broadcast %cst_33 : f32 to vector<32x64xf32>
    %59 = arith.maximumf %57, %58 : vector<32x64xf32>
    %60 = arith.truncf %59 : vector<32x64xf32> to vector<32x64xbf16>
    %c0_34 = arith.constant 0 : index
    %c0_35 = arith.constant 0 : index
    %61 = vector.load %arg6[%c0_34, %c0_35] : memref<128x32xbf16, #tpu.memory_space<vmem>>, vector<128x32xbf16>
    %cst_36 = arith.constant dense<0.000000e+00> : vector<128x64xf32>
    %62 = tpu.matmul %61, %60, %cst_36 {dimension_numbers = #tpu.dot_dimension_numbers<[1], [0], [0], [1], [0, 0, 1, 1], [], []>} : vector<128x32xbf16>, vector<32x64xbf16>, vector<128x64xf32> -> vector<128x64xf32>
    %63 = arith.truncf %62 : vector<128x64xf32> to vector<128x64xbf16>
    %64 = vector.extract_strided_slice %63 {offsets = [0, 0], sizes = [8, 64], strides = [1, 1]} : vector<128x64xbf16> to vector<8x64xbf16>
    %c0_37 = arith.constant 0 : index
    %c0_38 = arith.constant 0 : index
    %65 = vector.load %arg30[%c0_37, %c0_38] : memref<8x1024xbf16, #tpu.memory_space<vmem>>, vector<8x64xbf16>
    tpu.vector_store %arg30[%c0_37, %c0_38], %64 {strides = array<i32>} : memref<8x1024xbf16, #tpu.memory_space<vmem>>, vector<8x64xbf16>,
    %66 = vector.extract_strided_slice %63 {offsets = [8, 0], sizes = [8, 64], strides = [1, 1]} : vector<128x64xbf16> to vector<8x64xbf16>
    %c0_39 = arith.constant 0 : index
    %c64_40 = arith.constant 64 : index
    %67 = vector.load %arg30[%c0_39, %c64_40] : memref<8x1024xbf16, #tpu.memory_space<vmem>>, vector<8x64xbf16>
    tpu.vector_store %arg30[%c0_39, %c64_40], %66 {strides = array<i32>} : memref<8x1024xbf16, #tpu.memory_space<vmem>>, vector<8x64xbf16>,
    %68 = vector.extract_strided_slice %63 {offsets = [16, 0], sizes = [8, 64], strides = [1, 1]} : vector<128x64xbf16> to vector<8x64xbf16>
    %c0_41 = arith.constant 0 : index
    %c128_42 = arith.constant 128 : index
    %69 = vector.load %arg30[%c0_41, %c128_42] : memref<8x1024xbf16, #tpu.memory_space<vmem>>, vector<8x64xbf16>
    tpu.vector_store %arg30[%c0_41, %c128_42], %68 {strides = array<i32>} : memref<8x1024xbf16, #tpu.memory_space<vmem>>, vector<8x64xbf16>,
    %70 = vector.extract_strided_slice %63 {offsets = [24, 0], sizes = [8, 64], strides = [1, 1]} : vector<128x64xbf16> to vector<8x64xbf16>
    %c0_43 = arith.constant 0 : index
    %c192_44 = arith.constant 192 : index
    %71 = vector.load %arg30[%c0_43, %c192_44] : memref<8x1024xbf16, #tpu.memory_space<vmem>>, vector<8x64xbf16>
    tpu.vector_store %arg30[%c0_43, %c192_44], %70 {strides = array<i32>} : memref<8x1024xbf16, #tpu.memory_space<vmem>>, vector<8x64xbf16>,
    %72 = vector.extract_strided_slice %63 {offsets = [32, 0], sizes = [8, 64], strides = [1, 1]} : vector<128x64xbf16> to vector<8x64xbf16>
    %c0_45 = arith.constant 0 : index
    %c256_46 = arith.constant 256 : index
    %73 = vector.load %arg30[%c0_45, %c256_46] : memref<8x1024xbf16, #tpu.memory_space<vmem>>, vector<8x64xbf16>
    tpu.vector_store %arg30[%c0_45, %c256_46], %72 {strides = array<i32>} : memref<8x1024xbf16, #tpu.memory_space<vmem>>, vector<8x64xbf16>,
    %74 = vector.extract_strided_slice %63 {offsets = [40, 0], sizes = [8, 64], strides = [1, 1]} : vector<128x64xbf16> to vector<8x64xbf16>
    %c0_47 = arith.constant 0 : index
    %c320_48 = arith.constant 320 : index
    %75 = vector.load %arg30[%c0_47, %c320_48] : memref<8x1024xbf16, #tpu.memory_space<vmem>>, vector<8x64xbf16>
    tpu.vector_store %arg30[%c0_47, %c320_48], %74 {strides = array<i32>} : memref<8x1024xbf16, #tpu.memory_space<vmem>>, vector<8x64xbf16>,
    %76 = vector.extract_strided_slice %63 {offsets = [48, 0], sizes = [8, 64], strides = [1, 1]} : vector<128x64xbf16> to vector<8x64xbf16>
    %c0_49 = arith.constant 0 : index
    %c384_50 = arith.constant 384 : index
    %77 = vector.load %arg30[%c0_49, %c384_50] : memref<8x1024xbf16, #tpu.memory_space<vmem>>, vector<8x64xbf16>
    tpu.vector_store %arg30[%c0_49, %c384_50], %76 {strides = array<i32>} : memref<8x1024xbf16, #tpu.memory_space<vmem>>, vector<8x64xbf16>,
    %78 = vector.extract_strided_slice %63 {offsets = [56, 0], sizes = [8, 64], strides = [1, 1]} : vector<128x64xbf16> to vector<8x64xbf16>
    %c0_51 = arith.constant 0 : index
    %c448_52 = arith.constant 448 : index
    %79 = vector.load %arg30[%c0_51, %c448_52] : memref<8x1024xbf16, #tpu.memory_space<vmem>>, vector<8x64xbf16>
    tpu.vector_store %arg30[%c0_51, %c448_52], %78 {strides = array<i32>} : memref<8x1024xbf16, #tpu.memory_space<vmem>>, vector<8x64xbf16>,
    %80 = vector.extract_strided_slice %63 {offsets = [64, 0], sizes = [8, 64], strides = [1, 1]} : vector<128x64xbf16> to vector<8x64xbf16>
    %c0_53 = arith.constant 0 : index
    %c512 = arith.constant 512 : index
    %81 = vector.load %arg30[%c0_53, %c512] : memref<8x1024xbf16, #tpu.memory_space<vmem>>, vector<8x64xbf16>
    tpu.vector_store %arg30[%c0_53, %c512], %80 {strides = array<i32>} : memref<8x1024xbf16, #tpu.memory_space<vmem>>, vector<8x64xbf16>,
    %82 = vector.extract_strided_slice %63 {offsets = [72, 0], sizes = [8, 64], strides = [1, 1]} : vector<128x64xbf16> to vector<8x64xbf16>
    %c0_54 = arith.constant 0 : index
    %c576 = arith.constant 576 : index
    %83 = vector.load %arg30[%c0_54, %c576] : memref<8x1024xbf16, #tpu.memory_space<vmem>>, vector<8x64xbf16>
    tpu.vector_store %arg30[%c0_54, %c576], %82 {strides = array<i32>} : memref<8x1024xbf16, #tpu.memory_space<vmem>>, vector<8x64xbf16>,
    %84 = vector.extract_strided_slice %63 {offsets = [80, 0], sizes = [8, 64], strides = [1, 1]} : vector<128x64xbf16> to vector<8x64xbf16>
    %c0_55 = arith.constant 0 : index
    %c640 = arith.constant 640 : index
    %85 = vector.load %arg30[%c0_55, %c640] : memref<8x1024xbf16, #tpu.memory_space<vmem>>, vector<8x64xbf16>
    tpu.vector_store %arg30[%c0_55, %c640], %84 {strides = array<i32>} : memref<8x1024xbf16, #tpu.memory_space<vmem>>, vector<8x64xbf16>,
    %86 = vector.extract_strided_slice %63 {offsets = [88, 0], sizes = [8, 64], strides = [1, 1]} : vector<128x64xbf16> to vector<8x64xbf16>
    %c0_56 = arith.constant 0 : index
    %c704 = arith.constant 704 : index
    %87 = vector.load %arg30[%c0_56, %c704] : memref<8x1024xbf16, #tpu.memory_space<vmem>>, vector<8x64xbf16>
    tpu.vector_store %arg30[%c0_56, %c704], %86 {strides = array<i32>} : memref<8x1024xbf16, #tpu.memory_space<vmem>>, vector<8x64xbf16>,
    %88 = vector.extract_strided_slice %63 {offsets = [96, 0], sizes = [8, 64], strides = [1, 1]} : vector<128x64xbf16> to vector<8x64xbf16>
    %c0_57 = arith.constant 0 : index
    %c768 = arith.constant 768 : index
    %89 = vector.load %arg30[%c0_57, %c768] : memref<8x1024xbf16, #tpu.memory_space<vmem>>, vector<8x64xbf16>
    tpu.vector_store %arg30[%c0_57, %c768], %88 {strides = array<i32>} : memref<8x1024xbf16, #tpu.memory_space<vmem>>, vector<8x64xbf16>,
    %90 = vector.extract_strided_slice %63 {offsets = [104, 0], sizes = [8, 64], strides = [1, 1]} : vector<128x64xbf16> to vector<8x64xbf16>
    %c0_58 = arith.constant 0 : index
    %c832 = arith.constant 832 : index
    %91 = vector.load %arg30[%c0_58, %c832] : memref<8x1024xbf16, #tpu.memory_space<vmem>>, vector<8x64xbf16>
    tpu.vector_store %arg30[%c0_58, %c832], %90 {strides = array<i32>} : memref<8x1024xbf16, #tpu.memory_space<vmem>>, vector<8x64xbf16>,
    %92 = vector.extract_strided_slice %63 {offsets = [112, 0], sizes = [8, 64], strides = [1, 1]} : vector<128x64xbf16> to vector<8x64xbf16>
    %c0_59 = arith.constant 0 : index
    %c896 = arith.constant 896 : index
    %93 = vector.load %arg30[%c0_59, %c896] : memref<8x1024xbf16, #tpu.memory_space<vmem>>, vector<8x64xbf16>
    tpu.vector_store %arg30[%c0_59, %c896], %92 {strides = array<i32>} : memref<8x1024xbf16, #tpu.memory_space<vmem>>, vector<8x64xbf16>,
    %94 = vector.extract_strided_slice %63 {offsets = [120, 0], sizes = [8, 64], strides = [1, 1]} : vector<128x64xbf16> to vector<8x64xbf16>
    %c0_60 = arith.constant 0 : index
    %c960 = arith.constant 960 : index
    %95 = vector.load %arg30[%c0_60, %c960] : memref<8x1024xbf16, #tpu.memory_space<vmem>>, vector<8x64xbf16>
    tpu.vector_store %arg30[%c0_60, %c960], %94 {strides = array<i32>} : memref<8x1024xbf16, #tpu.memory_space<vmem>>, vector<8x64xbf16>,
    %c0_61 = arith.constant 0 : index
    %c0_62 = arith.constant 0 : index
    %96 = vector.load %arg30[%c0_61, %c0_62] : memref<8x1024xbf16, #tpu.memory_space<vmem>>, vector<8x1024xbf16>
    %c0_63 = arith.constant 0 : index
    %c0_64 = arith.constant 0 : index
    %97 = vector.load %arg7[%c0_63, %c0_64] : memref<1024x128xbf16, #tpu.memory_space<vmem>>, vector<1024x128xbf16>
    %cst_65 = arith.constant dense<0.000000e+00> : vector<8x128xf32>
    %98 = tpu.matmul %96, %97, %cst_65 {dimension_numbers = #tpu.dot_dimension_numbers<[1], [0], [0], [1], [0, 0, 1, 1], [], []>} : vector<8x1024xbf16>, vector<1024x128xbf16>, vector<8x128xf32> -> vector<8x128xf32>
    %c0_66 = arith.constant 0 : index
    %c0_67 = arith.constant 0 : index
    %99 = vector.load %arg8[%c0_66, %c0_67] : memref<1x128xf32, #tpu.memory_space<vmem>>, vector<1x128xf32>
    %100 = vector.broadcast %99 : vector<1x128xf32> to vector<8x128xf32>
    %101 = arith.addf %98, %100 : vector<8x128xf32>
    %cst_68 = arith.constant 0.000000e+00 : f32
    %102 = vector.broadcast %cst_68 : f32 to vector<8x128xf32>
    %103 = arith.maximumf %101, %102 : vector<8x128xf32>
    %104 = arith.truncf %103 : vector<8x128xf32> to vector<8x128xbf16>
    %c0_69 = arith.constant 0 : index
    %c0_70 = arith.constant 0 : index
    %105 = vector.load %arg9[%c0_69, %c0_70] : memref<8x8xbf16, #tpu.memory_space<vmem>>, vector<8x8xbf16>
    %cst_71 = arith.constant dense<0.000000e+00> : vector<8x128xf32>
    %106 = tpu.matmul %105, %104, %cst_71 {dimension_numbers = #tpu.dot_dimension_numbers<[1], [0], [0], [1], [0, 0, 1, 1], [], []>} : vector<8x8xbf16>, vector<8x128xbf16>, vector<8x128xf32> -> vector<8x128xf32>
    %107 = arith.truncf %106 : vector<8x128xf32> to vector<8x128xbf16>
    %108 = vector.extract_strided_slice %107 {offsets = [0, 0], sizes = [2, 128], strides = [1, 1]} : vector<8x128xbf16> to vector<2x128xbf16>
    %c0_72 = arith.constant 0 : index
    %c0_73 = arith.constant 0 : index
    %109 = vector.load %arg31[%c0_72, %c0_73] : memref<2x512xbf16, #tpu.memory_space<vmem>>, vector<2x128xbf16>
    tpu.vector_store %arg31[%c0_72, %c0_73], %108 {strides = array<i32>} : memref<2x512xbf16, #tpu.memory_space<vmem>>, vector<2x128xbf16>,
    %110 = vector.extract_strided_slice %107 {offsets = [2, 0], sizes = [2, 128], strides = [1, 1]} : vector<8x128xbf16> to vector<2x128xbf16>
    %c0_74 = arith.constant 0 : index
    %c128_75 = arith.constant 128 : index
    %111 = vector.load %arg31[%c0_74, %c128_75] : memref<2x512xbf16, #tpu.memory_space<vmem>>, vector<2x128xbf16>
    tpu.vector_store %arg31[%c0_74, %c128_75], %110 {strides = array<i32>} : memref<2x512xbf16, #tpu.memory_space<vmem>>, vector<2x128xbf16>,
    %112 = vector.extract_strided_slice %107 {offsets = [4, 0], sizes = [2, 128], strides = [1, 1]} : vector<8x128xbf16> to vector<2x128xbf16>
    %c0_76 = arith.constant 0 : index
    %c256_77 = arith.constant 256 : index
    %113 = vector.load %arg31[%c0_76, %c256_77] : memref<2x512xbf16, #tpu.memory_space<vmem>>, vector<2x128xbf16>
    tpu.vector_store %arg31[%c0_76, %c256_77], %112 {strides = array<i32>} : memref<2x512xbf16, #tpu.memory_space<vmem>>, vector<2x128xbf16>,
    %114 = vector.extract_strided_slice %107 {offsets = [6, 0], sizes = [2, 128], strides = [1, 1]} : vector<8x128xbf16> to vector<2x128xbf16>
    %c0_78 = arith.constant 0 : index
    %c384_79 = arith.constant 384 : index
    %115 = vector.load %arg31[%c0_78, %c384_79] : memref<2x512xbf16, #tpu.memory_space<vmem>>, vector<2x128xbf16>
    tpu.vector_store %arg31[%c0_78, %c384_79], %114 {strides = array<i32>} : memref<2x512xbf16, #tpu.memory_space<vmem>>, vector<2x128xbf16>,
    %c0_80 = arith.constant 0 : index
    %c0_81 = arith.constant 0 : index
    %116 = vector.load %arg31[%c0_80, %c0_81] : memref<2x512xbf16, #tpu.memory_space<vmem>>, vector<2x512xbf16>
    %c0_82 = arith.constant 0 : index
    %c0_83 = arith.constant 0 : index
    %117 = vector.load %arg10[%c0_82, %c0_83] : memref<512x256xbf16, #tpu.memory_space<vmem>>, vector<512x256xbf16>
    %cst_84 = arith.constant dense<0.000000e+00> : vector<2x256xf32>
    %118 = tpu.matmul %116, %117, %cst_84 {dimension_numbers = #tpu.dot_dimension_numbers<[1], [0], [0], [1], [0, 0, 1, 1], [], []>} : vector<2x512xbf16>, vector<512x256xbf16>, vector<2x256xf32> -> vector<2x256xf32>
    %c0_85 = arith.constant 0 : index
    %c0_86 = arith.constant 0 : index
    %119 = vector.load %arg11[%c0_85, %c0_86] : memref<1x256xf32, #tpu.memory_space<vmem>>, vector<1x256xf32>
    %120 = vector.broadcast %119 : vector<1x256xf32> to vector<2x256xf32>
    %121 = arith.addf %118, %120 : vector<2x256xf32>
    %cst_87 = arith.constant 0.000000e+00 : f32
    %122 = vector.broadcast %cst_87 : f32 to vector<2x256xf32>
    %123 = arith.maximumf %121, %122 : vector<2x256xf32>
    %124 = arith.truncf %123 : vector<2x256xf32> to vector<2x256xbf16>
    %c0_88 = arith.constant 0 : index
    %c0_89 = arith.constant 0 : index
    %125 = vector.load %arg12[%c0_88, %c0_89] : memref<256x8xbf16, #tpu.memory_space<vmem>>, vector<256x8xbf16>
    %cst_90 = arith.constant dense<0.000000e+00> : vector<2x8xf32>
    %126 = tpu.matmul %124, %125, %cst_90 {dimension_numbers = #tpu.dot_dimension_numbers<[1], [0], [0], [1], [0, 0, 1, 1], [], []>} : vector<2x256xbf16>, vector<256x8xbf16>, vector<2x8xf32> -> vector<2x8xf32>
    %c0_91 = arith.constant 0 : index
    %c0_92 = arith.constant 0 : index
    %127 = vector.load %arg13[%c0_91, %c0_92] : memref<1x8xf32, #tpu.memory_space<vmem>>, vector<1x8xf32>
    %128 = vector.broadcast %127 : vector<1x8xf32> to vector<2x8xf32>
    %129 = arith.addf %126, %128 : vector<2x8xf32>
    %c0_93 = arith.constant 0 : index
    %c0_94 = arith.constant 0 : index
    %130 = vector.load %arg27[%c0_93, %c0_94] : memref<2x8xf32, #tpu.memory_space<vmem>>, vector<2x8xf32>
    tpu.vector_store %arg27[%c0_93, %c0_94], %129 {strides = array<i32>} : memref<2x8xf32, #tpu.memory_space<vmem>>, vector<2x8xf32>,
    %131 = arith.truncf %129 : vector<2x8xf32> to vector<2x8xbf16>
    %c0_95 = arith.constant 0 : index
    %c0_96 = arith.constant 0 : index
    %132 = vector.load %arg14[%c0_95, %c0_96] : memref<8x256xbf16, #tpu.memory_space<vmem>>, vector<8x256xbf16>
    %cst_97 = arith.constant dense<0.000000e+00> : vector<2x256xf32>
    %133 = tpu.matmul %131, %132, %cst_97 {dimension_numbers = #tpu.dot_dimension_numbers<[1], [0], [0], [1], [0, 0, 1, 1], [], []>} : vector<2x8xbf16>, vector<8x256xbf16>, vector<2x256xf32> -> vector<2x256xf32>
    %c0_98 = arith.constant 0 : index
    %c0_99 = arith.constant 0 : index
    %134 = vector.load %arg15[%c0_98, %c0_99] : memref<1x256xf32, #tpu.memory_space<vmem>>, vector<1x256xf32>
    %135 = vector.broadcast %134 : vector<1x256xf32> to vector<2x256xf32>
    %136 = arith.addf %133, %135 : vector<2x256xf32>
    %cst_100 = arith.constant 0.000000e+00 : f32
    %137 = vector.broadcast %cst_100 : f32 to vector<2x256xf32>
    %138 = arith.maximumf %136, %137 : vector<2x256xf32>
    %139 = arith.truncf %138 : vector<2x256xf32> to vector<2x256xbf16>
    %c0_i32_101 = arith.constant 0 : i32
    %140 = tpu.memref_slice %arg42[%c0_i32_101] : memref<4x!tpu.dma_semaphore, #tpu.memory_space<semaphore_mem>> -> memref<1x!tpu.dma_semaphore, #tpu.memory_space<semaphore_mem>>
    %141 = tpu.memref_squeeze %140 : memref<1x!tpu.dma_semaphore, #tpu.memory_space<semaphore_mem>> -> memref<!tpu.dma_semaphore, #tpu.memory_space<semaphore_mem>>
    tpu.wait_dma2 semaphore(%141 : memref<!tpu.dma_semaphore, #tpu.memory_space<semaphore_mem>>) src(%arg16 : memref<256x512xbf16, #tpu.memory_space<any>>) dst(%arg38 : memref<256x512xbf16, #tpu.memory_space<vmem>>)
    %c0_102 = arith.constant 0 : index
    %c0_103 = arith.constant 0 : index
    %142 = vector.load %arg38[%c0_102, %c0_103] : memref<256x512xbf16, #tpu.memory_space<vmem>>, vector<256x512xbf16>
    %cst_104 = arith.constant dense<0.000000e+00> : vector<2x512xf32>
    %143 = tpu.matmul %139, %142, %cst_104 {dimension_numbers = #tpu.dot_dimension_numbers<[1], [0], [0], [1], [0, 0, 1, 1], [], []>} : vector<2x256xbf16>, vector<256x512xbf16>, vector<2x512xf32> -> vector<2x512xf32>
    %c0_105 = arith.constant 0 : index
    %c0_106 = arith.constant 0 : index
    %144 = vector.load %arg17[%c0_105, %c0_106] : memref<1x512xf32, #tpu.memory_space<vmem>>, vector<1x512xf32>
    %145 = vector.broadcast %144 : vector<1x512xf32> to vector<2x512xf32>
    %146 = arith.addf %143, %145 : vector<2x512xf32>
    %cst_107 = arith.constant 0.000000e+00 : f32
    %147 = vector.broadcast %cst_107 : f32 to vector<2x512xf32>
    %148 = arith.maximumf %146, %147 : vector<2x512xf32>
    %149 = arith.truncf %148 : vector<2x512xf32> to vector<2x512xbf16>
    %150 = vector.extract_strided_slice %149 {offsets = [0, 0], sizes = [2, 128], strides = [1, 1]} : vector<2x512xbf16> to vector<2x128xbf16>
    %c0_108 = arith.constant 0 : index
    %c0_109 = arith.constant 0 : index
    %151 = vector.load %arg32[%c0_108, %c0_109] : memref<8x128xbf16, #tpu.memory_space<vmem>>, vector<2x128xbf16>
    tpu.vector_store %arg32[%c0_108, %c0_109], %150 {strides = array<i32>} : memref<8x128xbf16, #tpu.memory_space<vmem>>, vector<2x128xbf16>,
    %152 = vector.extract_strided_slice %149 {offsets = [0, 128], sizes = [2, 128], strides = [1, 1]} : vector<2x512xbf16> to vector<2x128xbf16>
    %c2 = arith.constant 2 : index
    %c0_110 = arith.constant 0 : index
    %153 = vector.load %arg32[%c2, %c0_110] : memref<8x128xbf16, #tpu.memory_space<vmem>>, vector<2x128xbf16>
    tpu.vector_store %arg32[%c2, %c0_110], %152 {strides = array<i32>} : memref<8x128xbf16, #tpu.memory_space<vmem>>, vector<2x128xbf16>,
    %154 = vector.extract_strided_slice %149 {offsets = [0, 256], sizes = [2, 128], strides = [1, 1]} : vector<2x512xbf16> to vector<2x128xbf16>
    %c4 = arith.constant 4 : index
    %c0_111 = arith.constant 0 : index
    %155 = vector.load %arg32[%c4, %c0_111] : memref<8x128xbf16, #tpu.memory_space<vmem>>, vector<2x128xbf16>
    tpu.vector_store %arg32[%c4, %c0_111], %154 {strides = array<i32>} : memref<8x128xbf16, #tpu.memory_space<vmem>>, vector<2x128xbf16>,
    %156 = vector.extract_strided_slice %149 {offsets = [0, 384], sizes = [2, 128], strides = [1, 1]} : vector<2x512xbf16> to vector<2x128xbf16>
    %c6 = arith.constant 6 : index
    %c0_112 = arith.constant 0 : index
    %157 = vector.load %arg32[%c6, %c0_112] : memref<8x128xbf16, #tpu.memory_space<vmem>>, vector<2x128xbf16>
    tpu.vector_store %arg32[%c6, %c0_112], %156 {strides = array<i32>} : memref<8x128xbf16, #tpu.memory_space<vmem>>, vector<2x128xbf16>,
    %c0_113 = arith.constant 0 : index
    %c0_114 = arith.constant 0 : index
    %158 = vector.load %arg32[%c0_113, %c0_114] : memref<8x128xbf16, #tpu.memory_space<vmem>>, vector<8x128xbf16>
    %c0_115 = arith.constant 0 : index
    %c0_116 = arith.constant 0 : index
    %159 = vector.load %arg18[%c0_115, %c0_116] : memref<72x8xbf16, #tpu.memory_space<vmem>>, vector<72x8xbf16>
    %cst_117 = arith.constant dense<0.000000e+00> : vector<72x128xf32>
    %160 = tpu.matmul %159, %158, %cst_117 {dimension_numbers = #tpu.dot_dimension_numbers<[1], [0], [0], [1], [0, 0, 1, 1], [], []>} : vector<72x8xbf16>, vector<8x128xbf16>, vector<72x128xf32> -> vector<72x128xf32>
    %161 = arith.truncf %160 : vector<72x128xf32> to vector<72x128xbf16>
    %162 = vector.extract_strided_slice %161 {offsets = [0, 0], sizes = [8, 128], strides = [1, 1]} : vector<72x128xbf16> to vector<8x128xbf16>
    %c0_118 = arith.constant 0 : index
    %c0_119 = arith.constant 0 : index
    %163 = vector.load %arg33[%c0_118, %c0_119] : memref<8x1152xbf16, #tpu.memory_space<vmem>>, vector<8x128xbf16>
    tpu.vector_store %arg33[%c0_118, %c0_119], %162 {strides = array<i32>} : memref<8x1152xbf16, #tpu.memory_space<vmem>>, vector<8x128xbf16>,
    %164 = vector.extract_strided_slice %161 {offsets = [8, 0], sizes = [8, 128], strides = [1, 1]} : vector<72x128xbf16> to vector<8x128xbf16>
    %c0_120 = arith.constant 0 : index
    %c128_121 = arith.constant 128 : index
    %165 = vector.load %arg33[%c0_120, %c128_121] : memref<8x1152xbf16, #tpu.memory_space<vmem>>, vector<8x128xbf16>
    tpu.vector_store %arg33[%c0_120, %c128_121], %164 {strides = array<i32>} : memref<8x1152xbf16, #tpu.memory_space<vmem>>, vector<8x128xbf16>,
    %166 = vector.extract_strided_slice %161 {offsets = [16, 0], sizes = [8, 128], strides = [1, 1]} : vector<72x128xbf16> to vector<8x128xbf16>
    %c0_122 = arith.constant 0 : index
    %c256_123 = arith.constant 256 : index
    %167 = vector.load %arg33[%c0_122, %c256_123] : memref<8x1152xbf16, #tpu.memory_space<vmem>>, vector<8x128xbf16>
    tpu.vector_store %arg33[%c0_122, %c256_123], %166 {strides = array<i32>} : memref<8x1152xbf16, #tpu.memory_space<vmem>>, vector<8x128xbf16>,
    %168 = vector.extract_strided_slice %161 {offsets = [24, 0], sizes = [8, 128], strides = [1, 1]} : vector<72x128xbf16> to vector<8x128xbf16>
    %c0_124 = arith.constant 0 : index
    %c384_125 = arith.constant 384 : index
    %169 = vector.load %arg33[%c0_124, %c384_125] : memref<8x1152xbf16, #tpu.memory_space<vmem>>, vector<8x128xbf16>
    tpu.vector_store %arg33[%c0_124, %c384_125], %168 {strides = array<i32>} : memref<8x1152xbf16, #tpu.memory_space<vmem>>, vector<8x128xbf16>,
    %170 = vector.extract_strided_slice %161 {offsets = [32, 0], sizes = [8, 128], strides = [1, 1]} : vector<72x128xbf16> to vector<8x128xbf16>
    %c0_126 = arith.constant 0 : index
    %c512_127 = arith.constant 512 : index
    %171 = vector.load %arg33[%c0_126, %c512_127] : memref<8x1152xbf16, #tpu.memory_space<vmem>>, vector<8x128xbf16>
    tpu.vector_store %arg33[%c0_126, %c512_127], %170 {strides = array<i32>} : memref<8x1152xbf16, #tpu.memory_space<vmem>>, vector<8x128xbf16>,
    %172 = vector.extract_strided_slice %161 {offsets = [40, 0], sizes = [8, 128], strides = [1, 1]} : vector<72x128xbf16> to vector<8x128xbf16>
    %c0_128 = arith.constant 0 : index
    %c640_129 = arith.constant 640 : index
    %173 = vector.load %arg33[%c0_128, %c640_129] : memref<8x1152xbf16, #tpu.memory_space<vmem>>, vector<8x128xbf16>
    tpu.vector_store %arg33[%c0_128, %c640_129], %172 {strides = array<i32>} : memref<8x1152xbf16, #tpu.memory_space<vmem>>, vector<8x128xbf16>,
    %174 = vector.extract_strided_slice %161 {offsets = [48, 0], sizes = [8, 128], strides = [1, 1]} : vector<72x128xbf16> to vector<8x128xbf16>
    %c0_130 = arith.constant 0 : index
    %c768_131 = arith.constant 768 : index
    %175 = vector.load %arg33[%c0_130, %c768_131] : memref<8x1152xbf16, #tpu.memory_space<vmem>>, vector<8x128xbf16>
    tpu.vector_store %arg33[%c0_130, %c768_131], %174 {strides = array<i32>} : memref<8x1152xbf16, #tpu.memory_space<vmem>>, vector<8x128xbf16>,
    %176 = vector.extract_strided_slice %161 {offsets = [56, 0], sizes = [8, 128], strides = [1, 1]} : vector<72x128xbf16> to vector<8x128xbf16>
    %c0_132 = arith.constant 0 : index
    %c896_133 = arith.constant 896 : index
    %177 = vector.load %arg33[%c0_132, %c896_133] : memref<8x1152xbf16, #tpu.memory_space<vmem>>, vector<8x128xbf16>
    tpu.vector_store %arg33[%c0_132, %c896_133], %176 {strides = array<i32>} : memref<8x1152xbf16, #tpu.memory_space<vmem>>, vector<8x128xbf16>,
    %178 = vector.extract_strided_slice %161 {offsets = [64, 0], sizes = [8, 128], strides = [1, 1]} : vector<72x128xbf16> to vector<8x128xbf16>
    %c0_134 = arith.constant 0 : index
    %c1024 = arith.constant 1024 : index
    %179 = vector.load %arg33[%c0_134, %c1024] : memref<8x1152xbf16, #tpu.memory_space<vmem>>, vector<8x128xbf16>
    tpu.vector_store %arg33[%c0_134, %c1024], %178 {strides = array<i32>} : memref<8x1152xbf16, #tpu.memory_space<vmem>>, vector<8x128xbf16>,
    %c0_135 = arith.constant 0 : index
    %c0_136 = arith.constant 0 : index
    %180 = vector.load %arg33[%c0_135, %c0_136] : memref<8x1152xbf16, #tpu.memory_space<vmem>>, vector<8x1152xbf16>
    %c1_i32_137 = arith.constant 1 : i32
    %181 = tpu.memref_slice %arg42[%c1_i32_137] : memref<4x!tpu.dma_semaphore, #tpu.memory_space<semaphore_mem>> -> memref<1x!tpu.dma_semaphore, #tpu.memory_space<semaphore_mem>>
    %182 = tpu.memref_squeeze %181 : memref<1x!tpu.dma_semaphore, #tpu.memory_space<semaphore_mem>> -> memref<!tpu.dma_semaphore, #tpu.memory_space<semaphore_mem>>
    tpu.wait_dma2 semaphore(%182 : memref<!tpu.dma_semaphore, #tpu.memory_space<semaphore_mem>>) src(%arg19 : memref<1152x256xbf16, #tpu.memory_space<any>>) dst(%arg39 : memref<1152x256xbf16, #tpu.memory_space<vmem>>)
    %c0_138 = arith.constant 0 : index
    %c0_139 = arith.constant 0 : index
    %183 = vector.load %arg39[%c0_138, %c0_139] : memref<1152x256xbf16, #tpu.memory_space<vmem>>, vector<1152x256xbf16>
    %cst_140 = arith.constant dense<0.000000e+00> : vector<8x256xf32>
    %184 = tpu.matmul %180, %183, %cst_140 {dimension_numbers = #tpu.dot_dimension_numbers<[1], [0], [0], [1], [0, 0, 1, 1], [], []>} : vector<8x1152xbf16>, vector<1152x256xbf16>, vector<8x256xf32> -> vector<8x256xf32>
    %c0_141 = arith.constant 0 : index
    %c0_142 = arith.constant 0 : index
    %185 = vector.load %arg20[%c0_141, %c0_142] : memref<1x256xf32, #tpu.memory_space<vmem>>, vector<1x256xf32>
    %186 = vector.broadcast %185 : vector<1x256xf32> to vector<8x256xf32>
    %187 = arith.addf %184, %186 : vector<8x256xf32>
    %cst_143 = arith.constant 0.000000e+00 : f32
    %188 = vector.broadcast %cst_143 : f32 to vector<8x256xf32>
    %189 = arith.maximumf %187, %188 : vector<8x256xf32>
    %190 = arith.truncf %189 : vector<8x256xf32> to vector<8x256xbf16>
    %191 = vector.extract_strided_slice %190 {offsets = [0, 0], sizes = [8, 64], strides = [1, 1]} : vector<8x256xbf16> to vector<8x64xbf16>
    %c0_144 = arith.constant 0 : index
    %c0_145 = arith.constant 0 : index
    %192 = vector.load %arg34[%c0_144, %c0_145] : memref<32x64xbf16, #tpu.memory_space<vmem>>, vector<8x64xbf16>
    tpu.vector_store %arg34[%c0_144, %c0_145], %191 {strides = array<i32>} : memref<32x64xbf16, #tpu.memory_space<vmem>>, vector<8x64xbf16>,
    %193 = vector.extract_strided_slice %190 {offsets = [0, 64], sizes = [8, 64], strides = [1, 1]} : vector<8x256xbf16> to vector<8x64xbf16>
    %c8 = arith.constant 8 : index
    %c0_146 = arith.constant 0 : index
    %194 = vector.load %arg34[%c8, %c0_146] : memref<32x64xbf16, #tpu.memory_space<vmem>>, vector<8x64xbf16>
    tpu.vector_store %arg34[%c8, %c0_146], %193 {strides = array<i32>} : memref<32x64xbf16, #tpu.memory_space<vmem>>, vector<8x64xbf16>,
    %195 = vector.extract_strided_slice %190 {offsets = [0, 128], sizes = [8, 64], strides = [1, 1]} : vector<8x256xbf16> to vector<8x64xbf16>
    %c16 = arith.constant 16 : index
    %c0_147 = arith.constant 0 : index
    %196 = vector.load %arg34[%c16, %c0_147] : memref<32x64xbf16, #tpu.memory_space<vmem>>, vector<8x64xbf16>
    tpu.vector_store %arg34[%c16, %c0_147], %195 {strides = array<i32>} : memref<32x64xbf16, #tpu.memory_space<vmem>>, vector<8x64xbf16>,
    %197 = vector.extract_strided_slice %190 {offsets = [0, 192], sizes = [8, 64], strides = [1, 1]} : vector<8x256xbf16> to vector<8x64xbf16>
    %c24 = arith.constant 24 : index
    %c0_148 = arith.constant 0 : index
    %198 = vector.load %arg34[%c24, %c0_148] : memref<32x64xbf16, #tpu.memory_space<vmem>>, vector<8x64xbf16>
    tpu.vector_store %arg34[%c24, %c0_148], %197 {strides = array<i32>} : memref<32x64xbf16, #tpu.memory_space<vmem>>, vector<8x64xbf16>,
    %c0_149 = arith.constant 0 : index
    %c0_150 = arith.constant 0 : index
    %199 = vector.load %arg34[%c0_149, %c0_150] : memref<32x64xbf16, #tpu.memory_space<vmem>>, vector<32x64xbf16>
    %c0_151 = arith.constant 0 : index
    %c0_152 = arith.constant 0 : index
    %200 = vector.load %arg21[%c0_151, %c0_152] : memref<288x32xbf16, #tpu.memory_space<vmem>>, vector<288x32xbf16>
    %cst_153 = arith.constant dense<0.000000e+00> : vector<288x64xf32>
    %201 = tpu.matmul %200, %199, %cst_153 {dimension_numbers = #tpu.dot_dimension_numbers<[1], [0], [0], [1], [0, 0, 1, 1], [], []>} : vector<288x32xbf16>, vector<32x64xbf16>, vector<288x64xf32> -> vector<288x64xf32>
    %202 = arith.truncf %201 : vector<288x64xf32> to vector<288x64xbf16>
    %203 = vector.extract_strided_slice %202 {offsets = [0, 0], sizes = [32, 64], strides = [1, 1]} : vector<288x64xbf16> to vector<32x64xbf16>
    %c0_154 = arith.constant 0 : index
    %c0_155 = arith.constant 0 : index
    %204 = vector.load %arg35[%c0_154, %c0_155] : memref<32x576xbf16, #tpu.memory_space<vmem>>, vector<32x64xbf16>
    tpu.vector_store %arg35[%c0_154, %c0_155], %203 {strides = array<i32>} : memref<32x576xbf16, #tpu.memory_space<vmem>>, vector<32x64xbf16>,
    %205 = vector.extract_strided_slice %202 {offsets = [32, 0], sizes = [32, 64], strides = [1, 1]} : vector<288x64xbf16> to vector<32x64xbf16>
    %c0_156 = arith.constant 0 : index
    %c64_157 = arith.constant 64 : index
    %206 = vector.load %arg35[%c0_156, %c64_157] : memref<32x576xbf16, #tpu.memory_space<vmem>>, vector<32x64xbf16>
    tpu.vector_store %arg35[%c0_156, %c64_157], %205 {strides = array<i32>} : memref<32x576xbf16, #tpu.memory_space<vmem>>, vector<32x64xbf16>,
    %207 = vector.extract_strided_slice %202 {offsets = [64, 0], sizes = [32, 64], strides = [1, 1]} : vector<288x64xbf16> to vector<32x64xbf16>
    %c0_158 = arith.constant 0 : index
    %c128_159 = arith.constant 128 : index
    %208 = vector.load %arg35[%c0_158, %c128_159] : memref<32x576xbf16, #tpu.memory_space<vmem>>, vector<32x64xbf16>
    tpu.vector_store %arg35[%c0_158, %c128_159], %207 {strides = array<i32>} : memref<32x576xbf16, #tpu.memory_space<vmem>>, vector<32x64xbf16>,
    %209 = vector.extract_strided_slice %202 {offsets = [96, 0], sizes = [32, 64], strides = [1, 1]} : vector<288x64xbf16> to vector<32x64xbf16>
    %c0_160 = arith.constant 0 : index
    %c192_161 = arith.constant 192 : index
    %210 = vector.load %arg35[%c0_160, %c192_161] : memref<32x576xbf16, #tpu.memory_space<vmem>>, vector<32x64xbf16>
    tpu.vector_store %arg35[%c0_160, %c192_161], %209 {strides = array<i32>} : memref<32x576xbf16, #tpu.memory_space<vmem>>, vector<32x64xbf16>,
    %211 = vector.extract_strided_slice %202 {offsets = [128, 0], sizes = [32, 64], strides = [1, 1]} : vector<288x64xbf16> to vector<32x64xbf16>
    %c0_162 = arith.constant 0 : index
    %c256_163 = arith.constant 256 : index
    %212 = vector.load %arg35[%c0_162, %c256_163] : memref<32x576xbf16, #tpu.memory_space<vmem>>, vector<32x64xbf16>
    tpu.vector_store %arg35[%c0_162, %c256_163], %211 {strides = array<i32>} : memref<32x576xbf16, #tpu.memory_space<vmem>>, vector<32x64xbf16>,
    %213 = vector.extract_strided_slice %202 {offsets = [160, 0], sizes = [32, 64], strides = [1, 1]} : vector<288x64xbf16> to vector<32x64xbf16>
    %c0_164 = arith.constant 0 : index
    %c320_165 = arith.constant 320 : index
    %214 = vector.load %arg35[%c0_164, %c320_165] : memref<32x576xbf16, #tpu.memory_space<vmem>>, vector<32x64xbf16>
    tpu.vector_store %arg35[%c0_164, %c320_165], %213 {strides = array<i32>} : memref<32x576xbf16, #tpu.memory_space<vmem>>, vector<32x64xbf16>,
    %215 = vector.extract_strided_slice %202 {offsets = [192, 0], sizes = [32, 64], strides = [1, 1]} : vector<288x64xbf16> to vector<32x64xbf16>
    %c0_166 = arith.constant 0 : index
    %c384_167 = arith.constant 384 : index
    %216 = vector.load %arg35[%c0_166, %c384_167] : memref<32x576xbf16, #tpu.memory_space<vmem>>, vector<32x64xbf16>
    tpu.vector_store %arg35[%c0_166, %c384_167], %215 {strides = array<i32>} : memref<32x576xbf16, #tpu.memory_space<vmem>>, vector<32x64xbf16>,
    %217 = vector.extract_strided_slice %202 {offsets = [224, 0], sizes = [32, 64], strides = [1, 1]} : vector<288x64xbf16> to vector<32x64xbf16>
    %c0_168 = arith.constant 0 : index
    %c448_169 = arith.constant 448 : index
    %218 = vector.load %arg35[%c0_168, %c448_169] : memref<32x576xbf16, #tpu.memory_space<vmem>>, vector<32x64xbf16>
    tpu.vector_store %arg35[%c0_168, %c448_169], %217 {strides = array<i32>} : memref<32x576xbf16, #tpu.memory_space<vmem>>, vector<32x64xbf16>,
    %219 = vector.extract_strided_slice %202 {offsets = [256, 0], sizes = [32, 64], strides = [1, 1]} : vector<288x64xbf16> to vector<32x64xbf16>
    %c0_170 = arith.constant 0 : index
    %c512_171 = arith.constant 512 : index
    %220 = vector.load %arg35[%c0_170, %c512_171] : memref<32x576xbf16, #tpu.memory_space<vmem>>, vector<32x64xbf16>
    tpu.vector_store %arg35[%c0_170, %c512_171], %219 {strides = array<i32>} : memref<32x576xbf16, #tpu.memory_space<vmem>>, vector<32x64xbf16>,
    %c0_172 = arith.constant 0 : index
    %c0_173 = arith.constant 0 : index
    %221 = vector.load %arg35[%c0_172, %c0_173] : memref<32x576xbf16, #tpu.memory_space<vmem>>, vector<32x576xbf16>
    %c2_i32_174 = arith.constant 2 : i32
    %222 = tpu.memref_slice %arg42[%c2_i32_174] : memref<4x!tpu.dma_semaphore, #tpu.memory_space<semaphore_mem>> -> memref<1x!tpu.dma_semaphore, #tpu.memory_space<semaphore_mem>>
    %223 = tpu.memref_squeeze %222 : memref<1x!tpu.dma_semaphore, #tpu.memory_space<semaphore_mem>> -> memref<!tpu.dma_semaphore, #tpu.memory_space<semaphore_mem>>
    tpu.wait_dma2 semaphore(%223 : memref<!tpu.dma_semaphore, #tpu.memory_space<semaphore_mem>>) src(%arg22 : memref<576x128xbf16, #tpu.memory_space<any>>) dst(%arg40 : memref<576x128xbf16, #tpu.memory_space<vmem>>)
    %c0_175 = arith.constant 0 : index
    %c0_176 = arith.constant 0 : index
    %224 = vector.load %arg40[%c0_175, %c0_176] : memref<576x128xbf16, #tpu.memory_space<vmem>>, vector<576x128xbf16>
    %cst_177 = arith.constant dense<0.000000e+00> : vector<32x128xf32>
    %225 = tpu.matmul %221, %224, %cst_177 {dimension_numbers = #tpu.dot_dimension_numbers<[1], [0], [0], [1], [0, 0, 1, 1], [], []>} : vector<32x576xbf16>, vector<576x128xbf16>, vector<32x128xf32> -> vector<32x128xf32>
    %c0_178 = arith.constant 0 : index
    %c0_179 = arith.constant 0 : index
    %226 = vector.load %arg23[%c0_178, %c0_179] : memref<1x128xf32, #tpu.memory_space<vmem>>, vector<1x128xf32>
    %227 = vector.broadcast %226 : vector<1x128xf32> to vector<32x128xf32>
    %228 = arith.addf %225, %227 : vector<32x128xf32>
    %cst_180 = arith.constant 0.000000e+00 : f32
    %229 = vector.broadcast %cst_180 : f32 to vector<32x128xf32>
    %230 = arith.maximumf %228, %229 : vector<32x128xf32>
    %231 = arith.truncf %230 : vector<32x128xf32> to vector<32x128xbf16>
    %232 = vector.extract_strided_slice %231 {offsets = [0, 0], sizes = [32, 32], strides = [1, 1]} : vector<32x128xbf16> to vector<32x32xbf16>
    %c0_181 = arith.constant 0 : index
    %c0_182 = arith.constant 0 : index
    %233 = vector.load %arg36[%c0_181, %c0_182] : memref<128x32xbf16, #tpu.memory_space<vmem>>, vector<32x32xbf16>
    tpu.vector_store %arg36[%c0_181, %c0_182], %232 {strides = array<i32>} : memref<128x32xbf16, #tpu.memory_space<vmem>>, vector<32x32xbf16>,
    %234 = vector.extract_strided_slice %231 {offsets = [0, 32], sizes = [32, 32], strides = [1, 1]} : vector<32x128xbf16> to vector<32x32xbf16>
    %c32_183 = arith.constant 32 : index
    %c0_184 = arith.constant 0 : index
    %235 = vector.load %arg36[%c32_183, %c0_184] : memref<128x32xbf16, #tpu.memory_space<vmem>>, vector<32x32xbf16>
    tpu.vector_store %arg36[%c32_183, %c0_184], %234 {strides = array<i32>} : memref<128x32xbf16, #tpu.memory_space<vmem>>, vector<32x32xbf16>,
    %236 = vector.extract_strided_slice %231 {offsets = [0, 64], sizes = [32, 32], strides = [1, 1]} : vector<32x128xbf16> to vector<32x32xbf16>
    %c64_185 = arith.constant 64 : index
    %c0_186 = arith.constant 0 : index
    %237 = vector.load %arg36[%c64_185, %c0_186] : memref<128x32xbf16, #tpu.memory_space<vmem>>, vector<32x32xbf16>
    tpu.vector_store %arg36[%c64_185, %c0_186], %236 {strides = array<i32>} : memref<128x32xbf16, #tpu.memory_space<vmem>>, vector<32x32xbf16>,
    %238 = vector.extract_strided_slice %231 {offsets = [0, 96], sizes = [32, 32], strides = [1, 1]} : vector<32x128xbf16> to vector<32x32xbf16>
    %c96_187 = arith.constant 96 : index
    %c0_188 = arith.constant 0 : index
    %239 = vector.load %arg36[%c96_187, %c0_188] : memref<128x32xbf16, #tpu.memory_space<vmem>>, vector<32x32xbf16>
    tpu.vector_store %arg36[%c96_187, %c0_188], %238 {strides = array<i32>} : memref<128x32xbf16, #tpu.memory_space<vmem>>, vector<32x32xbf16>,
    %c0_189 = arith.constant 0 : index
    %c0_190 = arith.constant 0 : index
    %240 = vector.load %arg36[%c0_189, %c0_190] : memref<128x32xbf16, #tpu.memory_space<vmem>>, vector<128x32xbf16>
    %c3_i32_191 = arith.constant 3 : i32
    %241 = tpu.memref_slice %arg42[%c3_i32_191] : memref<4x!tpu.dma_semaphore, #tpu.memory_space<semaphore_mem>> -> memref<1x!tpu.dma_semaphore, #tpu.memory_space<semaphore_mem>>
    %242 = tpu.memref_squeeze %241 : memref<1x!tpu.dma_semaphore, #tpu.memory_space<semaphore_mem>> -> memref<!tpu.dma_semaphore, #tpu.memory_space<semaphore_mem>>
    tpu.wait_dma2 semaphore(%242 : memref<!tpu.dma_semaphore, #tpu.memory_space<semaphore_mem>>) src(%arg24 : memref<1152x128xbf16, #tpu.memory_space<any>>) dst(%arg41 : memref<1152x128xbf16, #tpu.memory_space<vmem>>)
    %c0_192 = arith.constant 0 : index
    %c0_193 = arith.constant 0 : index
    %243 = vector.load %arg41[%c0_192, %c0_193] : memref<1152x128xbf16, #tpu.memory_space<vmem>>, vector<1152x128xbf16>
    %cst_194 = arith.constant dense<0.000000e+00> : vector<1152x32xf32>
    %244 = tpu.matmul %243, %240, %cst_194 {dimension_numbers = #tpu.dot_dimension_numbers<[1], [0], [0], [1], [0, 0, 1, 1], [], []>} : vector<1152x128xbf16>, vector<128x32xbf16>, vector<1152x32xf32> -> vector<1152x32xf32>
    %245 = arith.truncf %244 : vector<1152x32xf32> to vector<1152x32xbf16>
    %246 = vector.extract_strided_slice %245 {offsets = [0, 0], sizes = [128, 32], strides = [1, 1]} : vector<1152x32xbf16> to vector<128x32xbf16>
    %c0_195 = arith.constant 0 : index
    %c0_196 = arith.constant 0 : index
    %247 = vector.load %arg37[%c0_195, %c0_196] : memref<128x288xbf16, #tpu.memory_space<vmem>>, vector<128x32xbf16>
    tpu.vector_store %arg37[%c0_195, %c0_196], %246 {strides = array<i32>} : memref<128x288xbf16, #tpu.memory_space<vmem>>, vector<128x32xbf16>,
    %248 = vector.extract_strided_slice %245 {offsets = [128, 0], sizes = [128, 32], strides = [1, 1]} : vector<1152x32xbf16> to vector<128x32xbf16>
    %c0_197 = arith.constant 0 : index
    %c32_198 = arith.constant 32 : index
    %249 = vector.load %arg37[%c0_197, %c32_198] : memref<128x288xbf16, #tpu.memory_space<vmem>>, vector<128x32xbf16>
    tpu.vector_store %arg37[%c0_197, %c32_198], %248 {strides = array<i32>} : memref<128x288xbf16, #tpu.memory_space<vmem>>, vector<128x32xbf16>,
    %250 = vector.extract_strided_slice %245 {offsets = [256, 0], sizes = [128, 32], strides = [1, 1]} : vector<1152x32xbf16> to vector<128x32xbf16>
    %c0_199 = arith.constant 0 : index
    %c64_200 = arith.constant 64 : index
    %251 = vector.load %arg37[%c0_199, %c64_200] : memref<128x288xbf16, #tpu.memory_space<vmem>>, vector<128x32xbf16>
    tpu.vector_store %arg37[%c0_199, %c64_200], %250 {strides = array<i32>} : memref<128x288xbf16, #tpu.memory_space<vmem>>, vector<128x32xbf16>,
    %252 = vector.extract_strided_slice %245 {offsets = [384, 0], sizes = [128, 32], strides = [1, 1]} : vector<1152x32xbf16> to vector<128x32xbf16>
    %c0_201 = arith.constant 0 : index
    %c96_202 = arith.constant 96 : index
    %253 = vector.load %arg37[%c0_201, %c96_202] : memref<128x288xbf16, #tpu.memory_space<vmem>>, vector<128x32xbf16>
    tpu.vector_store %arg37[%c0_201, %c96_202], %252 {strides = array<i32>} : memref<128x288xbf16, #tpu.memory_space<vmem>>, vector<128x32xbf16>,
    %254 = vector.extract_strided_slice %245 {offsets = [512, 0], sizes = [128, 32], strides = [1, 1]} : vector<1152x32xbf16> to vector<128x32xbf16>
    %c0_203 = arith.constant 0 : index
    %c128_204 = arith.constant 128 : index
    %255 = vector.load %arg37[%c0_203, %c128_204] : memref<128x288xbf16, #tpu.memory_space<vmem>>, vector<128x32xbf16>
    tpu.vector_store %arg37[%c0_203, %c128_204], %254 {strides = array<i32>} : memref<128x288xbf16, #tpu.memory_space<vmem>>, vector<128x32xbf16>,
    %256 = vector.extract_strided_slice %245 {offsets = [640, 0], sizes = [128, 32], strides = [1, 1]} : vector<1152x32xbf16> to vector<128x32xbf16>
    %c0_205 = arith.constant 0 : index
    %c160_206 = arith.constant 160 : index
    %257 = vector.load %arg37[%c0_205, %c160_206] : memref<128x288xbf16, #tpu.memory_space<vmem>>, vector<128x32xbf16>
    tpu.vector_store %arg37[%c0_205, %c160_206], %256 {strides = array<i32>} : memref<128x288xbf16, #tpu.memory_space<vmem>>, vector<128x32xbf16>,
    %258 = vector.extract_strided_slice %245 {offsets = [768, 0], sizes = [128, 32], strides = [1, 1]} : vector<1152x32xbf16> to vector<128x32xbf16>
    %c0_207 = arith.constant 0 : index
    %c192_208 = arith.constant 192 : index
    %259 = vector.load %arg37[%c0_207, %c192_208] : memref<128x288xbf16, #tpu.memory_space<vmem>>, vector<128x32xbf16>
    tpu.vector_store %arg37[%c0_207, %c192_208], %258 {strides = array<i32>} : memref<128x288xbf16, #tpu.memory_space<vmem>>, vector<128x32xbf16>,
    %260 = vector.extract_strided_slice %245 {offsets = [896, 0], sizes = [128, 32], strides = [1, 1]} : vector<1152x32xbf16> to vector<128x32xbf16>
    %c0_209 = arith.constant 0 : index
    %c224_210 = arith.constant 224 : index
    %261 = vector.load %arg37[%c0_209, %c224_210] : memref<128x288xbf16, #tpu.memory_space<vmem>>, vector<128x32xbf16>
    tpu.vector_store %arg37[%c0_209, %c224_210], %260 {strides = array<i32>} : memref<128x288xbf16, #tpu.memory_space<vmem>>, vector<128x32xbf16>,
    %262 = vector.extract_strided_slice %245 {offsets = [1024, 0], sizes = [128, 32], strides = [1, 1]} : vector<1152x32xbf16> to vector<128x32xbf16>
    %c0_211 = arith.constant 0 : index
    %c256_212 = arith.constant 256 : index
    %263 = vector.load %arg37[%c0_211, %c256_212] : memref<128x288xbf16, #tpu.memory_space<vmem>>, vector<128x32xbf16>
    tpu.vector_store %arg37[%c0_211, %c256_212], %262 {strides = array<i32>} : memref<128x288xbf16, #tpu.memory_space<vmem>>, vector<128x32xbf16>,
    %c0_213 = arith.constant 0 : index
    %c0_214 = arith.constant 0 : index
    %264 = vector.load %arg37[%c0_213, %c0_214] : memref<128x288xbf16, #tpu.memory_space<vmem>>, vector<128x288xbf16>
    %c0_215 = arith.constant 0 : index
    %c0_216 = arith.constant 0 : index
    %265 = vector.load %arg25[%c0_215, %c0_216] : memref<288x32xbf16, #tpu.memory_space<vmem>>, vector<288x32xbf16>
    %cst_217 = arith.constant dense<0.000000e+00> : vector<128x32xf32>
    %266 = tpu.matmul %264, %265, %cst_217 {dimension_numbers = #tpu.dot_dimension_numbers<[1], [0], [0], [1], [0, 0, 1, 1], [], []>} : vector<128x288xbf16>, vector<288x32xbf16>, vector<128x32xf32> -> vector<128x32xf32>
    %c0_218 = arith.constant 0 : index
    %c0_219 = arith.constant 0 : index
    %267 = vector.load %arg26[%c0_218, %c0_219] : memref<1x32xf32, #tpu.memory_space<vmem>>, vector<1x32xf32>
    %268 = vector.broadcast %267 : vector<1x32xf32> to vector<128x32xf32>
    %269 = arith.addf %266, %268 : vector<128x32xf32>
    %270 = arith.negf %269 : vector<128x32xf32>
    %271 = math.exp %270 : vector<128x32xf32>
    %cst_220 = arith.constant 1.000000e+00 : f32
    %272 = vector.broadcast %cst_220 : f32 to vector<128x32xf32>
    %273 = arith.addf %272, %271 : vector<128x32xf32>
    %274 = arith.divf %272, %273 : vector<128x32xf32>
    %c0_221 = arith.constant 0 : index
    %c0_222 = arith.constant 0 : index
    %275 = vector.load %arg28[%c0_221, %c0_222] : memref<128x32xf32, #tpu.memory_space<vmem>>, vector<128x32xf32>
    tpu.vector_store %arg28[%c0_221, %c0_222], %274 {strides = array<i32>} : memref<128x32xf32, #tpu.memory_space<vmem>>, vector<128x32xf32>,
    return
  }
}

</mosaic_0001>

<llo_original>
// kernel: fwd.1
$region0: #{fwd.1}
  #allocation0 [shape = 'u32[]', space=smem, size = 0x4, offset = 0x4, fixed_abs, tag = 'smem constant byte address 0x4 - core index']
  #allocation1 [shape = 'u32[144,128]{1,0:T(1,128)}', space=vmem, size = 0x12000, scoped, tag = 'internal scratch']
  #allocation2 [shape = 'bf16[32,512]{1,0:T(16,128)(2,1)}', space=vmem, size = 0x8000, scoped, tag = 'scratch operand']
  #allocation3 [shape = 'bf16[8,1024]{1,0:T(8,128)(2,1)}', space=vmem, size = 0x4000, scoped, tag = 'scratch operand']
  #allocation4 [shape = 'bf16[2,512]{1,0:T(2,128)(2,1)}', space=vmem, size = 0x800, scoped, tag = 'scratch operand']
  #allocation5 [shape = 'bf16[8,128]{1,0:T(8,128)(2,1)}', space=vmem, size = 0x800, scoped, tag = 'scratch operand']
  #allocation6 [shape = 'bf16[8,1152]{1,0:T(8,128)(2,1)}', space=vmem, size = 0x4800, scoped, tag = 'scratch operand']
  #allocation7 [shape = 'bf16[32,64]{1,0:T(16,128)(2,1)}', space=vmem, size = 0x2000, scoped, tag = 'scratch operand']
  #allocation8 [shape = 'bf16[32,576]{1,0:T(16,128)(2,1)}', space=vmem, size = 0xa000, scoped, tag = 'scratch operand']
  #allocation9 [shape = 'bf16[128,32]{1,0:T(16,128)(2,1)}', space=vmem, size = 0x8000, scoped, tag = 'scratch operand']
  #allocation10 [shape = 'bf16[128,288]{1,0:T(16,128)(2,1)}', space=vmem, size = 0x18000, scoped, tag = 'scratch operand']
  #allocation11 [shape = 'bf16[256,512]{1,0:T(16,128)(2,1)}', space=vmem, size = 0x40000, scoped, tag = 'scratch operand']
  #allocation12 [shape = 'bf16[1152,256]{1,0:T(16,128)(2,1)}', space=vmem, size = 0x90000, scoped, tag = 'scratch operand']
  #allocation13 [shape = 'bf16[576,128]{1,0:T(16,128)(2,1)}', space=vmem, size = 0x24000, scoped, tag = 'scratch operand']
  #allocation14 [shape = 'bf16[1152,128]{1,0:T(16,128)(2,1)}', space=vmem, size = 0x48000, scoped, tag = 'scratch operand']
  #allocation15 [shape = 's32[4]{0}', space=sflag, size = 0x10, scoped, tag = 'scratch operand']
  #allocation34 [shape = 's32[]', space=sflag, size = 0x4, offset = 0, fixed_abs, tag = 'sflag constant byte address 0x0 - dummy sync flag']
  #allocation35 [shape = 's32[]', space=sflag, size = 0x4, offset = 0, fixed_abs, tag = 'sflag constant byte address 0x0 - dummy sync flag']
  #allocation36 [shape = 's32[]', space=sflag, size = 0x4, offset = 0, fixed_abs, tag = 'sflag constant byte address 0x0 - dummy sync flag']
  #allocation37 [shape = 's32[]', space=sflag, size = 0x4, offset = 0, fixed_abs, tag = 'sflag constant byte address 0x0 - dummy sync flag']
  %s0 = inlined_call_operand.vmem [shape: bf16[128,48], index: 0, kind: input, shape index: {}]
  %s1 = inlined_call_operand.vmem [shape: bf16[48,32], index: 1, kind: input, shape index: {}]
  %s2 = inlined_call_operand.hbm [shape: f32[1,32], index: 2, kind: input, shape index: {}]
  %s3 = inlined_call_operand.vmem [shape: bf16[512,128], index: 3, kind: input, shape index: {}]
  %s4 = inlined_call_operand.vmem [shape: bf16[512,64], index: 4, kind: input, shape index: {}]
  %s5 = inlined_call_operand.hbm [shape: f32[1,64], index: 5, kind: input, shape index: {}]
  %s6 = inlined_call_operand.vmem [shape: bf16[128,32], index: 6, kind: input, shape index: {}]
  %s7 = inlined_call_operand.vmem [shape: bf16[1024,128], index: 7, kind: input, shape index: {}]
  %s8 = inlined_call_operand.hbm [shape: f32[1,128], index: 8, kind: input, shape index: {}]
  %s9 = inlined_call_operand.vmem [shape: bf16[8,8], index: 9, kind: input, shape index: {}]
  %s10 = inlined_call_operand.vmem [shape: bf16[512,256], index: 10, kind: input, shape index: {}]
  %s11 = inlined_call_operand.vmem [shape: f32[1,256], index: 11, kind: input, shape index: {}]
  %s12 = inlined_call_operand.vmem [shape: bf16[256,8], index: 12, kind: input, shape index: {}]
  %s13 = inlined_call_operand.hbm [shape: f32[1,8], index: 13, kind: input, shape index: {}]
  %s14 = inlined_call_operand.hbm [shape: bf16[8,256], index: 14, kind: input, shape index: {}]
  %s15 = inlined_call_operand.hbm [shape: f32[1,256], index: 15, kind: input, shape index: {}]
  %s16 = inlined_call_operand.vmem [shape: bf16[256,512], index: 16, kind: input, shape index: {}]
  %s17 = inlined_call_operand.hbm [shape: f32[1,512], index: 17, kind: input, shape index: {}]
  %s18 = inlined_call_operand.vmem [shape: bf16[72,8], index: 18, kind: input, shape index: {}]
  %s19 = inlined_call_operand.vmem [shape: bf16[1152,256], index: 19, kind: input, shape index: {}]
  %s20 = inlined_call_operand.hbm [shape: f32[1,256], index: 20, kind: input, shape index: {}]
  %s21 = inlined_call_operand.vmem [shape: bf16[288,32], index: 21, kind: input, shape index: {}]
  %s22 = inlined_call_operand.vmem [shape: bf16[576,128], index: 22, kind: input, shape index: {}]
  %s23 = inlined_call_operand.hbm [shape: f32[1,128], index: 23, kind: input, shape index: {}]
  %s24 = inlined_call_operand.vmem [shape: bf16[1152,128], index: 24, kind: input, shape index: {}]
  %s25 = inlined_call_operand.vmem [shape: bf16[288,32], index: 25, kind: input, shape index: {}]
  %s26 = inlined_call_operand.hbm [shape: f32[1,32], index: 26, kind: input, shape index: {}]
  %s27 = inlined_call_operand.hbm [shape: f32[2,8], index: 27, kind: output, shape index: {0}]
  %s28 = inlined_call_operand.vmem [shape: f32[128,32], index: 28, kind: output, shape index: {1}]
  %29 = xla_tuple %s27, %s28
  %s30 = sld [smem:[#allocation0]]
  $region292: #{fwd.1} parent=0
    _
  %s32 = ssub.s32 1, %s30
  %s33 = scalar_select 0, %s32, %s30
  $region1: #{fwd.1} parent=0
    #allocation16 [shape = 'u8[512]{0}', space=vmem, size = 0x400, scoped, tag = 'input window, operand 2, single buffered']
    #allocation17 [shape = 's32[1]{0}', space=sflag, size = 0x4, scoped, tag = 'scoped memory for fwd.1']
    #allocation18 [shape = 's32[1]{0}', space=sflag, size = 0x4, scoped, tag = 'scoped memory for fwd.1']
    #allocation19 [shape = 'u8[512]{0}', space=vmem, size = 0x400, scoped, tag = 'input window, operand 5, single buffered']
    #allocation20 [shape = 's32[1]{0}', space=sflag, size = 0x4, scoped, tag = 'scoped memory for fwd.1']
    #allocation21 [shape = 'u8[512]{0}', space=vmem, size = 0x400, scoped, tag = 'input window, operand 8, single buffered']
    #allocation22 [shape = 'u8[512]{0}', space=vmem, size = 0x400, scoped, tag = 'input window, operand 13, single buffered']
    #allocation23 [shape = 's32[1]{0}', space=sflag, size = 0x4, scoped, tag = 'scoped memory for fwd.1']
    #allocation24 [shape = 'u8[4096]{0}', space=vmem, size = 0x1000, scoped, tag = 'input window, operand 14, single buffered']
    #allocation25 [shape = 'u8[1024]{0}', space=vmem, size = 0x400, scoped, tag = 'input window, operand 15, single buffered']
    #allocation26 [shape = 's32[1]{0}', space=sflag, size = 0x4, scoped, tag = 'scoped memory for fwd.1']
    #allocation27 [shape = 'u8[2048]{0}', space=vmem, size = 0x800, scoped, tag = 'input window, operand 17, single buffered']
    #allocation28 [shape = 'u8[1024]{0}', space=vmem, size = 0x400, scoped, tag = 'input window, operand 20, single buffered']
    #allocation29 [shape = 's32[1]{0}', space=sflag, size = 0x4, scoped, tag = 'scoped memory for fwd.1']
    #allocation30 [shape = 'u8[512]{0}', space=vmem, size = 0x400, scoped, tag = 'input window, operand 23, single buffered']
    #allocation31 [shape = 'u8[512]{0}', space=vmem, size = 0x400, scoped, tag = 'input window, operand 26, single buffered']
    #allocation32 [shape = 's32[1]{0}', space=sflag, size = 0x4, scoped, tag = 'scoped memory for fwd.1']
    #allocation33 [shape = 'u8[1024]{0}', space=vmem, size = 0x400, scoped, tag = 'output window, operand 0, single buffered']
    %34 = vsyncpa [#allocation17], 0
    %35 = vsyncpa [#allocation20], 0
    %36 = vsyncpa [#allocation23], 0
    %37 = vsyncpa [#allocation26], 0
    %38 = vsyncpa [#allocation29], 0
    %39 = vsyncpa [#allocation32], 0
    %40 = vsyncpa [#allocation18], 0
    // Predicated region
    $region2: #{fwd.1} parent=1 // pred_check
      _
    $region3: #{fwd.1} parent=1 // pred_check_branch
      %42 = sbr.rel (0) target = $region5
    $region4: #{fwd.1} parent=1 // pred_region
      _
    $region5: #{fwd.1} parent=1 // pred_fallthru
      _
    // Predicated region
    $region6: #{fwd.1} parent=1 // pred_check
      _
    $region7: #{fwd.1} parent=1 // pred_check_branch
      %44 = sbr.rel (0) target = $region9
    $region8: #{fwd.1} parent=1 // pred_region
      _
    $region9: #{fwd.1} parent=1 // pred_fallthru
      _
    // Predicated region
    $region10: #{fwd.1} parent=1 // pred_check
      _
    $region11: #{fwd.1} parent=1 // pred_check_branch
      %46 = sbr.rel (0) target = $region13
    $region12: #{fwd.1} parent=1 // pred_region
      %s48 = ssub.s32 16, 16
      %49 = vsyncadd [#allocation17], %s48
      %s51 = sshll.u32 [#allocation16], 4
      %s52 = int_to_ptr.vmem [resolvable:$true] %s51
      %54 = dma.hbm_to_vmem [thread:$0]  %s2, 16, %s52, [#allocation17]
    $region13: #{fwd.1} parent=1 // pred_fallthru
      _
    // Predicated region
    $region14: #{fwd.1} parent=1 // pred_check
      _
    $region15: #{fwd.1} parent=1 // pred_check_branch
      %56 = sbr.rel (0) target = $region17
    $region16: #{fwd.1} parent=1 // pred_region
      _
    $region17: #{fwd.1} parent=1 // pred_fallthru
      _
    // Predicated region
    $region18: #{fwd.1} parent=1 // pred_check
      _
    $region19: #{fwd.1} parent=1 // pred_check_branch
      %58 = sbr.rel (0) target = $region21
    $region20: #{fwd.1} parent=1 // pred_region
      _
    $region21: #{fwd.1} parent=1 // pred_fallthru
      _
    // Predicated region
    $region22: #{fwd.1} parent=1 // pred_check
      _
    $region23: #{fwd.1} parent=1 // pred_check_branch
      %60 = sbr.rel (0) target = $region25
    $region24: #{fwd.1} parent=1 // pred_region
      %s62 = ssub.s32 16, 16
      %63 = vsyncadd [#allocation20], %s62
      %s65 = sshll.u32 [#allocation19], 4
      %s66 = int_to_ptr.vmem [resolvable:$true] %s65
      %68 = dma.hbm_to_vmem [thread:$0]  %s5, 16, %s66, [#allocation20]
    $region25: #{fwd.1} parent=1 // pred_fallthru
      _
    // Predicated region
    $region26: #{fwd.1} parent=1 // pred_check
      _
    $region27: #{fwd.1} parent=1 // pred_check_branch
      %70 = sbr.rel (0) target = $region29
    $region28: #{fwd.1} parent=1 // pred_region
      _
    $region29: #{fwd.1} parent=1 // pred_fallthru
      _
    // Predicated region
    $region30: #{fwd.1} parent=1 // pred_check
      _
    $region31: #{fwd.1} parent=1 // pred_check_branch
      %72 = sbr.rel (0) target = $region33
    $region32: #{fwd.1} parent=1 // pred_region
      _
    $region33: #{fwd.1} parent=1 // pred_fallthru
      _
    // Predicated region
    $region34: #{fwd.1} parent=1 // pred_check
      _
    $region35: #{fwd.1} parent=1 // pred_check_branch
      %74 = sbr.rel (0) target = $region37
    $region36: #{fwd.1} parent=1 // pred_region
      %s76 = ssub.s32 16, 16
      %77 = vsyncadd [#allocation20], %s76
      %s79 = sshll.u32 [#allocation21], 4
      %s80 = int_to_ptr.vmem [resolvable:$true] %s79
      %82 = dma.hbm_to_vmem [thread:$0]  %s8, 16, %s80, [#allocation20]
    $region37: #{fwd.1} parent=1 // pred_fallthru
      _
    // Predicated region
    $region38: #{fwd.1} parent=1 // pred_check
      _
    $region39: #{fwd.1} parent=1 // pred_check_branch
      %84 = sbr.rel (0) target = $region41
    $region40: #{fwd.1} parent=1 // pred_region
      _
    $region41: #{fwd.1} parent=1 // pred_fallthru
      _
    // Predicated region
    $region42: #{fwd.1} parent=1 // pred_check
      _
    $region43: #{fwd.1} parent=1 // pred_check_branch
      %86 = sbr.rel (0) target = $region45
    $region44: #{fwd.1} parent=1 // pred_region
      _
    $region45: #{fwd.1} parent=1 // pred_fallthru
      _
    // Predicated region
    $region46: #{fwd.1} parent=1 // pred_check
      _
    $region47: #{fwd.1} parent=1 // pred_check_branch
      %88 = sbr.rel (0) target = $region49
    $region48: #{fwd.1} parent=1 // pred_region
      _
    $region49: #{fwd.1} parent=1 // pred_fallthru
      _
    // Predicated region
    $region50: #{fwd.1} parent=1 // pred_check
      _
    $region51: #{fwd.1} parent=1 // pred_check_branch
      %90 = sbr.rel (0) target = $region53
    $region52: #{fwd.1} parent=1 // pred_region
      _
    $region53: #{fwd.1} parent=1 // pred_fallthru
      _
    // Predicated region
    $region54: #{fwd.1} parent=1 // pred_check
      _
    $region55: #{fwd.1} parent=1 // pred_check_branch
      %92 = sbr.rel (0) target = $region57
    $region56: #{fwd.1} parent=1 // pred_region
      %s94 = ssub.s32 16, 16
      %95 = vsyncadd [#allocation23], %s94
      %s97 = sshll.u32 [#allocation22], 4
      %s98 = int_to_ptr.vmem [resolvable:$true] %s97
      %100 = dma.hbm_to_vmem [thread:$0]  %s13, 16, %s98, [#allocation23]
    $region57: #{fwd.1} parent=1 // pred_fallthru
      _
    // Predicated region
    $region58: #{fwd.1} parent=1 // pred_check
      _
    $region59: #{fwd.1} parent=1 // pred_check_branch
      %102 = sbr.rel (0) target = $region61
    $region60: #{fwd.1} parent=1 // pred_region
      %s104 = ssub.s32 128, 128
      %105 = vsyncadd [#allocation23], %s104
      %s107 = sshll.u32 [#allocation24], 4
      %s108 = int_to_ptr.vmem [resolvable:$true] %s107
      %110 = dma.hbm_to_vmem [thread:$0]  %s14, 128, %s108, [#allocation23]
    $region61: #{fwd.1} parent=1 // pred_fallthru
      _
    // Predicated region
    $region62: #{fwd.1} parent=1 // pred_check
      _
    $region63: #{fwd.1} parent=1 // pred_check_branch
      %112 = sbr.rel (0) target = $region65
    $region64: #{fwd.1} parent=1 // pred_region
      %s114 = ssub.s32 32, 32
      %115 = vsyncadd [#allocation26], %s114
      %s117 = sshll.u32 [#allocation25], 4
      %s118 = int_to_ptr.vmem [resolvable:$true] %s117
      %120 = dma.hbm_to_vmem [thread:$0]  %s15, 32, %s118, [#allocation26]
    $region65: #{fwd.1} parent=1 // pred_fallthru
      _
    // Predicated region
    $region66: #{fwd.1} parent=1 // pred_check
      _
    $region67: #{fwd.1} parent=1 // pred_check_branch
      %122 = sbr.rel (0) target = $region69
    $region68: #{fwd.1} parent=1 // pred_region
      %s124 = ssub.s32 64, 64
      %125 = vsyncadd [#allocation26], %s124
      %s127 = sshll.u32 [#allocation27], 4
      %s128 = int_to_ptr.vmem [resolvable:$true] %s127
      %130 = dma.hbm_to_vmem [thread:$0]  %s17, 64, %s128, [#allocation26]
    $region69: #{fwd.1} parent=1 // pred_fallthru
      _
    // Predicated region
    $region70: #{fwd.1} parent=1 // pred_check
      _
    $region71: #{fwd.1} parent=1 // pred_check_branch
      %132 = sbr.rel (0) target = $region73
    $region72: #{fwd.1} parent=1 // pred_region
      _
    $region73: #{fwd.1} parent=1 // pred_fallthru
      _
    // Predicated region
    $region74: #{fwd.1} parent=1 // pred_check
      _
    $region75: #{fwd.1} parent=1 // pred_check_branch
      %134 = sbr.rel (0) target = $region77
    $region76: #{fwd.1} parent=1 // pred_region
      %s136 = ssub.s32 32, 32
      %137 = vsyncadd [#allocation29], %s136
      %s139 = sshll.u32 [#allocation28], 4
      %s140 = int_to_ptr.vmem [resolvable:$true] %s139
      %142 = dma.hbm_to_vmem [thread:$0]  %s20, 32, %s140, [#allocation29]
    $region77: #{fwd.1} parent=1 // pred_fallthru
      _
    // Predicated region
    $region78: #{fwd.1} parent=1 // pred_check
      _
    $region79: #{fwd.1} parent=1 // pred_check_branch
      %144 = sbr.rel (0) target = $region81
    $region80: #{fwd.1} parent=1 // pred_region
      _
    $region81: #{fwd.1} parent=1 // pred_fallthru
      _
    // Predicated region
    $region82: #{fwd.1} parent=1 // pred_check
      _
    $region83: #{fwd.1} parent=1 // pred_check_branch
      %146 = sbr.rel (0) target = $region85
    $region84: #{fwd.1} parent=1 // pred_region
      %s148 = ssub.s32 16, 16
      %149 = vsyncadd [#allocation29], %s148
      %s151 = sshll.u32 [#allocation30], 4
      %s152 = int_to_ptr.vmem [resolvable:$true] %s151
      %154 = dma.hbm_to_vmem [thread:$0]  %s23, 16, %s152, [#allocation29]
    $region85: #{fwd.1} parent=1 // pred_fallthru
      _
    // Predicated region
    $region86: #{fwd.1} parent=1 // pred_check
      _
    $region87: #{fwd.1} parent=1 // pred_check_branch
      %156 = sbr.rel (0) target = $region89
    $region88: #{fwd.1} parent=1 // pred_region
      _
    $region89: #{fwd.1} parent=1 // pred_fallthru
      _
    // Predicated region
    $region90: #{fwd.1} parent=1 // pred_check
      _
    $region91: #{fwd.1} parent=1 // pred_check_branch
      %158 = sbr.rel (0) target = $region93
    $region92: #{fwd.1} parent=1 // pred_region
      %s160 = ssub.s32 16, 16
      %161 = vsyncadd [#allocation32], %s160
      %s163 = sshll.u32 [#allocation31], 4
      %s164 = int_to_ptr.vmem [resolvable:$true] %s163
      %166 = dma.hbm_to_vmem [thread:$0]  %s26, 16, %s164, [#allocation32]
    $region93: #{fwd.1} parent=1 // pred_fallthru
      _
    // Predicated region
    $region94: #{fwd.1} parent=1 // pred_check
      _
    $region95: #{fwd.1} parent=1 // pred_check_branch
      %168 = sbr.rel (0) target = $region97
    $region96: #{fwd.1} parent=1 // pred_region
      %169 = dma.done [#allocation17], 16
    $region97: #{fwd.1} parent=1 // pred_fallthru
      _
    // Predicated region
    $region98: #{fwd.1} parent=1 // pred_check
      _
    $region99: #{fwd.1} parent=1 // pred_check_branch
      %171 = sbr.rel (0) target = $region101
    $region100: #{fwd.1} parent=1 // pred_region
      %172 = dma.done [#allocation20], 16
    $region101: #{fwd.1} parent=1 // pred_fallthru
      _
    // Predicated region
    $region102: #{fwd.1} parent=1 // pred_check
      _
    $region103: #{fwd.1} parent=1 // pred_check_branch
      %174 = sbr.rel (0) target = $region105
    $region104: #{fwd.1} parent=1 // pred_region
      %175 = dma.done [#allocation20], 16
    $region105: #{fwd.1} parent=1 // pred_fallthru
      _
    // Predicated region
    $region106: #{fwd.1} parent=1 // pred_check
      _
    $region107: #{fwd.1} parent=1 // pred_check_branch
      %177 = sbr.rel (0) target = $region109
    $region108: #{fwd.1} parent=1 // pred_region
      %178 = dma.done [#allocation23], 16
    $region109: #{fwd.1} parent=1 // pred_fallthru
      _
    // Predicated region
    $region110: #{fwd.1} parent=1 // pred_check
      _
    $region111: #{fwd.1} parent=1 // pred_check_branch
      %180 = sbr.rel (0) target = $region113
    $region112: #{fwd.1} parent=1 // pred_region
      %181 = dma.done [#allocation23], 128
    $region113: #{fwd.1} parent=1 // pred_fallthru
      _
    // Predicated region
    $region114: #{fwd.1} parent=1 // pred_check
      _
    $region115: #{fwd.1} parent=1 // pred_check_branch
      %183 = sbr.rel (0) target = $region117
    $region116: #{fwd.1} parent=1 // pred_region
      %184 = dma.done [#allocation26], 32
    $region117: #{fwd.1} parent=1 // pred_fallthru
      _
    // Predicated region
    $region118: #{fwd.1} parent=1 // pred_check
      _
    $region119: #{fwd.1} parent=1 // pred_check_branch
      %186 = sbr.rel (0) target = $region121
    $region120: #{fwd.1} parent=1 // pred_region
      %187 = dma.done [#allocation26], 64
    $region121: #{fwd.1} parent=1 // pred_fallthru
      _
    // Predicated region
    $region122: #{fwd.1} parent=1 // pred_check
      _
    $region123: #{fwd.1} parent=1 // pred_check_branch
      %189 = sbr.rel (0) target = $region125
    $region124: #{fwd.1} parent=1 // pred_region
      %190 = dma.done [#allocation29], 32
    $region125: #{fwd.1} parent=1 // pred_fallthru
      _
    // Predicated region
    $region126: #{fwd.1} parent=1 // pred_check
      _
    $region127: #{fwd.1} parent=1 // pred_check_branch
      %192 = sbr.rel (0) target = $region129
    $region128: #{fwd.1} parent=1 // pred_region
      %193 = dma.done [#allocation29], 16
    $region129: #{fwd.1} parent=1 // pred_fallthru
      _
    // Predicated region
    $region130: #{fwd.1} parent=1 // pred_check
      _
    $region131: #{fwd.1} parent=1 // pred_check_branch
      %195 = sbr.rel (0) target = $region133
    $region132: #{fwd.1} parent=1 // pred_region
      %196 = dma.done [#allocation32], 16
    $region133: #{fwd.1} parent=1 // pred_fallthru
      _
    %p199 = scmp.lt.u32.totalorder 4, 8
    %p200 = pneg %p199
    // Predicated region
    $region134: #{fwd.1} parent=1 // pred_check
      _
    $region135: #{fwd.1} parent=1 // pred_check_branch
      %202 = sbr.rel (%p199) target = $region137
    $region136: #{fwd.1} parent=1 // pred_region
      %s471 = sand.u32 4, 7
      %p472 = scmp.eq.s32.totalorder %s471, 0
      %p473 = pneg %p472
      // Predicated region
      $region149: #{fwd.1} parent=136 // pred_check
        _
      $region150: #{fwd.1} parent=136 // pred_check_branch
        %475 = sbr.rel (%p472) target = $region152
      $region151: #{fwd.1} parent=136 // pred_region
        %s476 = sand.u32 4, 7
        %s477 = ssub.s32 4, %s476
        %s478 = scalar_lea.vmem %s16, %s477
        %s479 = ssub.s32 4, %s476
        %s480 = scalar_lea.vmem [#allocation11], %s479
        loop: start=0, step=1, limit=1
        $region153: #{fwd.1} parent=151 // loop_pre_header
          _
        $region154: #{fwd.1} parent=151 // loop_header
          %s482 = sphi 0, %s486
          %p483 = scmp.ge.s32.totalorder %s482, 1
          %s487 = sphi %s16, %s16
          %s488 = sphi [#allocation11], [#allocation11]
        $region155: #{fwd.1} parent=151 // loop_header_branch
          %485 = sbr.rel (%p483) target = $region159
        $region156: #{fwd.1} parent=151 // loop_body
          _
        $region157: #{fwd.1} parent=151 // loop_footer
          %s486 = sadd.s32 1, %s482
        $region158: #{fwd.1} parent=151 // loop_footer_branch
          %481 = sbr.rel target = $region154
        $region159: #{fwd.1} parent=151 // loop_exit
          _
        %s489 = sshllo.u32 0, %s476
        loop: start=0, step=1, limit=1
        $region160: #{fwd.1} parent=151 // loop_pre_header
          _
        $region161: #{fwd.1} parent=151 // loop_header
          %s491 = sphi 0, %s495
          %p492 = scmp.ge.s32.totalorder %s491, 1
          %s496 = sphi %s478, %s478
          %s497 = sphi %s480, %s480
        $region162: #{fwd.1} parent=151 // loop_header_branch
          %494 = sbr.rel (%p492) target = $region166
        $region163: #{fwd.1} parent=151 // loop_body
          %v498 = vld [vmem:[%s496] sm:%s489]
          %499 = vst [vmem:[%s497] sm:%s489] %v498
          %v500 = vld [vmem:[%s496 + $0x10] sm:%s489]
          %501 = vst [vmem:[%s497 + $0x4] sm:%s489] %v500
          %v502 = vld [vmem:[%s496 + $0x4] sm:%s489]
          %503 = vst [vmem:[%s497 + $0x8] sm:%s489] %v502
          %v504 = vld [vmem:[%s496 + $0x14] sm:%s489]
          %505 = vst [vmem:[%s497 + $0xc] sm:%s489] %v504
          %v506 = vld [vmem:[%s496 + $0x8] sm:%s489]
          %507 = vst [vmem:[%s497 + $0x10] sm:%s489] %v506
          %v508 = vld [vmem:[%s496 + $0x18] sm:%s489]
          %509 = vst [vmem:[%s497 + $0x14] sm:%s489] %v508
          %v510 = vld [vmem:[%s496 + $0xc] sm:%s489]
          %511 = vst [vmem:[%s497 + $0x18] sm:%s489] %v510
          %v512 = vld [vmem:[%s496 + $0x1c] sm:%s489]
          %513 = vst [vmem:[%s497 + $0x1c] sm:%s489] %v512
          %v514 = vld [vmem:[%s496 + $0x20] sm:%s489]
          %515 = vst [vmem:[%s497 + $0x20] sm:%s489] %v514
          %v516 = vld [vmem:[%s496 + $0x30] sm:%s489]
          %517 = vst [vmem:[%s497 + $0x24] sm:%s489] %v516
          %v518 = vld [vmem:[%s496 + $0x24] sm:%s489]
          %519 = vst [vmem:[%s497 + $0x28] sm:%s489] %v518
          %v520 = vld [vmem:[%s496 + $0x34] sm:%s489]
          %521 = vst [vmem:[%s497 + $0x2c] sm:%s489] %v520
          %v522 = vld [vmem:[%s496 + $0x28] sm:%s489]
          %523 = vst [vmem:[%s497 + $0x30] sm:%s489] %v522
          %v524 = vld [vmem:[%s496 + $0x38] sm:%s489]
          %525 = vst [vmem:[%s497 + $0x34] sm:%s489] %v524
          %v526 = vld [vmem:[%s496 + $0x2c] sm:%s489]
          %527 = vst [vmem:[%s497 + $0x38] sm:%s489] %v526
          %v528 = vld [vmem:[%s496 + $0x3c] sm:%s489]
          %529 = vst [vmem:[%s497 + $0x3c] sm:%s489] %v528
          %v530 = vld [vmem:[%s496 + $0x40] sm:%s489]
          %531 = vst [vmem:[%s497 + $0x40] sm:%s489] %v530
          %v532 = vld [vmem:[%s496 + $0x50] sm:%s489]
          %533 = vst [vmem:[%s497 + $0x44] sm:%s489] %v532
          %v534 = vld [vmem:[%s496 + $0x44] sm:%s489]
          %535 = vst [vmem:[%s497 + $0x48] sm:%s489] %v534
          %v536 = vld [vmem:[%s496 + $0x54] sm:%s489]
          %537 = vst [vmem:[%s497 + $0x4c] sm:%s489] %v536
          %v538 = vld [vmem:[%s496 + $0x48] sm:%s489]
          %539 = vst [vmem:[%s497 + $0x50] sm:%s489] %v538
          %v540 = vld [vmem:[%s496 + $0x58] sm:%s489]
          %541 = vst [vmem:[%s497 + $0x54] sm:%s489] %v540
          %v542 = vld [vmem:[%s496 + $0x4c] sm:%s489]
          %543 = vst [vmem:[%s497 + $0x58] sm:%s489] %v542
          %v544 = vld [vmem:[%s496 + $0x5c] sm:%s489]
          %545 = vst [vmem:[%s497 + $0x5c] sm:%s489] %v544
          %v546 = vld [vmem:[%s496 + $0x60] sm:%s489]
          %547 = vst [vmem:[%s497 + $0x60] sm:%s489] %v546
          %v548 = vld [vmem:[%s496 + $0x70] sm:%s489]
          %549 = vst [vmem:[%s497 + $0x64] sm:%s489] %v548
          %v550 = vld [vmem:[%s496 + $0x64] sm:%s489]
          %551 = vst [vmem:[%s497 + $0x68] sm:%s489] %v550
          %v552 = vld [vmem:[%s496 + $0x74] sm:%s489]
          %553 = vst [vmem:[%s497 + $0x6c] sm:%s489] %v552
          %v554 = vld [vmem:[%s496 + $0x68] sm:%s489]
          %555 = vst [vmem:[%s497 + $0x70] sm:%s489] %v554
          %v556 = vld [vmem:[%s496 + $0x78] sm:%s489]
          %557 = vst [vmem:[%s497 + $0x74] sm:%s489] %v556
          %v558 = vld [vmem:[%s496 + $0x6c] sm:%s489]
          %559 = vst [vmem:[%s497 + $0x78] sm:%s489] %v558
          %v560 = vld [vmem:[%s496 + $0x7c] sm:%s489]
          %561 = vst [vmem:[%s497 + $0x7c] sm:%s489] %v560
          %v562 = vld [vmem:[%s496 + $0x80] sm:%s489]
          %563 = vst [vmem:[%s497 + $0x80] sm:%s489] %v562
          %v564 = vld [vmem:[%s496 + $0x90] sm:%s489]
          %565 = vst [vmem:[%s497 + $0x84] sm:%s489] %v564
          %v566 = vld [vmem:[%s496 + $0x84] sm:%s489]
          %567 = vst [vmem:[%s497 + $0x88] sm:%s489] %v566
          %v568 = vld [vmem:[%s496 + $0x94] sm:%s489]
          %569 = vst [vmem:[%s497 + $0x8c] sm:%s489] %v568
          %v570 = vld [vmem:[%s496 + $0x88] sm:%s489]
          %571 = vst [vmem:[%s497 + $0x90] sm:%s489] %v570
          %v572 = vld [vmem:[%s496 + $0x98] sm:%s489]
          %573 = vst [vmem:[%s497 + $0x94] sm:%s489] %v572
          %v574 = vld [vmem:[%s496 + $0x8c] sm:%s489]
          %575 = vst [vmem:[%s497 + $0x98] sm:%s489] %v574
          %v576 = vld [vmem:[%s496 + $0x9c] sm:%s489]
          %577 = vst [vmem:[%s497 + $0x9c] sm:%s489] %v576
          %v578 = vld [vmem:[%s496 + $0xa0] sm:%s489]
          %579 = vst [vmem:[%s497 + $0xa0] sm:%s489] %v578
          %v580 = vld [vmem:[%s496 + $0xb0] sm:%s489]
          %581 = vst [vmem:[%s497 + $0xa4] sm:%s489] %v580
          %v582 = vld [vmem:[%s496 + $0xa4] sm:%s489]
          %583 = vst [vmem:[%s497 + $0xa8] sm:%s489] %v582
          %v584 = vld [vmem:[%s496 + $0xb4] sm:%s489]
          %585 = vst [vmem:[%s497 + $0xac] sm:%s489] %v584
          %v586 = vld [vmem:[%s496 + $0xa8] sm:%s489]
          %587 = vst [vmem:[%s497 + $0xb0] sm:%s489] %v586
          %v588 = vld [vmem:[%s496 + $0xb8] sm:%s489]
          %589 = vst [vmem:[%s497 + $0xb4] sm:%s489] %v588
          %v590 = vld [vmem:[%s496 + $0xac] sm:%s489]
          %591 = vst [vmem:[%s497 + $0xb8] sm:%s489] %v590
          %v592 = vld [vmem:[%s496 + $0xbc] sm:%s489]
          %593 = vst [vmem:[%s497 + $0xbc] sm:%s489] %v592
          %v594 = vld [vmem:[%s496 + $0xc0] sm:%s489]
          %595 = vst [vmem:[%s497 + $0xc0] sm:%s489] %v594
          %v596 = vld [vmem:[%s496 + $0xd0] sm:%s489]
          %597 = vst [vmem:[%s497 + $0xc4] sm:%s489] %v596
          %v598 = vld [vmem:[%s496 + $0xc4] sm:%s489]
          %599 = vst [vmem:[%s497 + $0xc8] sm:%s489] %v598
          %v600 = vld [vmem:[%s496 + $0xd4] sm:%s489]
          %601 = vst [vmem:[%s497 + $0xcc] sm:%s489] %v600
          %v602 = vld [vmem:[%s496 + $0xc8] sm:%s489]
          %603 = vst [vmem:[%s497 + $0xd0] sm:%s489] %v602
          %v604 = vld [vmem:[%s496 + $0xd8] sm:%s489]
          %605 = vst [vmem:[%s497 + $0xd4] sm:%s489] %v604
          %v606 = vld [vmem:[%s496 + $0xcc] sm:%s489]
          %607 = vst [vmem:[%s497 + $0xd8] sm:%s489] %v606
          %v608 = vld [vmem:[%s496 + $0xdc] sm:%s489]
          %609 = vst [vmem:[%s497 + $0xdc] sm:%s489] %v608
          %v610 = vld [vmem:[%s496 + $0xe0] sm:%s489]
          %611 = vst [vmem:[%s497 + $0xe0] sm:%s489] %v610
          %v612 = vld [vmem:[%s496 + $0xf0] sm:%s489]
          %613 = vst [vmem:[%s497 + $0xe4] sm:%s489] %v612
          %v614 = vld [vmem:[%s496 + $0xe4] sm:%s489]
          %615 = vst [vmem:[%s497 + $0xe8] sm:%s489] %v614
          %v616 = vld [vmem:[%s496 + $0xf4] sm:%s489]
          %617 = vst [vmem:[%s497 + $0xec] sm:%s489] %v616
          %v618 = vld [vmem:[%s496 + $0xe8] sm:%s489]
          %619 = vst [vmem:[%s497 + $0xf0] sm:%s489] %v618
          %v620 = vld [vmem:[%s496 + $0xf8] sm:%s489]
          %621 = vst [vmem:[%s497 + $0xf4] sm:%s489] %v620
          %v622 = vld [vmem:[%s496 + $0xec] sm:%s489]
          %623 = vst [vmem:[%s497 + $0xf8] sm:%s489] %v622
          %v624 = vld [vmem:[%s496 + $0xfc] sm:%s489]
          %625 = vst [vmem:[%s497 + $0xfc] sm:%s489] %v624
          %v626 = vld [vmem:[%s496 + $0x100] sm:%s489]
          %627 = vst [vmem:[%s497 + $0x100] sm:%s489] %v626
          %v628 = vld [vmem:[%s496 + $0x110] sm:%s489]
          %629 = vst [vmem:[%s497 + $0x104] sm:%s489] %v628
          %v630 = vld [vmem:[%s496 + $0x104] sm:%s489]
          %631 = vst [vmem:[%s497 + $0x108] sm:%s489] %v630
          %v632 = vld [vmem:[%s496 + $0x114] sm:%s489]
          %633 = vst [vmem:[%s497 + $0x10c] sm:%s489] %v632
          %v634 = vld [vmem:[%s496 + $0x108] sm:%s489]
          %635 = vst [vmem:[%s497 + $0x110] sm:%s489] %v634
          %v636 = vld [vmem:[%s496 + $0x118] sm:%s489]
          %637 = vst [vmem:[%s497 + $0x114] sm:%s489] %v636
          %v638 = vld [vmem:[%s496 + $0x10c] sm:%s489]
          %639 = vst [vmem:[%s497 + $0x118] sm:%s489] %v638
          %v640 = vld [vmem:[%s496 + $0x11c] sm:%s489]
          %641 = vst [vmem:[%s497 + $0x11c] sm:%s489] %v640
          %v642 = vld [vmem:[%s496 + $0x120] sm:%s489]
          %643 = vst [vmem:[%s497 + $0x120] sm:%s489] %v642
          %v644 = vld [vmem:[%s496 + $0x130] sm:%s489]
          %645 = vst [vmem:[%s497 + $0x124] sm:%s489] %v644
          %v646 = vld [vmem:[%s496 + $0x124] sm:%s489]
          %647 = vst [vmem:[%s497 + $0x128] sm:%s489] %v646
          %v648 = vld [vmem:[%s496 + $0x134] sm:%s489]
          %649 = vst [vmem:[%s497 + $0x12c] sm:%s489] %v648
          %v650 = vld [vmem:[%s496 + $0x128] sm:%s489]
          %651 = vst [vmem:[%s497 + $0x130] sm:%s489] %v650
          %v652 = vld [vmem:[%s496 + $0x138] sm:%s489]
          %653 = vst [vmem:[%s497 + $0x134] sm:%s489] %v652
          %v654 = vld [vmem:[%s496 + $0x12c] sm:%s489]
          %655 = vst [vmem:[%s497 + $0x138] sm:%s489] %v654
          %v656 = vld [vmem:[%s496 + $0x13c] sm:%s489]
          %657 = vst [vmem:[%s497 + $0x13c] sm:%s489] %v656
          %v658 = vld [vmem:[%s496 + $0x140] sm:%s489]
          %659 = vst [vmem:[%s497 + $0x140] sm:%s489] %v658
          %v660 = vld [vmem:[%s496 + $0x150] sm:%s489]
          %661 = vst [vmem:[%s497 + $0x144] sm:%s489] %v660
          %v662 = vld [vmem:[%s496 + $0x144] sm:%s489]
          %663 = vst [vmem:[%s497 + $0x148] sm:%s489] %v662
          %v664 = vld [vmem:[%s496 + $0x154] sm:%s489]
          %665 = vst [vmem:[%s497 + $0x14c] sm:%s489] %v664
          %v666 = vld [vmem:[%s496 + $0x148] sm:%s489]
          %667 = vst [vmem:[%s497 + $0x150] sm:%s489] %v666
          %v668 = vld [vmem:[%s496 + $0x158] sm:%s489]
          %669 = vst [vmem:[%s497 + $0x154] sm:%s489] %v668
          %v670 = vld [vmem:[%s496 + $0x14c] sm:%s489]
          %671 = vst [vmem:[%s497 + $0x158] sm:%s489] %v670
          %v672 = vld [vmem:[%s496 + $0x15c] sm:%s489]
          %673 = vst [vmem:[%s497 + $0x15c] sm:%s489] %v672
          %v674 = vld [vmem:[%s496 + $0x160] sm:%s489]
          %675 = vst [vmem:[%s497 + $0x160] sm:%s489] %v674
          %v676 = vld [vmem:[%s496 + $0x170] sm:%s489]
          %677 = vst [vmem:[%s497 + $0x164] sm:%s489] %v676
          %v678 = vld [vmem:[%s496 + $0x164] sm:%s489]
          %679 = vst [vmem:[%s497 + $0x168] sm:%s489] %v678
          %v680 = vld [vmem:[%s496 + $0x174] sm:%s489]
          %681 = vst [vmem:[%s497 + $0x16c] sm:%s489] %v680
          %v682 = vld [vmem:[%s496 + $0x168] sm:%s489]
          %683 = vst [vmem:[%s497 + $0x170] sm:%s489] %v682
          %v684 = vld [vmem:[%s496 + $0x178] sm:%s489]
          %685 = vst [vmem:[%s497 + $0x174] sm:%s489] %v684
          %v686 = vld [vmem:[%s496 + $0x16c] sm:%s489]
          %687 = vst [vmem:[%s497 + $0x178] sm:%s489] %v686
          %v688 = vld [vmem:[%s496 + $0x17c] sm:%s489]
          %689 = vst [vmem:[%s497 + $0x17c] sm:%s489] %v688
          %v690 = vld [vmem:[%s496 + $0x180] sm:%s489]
          %691 = vst [vmem:[%s497 + $0x180] sm:%s489] %v690
          %v692 = vld [vmem:[%s496 + $0x190] sm:%s489]
          %693 = vst [vmem:[%s497 + $0x184] sm:%s489] %v692
          %v694 = vld [vmem:[%s496 + $0x184] sm:%s489]
          %695 = vst [vmem:[%s497 + $0x188] sm:%s489] %v694
          %v696 = vld [vmem:[%s496 + $0x194] sm:%s489]
          %697 = vst [vmem:[%s497 + $0x18c] sm:%s489] %v696
          %v698 = vld [vmem:[%s496 + $0x188] sm:%s489]
          %699 = vst [vmem:[%s497 + $0x190] sm:%s489] %v698
          %v700 = vld [vmem:[%s496 + $0x198] sm:%s489]
          %701 = vst [vmem:[%s497 + $0x194] sm:%s489] %v700
          %v702 = vld [vmem:[%s496 + $0x18c] sm:%s489]
          %703 = vst [vmem:[%s497 + $0x198] sm:%s489] %v702
          %v704 = vld [vmem:[%s496 + $0x19c] sm:%s489]
          %705 = vst [vmem:[%s497 + $0x19c] sm:%s489] %v704
          %v706 = vld [vmem:[%s496 + $0x1a0] sm:%s489]
          %707 = vst [vmem:[%s497 + $0x1a0] sm:%s489] %v706
          %v708 = vld [vmem:[%s496 + $0x1b0] sm:%s489]
          %709 = vst [vmem:[%s497 + $0x1a4] sm:%s489] %v708
          %v710 = vld [vmem:[%s496 + $0x1a4] sm:%s489]
          %711 = vst [vmem:[%s497 + $0x1a8] sm:%s489] %v710
          %v712 = vld [vmem:[%s496 + $0x1b4] sm:%s489]
          %713 = vst [vmem:[%s497 + $0x1ac] sm:%s489] %v712
          %v714 = vld [vmem:[%s496 + $0x1a8] sm:%s489]
          %715 = vst [vmem:[%s497 + $0x1b0] sm:%s489] %v714
          %v716 = vld [vmem:[%s496 + $0x1b8] sm:%s489]
          %717 = vst [vmem:[%s497 + $0x1b4] sm:%s489] %v716
          %v718 = vld [vmem:[%s496 + $0x1ac] sm:%s489]
          %719 = vst [vmem:[%s497 + $0x1b8] sm:%s489] %v718
          %v720 = vld [vmem:[%s496 + $0x1bc] sm:%s489]
          %721 = vst [vmem:[%s497 + $0x1bc] sm:%s489] %v720
          %v722 = vld [vmem:[%s496 + $0x1c0] sm:%s489]
          %723 = vst [vmem:[%s497 + $0x1c0] sm:%s489] %v722
          %v724 = vld [vmem:[%s496 + $0x1d0] sm:%s489]
          %725 = vst [vmem:[%s497 + $0x1c4] sm:%s489] %v724
          %v726 = vld [vmem:[%s496 + $0x1c4] sm:%s489]
          %727 = vst [vmem:[%s497 + $0x1c8] sm:%s489] %v726
          %v728 = vld [vmem:[%s496 + $0x1d4] sm:%s489]
          %729 = vst [vmem:[%s497 + $0x1cc] sm:%s489] %v728
          %v730 = vld [vmem:[%s496 + $0x1c8] sm:%s489]
          %731 = vst [vmem:[%s497 + $0x1d0] sm:%s489] %v730
          %v732 = vld [vmem:[%s496 + $0x1d8] sm:%s489]
          %733 = vst [vmem:[%s497 + $0x1d4] sm:%s489] %v732
          %v734 = vld [vmem:[%s496 + $0x1cc] sm:%s489]
          %735 = vst [vmem:[%s497 + $0x1d8] sm:%s489] %v734
          %v736 = vld [vmem:[%s496 + $0x1dc] sm:%s489]
          %737 = vst [vmem:[%s497 + $0x1dc] sm:%s489] %v736
          %v738 = vld [vmem:[%s496 + $0x1e0] sm:%s489]
          %739 = vst [vmem:[%s497 + $0x1e0] sm:%s489] %v738
          %v740 = vld [vmem:[%s496 + $0x1f0] sm:%s489]
          %741 = vst [vmem:[%s497 + $0x1e4] sm:%s489] %v740
          %v742 = vld [vmem:[%s496 + $0x1e4] sm:%s489]
          %743 = vst [vmem:[%s497 + $0x1e8] sm:%s489] %v742
          %v744 = vld [vmem:[%s496 + $0x1f4] sm:%s489]
          %745 = vst [vmem:[%s497 + $0x1ec] sm:%s489] %v744
          %v746 = vld [vmem:[%s496 + $0x1e8] sm:%s489]
          %747 = vst [vmem:[%s497 + $0x1f0] sm:%s489] %v746
          %v748 = vld [vmem:[%s496 + $0x1f8] sm:%s489]
          %749 = vst [vmem:[%s497 + $0x1f4] sm:%s489] %v748
          %v750 = vld [vmem:[%s496 + $0x1ec] sm:%s489]
          %751 = vst [vmem:[%s497 + $0x1f8] sm:%s489] %v750
          %v752 = vld [vmem:[%s496 + $0x1fc] sm:%s489]
          %753 = vst [vmem:[%s497 + $0x1fc] sm:%s489] %v752
        $region164: #{fwd.1} parent=151 // loop_footer
          %s495 = sadd.s32 1, %s491
        $region165: #{fwd.1} parent=151 // loop_footer_branch
          %490 = sbr.rel target = $region161
        $region166: #{fwd.1} parent=151 // loop_exit
          _
      $region152: #{fwd.1} parent=136 // pred_fallthru
        _
    $region137: #{fwd.1} parent=1 // pred_fallthru
      _
    // Predicated region
    $region138: #{fwd.1} parent=1 // pred_check
      %p203 = pneg %p199
    $region139: #{fwd.1} parent=1 // pred_check_branch
      %205 = sbr.rel (%p203) target = $region141
    $region140: #{fwd.1} parent=1 // pred_region
      %s206 = sshllo.u32 0, 4
      loop: start=0, step=1, limit=1
      $region142: #{fwd.1} parent=140 // loop_pre_header
        _
      $region143: #{fwd.1} parent=140 // loop_header
        %s208 = sphi 0, %s212
        %p209 = scmp.ge.s32.totalorder %s208, 1
        %s213 = sphi %s16, %s16
        %s214 = sphi [#allocation11], [#allocation11]
      $region144: #{fwd.1} parent=140 // loop_header_branch
        %211 = sbr.rel (%p209) target = $region148
      $region145: #{fwd.1} parent=140 // loop_body
        %v215 = vld [vmem:[%s213] sm:%s206]
        %216 = vst [vmem:[%s214] sm:%s206] %v215
        %v217 = vld [vmem:[%s213 + $0x10] sm:%s206]
        %218 = vst [vmem:[%s214 + $0x4] sm:%s206] %v217
        %v219 = vld [vmem:[%s213 + $0x4] sm:%s206]
        %220 = vst [vmem:[%s214 + $0x8] sm:%s206] %v219
        %v221 = vld [vmem:[%s213 + $0x14] sm:%s206]
        %222 = vst [vmem:[%s214 + $0xc] sm:%s206] %v221
        %v223 = vld [vmem:[%s213 + $0x8] sm:%s206]
        %224 = vst [vmem:[%s214 + $0x10] sm:%s206] %v223
        %v225 = vld [vmem:[%s213 + $0x18] sm:%s206]
        %226 = vst [vmem:[%s214 + $0x14] sm:%s206] %v225
        %v227 = vld [vmem:[%s213 + $0xc] sm:%s206]
        %228 = vst [vmem:[%s214 + $0x18] sm:%s206] %v227
        %v229 = vld [vmem:[%s213 + $0x1c] sm:%s206]
        %230 = vst [vmem:[%s214 + $0x1c] sm:%s206] %v229
        %v231 = vld [vmem:[%s213 + $0x20] sm:%s206]
        %232 = vst [vmem:[%s214 + $0x20] sm:%s206] %v231
        %v233 = vld [vmem:[%s213 + $0x30] sm:%s206]
        %234 = vst [vmem:[%s214 + $0x24] sm:%s206] %v233
        %v235 = vld [vmem:[%s213 + $0x24] sm:%s206]
        %236 = vst [vmem:[%s214 + $0x28] sm:%s206] %v235
        %v237 = vld [vmem:[%s213 + $0x34] sm:%s206]
        %238 = vst [vmem:[%s214 + $0x2c] sm:%s206] %v237
        %v239 = vld [vmem:[%s213 + $0x28] sm:%s206]
        %240 = vst [vmem:[%s214 + $0x30] sm:%s206] %v239
        %v241 = vld [vmem:[%s213 + $0x38] sm:%s206]
        %242 = vst [vmem:[%s214 + $0x34] sm:%s206] %v241
        %v243 = vld [vmem:[%s213 + $0x2c] sm:%s206]
        %244 = vst [vmem:[%s214 + $0x38] sm:%s206] %v243
        %v245 = vld [vmem:[%s213 + $0x3c] sm:%s206]
        %246 = vst [vmem:[%s214 + $0x3c] sm:%s206] %v245
        %v247 = vld [vmem:[%s213 + $0x40] sm:%s206]
        %248 = vst [vmem:[%s214 + $0x40] sm:%s206] %v247
        %v249 = vld [vmem:[%s213 + $0x50] sm:%s206]
        %250 = vst [vmem:[%s214 + $0x44] sm:%s206] %v249
        %v251 = vld [vmem:[%s213 + $0x44] sm:%s206]
        %252 = vst [vmem:[%s214 + $0x48] sm:%s206] %v251
        %v253 = vld [vmem:[%s213 + $0x54] sm:%s206]
        %254 = vst [vmem:[%s214 + $0x4c] sm:%s206] %v253
        %v255 = vld [vmem:[%s213 + $0x48] sm:%s206]
        %256 = vst [vmem:[%s214 + $0x50] sm:%s206] %v255
        %v257 = vld [vmem:[%s213 + $0x58] sm:%s206]
        %258 = vst [vmem:[%s214 + $0x54] sm:%s206] %v257
        %v259 = vld [vmem:[%s213 + $0x4c] sm:%s206]
        %260 = vst [vmem:[%s214 + $0x58] sm:%s206] %v259
        %v261 = vld [vmem:[%s213 + $0x5c] sm:%s206]
        %262 = vst [vmem:[%s214 + $0x5c] sm:%s206] %v261
        %v263 = vld [vmem:[%s213 + $0x60] sm:%s206]
        %264 = vst [vmem:[%s214 + $0x60] sm:%s206] %v263
        %v265 = vld [vmem:[%s213 + $0x70] sm:%s206]
        %266 = vst [vmem:[%s214 + $0x64] sm:%s206] %v265
        %v267 = vld [vmem:[%s213 + $0x64] sm:%s206]
        %268 = vst [vmem:[%s214 + $0x68] sm:%s206] %v267
        %v269 = vld [vmem:[%s213 + $0x74] sm:%s206]
        %270 = vst [vmem:[%s214 + $0x6c] sm:%s206] %v269
        %v271 = vld [vmem:[%s213 + $0x68] sm:%s206]
        %272 = vst [vmem:[%s214 + $0x70] sm:%s206] %v271
        %v273 = vld [vmem:[%s213 + $0x78] sm:%s206]
        %274 = vst [vmem:[%s214 + $0x74] sm:%s206] %v273
        %v275 = vld [vmem:[%s213 + $0x6c] sm:%s206]
        %276 = vst [vmem:[%s214 + $0x78] sm:%s206] %v275
        %v277 = vld [vmem:[%s213 + $0x7c] sm:%s206]
        %278 = vst [vmem:[%s214 + $0x7c] sm:%s206] %v277
        %v279 = vld [vmem:[%s213 + $0x80] sm:%s206]
        %280 = vst [vmem:[%s214 + $0x80] sm:%s206] %v279
        %v281 = vld [vmem:[%s213 + $0x90] sm:%s206]
        %282 = vst [vmem:[%s214 + $0x84] sm:%s206] %v281
        %v283 = vld [vmem:[%s213 + $0x84] sm:%s206]
        %284 = vst [vmem:[%s214 + $0x88] sm:%s206] %v283
        %v285 = vld [vmem:[%s213 + $0x94] sm:%s206]
        %286 = vst [vmem:[%s214 + $0x8c] sm:%s206] %v285
        %v287 = vld [vmem:[%s213 + $0x88] sm:%s206]
        %288 = vst [vmem:[%s214 + $0x90] sm:%s206] %v287
        %v289 = vld [vmem:[%s213 + $0x98] sm:%s206]
        %290 = vst [vmem:[%s214 + $0x94] sm:%s206] %v289
        %v291 = vld [vmem:[%s213 + $0x8c] sm:%s206]
        %292 = vst [vmem:[%s214 + $0x98] sm:%s206] %v291
        %v293 = vld [vmem:[%s213 + $0x9c] sm:%s206]
        %294 = vst [vmem:[%s214 + $0x9c] sm:%s206] %v293
        %v295 = vld [vmem:[%s213 + $0xa0] sm:%s206]
        %296 = vst [vmem:[%s214 + $0xa0] sm:%s206] %v295
        %v297 = vld [vmem:[%s213 + $0xb0] sm:%s206]
        %298 = vst [vmem:[%s214 + $0xa4] sm:%s206] %v297
        %v299 = vld [vmem:[%s213 + $0xa4] sm:%s206]
        %300 = vst [vmem:[%s214 + $0xa8] sm:%s206] %v299
        %v301 = vld [vmem:[%s213 + $0xb4] sm:%s206]
        %302 = vst [vmem:[%s214 + $0xac] sm:%s206] %v301
        %v303 = vld [vmem:[%s213 + $0xa8] sm:%s206]
        %304 = vst [vmem:[%s214 + $0xb0] sm:%s206] %v303
        %v305 = vld [vmem:[%s213 + $0xb8] sm:%s206]
        %306 = vst [vmem:[%s214 + $0xb4] sm:%s206] %v305
        %v307 = vld [vmem:[%s213 + $0xac] sm:%s206]
        %308 = vst [vmem:[%s214 + $0xb8] sm:%s206] %v307
        %v309 = vld [vmem:[%s213 + $0xbc] sm:%s206]
        %310 = vst [vmem:[%s214 + $0xbc] sm:%s206] %v309
        %v311 = vld [vmem:[%s213 + $0xc0] sm:%s206]
        %312 = vst [vmem:[%s214 + $0xc0] sm:%s206] %v311
        %v313 = vld [vmem:[%s213 + $0xd0] sm:%s206]
        %314 = vst [vmem:[%s214 + $0xc4] sm:%s206] %v313
        %v315 = vld [vmem:[%s213 + $0xc4] sm:%s206]
        %316 = vst [vmem:[%s214 + $0xc8] sm:%s206] %v315
        %v317 = vld [vmem:[%s213 + $0xd4] sm:%s206]
        %318 = vst [vmem:[%s214 + $0xcc] sm:%s206] %v317
        %v319 = vld [vmem:[%s213 + $0xc8] sm:%s206]
        %320 = vst [vmem:[%s214 + $0xd0] sm:%s206] %v319
        %v321 = vld [vmem:[%s213 + $0xd8] sm:%s206]
        %322 = vst [vmem:[%s214 + $0xd4] sm:%s206] %v321
        %v323 = vld [vmem:[%s213 + $0xcc] sm:%s206]
        %324 = vst [vmem:[%s214 + $0xd8] sm:%s206] %v323
        %v325 = vld [vmem:[%s213 + $0xdc] sm:%s206]
        %326 = vst [vmem:[%s214 + $0xdc] sm:%s206] %v325
        %v327 = vld [vmem:[%s213 + $0xe0] sm:%s206]
        %328 = vst [vmem:[%s214 + $0xe0] sm:%s206] %v327
        %v329 = vld [vmem:[%s213 + $0xf0] sm:%s206]
        %330 = vst [vmem:[%s214 + $0xe4] sm:%s206] %v329
        %v331 = vld [vmem:[%s213 + $0xe4] sm:%s206]
        %332 = vst [vmem:[%s214 + $0xe8] sm:%s206] %v331
        %v333 = vld [vmem:[%s213 + $0xf4] sm:%s206]
        %334 = vst [vmem:[%s214 + $0xec] sm:%s206] %v333
        %v335 = vld [vmem:[%s213 + $0xe8] sm:%s206]
        %336 = vst [vmem:[%s214 + $0xf0] sm:%s206] %v335
        %v337 = vld [vmem:[%s213 + $0xf8] sm:%s206]
        %338 = vst [vmem:[%s214 + $0xf4] sm:%s206] %v337
        %v339 = vld [vmem:[%s213 + $0xec] sm:%s206]
        %340 = vst [vmem:[%s214 + $0xf8] sm:%s206] %v339
        %v341 = vld [vmem:[%s213 + $0xfc] sm:%s206]
        %342 = vst [vmem:[%s214 + $0xfc] sm:%s206] %v341
        %v343 = vld [vmem:[%s213 + $0x100] sm:%s206]
        %344 = vst [vmem:[%s214 + $0x100] sm:%s206] %v343
        %v345 = vld [vmem:[%s213 + $0x110] sm:%s206]
        %346 = vst [vmem:[%s214 + $0x104] sm:%s206] %v345
        %v347 = vld [vmem:[%s213 + $0x104] sm:%s206]
        %348 = vst [vmem:[%s214 + $0x108] sm:%s206] %v347
        %v349 = vld [vmem:[%s213 + $0x114] sm:%s206]
        %350 = vst [vmem:[%s214 + $0x10c] sm:%s206] %v349
        %v351 = vld [vmem:[%s213 + $0x108] sm:%s206]
        %352 = vst [vmem:[%s214 + $0x110] sm:%s206] %v351
        %v353 = vld [vmem:[%s213 + $0x118] sm:%s206]
        %354 = vst [vmem:[%s214 + $0x114] sm:%s206] %v353
        %v355 = vld [vmem:[%s213 + $0x10c] sm:%s206]
        %356 = vst [vmem:[%s214 + $0x118] sm:%s206] %v355
        %v357 = vld [vmem:[%s213 + $0x11c] sm:%s206]
        %358 = vst [vmem:[%s214 + $0x11c] sm:%s206] %v357
        %v359 = vld [vmem:[%s213 + $0x120] sm:%s206]
        %360 = vst [vmem:[%s214 + $0x120] sm:%s206] %v359
        %v361 = vld [vmem:[%s213 + $0x130] sm:%s206]
        %362 = vst [vmem:[%s214 + $0x124] sm:%s206] %v361
        %v363 = vld [vmem:[%s213 + $0x124] sm:%s206]
        %364 = vst [vmem:[%s214 + $0x128] sm:%s206] %v363
        %v365 = vld [vmem:[%s213 + $0x134] sm:%s206]
        %366 = vst [vmem:[%s214 + $0x12c] sm:%s206] %v365
        %v367 = vld [vmem:[%s213 + $0x128] sm:%s206]
        %368 = vst [vmem:[%s214 + $0x130] sm:%s206] %v367
        %v369 = vld [vmem:[%s213 + $0x138] sm:%s206]
        %370 = vst [vmem:[%s214 + $0x134] sm:%s206] %v369
        %v371 = vld [vmem:[%s213 + $0x12c] sm:%s206]
        %372 = vst [vmem:[%s214 + $0x138] sm:%s206] %v371
        %v373 = vld [vmem:[%s213 + $0x13c] sm:%s206]
        %374 = vst [vmem:[%s214 + $0x13c] sm:%s206] %v373
        %v375 = vld [vmem:[%s213 + $0x140] sm:%s206]
        %376 = vst [vmem:[%s214 + $0x140] sm:%s206] %v375
        %v377 = vld [vmem:[%s213 + $0x150] sm:%s206]
        %378 = vst [vmem:[%s214 + $0x144] sm:%s206] %v377
        %v379 = vld [vmem:[%s213 + $0x144] sm:%s206]
        %380 = vst [vmem:[%s214 + $0x148] sm:%s206] %v379
        %v381 = vld [vmem:[%s213 + $0x154] sm:%s206]
        %382 = vst [vmem:[%s214 + $0x14c] sm:%s206] %v381
        %v383 = vld [vmem:[%s213 + $0x148] sm:%s206]
        %384 = vst [vmem:[%s214 + $0x150] sm:%s206] %v383
        %v385 = vld [vmem:[%s213 + $0x158] sm:%s206]
        %386 = vst [vmem:[%s214 + $0x154] sm:%s206] %v385
        %v387 = vld [vmem:[%s213 + $0x14c] sm:%s206]
        %388 = vst [vmem:[%s214 + $0x158] sm:%s206] %v387
        %v389 = vld [vmem:[%s213 + $0x15c] sm:%s206]
        %390 = vst [vmem:[%s214 + $0x15c] sm:%s206] %v389
        %v391 = vld [vmem:[%s213 + $0x160] sm:%s206]
        %392 = vst [vmem:[%s214 + $0x160] sm:%s206] %v391
        %v393 = vld [vmem:[%s213 + $0x170] sm:%s206]
        %394 = vst [vmem:[%s214 + $0x164] sm:%s206] %v393
        %v395 = vld [vmem:[%s213 + $0x164] sm:%s206]
        %396 = vst [vmem:[%s214 + $0x168] sm:%s206] %v395
        %v397 = vld [vmem:[%s213 + $0x174] sm:%s206]
        %398 = vst [vmem:[%s214 + $0x16c] sm:%s206] %v397
        %v399 = vld [vmem:[%s213 + $0x168] sm:%s206]
        %400 = vst [vmem:[%s214 + $0x170] sm:%s206] %v399
        %v401 = vld [vmem:[%s213 + $0x178] sm:%s206]
        %402 = vst [vmem:[%s214 + $0x174] sm:%s206] %v401
        %v403 = vld [vmem:[%s213 + $0x16c] sm:%s206]
        %404 = vst [vmem:[%s214 + $0x178] sm:%s206] %v403
        %v405 = vld [vmem:[%s213 + $0x17c] sm:%s206]
        %406 = vst [vmem:[%s214 + $0x17c] sm:%s206] %v405
        %v407 = vld [vmem:[%s213 + $0x180] sm:%s206]
        %408 = vst [vmem:[%s214 + $0x180] sm:%s206] %v407
        %v409 = vld [vmem:[%s213 + $0x190] sm:%s206]
        %410 = vst [vmem:[%s214 + $0x184] sm:%s206] %v409
        %v411 = vld [vmem:[%s213 + $0x184] sm:%s206]
        %412 = vst [vmem:[%s214 + $0x188] sm:%s206] %v411
        %v413 = vld [vmem:[%s213 + $0x194] sm:%s206]
        %414 = vst [vmem:[%s214 + $0x18c] sm:%s206] %v413
        %v415 = vld [vmem:[%s213 + $0x188] sm:%s206]
        %416 = vst [vmem:[%s214 + $0x190] sm:%s206] %v415
        %v417 = vld [vmem:[%s213 + $0x198] sm:%s206]
        %418 = vst [vmem:[%s214 + $0x194] sm:%s206] %v417
        %v419 = vld [vmem:[%s213 + $0x18c] sm:%s206]
        %420 = vst [vmem:[%s214 + $0x198] sm:%s206] %v419
        %v421 = vld [vmem:[%s213 + $0x19c] sm:%s206]
        %422 = vst [vmem:[%s214 + $0x19c] sm:%s206] %v421
        %v423 = vld [vmem:[%s213 + $0x1a0] sm:%s206]
        %424 = vst [vmem:[%s214 + $0x1a0] sm:%s206] %v423
        %v425 = vld [vmem:[%s213 + $0x1b0] sm:%s206]
        %426 = vst [vmem:[%s214 + $0x1a4] sm:%s206] %v425
        %v427 = vld [vmem:[%s213 + $0x1a4] sm:%s206]
        %428 = vst [vmem:[%s214 + $0x1a8] sm:%s206] %v427
        %v429 = vld [vmem:[%s213 + $0x1b4] sm:%s206]
        %430 = vst [vmem:[%s214 + $0x1ac] sm:%s206] %v429
        %v431 = vld [vmem:[%s213 + $0x1a8] sm:%s206]
        %432 = vst [vmem:[%s214 + $0x1b0] sm:%s206] %v431
        %v433 = vld [vmem:[%s213 + $0x1b8] sm:%s206]
        %434 = vst [vmem:[%s214 + $0x1b4] sm:%s206] %v433
        %v435 = vld [vmem:[%s213 + $0x1ac] sm:%s206]
        %436 = vst [vmem:[%s214 + $0x1b8] sm:%s206] %v435
        %v437 = vld [vmem:[%s213 + $0x1bc] sm:%s206]
        %438 = vst [vmem:[%s214 + $0x1bc] sm:%s206] %v437
        %v439 = vld [vmem:[%s213 + $0x1c0] sm:%s206]
        %440 = vst [vmem:[%s214 + $0x1c0] sm:%s206] %v439
        %v441 = vld [vmem:[%s213 + $0x1d0] sm:%s206]
        %442 = vst [vmem:[%s214 + $0x1c4] sm:%s206] %v441
        %v443 = vld [vmem:[%s213 + $0x1c4] sm:%s206]
        %444 = vst [vmem:[%s214 + $0x1c8] sm:%s206] %v443
        %v445 = vld [vmem:[%s213 + $0x1d4] sm:%s206]
        %446 = vst [vmem:[%s214 + $0x1cc] sm:%s206] %v445
        %v447 = vld [vmem:[%s213 + $0x1c8] sm:%s206]
        %448 = vst [vmem:[%s214 + $0x1d0] sm:%s206] %v447
        %v449 = vld [vmem:[%s213 + $0x1d8] sm:%s206]
        %450 = vst [vmem:[%s214 + $0x1d4] sm:%s206] %v449
        %v451 = vld [vmem:[%s213 + $0x1cc] sm:%s206]
        %452 = vst [vmem:[%s214 + $0x1d8] sm:%s206] %v451
        %v453 = vld [vmem:[%s213 + $0x1dc] sm:%s206]
        %454 = vst [vmem:[%s214 + $0x1dc] sm:%s206] %v453
        %v455 = vld [vmem:[%s213 + $0x1e0] sm:%s206]
        %456 = vst [vmem:[%s214 + $0x1e0] sm:%s206] %v455
        %v457 = vld [vmem:[%s213 + $0x1f0] sm:%s206]
        %458 = vst [vmem:[%s214 + $0x1e4] sm:%s206] %v457
        %v459 = vld [vmem:[%s213 + $0x1e4] sm:%s206]
        %460 = vst [vmem:[%s214 + $0x1e8] sm:%s206] %v459
        %v461 = vld [vmem:[%s213 + $0x1f4] sm:%s206]
        %462 = vst [vmem:[%s214 + $0x1ec] sm:%s206] %v461
        %v463 = vld [vmem:[%s213 + $0x1e8] sm:%s206]
        %464 = vst [vmem:[%s214 + $0x1f0] sm:%s206] %v463
        %v465 = vld [vmem:[%s213 + $0x1f8] sm:%s206]
        %466 = vst [vmem:[%s214 + $0x1f4] sm:%s206] %v465
        %v467 = vld [vmem:[%s213 + $0x1ec] sm:%s206]
        %468 = vst [vmem:[%s214 + $0x1f8] sm:%s206] %v467
        %v469 = vld [vmem:[%s213 + $0x1fc] sm:%s206]
        %470 = vst [vmem:[%s214 + $0x1fc] sm:%s206] %v469
      $region146: #{fwd.1} parent=140 // loop_footer
        %s212 = sadd.s32 1, %s208
      $region147: #{fwd.1} parent=140 // loop_footer_branch
        %207 = sbr.rel target = $region143
      $region148: #{fwd.1} parent=140 // loop_exit
        _
    $region141: #{fwd.1} parent=1 // pred_fallthru
      _
    // Predicated region
    $region167: #{fwd.1} parent=1 // pred_check
      _
    $region168: #{fwd.1} parent=1 // pred_check_branch
      %756 = sbr.rel (0) target = $region170
    $region169: #{fwd.1} parent=1 // pred_region
      %757 = vsyncadd [#allocation15], 8192
    $region170: #{fwd.1} parent=1 // pred_fallthru
      _
    %s758 = scalar_lea.sflag [#allocation15], 1
    %p760 = scmp.lt.u32.totalorder 4, 8
    %p761 = pneg %p760
    // Predicated region
    $region171: #{fwd.1} parent=1 // pred_check
      _
    $region172: #{fwd.1} parent=1 // pred_check_branch
      %763 = sbr.rel (%p760) target = $region174
    $region173: #{fwd.1} parent=1 // pred_region
      %s1352 = sand.u32 4, 7
      %p1353 = scmp.eq.s32.totalorder %s1352, 0
      %p1354 = pneg %p1353
      // Predicated region
      $region186: #{fwd.1} parent=173 // pred_check
        _
      $region187: #{fwd.1} parent=173 // pred_check_branch
        %1356 = sbr.rel (%p1353) target = $region189
      $region188: #{fwd.1} parent=173 // pred_region
        %s1357 = sand.u32 4, 7
        %s1358 = ssub.s32 4, %s1357
        %s1359 = scalar_lea.vmem %s19, %s1358
        %s1360 = ssub.s32 4, %s1357
        %s1361 = scalar_lea.vmem [#allocation12], %s1360
        loop: start=0, step=1, limit=1
        $region190: #{fwd.1} parent=188 // loop_pre_header
          _
        $region191: #{fwd.1} parent=188 // loop_header
          %s1363 = sphi 0, %s1367
          %p1364 = scmp.ge.s32.totalorder %s1363, 1
          %s1368 = sphi %s19, %s19
          %s1369 = sphi [#allocation12], [#allocation12]
        $region192: #{fwd.1} parent=188 // loop_header_branch
          %1366 = sbr.rel (%p1364) target = $region196
        $region193: #{fwd.1} parent=188 // loop_body
          _
        $region194: #{fwd.1} parent=188 // loop_footer
          %s1367 = sadd.s32 1, %s1363
        $region195: #{fwd.1} parent=188 // loop_footer_branch
          %1362 = sbr.rel target = $region191
        $region196: #{fwd.1} parent=188 // loop_exit
          _
        %s1370 = sshllo.u32 0, %s1357
        loop: start=0, step=1, limit=1
        $region197: #{fwd.1} parent=188 // loop_pre_header
          _
        $region198: #{fwd.1} parent=188 // loop_header
          %s1372 = sphi 0, %s1376
          %p1373 = scmp.ge.s32.totalorder %s1372, 1
          %s1377 = sphi %s1359, %s1359
          %s1378 = sphi %s1361, %s1361
        $region199: #{fwd.1} parent=188 // loop_header_branch
          %1375 = sbr.rel (%p1373) target = $region203
        $region200: #{fwd.1} parent=188 // loop_body
          %v1379 = vld [vmem:[%s1377] sm:%s1370]
          %1380 = vst [vmem:[%s1378] sm:%s1370] %v1379
          %v1381 = vld [vmem:[%s1377 + $0x8] sm:%s1370]
          %1382 = vst [vmem:[%s1378 + $0x4] sm:%s1370] %v1381
          %v1383 = vld [vmem:[%s1377 + $0x4] sm:%s1370]
          %1384 = vst [vmem:[%s1378 + $0x8] sm:%s1370] %v1383
          %v1385 = vld [vmem:[%s1377 + $0xc] sm:%s1370]
          %1386 = vst [vmem:[%s1378 + $0xc] sm:%s1370] %v1385
          %v1387 = vld [vmem:[%s1377 + $0x10] sm:%s1370]
          %1388 = vst [vmem:[%s1378 + $0x10] sm:%s1370] %v1387
          %v1389 = vld [vmem:[%s1377 + $0x18] sm:%s1370]
          %1390 = vst [vmem:[%s1378 + $0x14] sm:%s1370] %v1389
          %v1391 = vld [vmem:[%s1377 + $0x14] sm:%s1370]
          %1392 = vst [vmem:[%s1378 + $0x18] sm:%s1370] %v1391
          %v1393 = vld [vmem:[%s1377 + $0x1c] sm:%s1370]
          %1394 = vst [vmem:[%s1378 + $0x1c] sm:%s1370] %v1393
          %v1395 = vld [vmem:[%s1377 + $0x20] sm:%s1370]
          %1396 = vst [vmem:[%s1378 + $0x20] sm:%s1370] %v1395
          %v1397 = vld [vmem:[%s1377 + $0x28] sm:%s1370]
          %1398 = vst [vmem:[%s1378 + $0x24] sm:%s1370] %v1397
          %v1399 = vld [vmem:[%s1377 + $0x24] sm:%s1370]
          %1400 = vst [vmem:[%s1378 + $0x28] sm:%s1370] %v1399
          %v1401 = vld [vmem:[%s1377 + $0x2c] sm:%s1370]
          %1402 = vst [vmem:[%s1378 + $0x2c] sm:%s1370] %v1401
          %v1403 = vld [vmem:[%s1377 + $0x30] sm:%s1370]
          %1404 = vst [vmem:[%s1378 + $0x30] sm:%s1370] %v1403
          %v1405 = vld [vmem:[%s1377 + $0x38] sm:%s1370]
          %1406 = vst [vmem:[%s1378 + $0x34] sm:%s1370] %v1405
          %v1407 = vld [vmem:[%s1377 + $0x34] sm:%s1370]
          %1408 = vst [vmem:[%s1378 + $0x38] sm:%s1370] %v1407
          %v1409 = vld [vmem:[%s1377 + $0x3c] sm:%s1370]
          %1410 = vst [vmem:[%s1378 + $0x3c] sm:%s1370] %v1409
          %v1411 = vld [vmem:[%s1377 + $0x40] sm:%s1370]
          %1412 = vst [vmem:[%s1378 + $0x40] sm:%s1370] %v1411
          %v1413 = vld [vmem:[%s1377 + $0x48] sm:%s1370]
          %1414 = vst [vmem:[%s1378 + $0x44] sm:%s1370] %v1413
          %v1415 = vld [vmem:[%s1377 + $0x44] sm:%s1370]
          %1416 = vst [vmem:[%s1378 + $0x48] sm:%s1370] %v1415
          %v1417 = vld [vmem:[%s1377 + $0x4c] sm:%s1370]
          %1418 = vst [vmem:[%s1378 + $0x4c] sm:%s1370] %v1417
          %v1419 = vld [vmem:[%s1377 + $0x50] sm:%s1370]
          %1420 = vst [vmem:[%s1378 + $0x50] sm:%s1370] %v1419
          %v1421 = vld [vmem:[%s1377 + $0x58] sm:%s1370]
          %1422 = vst [vmem:[%s1378 + $0x54] sm:%s1370] %v1421
          %v1423 = vld [vmem:[%s1377 + $0x54] sm:%s1370]
          %1424 = vst [vmem:[%s1378 + $0x58] sm:%s1370] %v1423
          %v1425 = vld [vmem:[%s1377 + $0x5c] sm:%s1370]
          %1426 = vst [vmem:[%s1378 + $0x5c] sm:%s1370] %v1425
          %v1427 = vld [vmem:[%s1377 + $0x60] sm:%s1370]
          %1428 = vst [vmem:[%s1378 + $0x60] sm:%s1370] %v1427
          %v1429 = vld [vmem:[%s1377 + $0x68] sm:%s1370]
          %1430 = vst [vmem:[%s1378 + $0x64] sm:%s1370] %v1429
          %v1431 = vld [vmem:[%s1377 + $0x64] sm:%s1370]
          %1432 = vst [vmem:[%s1378 + $0x68] sm:%s1370] %v1431
          %v1433 = vld [vmem:[%s1377 + $0x6c] sm:%s1370]
          %1434 = vst [vmem:[%s1378 + $0x6c] sm:%s1370] %v1433
          %v1435 = vld [vmem:[%s1377 + $0x70] sm:%s1370]
          %1436 = vst [vmem:[%s1378 + $0x70] sm:%s1370] %v1435
          %v1437 = vld [vmem:[%s1377 + $0x78] sm:%s1370]
          %1438 = vst [vmem:[%s1378 + $0x74] sm:%s1370] %v1437
          %v1439 = vld [vmem:[%s1377 + $0x74] sm:%s1370]
          %1440 = vst [vmem:[%s1378 + $0x78] sm:%s1370] %v1439
          %v1441 = vld [vmem:[%s1377 + $0x7c] sm:%s1370]
          %1442 = vst [vmem:[%s1378 + $0x7c] sm:%s1370] %v1441
          %v1443 = vld [vmem:[%s1377 + $0x80] sm:%s1370]
          %1444 = vst [vmem:[%s1378 + $0x80] sm:%s1370] %v1443
          %v1445 = vld [vmem:[%s1377 + $0x88] sm:%s1370]
          %1446 = vst [vmem:[%s1378 + $0x84] sm:%s1370] %v1445
          %v1447 = vld [vmem:[%s1377 + $0x84] sm:%s1370]
          %1448 = vst [vmem:[%s1378 + $0x88] sm:%s1370] %v1447
          %v1449 = vld [vmem:[%s1377 + $0x8c] sm:%s1370]
          %1450 = vst [vmem:[%s1378 + $0x8c] sm:%s1370] %v1449
          %v1451 = vld [vmem:[%s1377 + $0x90] sm:%s1370]
          %1452 = vst [vmem:[%s1378 + $0x90] sm:%s1370] %v1451
          %v1453 = vld [vmem:[%s1377 + $0x98] sm:%s1370]
          %1454 = vst [vmem:[%s1378 + $0x94] sm:%s1370] %v1453
          %v1455 = vld [vmem:[%s1377 + $0x94] sm:%s1370]
          %1456 = vst [vmem:[%s1378 + $0x98] sm:%s1370] %v1455
          %v1457 = vld [vmem:[%s1377 + $0x9c] sm:%s1370]
          %1458 = vst [vmem:[%s1378 + $0x9c] sm:%s1370] %v1457
          %v1459 = vld [vmem:[%s1377 + $0xa0] sm:%s1370]
          %1460 = vst [vmem:[%s1378 + $0xa0] sm:%s1370] %v1459
          %v1461 = vld [vmem:[%s1377 + $0xa8] sm:%s1370]
          %1462 = vst [vmem:[%s1378 + $0xa4] sm:%s1370] %v1461
          %v1463 = vld [vmem:[%s1377 + $0xa4] sm:%s1370]
          %1464 = vst [vmem:[%s1378 + $0xa8] sm:%s1370] %v1463
          %v1465 = vld [vmem:[%s1377 + $0xac] sm:%s1370]
          %1466 = vst [vmem:[%s1378 + $0xac] sm:%s1370] %v1465
          %v1467 = vld [vmem:[%s1377 + $0xb0] sm:%s1370]
          %1468 = vst [vmem:[%s1378 + $0xb0] sm:%s1370] %v1467
          %v1469 = vld [vmem:[%s1377 + $0xb8] sm:%s1370]
          %1470 = vst [vmem:[%s1378 + $0xb4] sm:%s1370] %v1469
          %v1471 = vld [vmem:[%s1377 + $0xb4] sm:%s1370]
          %1472 = vst [vmem:[%s1378 + $0xb8] sm:%s1370] %v1471
          %v1473 = vld [vmem:[%s1377 + $0xbc] sm:%s1370]
          %1474 = vst [vmem:[%s1378 + $0xbc] sm:%s1370] %v1473
          %v1475 = vld [vmem:[%s1377 + $0xc0] sm:%s1370]
          %1476 = vst [vmem:[%s1378 + $0xc0] sm:%s1370] %v1475
          %v1477 = vld [vmem:[%s1377 + $0xc8] sm:%s1370]
          %1478 = vst [vmem:[%s1378 + $0xc4] sm:%s1370] %v1477
          %v1479 = vld [vmem:[%s1377 + $0xc4] sm:%s1370]
          %1480 = vst [vmem:[%s1378 + $0xc8] sm:%s1370] %v1479
          %v1481 = vld [vmem:[%s1377 + $0xcc] sm:%s1370]
          %1482 = vst [vmem:[%s1378 + $0xcc] sm:%s1370] %v1481
          %v1483 = vld [vmem:[%s1377 + $0xd0] sm:%s1370]
          %1484 = vst [vmem:[%s1378 + $0xd0] sm:%s1370] %v1483
          %v1485 = vld [vmem:[%s1377 + $0xd8] sm:%s1370]
          %1486 = vst [vmem:[%s1378 + $0xd4] sm:%s1370] %v1485
          %v1487 = vld [vmem:[%s1377 + $0xd4] sm:%s1370]
          %1488 = vst [vmem:[%s1378 + $0xd8] sm:%s1370] %v1487
          %v1489 = vld [vmem:[%s1377 + $0xdc] sm:%s1370]
          %1490 = vst [vmem:[%s1378 + $0xdc] sm:%s1370] %v1489
          %v1491 = vld [vmem:[%s1377 + $0xe0] sm:%s1370]
          %1492 = vst [vmem:[%s1378 + $0xe0] sm:%s1370] %v1491
          %v1493 = vld [vmem:[%s1377 + $0xe8] sm:%s1370]
          %1494 = vst [vmem:[%s1378 + $0xe4] sm:%s1370] %v1493
          %v1495 = vld [vmem:[%s1377 + $0xe4] sm:%s1370]
          %1496 = vst [vmem:[%s1378 + $0xe8] sm:%s1370] %v1495
          %v1497 = vld [vmem:[%s1377 + $0xec] sm:%s1370]
          %1498 = vst [vmem:[%s1378 + $0xec] sm:%s1370] %v1497
          %v1499 = vld [vmem:[%s1377 + $0xf0] sm:%s1370]
          %1500 = vst [vmem:[%s1378 + $0xf0] sm:%s1370] %v1499
          %v1501 = vld [vmem:[%s1377 + $0xf8] sm:%s1370]
          %1502 = vst [vmem:[%s1378 + $0xf4] sm:%s1370] %v1501
          %v1503 = vld [vmem:[%s1377 + $0xf4] sm:%s1370]
          %1504 = vst [vmem:[%s1378 + $0xf8] sm:%s1370] %v1503
          %v1505 = vld [vmem:[%s1377 + $0xfc] sm:%s1370]
          %1506 = vst [vmem:[%s1378 + $0xfc] sm:%s1370] %v1505
          %v1507 = vld [vmem:[%s1377 + $0x100] sm:%s1370]
          %1508 = vst [vmem:[%s1378 + $0x100] sm:%s1370] %v1507
          %v1509 = vld [vmem:[%s1377 + $0x108] sm:%s1370]
          %1510 = vst [vmem:[%s1378 + $0x104] sm:%s1370] %v1509
          %v1511 = vld [vmem:[%s1377 + $0x104] sm:%s1370]
          %1512 = vst [vmem:[%s1378 + $0x108] sm:%s1370] %v1511
          %v1513 = vld [vmem:[%s1377 + $0x10c] sm:%s1370]
          %1514 = vst [vmem:[%s1378 + $0x10c] sm:%s1370] %v1513
          %v1515 = vld [vmem:[%s1377 + $0x110] sm:%s1370]
          %1516 = vst [vmem:[%s1378 + $0x110] sm:%s1370] %v1515
          %v1517 = vld [vmem:[%s1377 + $0x118] sm:%s1370]
          %1518 = vst [vmem:[%s1378 + $0x114] sm:%s1370] %v1517
          %v1519 = vld [vmem:[%s1377 + $0x114] sm:%s1370]
          %1520 = vst [vmem:[%s1378 + $0x118] sm:%s1370] %v1519
          %v1521 = vld [vmem:[%s1377 + $0x11c] sm:%s1370]
          %1522 = vst [vmem:[%s1378 + $0x11c] sm:%s1370] %v1521
          %v1523 = vld [vmem:[%s1377 + $0x120] sm:%s1370]
          %1524 = vst [vmem:[%s1378 + $0x120] sm:%s1370] %v1523
          %v1525 = vld [vmem:[%s1377 + $0x128] sm:%s1370]
          %1526 = vst [vmem:[%s1378 + $0x124] sm:%s1370] %v1525
          %v1527 = vld [vmem:[%s1377 + $0x124] sm:%s1370]
          %1528 = vst [vmem:[%s1378 + $0x128] sm:%s1370] %v1527
          %v1529 = vld [vmem:[%s1377 + $0x12c] sm:%s1370]
          %1530 = vst [vmem:[%s1378 + $0x12c] sm:%s1370] %v1529
          %v1531 = vld [vmem:[%s1377 + $0x130] sm:%s1370]
          %1532 = vst [vmem:[%s1378 + $0x130] sm:%s1370] %v1531
          %v1533 = vld [vmem:[%s1377 + $0x138] sm:%s1370]
          %1534 = vst [vmem:[%s1378 + $0x134] sm:%s1370] %v1533
          %v1535 = vld [vmem:[%s1377 + $0x134] sm:%s1370]
          %1536 = vst [vmem:[%s1378 + $0x138] sm:%s1370] %v1535
          %v1537 = vld [vmem:[%s1377 + $0x13c] sm:%s1370]
          %1538 = vst [vmem:[%s1378 + $0x13c] sm:%s1370] %v1537
          %v1539 = vld [vmem:[%s1377 + $0x140] sm:%s1370]
          %1540 = vst [vmem:[%s1378 + $0x140] sm:%s1370] %v1539
          %v1541 = vld [vmem:[%s1377 + $0x148] sm:%s1370]
          %1542 = vst [vmem:[%s1378 + $0x144] sm:%s1370] %v1541
          %v1543 = vld [vmem:[%s1377 + $0x144] sm:%s1370]
          %1544 = vst [vmem:[%s1378 + $0x148] sm:%s1370] %v1543
          %v1545 = vld [vmem:[%s1377 + $0x14c] sm:%s1370]
          %1546 = vst [vmem:[%s1378 + $0x14c] sm:%s1370] %v1545
          %v1547 = vld [vmem:[%s1377 + $0x150] sm:%s1370]
          %1548 = vst [vmem:[%s1378 + $0x150] sm:%s1370] %v1547
          %v1549 = vld [vmem:[%s1377 + $0x158] sm:%s1370]
          %1550 = vst [vmem:[%s1378 + $0x154] sm:%s1370] %v1549
          %v1551 = vld [vmem:[%s1377 + $0x154] sm:%s1370]
          %1552 = vst [vmem:[%s1378 + $0x158] sm:%s1370] %v1551
          %v1553 = vld [vmem:[%s1377 + $0x15c] sm:%s1370]
          %1554 = vst [vmem:[%s1378 + $0x15c] sm:%s1370] %v1553
          %v1555 = vld [vmem:[%s1377 + $0x160] sm:%s1370]
          %1556 = vst [vmem:[%s1378 + $0x160] sm:%s1370] %v1555
          %v1557 = vld [vmem:[%s1377 + $0x168] sm:%s1370]
          %1558 = vst [vmem:[%s1378 + $0x164] sm:%s1370] %v1557
          %v1559 = vld [vmem:[%s1377 + $0x164] sm:%s1370]
          %1560 = vst [vmem:[%s1378 + $0x168] sm:%s1370] %v1559
          %v1561 = vld [vmem:[%s1377 + $0x16c] sm:%s1370]
          %1562 = vst [vmem:[%s1378 + $0x16c] sm:%s1370] %v1561
          %v1563 = vld [vmem:[%s1377 + $0x170] sm:%s1370]
          %1564 = vst [vmem:[%s1378 + $0x170] sm:%s1370] %v1563
          %v1565 = vld [vmem:[%s1377 + $0x178] sm:%s1370]
          %1566 = vst [vmem:[%s1378 + $0x174] sm:%s1370] %v1565
          %v1567 = vld [vmem:[%s1377 + $0x174] sm:%s1370]
          %1568 = vst [vmem:[%s1378 + $0x178] sm:%s1370] %v1567
          %v1569 = vld [vmem:[%s1377 + $0x17c] sm:%s1370]
          %1570 = vst [vmem:[%s1378 + $0x17c] sm:%s1370] %v1569
          %v1571 = vld [vmem:[%s1377 + $0x180] sm:%s1370]
          %1572 = vst [vmem:[%s1378 + $0x180] sm:%s1370] %v1571
          %v1573 = vld [vmem:[%s1377 + $0x188] sm:%s1370]
          %1574 = vst [vmem:[%s1378 + $0x184] sm:%s1370] %v1573
          %v1575 = vld [vmem:[%s1377 + $0x184] sm:%s1370]
          %1576 = vst [vmem:[%s1378 + $0x188] sm:%s1370] %v1575
          %v1577 = vld [vmem:[%s1377 + $0x18c] sm:%s1370]
          %1578 = vst [vmem:[%s1378 + $0x18c] sm:%s1370] %v1577
          %v1579 = vld [vmem:[%s1377 + $0x190] sm:%s1370]
          %1580 = vst [vmem:[%s1378 + $0x190] sm:%s1370] %v1579
          %v1581 = vld [vmem:[%s1377 + $0x198] sm:%s1370]
          %1582 = vst [vmem:[%s1378 + $0x194] sm:%s1370] %v1581
          %v1583 = vld [vmem:[%s1377 + $0x194] sm:%s1370]
          %1584 = vst [vmem:[%s1378 + $0x198] sm:%s1370] %v1583
          %v1585 = vld [vmem:[%s1377 + $0x19c] sm:%s1370]
          %1586 = vst [vmem:[%s1378 + $0x19c] sm:%s1370] %v1585
          %v1587 = vld [vmem:[%s1377 + $0x1a0] sm:%s1370]
          %1588 = vst [vmem:[%s1378 + $0x1a0] sm:%s1370] %v1587
          %v1589 = vld [vmem:[%s1377 + $0x1a8] sm:%s1370]
          %1590 = vst [vmem:[%s1378 + $0x1a4] sm:%s1370] %v1589
          %v1591 = vld [vmem:[%s1377 + $0x1a4] sm:%s1370]
          %1592 = vst [vmem:[%s1378 + $0x1a8] sm:%s1370] %v1591
          %v1593 = vld [vmem:[%s1377 + $0x1ac] sm:%s1370]
          %1594 = vst [vmem:[%s1378 + $0x1ac] sm:%s1370] %v1593
          %v1595 = vld [vmem:[%s1377 + $0x1b0] sm:%s1370]
          %1596 = vst [vmem:[%s1378 + $0x1b0] sm:%s1370] %v1595
          %v1597 = vld [vmem:[%s1377 + $0x1b8] sm:%s1370]
          %1598 = vst [vmem:[%s1378 + $0x1b4] sm:%s1370] %v1597
          %v1599 = vld [vmem:[%s1377 + $0x1b4] sm:%s1370]
          %1600 = vst [vmem:[%s1378 + $0x1b8] sm:%s1370] %v1599
          %v1601 = vld [vmem:[%s1377 + $0x1bc] sm:%s1370]
          %1602 = vst [vmem:[%s1378 + $0x1bc] sm:%s1370] %v1601
          %v1603 = vld [vmem:[%s1377 + $0x1c0] sm:%s1370]
          %1604 = vst [vmem:[%s1378 + $0x1c0] sm:%s1370] %v1603
          %v1605 = vld [vmem:[%s1377 + $0x1c8] sm:%s1370]
          %1606 = vst [vmem:[%s1378 + $0x1c4] sm:%s1370] %v1605
          %v1607 = vld [vmem:[%s1377 + $0x1c4] sm:%s1370]
          %1608 = vst [vmem:[%s1378 + $0x1c8] sm:%s1370] %v1607
          %v1609 = vld [vmem:[%s1377 + $0x1cc] sm:%s1370]
          %1610 = vst [vmem:[%s1378 + $0x1cc] sm:%s1370] %v1609
          %v1611 = vld [vmem:[%s1377 + $0x1d0] sm:%s1370]
          %1612 = vst [vmem:[%s1378 + $0x1d0] sm:%s1370] %v1611
          %v1613 = vld [vmem:[%s1377 + $0x1d8] sm:%s1370]
          %1614 = vst [vmem:[%s1378 + $0x1d4] sm:%s1370] %v1613
          %v1615 = vld [vmem:[%s1377 + $0x1d4] sm:%s1370]
          %1616 = vst [vmem:[%s1378 + $0x1d8] sm:%s1370] %v1615
          %v1617 = vld [vmem:[%s1377 + $0x1dc] sm:%s1370]
          %1618 = vst [vmem:[%s1378 + $0x1dc] sm:%s1370] %v1617
          %v1619 = vld [vmem:[%s1377 + $0x1e0] sm:%s1370]
          %1620 = vst [vmem:[%s1378 + $0x1e0] sm:%s1370] %v1619
          %v1621 = vld [vmem:[%s1377 + $0x1e8] sm:%s1370]
          %1622 = vst [vmem:[%s1378 + $0x1e4] sm:%s1370] %v1621
          %v1623 = vld [vmem:[%s1377 + $0x1e4] sm:%s1370]
          %1624 = vst [vmem:[%s1378 + $0x1e8] sm:%s1370] %v1623
          %v1625 = vld [vmem:[%s1377 + $0x1ec] sm:%s1370]
          %1626 = vst [vmem:[%s1378 + $0x1ec] sm:%s1370] %v1625
          %v1627 = vld [vmem:[%s1377 + $0x1f0] sm:%s1370]
          %1628 = vst [vmem:[%s1378 + $0x1f0] sm:%s1370] %v1627
          %v1629 = vld [vmem:[%s1377 + $0x1f8] sm:%s1370]
          %1630 = vst [vmem:[%s1378 + $0x1f4] sm:%s1370] %v1629
          %v1631 = vld [vmem:[%s1377 + $0x1f4] sm:%s1370]
          %1632 = vst [vmem:[%s1378 + $0x1f8] sm:%s1370] %v1631
          %v1633 = vld [vmem:[%s1377 + $0x1fc] sm:%s1370]
          %1634 = vst [vmem:[%s1378 + $0x1fc] sm:%s1370] %v1633
          %v1635 = vld [vmem:[%s1377 + $0x200] sm:%s1370]
          %1636 = vst [vmem:[%s1378 + $0x200] sm:%s1370] %v1635
          %v1637 = vld [vmem:[%s1377 + $0x208] sm:%s1370]
          %1638 = vst [vmem:[%s1378 + $0x204] sm:%s1370] %v1637
          %v1639 = vld [vmem:[%s1377 + $0x204] sm:%s1370]
          %1640 = vst [vmem:[%s1378 + $0x208] sm:%s1370] %v1639
          %v1641 = vld [vmem:[%s1377 + $0x20c] sm:%s1370]
          %1642 = vst [vmem:[%s1378 + $0x20c] sm:%s1370] %v1641
          %v1643 = vld [vmem:[%s1377 + $0x210] sm:%s1370]
          %1644 = vst [vmem:[%s1378 + $0x210] sm:%s1370] %v1643
          %v1645 = vld [vmem:[%s1377 + $0x218] sm:%s1370]
          %1646 = vst [vmem:[%s1378 + $0x214] sm:%s1370] %v1645
          %v1647 = vld [vmem:[%s1377 + $0x214] sm:%s1370]
          %1648 = vst [vmem:[%s1378 + $0x218] sm:%s1370] %v1647
          %v1649 = vld [vmem:[%s1377 + $0x21c] sm:%s1370]
          %1650 = vst [vmem:[%s1378 + $0x21c] sm:%s1370] %v1649
          %v1651 = vld [vmem:[%s1377 + $0x220] sm:%s1370]
          %1652 = vst [vmem:[%s1378 + $0x220] sm:%s1370] %v1651
          %v1653 = vld [vmem:[%s1377 + $0x228] sm:%s1370]
          %1654 = vst [vmem:[%s1378 + $0x224] sm:%s1370] %v1653
          %v1655 = vld [vmem:[%s1377 + $0x224] sm:%s1370]
          %1656 = vst [vmem:[%s1378 + $0x228] sm:%s1370] %v1655
          %v1657 = vld [vmem:[%s1377 + $0x22c] sm:%s1370]
          %1658 = vst [vmem:[%s1378 + $0x22c] sm:%s1370] %v1657
          %v1659 = vld [vmem:[%s1377 + $0x230] sm:%s1370]
          %1660 = vst [vmem:[%s1378 + $0x230] sm:%s1370] %v1659
          %v1661 = vld [vmem:[%s1377 + $0x238] sm:%s1370]
          %1662 = vst [vmem:[%s1378 + $0x234] sm:%s1370] %v1661
          %v1663 = vld [vmem:[%s1377 + $0x234] sm:%s1370]
          %1664 = vst [vmem:[%s1378 + $0x238] sm:%s1370] %v1663
          %v1665 = vld [vmem:[%s1377 + $0x23c] sm:%s1370]
          %1666 = vst [vmem:[%s1378 + $0x23c] sm:%s1370] %v1665
          %v1667 = vld [vmem:[%s1377 + $0x240] sm:%s1370]
          %1668 = vst [vmem:[%s1378 + $0x240] sm:%s1370] %v1667
          %v1669 = vld [vmem:[%s1377 + $0x248] sm:%s1370]
          %1670 = vst [vmem:[%s1378 + $0x244] sm:%s1370] %v1669
          %v1671 = vld [vmem:[%s1377 + $0x244] sm:%s1370]
          %1672 = vst [vmem:[%s1378 + $0x248] sm:%s1370] %v1671
          %v1673 = vld [vmem:[%s1377 + $0x24c] sm:%s1370]
          %1674 = vst [vmem:[%s1378 + $0x24c] sm:%s1370] %v1673
          %v1675 = vld [vmem:[%s1377 + $0x250] sm:%s1370]
          %1676 = vst [vmem:[%s1378 + $0x250] sm:%s1370] %v1675
          %v1677 = vld [vmem:[%s1377 + $0x258] sm:%s1370]
          %1678 = vst [vmem:[%s1378 + $0x254] sm:%s1370] %v1677
          %v1679 = vld [vmem:[%s1377 + $0x254] sm:%s1370]
          %1680 = vst [vmem:[%s1378 + $0x258] sm:%s1370] %v1679
          %v1681 = vld [vmem:[%s1377 + $0x25c] sm:%s1370]
          %1682 = vst [vmem:[%s1378 + $0x25c] sm:%s1370] %v1681
          %v1683 = vld [vmem:[%s1377 + $0x260] sm:%s1370]
          %1684 = vst [vmem:[%s1378 + $0x260] sm:%s1370] %v1683
          %v1685 = vld [vmem:[%s1377 + $0x268] sm:%s1370]
          %1686 = vst [vmem:[%s1378 + $0x264] sm:%s1370] %v1685
          %v1687 = vld [vmem:[%s1377 + $0x264] sm:%s1370]
          %1688 = vst [vmem:[%s1378 + $0x268] sm:%s1370] %v1687
          %v1689 = vld [vmem:[%s1377 + $0x26c] sm:%s1370]
          %1690 = vst [vmem:[%s1378 + $0x26c] sm:%s1370] %v1689
          %v1691 = vld [vmem:[%s1377 + $0x270] sm:%s1370]
          %1692 = vst [vmem:[%s1378 + $0x270] sm:%s1370] %v1691
          %v1693 = vld [vmem:[%s1377 + $0x278] sm:%s1370]
          %1694 = vst [vmem:[%s1378 + $0x274] sm:%s1370] %v1693
          %v1695 = vld [vmem:[%s1377 + $0x274] sm:%s1370]
          %1696 = vst [vmem:[%s1378 + $0x278] sm:%s1370] %v1695
          %v1697 = vld [vmem:[%s1377 + $0x27c] sm:%s1370]
          %1698 = vst [vmem:[%s1378 + $0x27c] sm:%s1370] %v1697
          %v1699 = vld [vmem:[%s1377 + $0x280] sm:%s1370]
          %1700 = vst [vmem:[%s1378 + $0x280] sm:%s1370] %v1699
          %v1701 = vld [vmem:[%s1377 + $0x288] sm:%s1370]
          %1702 = vst [vmem:[%s1378 + $0x284] sm:%s1370] %v1701
          %v1703 = vld [vmem:[%s1377 + $0x284] sm:%s1370]
          %1704 = vst [vmem:[%s1378 + $0x288] sm:%s1370] %v1703
          %v1705 = vld [vmem:[%s1377 + $0x28c] sm:%s1370]
          %1706 = vst [vmem:[%s1378 + $0x28c] sm:%s1370] %v1705
          %v1707 = vld [vmem:[%s1377 + $0x290] sm:%s1370]
          %1708 = vst [vmem:[%s1378 + $0x290] sm:%s1370] %v1707
          %v1709 = vld [vmem:[%s1377 + $0x298] sm:%s1370]
          %1710 = vst [vmem:[%s1378 + $0x294] sm:%s1370] %v1709
          %v1711 = vld [vmem:[%s1377 + $0x294] sm:%s1370]
          %1712 = vst [vmem:[%s1378 + $0x298] sm:%s1370] %v1711
          %v1713 = vld [vmem:[%s1377 + $0x29c] sm:%s1370]
          %1714 = vst [vmem:[%s1378 + $0x29c] sm:%s1370] %v1713
          %v1715 = vld [vmem:[%s1377 + $0x2a0] sm:%s1370]
          %1716 = vst [vmem:[%s1378 + $0x2a0] sm:%s1370] %v1715
          %v1717 = vld [vmem:[%s1377 + $0x2a8] sm:%s1370]
          %1718 = vst [vmem:[%s1378 + $0x2a4] sm:%s1370] %v1717
          %v1719 = vld [vmem:[%s1377 + $0x2a4] sm:%s1370]
          %1720 = vst [vmem:[%s1378 + $0x2a8] sm:%s1370] %v1719
          %v1721 = vld [vmem:[%s1377 + $0x2ac] sm:%s1370]
          %1722 = vst [vmem:[%s1378 + $0x2ac] sm:%s1370] %v1721
          %v1723 = vld [vmem:[%s1377 + $0x2b0] sm:%s1370]
          %1724 = vst [vmem:[%s1378 + $0x2b0] sm:%s1370] %v1723
          %v1725 = vld [vmem:[%s1377 + $0x2b8] sm:%s1370]
          %1726 = vst [vmem:[%s1378 + $0x2b4] sm:%s1370] %v1725
          %v1727 = vld [vmem:[%s1377 + $0x2b4] sm:%s1370]
          %1728 = vst [vmem:[%s1378 + $0x2b8] sm:%s1370] %v1727
          %v1729 = vld [vmem:[%s1377 + $0x2bc] sm:%s1370]
          %1730 = vst [vmem:[%s1378 + $0x2bc] sm:%s1370] %v1729
          %v1731 = vld [vmem:[%s1377 + $0x2c0] sm:%s1370]
          %1732 = vst [vmem:[%s1378 + $0x2c0] sm:%s1370] %v1731
          %v1733 = vld [vmem:[%s1377 + $0x2c8] sm:%s1370]
          %1734 = vst [vmem:[%s1378 + $0x2c4] sm:%s1370] %v1733
          %v1735 = vld [vmem:[%s1377 + $0x2c4] sm:%s1370]
          %1736 = vst [vmem:[%s1378 + $0x2c8] sm:%s1370] %v1735
          %v1737 = vld [vmem:[%s1377 + $0x2cc] sm:%s1370]
          %1738 = vst [vmem:[%s1378 + $0x2cc] sm:%s1370] %v1737
          %v1739 = vld [vmem:[%s1377 + $0x2d0] sm:%s1370]
          %1740 = vst [vmem:[%s1378 + $0x2d0] sm:%s1370] %v1739
          %v1741 = vld [vmem:[%s1377 + $0x2d8] sm:%s1370]
          %1742 = vst [vmem:[%s1378 + $0x2d4] sm:%s1370] %v1741
          %v1743 = vld [vmem:[%s1377 + $0x2d4] sm:%s1370]
          %1744 = vst [vmem:[%s1378 + $0x2d8] sm:%s1370] %v1743
          %v1745 = vld [vmem:[%s1377 + $0x2dc] sm:%s1370]
          %1746 = vst [vmem:[%s1378 + $0x2dc] sm:%s1370] %v1745
          %v1747 = vld [vmem:[%s1377 + $0x2e0] sm:%s1370]
          %1748 = vst [vmem:[%s1378 + $0x2e0] sm:%s1370] %v1747
          %v1749 = vld [vmem:[%s1377 + $0x2e8] sm:%s1370]
          %1750 = vst [vmem:[%s1378 + $0x2e4] sm:%s1370] %v1749
          %v1751 = vld [vmem:[%s1377 + $0x2e4] sm:%s1370]
          %1752 = vst [vmem:[%s1378 + $0x2e8] sm:%s1370] %v1751
          %v1753 = vld [vmem:[%s1377 + $0x2ec] sm:%s1370]
          %1754 = vst [vmem:[%s1378 + $0x2ec] sm:%s1370] %v1753
          %v1755 = vld [vmem:[%s1377 + $0x2f0] sm:%s1370]
          %1756 = vst [vmem:[%s1378 + $0x2f0] sm:%s1370] %v1755
          %v1757 = vld [vmem:[%s1377 + $0x2f8] sm:%s1370]
          %1758 = vst [vmem:[%s1378 + $0x2f4] sm:%s1370] %v1757
          %v1759 = vld [vmem:[%s1377 + $0x2f4] sm:%s1370]
          %1760 = vst [vmem:[%s1378 + $0x2f8] sm:%s1370] %v1759
          %v1761 = vld [vmem:[%s1377 + $0x2fc] sm:%s1370]
          %1762 = vst [vmem:[%s1378 + $0x2fc] sm:%s1370] %v1761
          %v1763 = vld [vmem:[%s1377 + $0x300] sm:%s1370]
          %1764 = vst [vmem:[%s1378 + $0x300] sm:%s1370] %v1763
          %v1765 = vld [vmem:[%s1377 + $0x308] sm:%s1370]
          %1766 = vst [vmem:[%s1378 + $0x304] sm:%s1370] %v1765
          %v1767 = vld [vmem:[%s1377 + $0x304] sm:%s1370]
          %1768 = vst [vmem:[%s1378 + $0x308] sm:%s1370] %v1767
          %v1769 = vld [vmem:[%s1377 + $0x30c] sm:%s1370]
          %1770 = vst [vmem:[%s1378 + $0x30c] sm:%s1370] %v1769
          %v1771 = vld [vmem:[%s1377 + $0x310] sm:%s1370]
          %1772 = vst [vmem:[%s1378 + $0x310] sm:%s1370] %v1771
          %v1773 = vld [vmem:[%s1377 + $0x318] sm:%s1370]
          %1774 = vst [vmem:[%s1378 + $0x314] sm:%s1370] %v1773
          %v1775 = vld [vmem:[%s1377 + $0x314] sm:%s1370]
          %1776 = vst [vmem:[%s1378 + $0x318] sm:%s1370] %v1775
          %v1777 = vld [vmem:[%s1377 + $0x31c] sm:%s1370]
          %1778 = vst [vmem:[%s1378 + $0x31c] sm:%s1370] %v1777
          %v1779 = vld [vmem:[%s1377 + $0x320] sm:%s1370]
          %1780 = vst [vmem:[%s1378 + $0x320] sm:%s1370] %v1779
          %v1781 = vld [vmem:[%s1377 + $0x328] sm:%s1370]
          %1782 = vst [vmem:[%s1378 + $0x324] sm:%s1370] %v1781
          %v1783 = vld [vmem:[%s1377 + $0x324] sm:%s1370]
          %1784 = vst [vmem:[%s1378 + $0x328] sm:%s1370] %v1783
          %v1785 = vld [vmem:[%s1377 + $0x32c] sm:%s1370]
          %1786 = vst [vmem:[%s1378 + $0x32c] sm:%s1370] %v1785
          %v1787 = vld [vmem:[%s1377 + $0x330] sm:%s1370]
          %1788 = vst [vmem:[%s1378 + $0x330] sm:%s1370] %v1787
          %v1789 = vld [vmem:[%s1377 + $0x338] sm:%s1370]
          %1790 = vst [vmem:[%s1378 + $0x334] sm:%s1370] %v1789
          %v1791 = vld [vmem:[%s1377 + $0x334] sm:%s1370]
          %1792 = vst [vmem:[%s1378 + $0x338] sm:%s1370] %v1791
          %v1793 = vld [vmem:[%s1377 + $0x33c] sm:%s1370]
          %1794 = vst [vmem:[%s1378 + $0x33c] sm:%s1370] %v1793
          %v1795 = vld [vmem:[%s1377 + $0x340] sm:%s1370]
          %1796 = vst [vmem:[%s1378 + $0x340] sm:%s1370] %v1795
          %v1797 = vld [vmem:[%s1377 + $0x348] sm:%s1370]
          %1798 = vst [vmem:[%s1378 + $0x344] sm:%s1370] %v1797
          %v1799 = vld [vmem:[%s1377 + $0x344] sm:%s1370]
          %1800 = vst [vmem:[%s1378 + $0x348] sm:%s1370] %v1799
          %v1801 = vld [vmem:[%s1377 + $0x34c] sm:%s1370]
          %1802 = vst [vmem:[%s1378 + $0x34c] sm:%s1370] %v1801
          %v1803 = vld [vmem:[%s1377 + $0x350] sm:%s1370]
          %1804 = vst [vmem:[%s1378 + $0x350] sm:%s1370] %v1803
          %v1805 = vld [vmem:[%s1377 + $0x358] sm:%s1370]
          %1806 = vst [vmem:[%s1378 + $0x354] sm:%s1370] %v1805
          %v1807 = vld [vmem:[%s1377 + $0x354] sm:%s1370]
          %1808 = vst [vmem:[%s1378 + $0x358] sm:%s1370] %v1807
          %v1809 = vld [vmem:[%s1377 + $0x35c] sm:%s1370]
          %1810 = vst [vmem:[%s1378 + $0x35c] sm:%s1370] %v1809
          %v1811 = vld [vmem:[%s1377 + $0x360] sm:%s1370]
          %1812 = vst [vmem:[%s1378 + $0x360] sm:%s1370] %v1811
          %v1813 = vld [vmem:[%s1377 + $0x368] sm:%s1370]
          %1814 = vst [vmem:[%s1378 + $0x364] sm:%s1370] %v1813
          %v1815 = vld [vmem:[%s1377 + $0x364] sm:%s1370]
          %1816 = vst [vmem:[%s1378 + $0x368] sm:%s1370] %v1815
          %v1817 = vld [vmem:[%s1377 + $0x36c] sm:%s1370]
          %1818 = vst [vmem:[%s1378 + $0x36c] sm:%s1370] %v1817
          %v1819 = vld [vmem:[%s1377 + $0x370] sm:%s1370]
          %1820 = vst [vmem:[%s1378 + $0x370] sm:%s1370] %v1819
          %v1821 = vld [vmem:[%s1377 + $0x378] sm:%s1370]
          %1822 = vst [vmem:[%s1378 + $0x374] sm:%s1370] %v1821
          %v1823 = vld [vmem:[%s1377 + $0x374] sm:%s1370]
          %1824 = vst [vmem:[%s1378 + $0x378] sm:%s1370] %v1823
          %v1825 = vld [vmem:[%s1377 + $0x37c] sm:%s1370]
          %1826 = vst [vmem:[%s1378 + $0x37c] sm:%s1370] %v1825
          %v1827 = vld [vmem:[%s1377 + $0x380] sm:%s1370]
          %1828 = vst [vmem:[%s1378 + $0x380] sm:%s1370] %v1827
          %v1829 = vld [vmem:[%s1377 + $0x388] sm:%s1370]
          %1830 = vst [vmem:[%s1378 + $0x384] sm:%s1370] %v1829
          %v1831 = vld [vmem:[%s1377 + $0x384] sm:%s1370]
          %1832 = vst [vmem:[%s1378 + $0x388] sm:%s1370] %v1831
          %v1833 = vld [vmem:[%s1377 + $0x38c] sm:%s1370]
          %1834 = vst [vmem:[%s1378 + $0x38c] sm:%s1370] %v1833
          %v1835 = vld [vmem:[%s1377 + $0x390] sm:%s1370]
          %1836 = vst [vmem:[%s1378 + $0x390] sm:%s1370] %v1835
          %v1837 = vld [vmem:[%s1377 + $0x398] sm:%s1370]
          %1838 = vst [vmem:[%s1378 + $0x394] sm:%s1370] %v1837
          %v1839 = vld [vmem:[%s1377 + $0x394] sm:%s1370]
          %1840 = vst [vmem:[%s1378 + $0x398] sm:%s1370] %v1839
          %v1841 = vld [vmem:[%s1377 + $0x39c] sm:%s1370]
          %1842 = vst [vmem:[%s1378 + $0x39c] sm:%s1370] %v1841
          %v1843 = vld [vmem:[%s1377 + $0x3a0] sm:%s1370]
          %1844 = vst [vmem:[%s1378 + $0x3a0] sm:%s1370] %v1843
          %v1845 = vld [vmem:[%s1377 + $0x3a8] sm:%s1370]
          %1846 = vst [vmem:[%s1378 + $0x3a4] sm:%s1370] %v1845
          %v1847 = vld [vmem:[%s1377 + $0x3a4] sm:%s1370]
          %1848 = vst [vmem:[%s1378 + $0x3a8] sm:%s1370] %v1847
          %v1849 = vld [vmem:[%s1377 + $0x3ac] sm:%s1370]
          %1850 = vst [vmem:[%s1378 + $0x3ac] sm:%s1370] %v1849
          %v1851 = vld [vmem:[%s1377 + $0x3b0] sm:%s1370]
          %1852 = vst [vmem:[%s1378 + $0x3b0] sm:%s1370] %v1851
          %v1853 = vld [vmem:[%s1377 + $0x3b8] sm:%s1370]
          %1854 = vst [vmem:[%s1378 + $0x3b4] sm:%s1370] %v1853
          %v1855 = vld [vmem:[%s1377 + $0x3b4] sm:%s1370]
          %1856 = vst [vmem:[%s1378 + $0x3b8] sm:%s1370] %v1855
          %v1857 = vld [vmem:[%s1377 + $0x3bc] sm:%s1370]
          %1858 = vst [vmem:[%s1378 + $0x3bc] sm:%s1370] %v1857
          %v1859 = vld [vmem:[%s1377 + $0x3c0] sm:%s1370]
          %1860 = vst [vmem:[%s1378 + $0x3c0] sm:%s1370] %v1859
          %v1861 = vld [vmem:[%s1377 + $0x3c8] sm:%s1370]
          %1862 = vst [vmem:[%s1378 + $0x3c4] sm:%s1370] %v1861
          %v1863 = vld [vmem:[%s1377 + $0x3c4] sm:%s1370]
          %1864 = vst [vmem:[%s1378 + $0x3c8] sm:%s1370] %v1863
          %v1865 = vld [vmem:[%s1377 + $0x3cc] sm:%s1370]
          %1866 = vst [vmem:[%s1378 + $0x3cc] sm:%s1370] %v1865
          %v1867 = vld [vmem:[%s1377 + $0x3d0] sm:%s1370]
          %1868 = vst [vmem:[%s1378 + $0x3d0] sm:%s1370] %v1867
          %v1869 = vld [vmem:[%s1377 + $0x3d8] sm:%s1370]
          %1870 = vst [vmem:[%s1378 + $0x3d4] sm:%s1370] %v1869
          %v1871 = vld [vmem:[%s1377 + $0x3d4] sm:%s1370]
          %1872 = vst [vmem:[%s1378 + $0x3d8] sm:%s1370] %v1871
          %v1873 = vld [vmem:[%s1377 + $0x3dc] sm:%s1370]
          %1874 = vst [vmem:[%s1378 + $0x3dc] sm:%s1370] %v1873
          %v1875 = vld [vmem:[%s1377 + $0x3e0] sm:%s1370]
          %1876 = vst [vmem:[%s1378 + $0x3e0] sm:%s1370] %v1875
          %v1877 = vld [vmem:[%s1377 + $0x3e8] sm:%s1370]
          %1878 = vst [vmem:[%s1378 + $0x3e4] sm:%s1370] %v1877
          %v1879 = vld [vmem:[%s1377 + $0x3e4] sm:%s1370]
          %1880 = vst [vmem:[%s1378 + $0x3e8] sm:%s1370] %v1879
          %v1881 = vld [vmem:[%s1377 + $0x3ec] sm:%s1370]
          %1882 = vst [vmem:[%s1378 + $0x3ec] sm:%s1370] %v1881
          %v1883 = vld [vmem:[%s1377 + $0x3f0] sm:%s1370]
          %1884 = vst [vmem:[%s1378 + $0x3f0] sm:%s1370] %v1883
          %v1885 = vld [vmem:[%s1377 + $0x3f8] sm:%s1370]
          %1886 = vst [vmem:[%s1378 + $0x3f4] sm:%s1370] %v1885
          %v1887 = vld [vmem:[%s1377 + $0x3f4] sm:%s1370]
          %1888 = vst [vmem:[%s1378 + $0x3f8] sm:%s1370] %v1887
          %v1889 = vld [vmem:[%s1377 + $0x3fc] sm:%s1370]
          %1890 = vst [vmem:[%s1378 + $0x3fc] sm:%s1370] %v1889
          %v1891 = vld [vmem:[%s1377 + $0x400] sm:%s1370]
          %1892 = vst [vmem:[%s1378 + $0x400] sm:%s1370] %v1891
          %v1893 = vld [vmem:[%s1377 + $0x408] sm:%s1370]
          %1894 = vst [vmem:[%s1378 + $0x404] sm:%s1370] %v1893
          %v1895 = vld [vmem:[%s1377 + $0x404] sm:%s1370]
          %1896 = vst [vmem:[%s1378 + $0x408] sm:%s1370] %v1895
          %v1897 = vld [vmem:[%s1377 + $0x40c] sm:%s1370]
          %1898 = vst [vmem:[%s1378 + $0x40c] sm:%s1370] %v1897
          %v1899 = vld [vmem:[%s1377 + $0x410] sm:%s1370]
          %1900 = vst [vmem:[%s1378 + $0x410] sm:%s1370] %v1899
          %v1901 = vld [vmem:[%s1377 + $0x418] sm:%s1370]
          %1902 = vst [vmem:[%s1378 + $0x414] sm:%s1370] %v1901
          %v1903 = vld [vmem:[%s1377 + $0x414] sm:%s1370]
          %1904 = vst [vmem:[%s1378 + $0x418] sm:%s1370] %v1903
          %v1905 = vld [vmem:[%s1377 + $0x41c] sm:%s1370]
          %1906 = vst [vmem:[%s1378 + $0x41c] sm:%s1370] %v1905
          %v1907 = vld [vmem:[%s1377 + $0x420] sm:%s1370]
          %1908 = vst [vmem:[%s1378 + $0x420] sm:%s1370] %v1907
          %v1909 = vld [vmem:[%s1377 + $0x428] sm:%s1370]
          %1910 = vst [vmem:[%s1378 + $0x424] sm:%s1370] %v1909
          %v1911 = vld [vmem:[%s1377 + $0x424] sm:%s1370]
          %1912 = vst [vmem:[%s1378 + $0x428] sm:%s1370] %v1911
          %v1913 = vld [vmem:[%s1377 + $0x42c] sm:%s1370]
          %1914 = vst [vmem:[%s1378 + $0x42c] sm:%s1370] %v1913
          %v1915 = vld [vmem:[%s1377 + $0x430] sm:%s1370]
          %1916 = vst [vmem:[%s1378 + $0x430] sm:%s1370] %v1915
          %v1917 = vld [vmem:[%s1377 + $0x438] sm:%s1370]
          %1918 = vst [vmem:[%s1378 + $0x434] sm:%s1370] %v1917
          %v1919 = vld [vmem:[%s1377 + $0x434] sm:%s1370]
          %1920 = vst [vmem:[%s1378 + $0x438] sm:%s1370] %v1919
          %v1921 = vld [vmem:[%s1377 + $0x43c] sm:%s1370]
          %1922 = vst [vmem:[%s1378 + $0x43c] sm:%s1370] %v1921
          %v1923 = vld [vmem:[%s1377 + $0x440] sm:%s1370]
          %1924 = vst [vmem:[%s1378 + $0x440] sm:%s1370] %v1923
          %v1925 = vld [vmem:[%s1377 + $0x448] sm:%s1370]
          %1926 = vst [vmem:[%s1378 + $0x444] sm:%s1370] %v1925
          %v1927 = vld [vmem:[%s1377 + $0x444] sm:%s1370]
          %1928 = vst [vmem:[%s1378 + $0x448] sm:%s1370] %v1927
          %v1929 = vld [vmem:[%s1377 + $0x44c] sm:%s1370]
          %1930 = vst [vmem:[%s1378 + $0x44c] sm:%s1370] %v1929
          %v1931 = vld [vmem:[%s1377 + $0x450] sm:%s1370]
          %1932 = vst [vmem:[%s1378 + $0x450] sm:%s1370] %v1931
          %v1933 = vld [vmem:[%s1377 + $0x458] sm:%s1370]
          %1934 = vst [vmem:[%s1378 + $0x454] sm:%s1370] %v1933
          %v1935 = vld [vmem:[%s1377 + $0x454] sm:%s1370]
          %1936 = vst [vmem:[%s1378 + $0x458] sm:%s1370] %v1935
          %v1937 = vld [vmem:[%s1377 + $0x45c] sm:%s1370]
          %1938 = vst [vmem:[%s1378 + $0x45c] sm:%s1370] %v1937
          %v1939 = vld [vmem:[%s1377 + $0x460] sm:%s1370]
          %1940 = vst [vmem:[%s1378 + $0x460] sm:%s1370] %v1939
          %v1941 = vld [vmem:[%s1377 + $0x468] sm:%s1370]
          %1942 = vst [vmem:[%s1378 + $0x464] sm:%s1370] %v1941
          %v1943 = vld [vmem:[%s1377 + $0x464] sm:%s1370]
          %1944 = vst [vmem:[%s1378 + $0x468] sm:%s1370] %v1943
          %v1945 = vld [vmem:[%s1377 + $0x46c] sm:%s1370]
          %1946 = vst [vmem:[%s1378 + $0x46c] sm:%s1370] %v1945
          %v1947 = vld [vmem:[%s1377 + $0x470] sm:%s1370]
          %1948 = vst [vmem:[%s1378 + $0x470] sm:%s1370] %v1947
          %v1949 = vld [vmem:[%s1377 + $0x478] sm:%s1370]
          %1950 = vst [vmem:[%s1378 + $0x474] sm:%s1370] %v1949
          %v1951 = vld [vmem:[%s1377 + $0x474] sm:%s1370]
          %1952 = vst [vmem:[%s1378 + $0x478] sm:%s1370] %v1951
          %v1953 = vld [vmem:[%s1377 + $0x47c] sm:%s1370]
          %1954 = vst [vmem:[%s1378 + $0x47c] sm:%s1370] %v1953
        $region201: #{fwd.1} parent=188 // loop_footer
          %s1376 = sadd.s32 1, %s1372
        $region202: #{fwd.1} parent=188 // loop_footer_branch
          %1371 = sbr.rel target = $region198
        $region203: #{fwd.1} parent=188 // loop_exit
          _
      $region189: #{fwd.1} parent=173 // pred_fallthru
        _
    $region174: #{fwd.1} parent=1 // pred_fallthru
      _
    // Predicated region
    $region175: #{fwd.1} parent=1 // pred_check
      %p764 = pneg %p760
    $region176: #{fwd.1} parent=1 // pred_check_branch
      %766 = sbr.rel (%p764) target = $region178
    $region177: #{fwd.1} parent=1 // pred_region
      %s767 = sshllo.u32 0, 4
      loop: start=0, step=1, limit=1
      $region179: #{fwd.1} parent=177 // loop_pre_header
        _
      $region180: #{fwd.1} parent=177 // loop_header
        %s769 = sphi 0, %s773
        %p770 = scmp.ge.s32.totalorder %s769, 1
        %s774 = sphi %s19, %s19
        %s775 = sphi [#allocation12], [#allocation12]
      $region181: #{fwd.1} parent=177 // loop_header_branch
        %772 = sbr.rel (%p770) target = $region185
      $region182: #{fwd.1} parent=177 // loop_body
        %v776 = vld [vmem:[%s774] sm:%s767]
        %777 = vst [vmem:[%s775] sm:%s767] %v776
        %v778 = vld [vmem:[%s774 + $0x8] sm:%s767]
        %779 = vst [vmem:[%s775 + $0x4] sm:%s767] %v778
        %v780 = vld [vmem:[%s774 + $0x4] sm:%s767]
        %781 = vst [vmem:[%s775 + $0x8] sm:%s767] %v780
        %v782 = vld [vmem:[%s774 + $0xc] sm:%s767]
        %783 = vst [vmem:[%s775 + $0xc] sm:%s767] %v782
        %v784 = vld [vmem:[%s774 + $0x10] sm:%s767]
        %785 = vst [vmem:[%s775 + $0x10] sm:%s767] %v784
        %v786 = vld [vmem:[%s774 + $0x18] sm:%s767]
        %787 = vst [vmem:[%s775 + $0x14] sm:%s767] %v786
        %v788 = vld [vmem:[%s774 + $0x14] sm:%s767]
        %789 = vst [vmem:[%s775 + $0x18] sm:%s767] %v788
        %v790 = vld [vmem:[%s774 + $0x1c] sm:%s767]
        %791 = vst [vmem:[%s775 + $0x1c] sm:%s767] %v790
        %v792 = vld [vmem:[%s774 + $0x20] sm:%s767]
        %793 = vst [vmem:[%s775 + $0x20] sm:%s767] %v792
        %v794 = vld [vmem:[%s774 + $0x28] sm:%s767]
        %795 = vst [vmem:[%s775 + $0x24] sm:%s767] %v794
        %v796 = vld [vmem:[%s774 + $0x24] sm:%s767]
        %797 = vst [vmem:[%s775 + $0x28] sm:%s767] %v796
        %v798 = vld [vmem:[%s774 + $0x2c] sm:%s767]
        %799 = vst [vmem:[%s775 + $0x2c] sm:%s767] %v798
        %v800 = vld [vmem:[%s774 + $0x30] sm:%s767]
        %801 = vst [vmem:[%s775 + $0x30] sm:%s767] %v800
        %v802 = vld [vmem:[%s774 + $0x38] sm:%s767]
        %803 = vst [vmem:[%s775 + $0x34] sm:%s767] %v802
        %v804 = vld [vmem:[%s774 + $0x34] sm:%s767]
        %805 = vst [vmem:[%s775 + $0x38] sm:%s767] %v804
        %v806 = vld [vmem:[%s774 + $0x3c] sm:%s767]
        %807 = vst [vmem:[%s775 + $0x3c] sm:%s767] %v806
        %v808 = vld [vmem:[%s774 + $0x40] sm:%s767]
        %809 = vst [vmem:[%s775 + $0x40] sm:%s767] %v808
        %v810 = vld [vmem:[%s774 + $0x48] sm:%s767]
        %811 = vst [vmem:[%s775 + $0x44] sm:%s767] %v810
        %v812 = vld [vmem:[%s774 + $0x44] sm:%s767]
        %813 = vst [vmem:[%s775 + $0x48] sm:%s767] %v812
        %v814 = vld [vmem:[%s774 + $0x4c] sm:%s767]
        %815 = vst [vmem:[%s775 + $0x4c] sm:%s767] %v814
        %v816 = vld [vmem:[%s774 + $0x50] sm:%s767]
        %817 = vst [vmem:[%s775 + $0x50] sm:%s767] %v816
        %v818 = vld [vmem:[%s774 + $0x58] sm:%s767]
        %819 = vst [vmem:[%s775 + $0x54] sm:%s767] %v818
        %v820 = vld [vmem:[%s774 + $0x54] sm:%s767]
        %821 = vst [vmem:[%s775 + $0x58] sm:%s767] %v820
        %v822 = vld [vmem:[%s774 + $0x5c] sm:%s767]
        %823 = vst [vmem:[%s775 + $0x5c] sm:%s767] %v822
        %v824 = vld [vmem:[%s774 + $0x60] sm:%s767]
        %825 = vst [vmem:[%s775 + $0x60] sm:%s767] %v824
        %v826 = vld [vmem:[%s774 + $0x68] sm:%s767]
        %827 = vst [vmem:[%s775 + $0x64] sm:%s767] %v826
        %v828 = vld [vmem:[%s774 + $0x64] sm:%s767]
        %829 = vst [vmem:[%s775 + $0x68] sm:%s767] %v828
        %v830 = vld [vmem:[%s774 + $0x6c] sm:%s767]
        %831 = vst [vmem:[%s775 + $0x6c] sm:%s767] %v830
        %v832 = vld [vmem:[%s774 + $0x70] sm:%s767]
        %833 = vst [vmem:[%s775 + $0x70] sm:%s767] %v832
        %v834 = vld [vmem:[%s774 + $0x78] sm:%s767]
        %835 = vst [vmem:[%s775 + $0x74] sm:%s767] %v834
        %v836 = vld [vmem:[%s774 + $0x74] sm:%s767]
        %837 = vst [vmem:[%s775 + $0x78] sm:%s767] %v836
        %v838 = vld [vmem:[%s774 + $0x7c] sm:%s767]
        %839 = vst [vmem:[%s775 + $0x7c] sm:%s767] %v838
        %v840 = vld [vmem:[%s774 + $0x80] sm:%s767]
        %841 = vst [vmem:[%s775 + $0x80] sm:%s767] %v840
        %v842 = vld [vmem:[%s774 + $0x88] sm:%s767]
        %843 = vst [vmem:[%s775 + $0x84] sm:%s767] %v842
        %v844 = vld [vmem:[%s774 + $0x84] sm:%s767]
        %845 = vst [vmem:[%s775 + $0x88] sm:%s767] %v844
        %v846 = vld [vmem:[%s774 + $0x8c] sm:%s767]
        %847 = vst [vmem:[%s775 + $0x8c] sm:%s767] %v846
        %v848 = vld [vmem:[%s774 + $0x90] sm:%s767]
        %849 = vst [vmem:[%s775 + $0x90] sm:%s767] %v848
        %v850 = vld [vmem:[%s774 + $0x98] sm:%s767]
        %851 = vst [vmem:[%s775 + $0x94] sm:%s767] %v850
        %v852 = vld [vmem:[%s774 + $0x94] sm:%s767]
        %853 = vst [vmem:[%s775 + $0x98] sm:%s767] %v852
        %v854 = vld [vmem:[%s774 + $0x9c] sm:%s767]
        %855 = vst [vmem:[%s775 + $0x9c] sm:%s767] %v854
        %v856 = vld [vmem:[%s774 + $0xa0] sm:%s767]
        %857 = vst [vmem:[%s775 + $0xa0] sm:%s767] %v856
        %v858 = vld [vmem:[%s774 + $0xa8] sm:%s767]
        %859 = vst [vmem:[%s775 + $0xa4] sm:%s767] %v858
        %v860 = vld [vmem:[%s774 + $0xa4] sm:%s767]
        %861 = vst [vmem:[%s775 + $0xa8] sm:%s767] %v860
        %v862 = vld [vmem:[%s774 + $0xac] sm:%s767]
        %863 = vst [vmem:[%s775 + $0xac] sm:%s767] %v862
        %v864 = vld [vmem:[%s774 + $0xb0] sm:%s767]
        %865 = vst [vmem:[%s775 + $0xb0] sm:%s767] %v864
        %v866 = vld [vmem:[%s774 + $0xb8] sm:%s767]
        %867 = vst [vmem:[%s775 + $0xb4] sm:%s767] %v866
        %v868 = vld [vmem:[%s774 + $0xb4] sm:%s767]
        %869 = vst [vmem:[%s775 + $0xb8] sm:%s767] %v868
        %v870 = vld [vmem:[%s774 + $0xbc] sm:%s767]
        %871 = vst [vmem:[%s775 + $0xbc] sm:%s767] %v870
        %v872 = vld [vmem:[%s774 + $0xc0] sm:%s767]
        %873 = vst [vmem:[%s775 + $0xc0] sm:%s767] %v872
        %v874 = vld [vmem:[%s774 + $0xc8] sm:%s767]
        %875 = vst [vmem:[%s775 + $0xc4] sm:%s767] %v874
        %v876 = vld [vmem:[%s774 + $0xc4] sm:%s767]
        %877 = vst [vmem:[%s775 + $0xc8] sm:%s767] %v876
        %v878 = vld [vmem:[%s774 + $0xcc] sm:%s767]
        %879 = vst [vmem:[%s775 + $0xcc] sm:%s767] %v878
        %v880 = vld [vmem:[%s774 + $0xd0] sm:%s767]
        %881 = vst [vmem:[%s775 + $0xd0] sm:%s767] %v880
        %v882 = vld [vmem:[%s774 + $0xd8] sm:%s767]
        %883 = vst [vmem:[%s775 + $0xd4] sm:%s767] %v882
        %v884 = vld [vmem:[%s774 + $0xd4] sm:%s767]
        %885 = vst [vmem:[%s775 + $0xd8] sm:%s767] %v884
        %v886 = vld [vmem:[%s774 + $0xdc] sm:%s767]
        %887 = vst [vmem:[%s775 + $0xdc] sm:%s767] %v886
        %v888 = vld [vmem:[%s774 + $0xe0] sm:%s767]
        %889 = vst [vmem:[%s775 + $0xe0] sm:%s767] %v888
        %v890 = vld [vmem:[%s774 + $0xe8] sm:%s767]
        %891 = vst [vmem:[%s775 + $0xe4] sm:%s767] %v890
        %v892 = vld [vmem:[%s774 + $0xe4] sm:%s767]
        %893 = vst [vmem:[%s775 + $0xe8] sm:%s767] %v892
        %v894 = vld [vmem:[%s774 + $0xec] sm:%s767]
        %895 = vst [vmem:[%s775 + $0xec] sm:%s767] %v894
        %v896 = vld [vmem:[%s774 + $0xf0] sm:%s767]
        %897 = vst [vmem:[%s775 + $0xf0] sm:%s767] %v896
        %v898 = vld [vmem:[%s774 + $0xf8] sm:%s767]
        %899 = vst [vmem:[%s775 + $0xf4] sm:%s767] %v898
        %v900 = vld [vmem:[%s774 + $0xf4] sm:%s767]
        %901 = vst [vmem:[%s775 + $0xf8] sm:%s767] %v900
        %v902 = vld [vmem:[%s774 + $0xfc] sm:%s767]
        %903 = vst [vmem:[%s775 + $0xfc] sm:%s767] %v902
        %v904 = vld [vmem:[%s774 + $0x100] sm:%s767]
        %905 = vst [vmem:[%s775 + $0x100] sm:%s767] %v904
        %v906 = vld [vmem:[%s774 + $0x108] sm:%s767]
        %907 = vst [vmem:[%s775 + $0x104] sm:%s767] %v906
        %v908 = vld [vmem:[%s774 + $0x104] sm:%s767]
        %909 = vst [vmem:[%s775 + $0x108] sm:%s767] %v908
        %v910 = vld [vmem:[%s774 + $0x10c] sm:%s767]
        %911 = vst [vmem:[%s775 + $0x10c] sm:%s767] %v910
        %v912 = vld [vmem:[%s774 + $0x110] sm:%s767]
        %913 = vst [vmem:[%s775 + $0x110] sm:%s767] %v912
        %v914 = vld [vmem:[%s774 + $0x118] sm:%s767]
        %915 = vst [vmem:[%s775 + $0x114] sm:%s767] %v914
        %v916 = vld [vmem:[%s774 + $0x114] sm:%s767]
        %917 = vst [vmem:[%s775 + $0x118] sm:%s767] %v916
        %v918 = vld [vmem:[%s774 + $0x11c] sm:%s767]
        %919 = vst [vmem:[%s775 + $0x11c] sm:%s767] %v918
        %v920 = vld [vmem:[%s774 + $0x120] sm:%s767]
        %921 = vst [vmem:[%s775 + $0x120] sm:%s767] %v920
        %v922 = vld [vmem:[%s774 + $0x128] sm:%s767]
        %923 = vst [vmem:[%s775 + $0x124] sm:%s767] %v922
        %v924 = vld [vmem:[%s774 + $0x124] sm:%s767]
        %925 = vst [vmem:[%s775 + $0x128] sm:%s767] %v924
        %v926 = vld [vmem:[%s774 + $0x12c] sm:%s767]
        %927 = vst [vmem:[%s775 + $0x12c] sm:%s767] %v926
        %v928 = vld [vmem:[%s774 + $0x130] sm:%s767]
        %929 = vst [vmem:[%s775 + $0x130] sm:%s767] %v928
        %v930 = vld [vmem:[%s774 + $0x138] sm:%s767]
        %931 = vst [vmem:[%s775 + $0x134] sm:%s767] %v930
        %v932 = vld [vmem:[%s774 + $0x134] sm:%s767]
        %933 = vst [vmem:[%s775 + $0x138] sm:%s767] %v932
        %v934 = vld [vmem:[%s774 + $0x13c] sm:%s767]
        %935 = vst [vmem:[%s775 + $0x13c] sm:%s767] %v934
        %v936 = vld [vmem:[%s774 + $0x140] sm:%s767]
        %937 = vst [vmem:[%s775 + $0x140] sm:%s767] %v936
        %v938 = vld [vmem:[%s774 + $0x148] sm:%s767]
        %939 = vst [vmem:[%s775 + $0x144] sm:%s767] %v938
        %v940 = vld [vmem:[%s774 + $0x144] sm:%s767]
        %941 = vst [vmem:[%s775 + $0x148] sm:%s767] %v940
        %v942 = vld [vmem:[%s774 + $0x14c] sm:%s767]
        %943 = vst [vmem:[%s775 + $0x14c] sm:%s767] %v942
        %v944 = vld [vmem:[%s774 + $0x150] sm:%s767]
        %945 = vst [vmem:[%s775 + $0x150] sm:%s767] %v944
        %v946 = vld [vmem:[%s774 + $0x158] sm:%s767]
        %947 = vst [vmem:[%s775 + $0x154] sm:%s767] %v946
        %v948 = vld [vmem:[%s774 + $0x154] sm:%s767]
        %949 = vst [vmem:[%s775 + $0x158] sm:%s767] %v948
        %v950 = vld [vmem:[%s774 + $0x15c] sm:%s767]
        %951 = vst [vmem:[%s775 + $0x15c] sm:%s767] %v950
        %v952 = vld [vmem:[%s774 + $0x160] sm:%s767]
        %953 = vst [vmem:[%s775 + $0x160] sm:%s767] %v952
        %v954 = vld [vmem:[%s774 + $0x168] sm:%s767]
        %955 = vst [vmem:[%s775 + $0x164] sm:%s767] %v954
        %v956 = vld [vmem:[%s774 + $0x164] sm:%s767]
        %957 = vst [vmem:[%s775 + $0x168] sm:%s767] %v956
        %v958 = vld [vmem:[%s774 + $0x16c] sm:%s767]
        %959 = vst [vmem:[%s775 + $0x16c] sm:%s767] %v958
        %v960 = vld [vmem:[%s774 + $0x170] sm:%s767]
        %961 = vst [vmem:[%s775 + $0x170] sm:%s767] %v960
        %v962 = vld [vmem:[%s774 + $0x178] sm:%s767]
        %963 = vst [vmem:[%s775 + $0x174] sm:%s767] %v962
        %v964 = vld [vmem:[%s774 + $0x174] sm:%s767]
        %965 = vst [vmem:[%s775 + $0x178] sm:%s767] %v964
        %v966 = vld [vmem:[%s774 + $0x17c] sm:%s767]
        %967 = vst [vmem:[%s775 + $0x17c] sm:%s767] %v966
        %v968 = vld [vmem:[%s774 + $0x180] sm:%s767]
        %969 = vst [vmem:[%s775 + $0x180] sm:%s767] %v968
        %v970 = vld [vmem:[%s774 + $0x188] sm:%s767]
        %971 = vst [vmem:[%s775 + $0x184] sm:%s767] %v970
        %v972 = vld [vmem:[%s774 + $0x184] sm:%s767]
        %973 = vst [vmem:[%s775 + $0x188] sm:%s767] %v972
        %v974 = vld [vmem:[%s774 + $0x18c] sm:%s767]
        %975 = vst [vmem:[%s775 + $0x18c] sm:%s767] %v974
        %v976 = vld [vmem:[%s774 + $0x190] sm:%s767]
        %977 = vst [vmem:[%s775 + $0x190] sm:%s767] %v976
        %v978 = vld [vmem:[%s774 + $0x198] sm:%s767]
        %979 = vst [vmem:[%s775 + $0x194] sm:%s767] %v978
        %v980 = vld [vmem:[%s774 + $0x194] sm:%s767]
        %981 = vst [vmem:[%s775 + $0x198] sm:%s767] %v980
        %v982 = vld [vmem:[%s774 + $0x19c] sm:%s767]
        %983 = vst [vmem:[%s775 + $0x19c] sm:%s767] %v982
        %v984 = vld [vmem:[%s774 + $0x1a0] sm:%s767]
        %985 = vst [vmem:[%s775 + $0x1a0] sm:%s767] %v984
        %v986 = vld [vmem:[%s774 + $0x1a8] sm:%s767]
        %987 = vst [vmem:[%s775 + $0x1a4] sm:%s767] %v986
        %v988 = vld [vmem:[%s774 + $0x1a4] sm:%s767]
        %989 = vst [vmem:[%s775 + $0x1a8] sm:%s767] %v988
        %v990 = vld [vmem:[%s774 + $0x1ac] sm:%s767]
        %991 = vst [vmem:[%s775 + $0x1ac] sm:%s767] %v990
        %v992 = vld [vmem:[%s774 + $0x1b0] sm:%s767]
        %993 = vst [vmem:[%s775 + $0x1b0] sm:%s767] %v992
        %v994 = vld [vmem:[%s774 + $0x1b8] sm:%s767]
        %995 = vst [vmem:[%s775 + $0x1b4] sm:%s767] %v994
        %v996 = vld [vmem:[%s774 + $0x1b4] sm:%s767]
        %997 = vst [vmem:[%s775 + $0x1b8] sm:%s767] %v996
        %v998 = vld [vmem:[%s774 + $0x1bc] sm:%s767]
        %999 = vst [vmem:[%s775 + $0x1bc] sm:%s767] %v998
        %v1000 = vld [vmem:[%s774 + $0x1c0] sm:%s767]
        %1001 = vst [vmem:[%s775 + $0x1c0] sm:%s767] %v1000
        %v1002 = vld [vmem:[%s774 + $0x1c8] sm:%s767]
        %1003 = vst [vmem:[%s775 + $0x1c4] sm:%s767] %v1002
        %v1004 = vld [vmem:[%s774 + $0x1c4] sm:%s767]
        %1005 = vst [vmem:[%s775 + $0x1c8] sm:%s767] %v1004
        %v1006 = vld [vmem:[%s774 + $0x1cc] sm:%s767]
        %1007 = vst [vmem:[%s775 + $0x1cc] sm:%s767] %v1006
        %v1008 = vld [vmem:[%s774 + $0x1d0] sm:%s767]
        %1009 = vst [vmem:[%s775 + $0x1d0] sm:%s767] %v1008
        %v1010 = vld [vmem:[%s774 + $0x1d8] sm:%s767]
        %1011 = vst [vmem:[%s775 + $0x1d4] sm:%s767] %v1010
        %v1012 = vld [vmem:[%s774 + $0x1d4] sm:%s767]
        %1013 = vst [vmem:[%s775 + $0x1d8] sm:%s767] %v1012
        %v1014 = vld [vmem:[%s774 + $0x1dc] sm:%s767]
        %1015 = vst [vmem:[%s775 + $0x1dc] sm:%s767] %v1014
        %v1016 = vld [vmem:[%s774 + $0x1e0] sm:%s767]
        %1017 = vst [vmem:[%s775 + $0x1e0] sm:%s767] %v1016
        %v1018 = vld [vmem:[%s774 + $0x1e8] sm:%s767]
        %1019 = vst [vmem:[%s775 + $0x1e4] sm:%s767] %v1018
        %v1020 = vld [vmem:[%s774 + $0x1e4] sm:%s767]
        %1021 = vst [vmem:[%s775 + $0x1e8] sm:%s767] %v1020
        %v1022 = vld [vmem:[%s774 + $0x1ec] sm:%s767]
        %1023 = vst [vmem:[%s775 + $0x1ec] sm:%s767] %v1022
        %v1024 = vld [vmem:[%s774 + $0x1f0] sm:%s767]
        %1025 = vst [vmem:[%s775 + $0x1f0] sm:%s767] %v1024
        %v1026 = vld [vmem:[%s774 + $0x1f8] sm:%s767]
        %1027 = vst [vmem:[%s775 + $0x1f4] sm:%s767] %v1026
        %v1028 = vld [vmem:[%s774 + $0x1f4] sm:%s767]
        %1029 = vst [vmem:[%s775 + $0x1f8] sm:%s767] %v1028
        %v1030 = vld [vmem:[%s774 + $0x1fc] sm:%s767]
        %1031 = vst [vmem:[%s775 + $0x1fc] sm:%s767] %v1030
        %v1032 = vld [vmem:[%s774 + $0x200] sm:%s767]
        %1033 = vst [vmem:[%s775 + $0x200] sm:%s767] %v1032
        %v1034 = vld [vmem:[%s774 + $0x208] sm:%s767]
        %1035 = vst [vmem:[%s775 + $0x204] sm:%s767] %v1034
        %v1036 = vld [vmem:[%s774 + $0x204] sm:%s767]
        %1037 = vst [vmem:[%s775 + $0x208] sm:%s767] %v1036
        %v1038 = vld [vmem:[%s774 + $0x20c] sm:%s767]
        %1039 = vst [vmem:[%s775 + $0x20c] sm:%s767] %v1038
        %v1040 = vld [vmem:[%s774 + $0x210] sm:%s767]
        %1041 = vst [vmem:[%s775 + $0x210] sm:%s767] %v1040
        %v1042 = vld [vmem:[%s774 + $0x218] sm:%s767]
        %1043 = vst [vmem:[%s775 + $0x214] sm:%s767] %v1042
        %v1044 = vld [vmem:[%s774 + $0x214] sm:%s767]
        %1045 = vst [vmem:[%s775 + $0x218] sm:%s767] %v1044
        %v1046 = vld [vmem:[%s774 + $0x21c] sm:%s767]
        %1047 = vst [vmem:[%s775 + $0x21c] sm:%s767] %v1046
        %v1048 = vld [vmem:[%s774 + $0x220] sm:%s767]
        %1049 = vst [vmem:[%s775 + $0x220] sm:%s767] %v1048
        %v1050 = vld [vmem:[%s774 + $0x228] sm:%s767]
        %1051 = vst [vmem:[%s775 + $0x224] sm:%s767] %v1050
        %v1052 = vld [vmem:[%s774 + $0x224] sm:%s767]
        %1053 = vst [vmem:[%s775 + $0x228] sm:%s767] %v1052
        %v1054 = vld [vmem:[%s774 + $0x22c] sm:%s767]
        %1055 = vst [vmem:[%s775 + $0x22c] sm:%s767] %v1054
        %v1056 = vld [vmem:[%s774 + $0x230] sm:%s767]
        %1057 = vst [vmem:[%s775 + $0x230] sm:%s767] %v1056
        %v1058 = vld [vmem:[%s774 + $0x238] sm:%s767]
        %1059 = vst [vmem:[%s775 + $0x234] sm:%s767] %v1058
        %v1060 = vld [vmem:[%s774 + $0x234] sm:%s767]
        %1061 = vst [vmem:[%s775 + $0x238] sm:%s767] %v1060
        %v1062 = vld [vmem:[%s774 + $0x23c] sm:%s767]
        %1063 = vst [vmem:[%s775 + $0x23c] sm:%s767] %v1062
        %v1064 = vld [vmem:[%s774 + $0x240] sm:%s767]
        %1065 = vst [vmem:[%s775 + $0x240] sm:%s767] %v1064
        %v1066 = vld [vmem:[%s774 + $0x248] sm:%s767]
        %1067 = vst [vmem:[%s775 + $0x244] sm:%s767] %v1066
        %v1068 = vld [vmem:[%s774 + $0x244] sm:%s767]
        %1069 = vst [vmem:[%s775 + $0x248] sm:%s767] %v1068
        %v1070 = vld [vmem:[%s774 + $0x24c] sm:%s767]
        %1071 = vst [vmem:[%s775 + $0x24c] sm:%s767] %v1070
        %v1072 = vld [vmem:[%s774 + $0x250] sm:%s767]
        %1073 = vst [vmem:[%s775 + $0x250] sm:%s767] %v1072
        %v1074 = vld [vmem:[%s774 + $0x258] sm:%s767]
        %1075 = vst [vmem:[%s775 + $0x254] sm:%s767] %v1074
        %v1076 = vld [vmem:[%s774 + $0x254] sm:%s767]
        %1077 = vst [vmem:[%s775 + $0x258] sm:%s767] %v1076
        %v1078 = vld [vmem:[%s774 + $0x25c] sm:%s767]
        %1079 = vst [vmem:[%s775 + $0x25c] sm:%s767] %v1078
        %v1080 = vld [vmem:[%s774 + $0x260] sm:%s767]
        %1081 = vst [vmem:[%s775 + $0x260] sm:%s767] %v1080
        %v1082 = vld [vmem:[%s774 + $0x268] sm:%s767]
        %1083 = vst [vmem:[%s775 + $0x264] sm:%s767] %v1082
        %v1084 = vld [vmem:[%s774 + $0x264] sm:%s767]
        %1085 = vst [vmem:[%s775 + $0x268] sm:%s767] %v1084
        %v1086 = vld [vmem:[%s774 + $0x26c] sm:%s767]
        %1087 = vst [vmem:[%s775 + $0x26c] sm:%s767] %v1086
        %v1088 = vld [vmem:[%s774 + $0x270] sm:%s767]
        %1089 = vst [vmem:[%s775 + $0x270] sm:%s767] %v1088
        %v1090 = vld [vmem:[%s774 + $0x278] sm:%s767]
        %1091 = vst [vmem:[%s775 + $0x274] sm:%s767] %v1090
        %v1092 = vld [vmem:[%s774 + $0x274] sm:%s767]
        %1093 = vst [vmem:[%s775 + $0x278] sm:%s767] %v1092
        %v1094 = vld [vmem:[%s774 + $0x27c] sm:%s767]
        %1095 = vst [vmem:[%s775 + $0x27c] sm:%s767] %v1094
        %v1096 = vld [vmem:[%s774 + $0x280] sm:%s767]
        %1097 = vst [vmem:[%s775 + $0x280] sm:%s767] %v1096
        %v1098 = vld [vmem:[%s774 + $0x288] sm:%s767]
        %1099 = vst [vmem:[%s775 + $0x284] sm:%s767] %v1098
        %v1100 = vld [vmem:[%s774 + $0x284] sm:%s767]
        %1101 = vst [vmem:[%s775 + $0x288] sm:%s767] %v1100
        %v1102 = vld [vmem:[%s774 + $0x28c] sm:%s767]
        %1103 = vst [vmem:[%s775 + $0x28c] sm:%s767] %v1102
        %v1104 = vld [vmem:[%s774 + $0x290] sm:%s767]
        %1105 = vst [vmem:[%s775 + $0x290] sm:%s767] %v1104
        %v1106 = vld [vmem:[%s774 + $0x298] sm:%s767]
        %1107 = vst [vmem:[%s775 + $0x294] sm:%s767] %v1106
        %v1108 = vld [vmem:[%s774 + $0x294] sm:%s767]
        %1109 = vst [vmem:[%s775 + $0x298] sm:%s767] %v1108
        %v1110 = vld [vmem:[%s774 + $0x29c] sm:%s767]
        %1111 = vst [vmem:[%s775 + $0x29c] sm:%s767] %v1110
        %v1112 = vld [vmem:[%s774 + $0x2a0] sm:%s767]
        %1113 = vst [vmem:[%s775 + $0x2a0] sm:%s767] %v1112
        %v1114 = vld [vmem:[%s774 + $0x2a8] sm:%s767]
        %1115 = vst [vmem:[%s775 + $0x2a4] sm:%s767] %v1114
        %v1116 = vld [vmem:[%s774 + $0x2a4] sm:%s767]
        %1117 = vst [vmem:[%s775 + $0x2a8] sm:%s767] %v1116
        %v1118 = vld [vmem:[%s774 + $0x2ac] sm:%s767]
        %1119 = vst [vmem:[%s775 + $0x2ac] sm:%s767] %v1118
        %v1120 = vld [vmem:[%s774 + $0x2b0] sm:%s767]
        %1121 = vst [vmem:[%s775 + $0x2b0] sm:%s767] %v1120
        %v1122 = vld [vmem:[%s774 + $0x2b8] sm:%s767]
        %1123 = vst [vmem:[%s775 + $0x2b4] sm:%s767] %v1122
        %v1124 = vld [vmem:[%s774 + $0x2b4] sm:%s767]
        %1125 = vst [vmem:[%s775 + $0x2b8] sm:%s767] %v1124
        %v1126 = vld [vmem:[%s774 + $0x2bc] sm:%s767]
        %1127 = vst [vmem:[%s775 + $0x2bc] sm:%s767] %v1126
        %v1128 = vld [vmem:[%s774 + $0x2c0] sm:%s767]
        %1129 = vst [vmem:[%s775 + $0x2c0] sm:%s767] %v1128
        %v1130 = vld [vmem:[%s774 + $0x2c8] sm:%s767]
        %1131 = vst [vmem:[%s775 + $0x2c4] sm:%s767] %v1130
        %v1132 = vld [vmem:[%s774 + $0x2c4] sm:%s767]
        %1133 = vst [vmem:[%s775 + $0x2c8] sm:%s767] %v1132
        %v1134 = vld [vmem:[%s774 + $0x2cc] sm:%s767]
        %1135 = vst [vmem:[%s775 + $0x2cc] sm:%s767] %v1134
        %v1136 = vld [vmem:[%s774 + $0x2d0] sm:%s767]
        %1137 = vst [vmem:[%s775 + $0x2d0] sm:%s767] %v1136
        %v1138 = vld [vmem:[%s774 + $0x2d8] sm:%s767]
        %1139 = vst [vmem:[%s775 + $0x2d4] sm:%s767] %v1138
        %v1140 = vld [vmem:[%s774 + $0x2d4] sm:%s767]
        %1141 = vst [vmem:[%s775 + $0x2d8] sm:%s767] %v1140
        %v1142 = vld [vmem:[%s774 + $0x2dc] sm:%s767]
        %1143 = vst [vmem:[%s775 + $0x2dc] sm:%s767] %v1142
        %v1144 = vld [vmem:[%s774 + $0x2e0] sm:%s767]
        %1145 = vst [vmem:[%s775 + $0x2e0] sm:%s767] %v1144
        %v1146 = vld [vmem:[%s774 + $0x2e8] sm:%s767]
        %1147 = vst [vmem:[%s775 + $0x2e4] sm:%s767] %v1146
        %v1148 = vld [vmem:[%s774 + $0x2e4] sm:%s767]
        %1149 = vst [vmem:[%s775 + $0x2e8] sm:%s767] %v1148
        %v1150 = vld [vmem:[%s774 + $0x2ec] sm:%s767]
        %1151 = vst [vmem:[%s775 + $0x2ec] sm:%s767] %v1150
        %v1152 = vld [vmem:[%s774 + $0x2f0] sm:%s767]
        %1153 = vst [vmem:[%s775 + $0x2f0] sm:%s767] %v1152
        %v1154 = vld [vmem:[%s774 + $0x2f8] sm:%s767]
        %1155 = vst [vmem:[%s775 + $0x2f4] sm:%s767] %v1154
        %v1156 = vld [vmem:[%s774 + $0x2f4] sm:%s767]
        %1157 = vst [vmem:[%s775 + $0x2f8] sm:%s767] %v1156
        %v1158 = vld [vmem:[%s774 + $0x2fc] sm:%s767]
        %1159 = vst [vmem:[%s775 + $0x2fc] sm:%s767] %v1158
        %v1160 = vld [vmem:[%s774 + $0x300] sm:%s767]
        %1161 = vst [vmem:[%s775 + $0x300] sm:%s767] %v1160
        %v1162 = vld [vmem:[%s774 + $0x308] sm:%s767]
        %1163 = vst [vmem:[%s775 + $0x304] sm:%s767] %v1162
        %v1164 = vld [vmem:[%s774 + $0x304] sm:%s767]
        %1165 = vst [vmem:[%s775 + $0x308] sm:%s767] %v1164
        %v1166 = vld [vmem:[%s774 + $0x30c] sm:%s767]
        %1167 = vst [vmem:[%s775 + $0x30c] sm:%s767] %v1166
        %v1168 = vld [vmem:[%s774 + $0x310] sm:%s767]
        %1169 = vst [vmem:[%s775 + $0x310] sm:%s767] %v1168
        %v1170 = vld [vmem:[%s774 + $0x318] sm:%s767]
        %1171 = vst [vmem:[%s775 + $0x314] sm:%s767] %v1170
        %v1172 = vld [vmem:[%s774 + $0x314] sm:%s767]
        %1173 = vst [vmem:[%s775 + $0x318] sm:%s767] %v1172
        %v1174 = vld [vmem:[%s774 + $0x31c] sm:%s767]
        %1175 = vst [vmem:[%s775 + $0x31c] sm:%s767] %v1174
        %v1176 = vld [vmem:[%s774 + $0x320] sm:%s767]
        %1177 = vst [vmem:[%s775 + $0x320] sm:%s767] %v1176
        %v1178 = vld [vmem:[%s774 + $0x328] sm:%s767]
        %1179 = vst [vmem:[%s775 + $0x324] sm:%s767] %v1178
        %v1180 = vld [vmem:[%s774 + $0x324] sm:%s767]
        %1181 = vst [vmem:[%s775 + $0x328] sm:%s767] %v1180
        %v1182 = vld [vmem:[%s774 + $0x32c] sm:%s767]
        %1183 = vst [vmem:[%s775 + $0x32c] sm:%s767] %v1182
        %v1184 = vld [vmem:[%s774 + $0x330] sm:%s767]
        %1185 = vst [vmem:[%s775 + $0x330] sm:%s767] %v1184
        %v1186 = vld [vmem:[%s774 + $0x338] sm:%s767]
        %1187 = vst [vmem:[%s775 + $0x334] sm:%s767] %v1186
        %v1188 = vld [vmem:[%s774 + $0x334] sm:%s767]
        %1189 = vst [vmem:[%s775 + $0x338] sm:%s767] %v1188
        %v1190 = vld [vmem:[%s774 + $0x33c] sm:%s767]
        %1191 = vst [vmem:[%s775 + $0x33c] sm:%s767] %v1190
        %v1192 = vld [vmem:[%s774 + $0x340] sm:%s767]
        %1193 = vst [vmem:[%s775 + $0x340] sm:%s767] %v1192
        %v1194 = vld [vmem:[%s774 + $0x348] sm:%s767]
        %1195 = vst [vmem:[%s775 + $0x344] sm:%s767] %v1194
        %v1196 = vld [vmem:[%s774 + $0x344] sm:%s767]
        %1197 = vst [vmem:[%s775 + $0x348] sm:%s767] %v1196
        %v1198 = vld [vmem:[%s774 + $0x34c] sm:%s767]
        %1199 = vst [vmem:[%s775 + $0x34c] sm:%s767] %v1198
        %v1200 = vld [vmem:[%s774 + $0x350] sm:%s767]
        %1201 = vst [vmem:[%s775 + $0x350] sm:%s767] %v1200
        %v1202 = vld [vmem:[%s774 + $0x358] sm:%s767]
        %1203 = vst [vmem:[%s775 + $0x354] sm:%s767] %v1202
        %v1204 = vld [vmem:[%s774 + $0x354] sm:%s767]
        %1205 = vst [vmem:[%s775 + $0x358] sm:%s767] %v1204
        %v1206 = vld [vmem:[%s774 + $0x35c] sm:%s767]
        %1207 = vst [vmem:[%s775 + $0x35c] sm:%s767] %v1206
        %v1208 = vld [vmem:[%s774 + $0x360] sm:%s767]
        %1209 = vst [vmem:[%s775 + $0x360] sm:%s767] %v1208
        %v1210 = vld [vmem:[%s774 + $0x368] sm:%s767]
        %1211 = vst [vmem:[%s775 + $0x364] sm:%s767] %v1210
        %v1212 = vld [vmem:[%s774 + $0x364] sm:%s767]
        %1213 = vst [vmem:[%s775 + $0x368] sm:%s767] %v1212
        %v1214 = vld [vmem:[%s774 + $0x36c] sm:%s767]
        %1215 = vst [vmem:[%s775 + $0x36c] sm:%s767] %v1214
        %v1216 = vld [vmem:[%s774 + $0x370] sm:%s767]
        %1217 = vst [vmem:[%s775 + $0x370] sm:%s767] %v1216
        %v1218 = vld [vmem:[%s774 + $0x378] sm:%s767]
        %1219 = vst [vmem:[%s775 + $0x374] sm:%s767] %v1218
        %v1220 = vld [vmem:[%s774 + $0x374] sm:%s767]
        %1221 = vst [vmem:[%s775 + $0x378] sm:%s767] %v1220
        %v1222 = vld [vmem:[%s774 + $0x37c] sm:%s767]
        %1223 = vst [vmem:[%s775 + $0x37c] sm:%s767] %v1222
        %v1224 = vld [vmem:[%s774 + $0x380] sm:%s767]
        %1225 = vst [vmem:[%s775 + $0x380] sm:%s767] %v1224
        %v1226 = vld [vmem:[%s774 + $0x388] sm:%s767]
        %1227 = vst [vmem:[%s775 + $0x384] sm:%s767] %v1226
        %v1228 = vld [vmem:[%s774 + $0x384] sm:%s767]
        %1229 = vst [vmem:[%s775 + $0x388] sm:%s767] %v1228
        %v1230 = vld [vmem:[%s774 + $0x38c] sm:%s767]
        %1231 = vst [vmem:[%s775 + $0x38c] sm:%s767] %v1230
        %v1232 = vld [vmem:[%s774 + $0x390] sm:%s767]
        %1233 = vst [vmem:[%s775 + $0x390] sm:%s767] %v1232
        %v1234 = vld [vmem:[%s774 + $0x398] sm:%s767]
        %1235 = vst [vmem:[%s775 + $0x394] sm:%s767] %v1234
        %v1236 = vld [vmem:[%s774 + $0x394] sm:%s767]
        %1237 = vst [vmem:[%s775 + $0x398] sm:%s767] %v1236
        %v1238 = vld [vmem:[%s774 + $0x39c] sm:%s767]
        %1239 = vst [vmem:[%s775 + $0x39c] sm:%s767] %v1238
        %v1240 = vld [vmem:[%s774 + $0x3a0] sm:%s767]
        %1241 = vst [vmem:[%s775 + $0x3a0] sm:%s767] %v1240
        %v1242 = vld [vmem:[%s774 + $0x3a8] sm:%s767]
        %1243 = vst [vmem:[%s775 + $0x3a4] sm:%s767] %v1242
        %v1244 = vld [vmem:[%s774 + $0x3a4] sm:%s767]
        %1245 = vst [vmem:[%s775 + $0x3a8] sm:%s767] %v1244
        %v1246 = vld [vmem:[%s774 + $0x3ac] sm:%s767]
        %1247 = vst [vmem:[%s775 + $0x3ac] sm:%s767] %v1246
        %v1248 = vld [vmem:[%s774 + $0x3b0] sm:%s767]
        %1249 = vst [vmem:[%s775 + $0x3b0] sm:%s767] %v1248
        %v1250 = vld [vmem:[%s774 + $0x3b8] sm:%s767]
        %1251 = vst [vmem:[%s775 + $0x3b4] sm:%s767] %v1250
        %v1252 = vld [vmem:[%s774 + $0x3b4] sm:%s767]
        %1253 = vst [vmem:[%s775 + $0x3b8] sm:%s767] %v1252
        %v1254 = vld [vmem:[%s774 + $0x3bc] sm:%s767]
        %1255 = vst [vmem:[%s775 + $0x3bc] sm:%s767] %v1254
        %v1256 = vld [vmem:[%s774 + $0x3c0] sm:%s767]
        %1257 = vst [vmem:[%s775 + $0x3c0] sm:%s767] %v1256
        %v1258 = vld [vmem:[%s774 + $0x3c8] sm:%s767]
        %1259 = vst [vmem:[%s775 + $0x3c4] sm:%s767] %v1258
        %v1260 = vld [vmem:[%s774 + $0x3c4] sm:%s767]
        %1261 = vst [vmem:[%s775 + $0x3c8] sm:%s767] %v1260
        %v1262 = vld [vmem:[%s774 + $0x3cc] sm:%s767]
        %1263 = vst [vmem:[%s775 + $0x3cc] sm:%s767] %v1262
        %v1264 = vld [vmem:[%s774 + $0x3d0] sm:%s767]
        %1265 = vst [vmem:[%s775 + $0x3d0] sm:%s767] %v1264
        %v1266 = vld [vmem:[%s774 + $0x3d8] sm:%s767]
        %1267 = vst [vmem:[%s775 + $0x3d4] sm:%s767] %v1266
        %v1268 = vld [vmem:[%s774 + $0x3d4] sm:%s767]
        %1269 = vst [vmem:[%s775 + $0x3d8] sm:%s767] %v1268
        %v1270 = vld [vmem:[%s774 + $0x3dc] sm:%s767]
        %1271 = vst [vmem:[%s775 + $0x3dc] sm:%s767] %v1270
        %v1272 = vld [vmem:[%s774 + $0x3e0] sm:%s767]
        %1273 = vst [vmem:[%s775 + $0x3e0] sm:%s767] %v1272
        %v1274 = vld [vmem:[%s774 + $0x3e8] sm:%s767]
        %1275 = vst [vmem:[%s775 + $0x3e4] sm:%s767] %v1274
        %v1276 = vld [vmem:[%s774 + $0x3e4] sm:%s767]
        %1277 = vst [vmem:[%s775 + $0x3e8] sm:%s767] %v1276
        %v1278 = vld [vmem:[%s774 + $0x3ec] sm:%s767]
        %1279 = vst [vmem:[%s775 + $0x3ec] sm:%s767] %v1278
        %v1280 = vld [vmem:[%s774 + $0x3f0] sm:%s767]
        %1281 = vst [vmem:[%s775 + $0x3f0] sm:%s767] %v1280
        %v1282 = vld [vmem:[%s774 + $0x3f8] sm:%s767]
        %1283 = vst [vmem:[%s775 + $0x3f4] sm:%s767] %v1282
        %v1284 = vld [vmem:[%s774 + $0x3f4] sm:%s767]
        %1285 = vst [vmem:[%s775 + $0x3f8] sm:%s767] %v1284
        %v1286 = vld [vmem:[%s774 + $0x3fc] sm:%s767]
        %1287 = vst [vmem:[%s775 + $0x3fc] sm:%s767] %v1286
        %v1288 = vld [vmem:[%s774 + $0x400] sm:%s767]
        %1289 = vst [vmem:[%s775 + $0x400] sm:%s767] %v1288
        %v1290 = vld [vmem:[%s774 + $0x408] sm:%s767]
        %1291 = vst [vmem:[%s775 + $0x404] sm:%s767] %v1290
        %v1292 = vld [vmem:[%s774 + $0x404] sm:%s767]
        %1293 = vst [vmem:[%s775 + $0x408] sm:%s767] %v1292
        %v1294 = vld [vmem:[%s774 + $0x40c] sm:%s767]
        %1295 = vst [vmem:[%s775 + $0x40c] sm:%s767] %v1294
        %v1296 = vld [vmem:[%s774 + $0x410] sm:%s767]
        %1297 = vst [vmem:[%s775 + $0x410] sm:%s767] %v1296
        %v1298 = vld [vmem:[%s774 + $0x418] sm:%s767]
        %1299 = vst [vmem:[%s775 + $0x414] sm:%s767] %v1298
        %v1300 = vld [vmem:[%s774 + $0x414] sm:%s767]
        %1301 = vst [vmem:[%s775 + $0x418] sm:%s767] %v1300
        %v1302 = vld [vmem:[%s774 + $0x41c] sm:%s767]
        %1303 = vst [vmem:[%s775 + $0x41c] sm:%s767] %v1302
        %v1304 = vld [vmem:[%s774 + $0x420] sm:%s767]
        %1305 = vst [vmem:[%s775 + $0x420] sm:%s767] %v1304
        %v1306 = vld [vmem:[%s774 + $0x428] sm:%s767]
        %1307 = vst [vmem:[%s775 + $0x424] sm:%s767] %v1306
        %v1308 = vld [vmem:[%s774 + $0x424] sm:%s767]
        %1309 = vst [vmem:[%s775 + $0x428] sm:%s767] %v1308
        %v1310 = vld [vmem:[%s774 + $0x42c] sm:%s767]
        %1311 = vst [vmem:[%s775 + $0x42c] sm:%s767] %v1310
        %v1312 = vld [vmem:[%s774 + $0x430] sm:%s767]
        %1313 = vst [vmem:[%s775 + $0x430] sm:%s767] %v1312
        %v1314 = vld [vmem:[%s774 + $0x438] sm:%s767]
        %1315 = vst [vmem:[%s775 + $0x434] sm:%s767] %v1314
        %v1316 = vld [vmem:[%s774 + $0x434] sm:%s767]
        %1317 = vst [vmem:[%s775 + $0x438] sm:%s767] %v1316
        %v1318 = vld [vmem:[%s774 + $0x43c] sm:%s767]
        %1319 = vst [vmem:[%s775 + $0x43c] sm:%s767] %v1318
        %v1320 = vld [vmem:[%s774 + $0x440] sm:%s767]
        %1321 = vst [vmem:[%s775 + $0x440] sm:%s767] %v1320
        %v1322 = vld [vmem:[%s774 + $0x448] sm:%s767]
        %1323 = vst [vmem:[%s775 + $0x444] sm:%s767] %v1322
        %v1324 = vld [vmem:[%s774 + $0x444] sm:%s767]
        %1325 = vst [vmem:[%s775 + $0x448] sm:%s767] %v1324
        %v1326 = vld [vmem:[%s774 + $0x44c] sm:%s767]
        %1327 = vst [vmem:[%s775 + $0x44c] sm:%s767] %v1326
        %v1328 = vld [vmem:[%s774 + $0x450] sm:%s767]
        %1329 = vst [vmem:[%s775 + $0x450] sm:%s767] %v1328
        %v1330 = vld [vmem:[%s774 + $0x458] sm:%s767]
        %1331 = vst [vmem:[%s775 + $0x454] sm:%s767] %v1330
        %v1332 = vld [vmem:[%s774 + $0x454] sm:%s767]
        %1333 = vst [vmem:[%s775 + $0x458] sm:%s767] %v1332
        %v1334 = vld [vmem:[%s774 + $0x45c] sm:%s767]
        %1335 = vst [vmem:[%s775 + $0x45c] sm:%s767] %v1334
        %v1336 = vld [vmem:[%s774 + $0x460] sm:%s767]
        %1337 = vst [vmem:[%s775 + $0x460] sm:%s767] %v1336
        %v1338 = vld [vmem:[%s774 + $0x468] sm:%s767]
        %1339 = vst [vmem:[%s775 + $0x464] sm:%s767] %v1338
        %v1340 = vld [vmem:[%s774 + $0x464] sm:%s767]
        %1341 = vst [vmem:[%s775 + $0x468] sm:%s767] %v1340
        %v1342 = vld [vmem:[%s774 + $0x46c] sm:%s767]
        %1343 = vst [vmem:[%s775 + $0x46c] sm:%s767] %v1342
        %v1344 = vld [vmem:[%s774 + $0x470] sm:%s767]
        %1345 = vst [vmem:[%s775 + $0x470] sm:%s767] %v1344
        %v1346 = vld [vmem:[%s774 + $0x478] sm:%s767]
        %1347 = vst [vmem:[%s775 + $0x474] sm:%s767] %v1346
        %v1348 = vld [vmem:[%s774 + $0x474] sm:%s767]
        %1349 = vst [vmem:[%s775 + $0x478] sm:%s767] %v1348
        %v1350 = vld [vmem:[%s774 + $0x47c] sm:%s767]
        %1351 = vst [vmem:[%s775 + $0x47c] sm:%s767] %v1350
      $region183: #{fwd.1} parent=177 // loop_footer
        %s773 = sadd.s32 1, %s769
      $region184: #{fwd.1} parent=177 // loop_footer_branch
        %768 = sbr.rel target = $region180
      $region185: #{fwd.1} parent=177 // loop_exit
        _
    $region178: #{fwd.1} parent=1 // pred_fallthru
      _
    // Predicated region
    $region204: #{fwd.1} parent=1 // pred_check
      _
    $region205: #{fwd.1} parent=1 // pred_check_branch
      %1957 = sbr.rel (0) target = $region207
    $region206: #{fwd.1} parent=1 // pred_region
      %1958 = vsyncadd %s758, 18432
    $region207: #{fwd.1} parent=1 // pred_fallthru
      _
    %s1959 = scalar_lea.sflag [#allocation15], 2
    %p1961 = scmp.lt.u32.totalorder 288, 8
    %p1962 = pneg %p1961
    // Predicated region
    $region208: #{fwd.1} parent=1 // pred_check
      _
    $region209: #{fwd.1} parent=1 // pred_check_branch
      %1964 = sbr.rel (%p1961) target = $region211
    $region210: #{fwd.1} parent=1 // pred_region
      %s1979 = sand.u32 288, 7
      %p1980 = scmp.eq.s32.totalorder %s1979, 0
      // Predicated region
      $region223: #{fwd.1} parent=210 // pred_check
        %p1981 = pneg %p1980
      $region224: #{fwd.1} parent=210 // pred_check_branch
        %1983 = sbr.rel (%p1981) target = $region226
      $region225: #{fwd.1} parent=210 // pred_region
        loop: start=0, step=1, limit=1
        $region227: #{fwd.1} parent=225 // loop_pre_header
          _
        $region228: #{fwd.1} parent=225 // loop_header
          %s1985 = sphi 0, %s1989
          %p1986 = scmp.ge.s32.totalorder %s1985, 1
          %s1990 = sphi %s22, %s22
          %s1991 = sphi [#allocation13], [#allocation13]
        $region229: #{fwd.1} parent=225 // loop_header_branch
          %1988 = sbr.rel (%p1986) target = $region233
        $region230: #{fwd.1} parent=225 // loop_body
          %v1992 = vld [vmem:[%s1990] sm:$0xff]
          %1993 = vst [vmem:[%s1991] sm:$0xff] %v1992
          %v1994 = vld [vmem:[%s1990 + $0x8] sm:$0xff]
          %1995 = vst [vmem:[%s1991 + $0x8] sm:$0xff] %v1994
          %v1996 = vld [vmem:[%s1990 + $0x10] sm:$0xff]
          %1997 = vst [vmem:[%s1991 + $0x10] sm:$0xff] %v1996
          %v1998 = vld [vmem:[%s1990 + $0x18] sm:$0xff]
          %1999 = vst [vmem:[%s1991 + $0x18] sm:$0xff] %v1998
          %v2000 = vld [vmem:[%s1990 + $0x20] sm:$0xff]
          %2001 = vst [vmem:[%s1991 + $0x20] sm:$0xff] %v2000
          %v2002 = vld [vmem:[%s1990 + $0x28] sm:$0xff]
          %2003 = vst [vmem:[%s1991 + $0x28] sm:$0xff] %v2002
          %v2004 = vld [vmem:[%s1990 + $0x30] sm:$0xff]
          %2005 = vst [vmem:[%s1991 + $0x30] sm:$0xff] %v2004
          %v2006 = vld [vmem:[%s1990 + $0x38] sm:$0xff]
          %2007 = vst [vmem:[%s1991 + $0x38] sm:$0xff] %v2006
          %v2008 = vld [vmem:[%s1990 + $0x40] sm:$0xff]
          %2009 = vst [vmem:[%s1991 + $0x40] sm:$0xff] %v2008
          %v2010 = vld [vmem:[%s1990 + $0x48] sm:$0xff]
          %2011 = vst [vmem:[%s1991 + $0x48] sm:$0xff] %v2010
          %v2012 = vld [vmem:[%s1990 + $0x50] sm:$0xff]
          %2013 = vst [vmem:[%s1991 + $0x50] sm:$0xff] %v2012
          %v2014 = vld [vmem:[%s1990 + $0x58] sm:$0xff]
          %2015 = vst [vmem:[%s1991 + $0x58] sm:$0xff] %v2014
          %v2016 = vld [vmem:[%s1990 + $0x60] sm:$0xff]
          %2017 = vst [vmem:[%s1991 + $0x60] sm:$0xff] %v2016
          %v2018 = vld [vmem:[%s1990 + $0x68] sm:$0xff]
          %2019 = vst [vmem:[%s1991 + $0x68] sm:$0xff] %v2018
          %v2020 = vld [vmem:[%s1990 + $0x70] sm:$0xff]
          %2021 = vst [vmem:[%s1991 + $0x70] sm:$0xff] %v2020
          %v2022 = vld [vmem:[%s1990 + $0x78] sm:$0xff]
          %2023 = vst [vmem:[%s1991 + $0x78] sm:$0xff] %v2022
          %v2024 = vld [vmem:[%s1990 + $0x80] sm:$0xff]
          %2025 = vst [vmem:[%s1991 + $0x80] sm:$0xff] %v2024
          %v2026 = vld [vmem:[%s1990 + $0x88] sm:$0xff]
          %2027 = vst [vmem:[%s1991 + $0x88] sm:$0xff] %v2026
          %v2028 = vld [vmem:[%s1990 + $0x90] sm:$0xff]
          %2029 = vst [vmem:[%s1991 + $0x90] sm:$0xff] %v2028
          %v2030 = vld [vmem:[%s1990 + $0x98] sm:$0xff]
          %2031 = vst [vmem:[%s1991 + $0x98] sm:$0xff] %v2030
          %v2032 = vld [vmem:[%s1990 + $0xa0] sm:$0xff]
          %2033 = vst [vmem:[%s1991 + $0xa0] sm:$0xff] %v2032
          %v2034 = vld [vmem:[%s1990 + $0xa8] sm:$0xff]
          %2035 = vst [vmem:[%s1991 + $0xa8] sm:$0xff] %v2034
          %v2036 = vld [vmem:[%s1990 + $0xb0] sm:$0xff]
          %2037 = vst [vmem:[%s1991 + $0xb0] sm:$0xff] %v2036
          %v2038 = vld [vmem:[%s1990 + $0xb8] sm:$0xff]
          %2039 = vst [vmem:[%s1991 + $0xb8] sm:$0xff] %v2038
          %v2040 = vld [vmem:[%s1990 + $0xc0] sm:$0xff]
          %2041 = vst [vmem:[%s1991 + $0xc0] sm:$0xff] %v2040
          %v2042 = vld [vmem:[%s1990 + $0xc8] sm:$0xff]
          %2043 = vst [vmem:[%s1991 + $0xc8] sm:$0xff] %v2042
          %v2044 = vld [vmem:[%s1990 + $0xd0] sm:$0xff]
          %2045 = vst [vmem:[%s1991 + $0xd0] sm:$0xff] %v2044
          %v2046 = vld [vmem:[%s1990 + $0xd8] sm:$0xff]
          %2047 = vst [vmem:[%s1991 + $0xd8] sm:$0xff] %v2046
          %v2048 = vld [vmem:[%s1990 + $0xe0] sm:$0xff]
          %2049 = vst [vmem:[%s1991 + $0xe0] sm:$0xff] %v2048
          %v2050 = vld [vmem:[%s1990 + $0xe8] sm:$0xff]
          %2051 = vst [vmem:[%s1991 + $0xe8] sm:$0xff] %v2050
          %v2052 = vld [vmem:[%s1990 + $0xf0] sm:$0xff]
          %2053 = vst [vmem:[%s1991 + $0xf0] sm:$0xff] %v2052
          %v2054 = vld [vmem:[%s1990 + $0xf8] sm:$0xff]
          %2055 = vst [vmem:[%s1991 + $0xf8] sm:$0xff] %v2054
          %v2056 = vld [vmem:[%s1990 + $0x100] sm:$0xff]
          %2057 = vst [vmem:[%s1991 + $0x100] sm:$0xff] %v2056
          %v2058 = vld [vmem:[%s1990 + $0x108] sm:$0xff]
          %2059 = vst [vmem:[%s1991 + $0x108] sm:$0xff] %v2058
          %v2060 = vld [vmem:[%s1990 + $0x110] sm:$0xff]
          %2061 = vst [vmem:[%s1991 + $0x110] sm:$0xff] %v2060
          %v2062 = vld [vmem:[%s1990 + $0x118] sm:$0xff]
          %2063 = vst [vmem:[%s1991 + $0x118] sm:$0xff] %v2062
        $region231: #{fwd.1} parent=225 // loop_footer
          %s1989 = sadd.s32 1, %s1985
        $region232: #{fwd.1} parent=225 // loop_footer_branch
          %1984 = sbr.rel target = $region228
        $region233: #{fwd.1} parent=225 // loop_exit
          _
      $region226: #{fwd.1} parent=210 // pred_fallthru
        _
      %p2064 = pneg %p1980
      // Predicated region
      $region234: #{fwd.1} parent=210 // pred_check
        _
      $region235: #{fwd.1} parent=210 // pred_check_branch
        %2066 = sbr.rel (%p1980) target = $region237
      $region236: #{fwd.1} parent=210 // pred_region
        %s2067 = sand.u32 288, 7
      $region237: #{fwd.1} parent=210 // pred_fallthru
        _
    $region211: #{fwd.1} parent=1 // pred_fallthru
      _
    // Predicated region
    $region212: #{fwd.1} parent=1 // pred_check
      %p1965 = pneg %p1961
    $region213: #{fwd.1} parent=1 // pred_check_branch
      %1967 = sbr.rel (%p1965) target = $region215
    $region214: #{fwd.1} parent=1 // pred_region
      %s1968 = sshllo.u32 0, 288
      loop: start=0, step=1, limit=1
      $region216: #{fwd.1} parent=214 // loop_pre_header
        _
      $region217: #{fwd.1} parent=214 // loop_header
        %s1970 = sphi 0, %s1974
        %p1971 = scmp.ge.s32.totalorder %s1970, 1
        %s1975 = sphi %s22, %s22
        %s1976 = sphi [#allocation13], [#allocation13]
      $region218: #{fwd.1} parent=214 // loop_header_branch
        %1973 = sbr.rel (%p1971) target = $region222
      $region219: #{fwd.1} parent=214 // loop_body
        %v1977 = vld [vmem:[%s1975] sm:%s1968]
        %1978 = vst [vmem:[%s1976] sm:%s1968] %v1977
      $region220: #{fwd.1} parent=214 // loop_footer
        %s1974 = sadd.s32 1, %s1970
      $region221: #{fwd.1} parent=214 // loop_footer_branch
        %1969 = sbr.rel target = $region217
      $region222: #{fwd.1} parent=214 // loop_exit
        _
    $region215: #{fwd.1} parent=1 // pred_fallthru
      _
    // Predicated region
    $region238: #{fwd.1} parent=1 // pred_check
      _
    $region239: #{fwd.1} parent=1 // pred_check_branch
      %2070 = sbr.rel (0) target = $region241
    $region240: #{fwd.1} parent=1 // pred_region
      %2071 = vsyncadd %s1959, 4608
    $region241: #{fwd.1} parent=1 // pred_fallthru
      _
    %s2072 = scalar_lea.sflag [#allocation15], 3
    %p2074 = scmp.lt.u32.totalorder 576, 8
    %p2075 = pneg %p2074
    // Predicated region
    $region242: #{fwd.1} parent=1 // pred_check
      _
    $region243: #{fwd.1} parent=1 // pred_check_branch
      %2077 = sbr.rel (%p2074) target = $region245
    $region244: #{fwd.1} parent=1 // pred_region
      %s2092 = sand.u32 576, 7
      %p2093 = scmp.eq.s32.totalorder %s2092, 0
      // Predicated region
      $region257: #{fwd.1} parent=244 // pred_check
        %p2094 = pneg %p2093
      $region258: #{fwd.1} parent=244 // pred_check_branch
        %2096 = sbr.rel (%p2094) target = $region260
      $region259: #{fwd.1} parent=244 // pred_region
        loop: start=0, step=1, limit=1
        $region261: #{fwd.1} parent=259 // loop_pre_header
          _
        $region262: #{fwd.1} parent=259 // loop_header
          %s2098 = sphi 0, %s2102
          %p2099 = scmp.ge.s32.totalorder %s2098, 1
          %s2103 = sphi %s24, %s24
          %s2104 = sphi [#allocation14], [#allocation14]
        $region263: #{fwd.1} parent=259 // loop_header_branch
          %2101 = sbr.rel (%p2099) target = $region267
        $region264: #{fwd.1} parent=259 // loop_body
          %v2105 = vld [vmem:[%s2103] sm:$0xff]
          %2106 = vst [vmem:[%s2104] sm:$0xff] %v2105
          %v2107 = vld [vmem:[%s2103 + $0x8] sm:$0xff]
          %2108 = vst [vmem:[%s2104 + $0x8] sm:$0xff] %v2107
          %v2109 = vld [vmem:[%s2103 + $0x10] sm:$0xff]
          %2110 = vst [vmem:[%s2104 + $0x10] sm:$0xff] %v2109
          %v2111 = vld [vmem:[%s2103 + $0x18] sm:$0xff]
          %2112 = vst [vmem:[%s2104 + $0x18] sm:$0xff] %v2111
          %v2113 = vld [vmem:[%s2103 + $0x20] sm:$0xff]
          %2114 = vst [vmem:[%s2104 + $0x20] sm:$0xff] %v2113
          %v2115 = vld [vmem:[%s2103 + $0x28] sm:$0xff]
          %2116 = vst [vmem:[%s2104 + $0x28] sm:$0xff] %v2115
          %v2117 = vld [vmem:[%s2103 + $0x30] sm:$0xff]
          %2118 = vst [vmem:[%s2104 + $0x30] sm:$0xff] %v2117
          %v2119 = vld [vmem:[%s2103 + $0x38] sm:$0xff]
          %2120 = vst [vmem:[%s2104 + $0x38] sm:$0xff] %v2119
          %v2121 = vld [vmem:[%s2103 + $0x40] sm:$0xff]
          %2122 = vst [vmem:[%s2104 + $0x40] sm:$0xff] %v2121
          %v2123 = vld [vmem:[%s2103 + $0x48] sm:$0xff]
          %2124 = vst [vmem:[%s2104 + $0x48] sm:$0xff] %v2123
          %v2125 = vld [vmem:[%s2103 + $0x50] sm:$0xff]
          %2126 = vst [vmem:[%s2104 + $0x50] sm:$0xff] %v2125
          %v2127 = vld [vmem:[%s2103 + $0x58] sm:$0xff]
          %2128 = vst [vmem:[%s2104 + $0x58] sm:$0xff] %v2127
          %v2129 = vld [vmem:[%s2103 + $0x60] sm:$0xff]
          %2130 = vst [vmem:[%s2104 + $0x60] sm:$0xff] %v2129
          %v2131 = vld [vmem:[%s2103 + $0x68] sm:$0xff]
          %2132 = vst [vmem:[%s2104 + $0x68] sm:$0xff] %v2131
          %v2133 = vld [vmem:[%s2103 + $0x70] sm:$0xff]
          %2134 = vst [vmem:[%s2104 + $0x70] sm:$0xff] %v2133
          %v2135 = vld [vmem:[%s2103 + $0x78] sm:$0xff]
          %2136 = vst [vmem:[%s2104 + $0x78] sm:$0xff] %v2135
          %v2137 = vld [vmem:[%s2103 + $0x80] sm:$0xff]
          %2138 = vst [vmem:[%s2104 + $0x80] sm:$0xff] %v2137
          %v2139 = vld [vmem:[%s2103 + $0x88] sm:$0xff]
          %2140 = vst [vmem:[%s2104 + $0x88] sm:$0xff] %v2139
          %v2141 = vld [vmem:[%s2103 + $0x90] sm:$0xff]
          %2142 = vst [vmem:[%s2104 + $0x90] sm:$0xff] %v2141
          %v2143 = vld [vmem:[%s2103 + $0x98] sm:$0xff]
          %2144 = vst [vmem:[%s2104 + $0x98] sm:$0xff] %v2143
          %v2145 = vld [vmem:[%s2103 + $0xa0] sm:$0xff]
          %2146 = vst [vmem:[%s2104 + $0xa0] sm:$0xff] %v2145
          %v2147 = vld [vmem:[%s2103 + $0xa8] sm:$0xff]
          %2148 = vst [vmem:[%s2104 + $0xa8] sm:$0xff] %v2147
          %v2149 = vld [vmem:[%s2103 + $0xb0] sm:$0xff]
          %2150 = vst [vmem:[%s2104 + $0xb0] sm:$0xff] %v2149
          %v2151 = vld [vmem:[%s2103 + $0xb8] sm:$0xff]
          %2152 = vst [vmem:[%s2104 + $0xb8] sm:$0xff] %v2151
          %v2153 = vld [vmem:[%s2103 + $0xc0] sm:$0xff]
          %2154 = vst [vmem:[%s2104 + $0xc0] sm:$0xff] %v2153
          %v2155 = vld [vmem:[%s2103 + $0xc8] sm:$0xff]
          %2156 = vst [vmem:[%s2104 + $0xc8] sm:$0xff] %v2155
          %v2157 = vld [vmem:[%s2103 + $0xd0] sm:$0xff]
          %2158 = vst [vmem:[%s2104 + $0xd0] sm:$0xff] %v2157
          %v2159 = vld [vmem:[%s2103 + $0xd8] sm:$0xff]
          %2160 = vst [vmem:[%s2104 + $0xd8] sm:$0xff] %v2159
          %v2161 = vld [vmem:[%s2103 + $0xe0] sm:$0xff]
          %2162 = vst [vmem:[%s2104 + $0xe0] sm:$0xff] %v2161
          %v2163 = vld [vmem:[%s2103 + $0xe8] sm:$0xff]
          %2164 = vst [vmem:[%s2104 + $0xe8] sm:$0xff] %v2163
          %v2165 = vld [vmem:[%s2103 + $0xf0] sm:$0xff]
          %2166 = vst [vmem:[%s2104 + $0xf0] sm:$0xff] %v2165
          %v2167 = vld [vmem:[%s2103 + $0xf8] sm:$0xff]
          %2168 = vst [vmem:[%s2104 + $0xf8] sm:$0xff] %v2167
          %v2169 = vld [vmem:[%s2103 + $0x100] sm:$0xff]
          %2170 = vst [vmem:[%s2104 + $0x100] sm:$0xff] %v2169
          %v2171 = vld [vmem:[%s2103 + $0x108] sm:$0xff]
          %2172 = vst [vmem:[%s2104 + $0x108] sm:$0xff] %v2171
          %v2173 = vld [vmem:[%s2103 + $0x110] sm:$0xff]
          %2174 = vst [vmem:[%s2104 + $0x110] sm:$0xff] %v2173
          %v2175 = vld [vmem:[%s2103 + $0x118] sm:$0xff]
          %2176 = vst [vmem:[%s2104 + $0x118] sm:$0xff] %v2175
          %v2177 = vld [vmem:[%s2103 + $0x120] sm:$0xff]
          %2178 = vst [vmem:[%s2104 + $0x120] sm:$0xff] %v2177
          %v2179 = vld [vmem:[%s2103 + $0x128] sm:$0xff]
          %2180 = vst [vmem:[%s2104 + $0x128] sm:$0xff] %v2179
          %v2181 = vld [vmem:[%s2103 + $0x130] sm:$0xff]
          %2182 = vst [vmem:[%s2104 + $0x130] sm:$0xff] %v2181
          %v2183 = vld [vmem:[%s2103 + $0x138] sm:$0xff]
          %2184 = vst [vmem:[%s2104 + $0x138] sm:$0xff] %v2183
          %v2185 = vld [vmem:[%s2103 + $0x140] sm:$0xff]
          %2186 = vst [vmem:[%s2104 + $0x140] sm:$0xff] %v2185
          %v2187 = vld [vmem:[%s2103 + $0x148] sm:$0xff]
          %2188 = vst [vmem:[%s2104 + $0x148] sm:$0xff] %v2187
          %v2189 = vld [vmem:[%s2103 + $0x150] sm:$0xff]
          %2190 = vst [vmem:[%s2104 + $0x150] sm:$0xff] %v2189
          %v2191 = vld [vmem:[%s2103 + $0x158] sm:$0xff]
          %2192 = vst [vmem:[%s2104 + $0x158] sm:$0xff] %v2191
          %v2193 = vld [vmem:[%s2103 + $0x160] sm:$0xff]
          %2194 = vst [vmem:[%s2104 + $0x160] sm:$0xff] %v2193
          %v2195 = vld [vmem:[%s2103 + $0x168] sm:$0xff]
          %2196 = vst [vmem:[%s2104 + $0x168] sm:$0xff] %v2195
          %v2197 = vld [vmem:[%s2103 + $0x170] sm:$0xff]
          %2198 = vst [vmem:[%s2104 + $0x170] sm:$0xff] %v2197
          %v2199 = vld [vmem:[%s2103 + $0x178] sm:$0xff]
          %2200 = vst [vmem:[%s2104 + $0x178] sm:$0xff] %v2199
          %v2201 = vld [vmem:[%s2103 + $0x180] sm:$0xff]
          %2202 = vst [vmem:[%s2104 + $0x180] sm:$0xff] %v2201
          %v2203 = vld [vmem:[%s2103 + $0x188] sm:$0xff]
          %2204 = vst [vmem:[%s2104 + $0x188] sm:$0xff] %v2203
          %v2205 = vld [vmem:[%s2103 + $0x190] sm:$0xff]
          %2206 = vst [vmem:[%s2104 + $0x190] sm:$0xff] %v2205
          %v2207 = vld [vmem:[%s2103 + $0x198] sm:$0xff]
          %2208 = vst [vmem:[%s2104 + $0x198] sm:$0xff] %v2207
          %v2209 = vld [vmem:[%s2103 + $0x1a0] sm:$0xff]
          %2210 = vst [vmem:[%s2104 + $0x1a0] sm:$0xff] %v2209
          %v2211 = vld [vmem:[%s2103 + $0x1a8] sm:$0xff]
          %2212 = vst [vmem:[%s2104 + $0x1a8] sm:$0xff] %v2211
          %v2213 = vld [vmem:[%s2103 + $0x1b0] sm:$0xff]
          %2214 = vst [vmem:[%s2104 + $0x1b0] sm:$0xff] %v2213
          %v2215 = vld [vmem:[%s2103 + $0x1b8] sm:$0xff]
          %2216 = vst [vmem:[%s2104 + $0x1b8] sm:$0xff] %v2215
          %v2217 = vld [vmem:[%s2103 + $0x1c0] sm:$0xff]
          %2218 = vst [vmem:[%s2104 + $0x1c0] sm:$0xff] %v2217
          %v2219 = vld [vmem:[%s2103 + $0x1c8] sm:$0xff]
          %2220 = vst [vmem:[%s2104 + $0x1c8] sm:$0xff] %v2219
          %v2221 = vld [vmem:[%s2103 + $0x1d0] sm:$0xff]
          %2222 = vst [vmem:[%s2104 + $0x1d0] sm:$0xff] %v2221
          %v2223 = vld [vmem:[%s2103 + $0x1d8] sm:$0xff]
          %2224 = vst [vmem:[%s2104 + $0x1d8] sm:$0xff] %v2223
          %v2225 = vld [vmem:[%s2103 + $0x1e0] sm:$0xff]
          %2226 = vst [vmem:[%s2104 + $0x1e0] sm:$0xff] %v2225
          %v2227 = vld [vmem:[%s2103 + $0x1e8] sm:$0xff]
          %2228 = vst [vmem:[%s2104 + $0x1e8] sm:$0xff] %v2227
          %v2229 = vld [vmem:[%s2103 + $0x1f0] sm:$0xff]
          %2230 = vst [vmem:[%s2104 + $0x1f0] sm:$0xff] %v2229
          %v2231 = vld [vmem:[%s2103 + $0x1f8] sm:$0xff]
          %2232 = vst [vmem:[%s2104 + $0x1f8] sm:$0xff] %v2231
          %v2233 = vld [vmem:[%s2103 + $0x200] sm:$0xff]
          %2234 = vst [vmem:[%s2104 + $0x200] sm:$0xff] %v2233
          %v2235 = vld [vmem:[%s2103 + $0x208] sm:$0xff]
          %2236 = vst [vmem:[%s2104 + $0x208] sm:$0xff] %v2235
          %v2237 = vld [vmem:[%s2103 + $0x210] sm:$0xff]
          %2238 = vst [vmem:[%s2104 + $0x210] sm:$0xff] %v2237
          %v2239 = vld [vmem:[%s2103 + $0x218] sm:$0xff]
          %2240 = vst [vmem:[%s2104 + $0x218] sm:$0xff] %v2239
          %v2241 = vld [vmem:[%s2103 + $0x220] sm:$0xff]
          %2242 = vst [vmem:[%s2104 + $0x220] sm:$0xff] %v2241
          %v2243 = vld [vmem:[%s2103 + $0x228] sm:$0xff]
          %2244 = vst [vmem:[%s2104 + $0x228] sm:$0xff] %v2243
          %v2245 = vld [vmem:[%s2103 + $0x230] sm:$0xff]
          %2246 = vst [vmem:[%s2104 + $0x230] sm:$0xff] %v2245
          %v2247 = vld [vmem:[%s2103 + $0x238] sm:$0xff]
          %2248 = vst [vmem:[%s2104 + $0x238] sm:$0xff] %v2247
        $region265: #{fwd.1} parent=259 // loop_footer
          %s2102 = sadd.s32 1, %s2098
        $region266: #{fwd.1} parent=259 // loop_footer_branch
          %2097 = sbr.rel target = $region262
        $region267: #{fwd.1} parent=259 // loop_exit
          _
      $region260: #{fwd.1} parent=244 // pred_fallthru
        _
      %p2249 = pneg %p2093
      // Predicated region
      $region268: #{fwd.1} parent=244 // pred_check
        _
      $region269: #{fwd.1} parent=244 // pred_check_branch
        %2251 = sbr.rel (%p2093) target = $region271
      $region270: #{fwd.1} parent=244 // pred_region
        %s2252 = sand.u32 576, 7
      $region271: #{fwd.1} parent=244 // pred_fallthru
        _
    $region245: #{fwd.1} parent=1 // pred_fallthru
      _
    // Predicated region
    $region246: #{fwd.1} parent=1 // pred_check
      %p2078 = pneg %p2074
    $region247: #{fwd.1} parent=1 // pred_check_branch
      %2080 = sbr.rel (%p2078) target = $region249
    $region248: #{fwd.1} parent=1 // pred_region
      %s2081 = sshllo.u32 0, 576
      loop: start=0, step=1, limit=1
      $region250: #{fwd.1} parent=248 // loop_pre_header
        _
      $region251: #{fwd.1} parent=248 // loop_header
        %s2083 = sphi 0, %s2087
        %p2084 = scmp.ge.s32.totalorder %s2083, 1
        %s2088 = sphi %s24, %s24
        %s2089 = sphi [#allocation14], [#allocation14]
      $region252: #{fwd.1} parent=248 // loop_header_branch
        %2086 = sbr.rel (%p2084) target = $region256
      $region253: #{fwd.1} parent=248 // loop_body
        %v2090 = vld [vmem:[%s2088] sm:%s2081]
        %2091 = vst [vmem:[%s2089] sm:%s2081] %v2090
      $region254: #{fwd.1} parent=248 // loop_footer
        %s2087 = sadd.s32 1, %s2083
      $region255: #{fwd.1} parent=248 // loop_footer_branch
        %2082 = sbr.rel target = $region251
      $region256: #{fwd.1} parent=248 // loop_exit
        _
    $region249: #{fwd.1} parent=1 // pred_fallthru
      _
    // Predicated region
    $region272: #{fwd.1} parent=1 // pred_check
      _
    $region273: #{fwd.1} parent=1 // pred_check_branch
      %2255 = sbr.rel (0) target = $region275
    $region274: #{fwd.1} parent=1 // pred_region
      %2256 = vsyncadd %s2072, 9216
    $region275: #{fwd.1} parent=1 // pred_fallthru
      _
    %v2257 = vld [vmem:[%s0] sm:$0xf]
    %v2258 = vld [vmem:[%s0 + $0x4] sm:$0xf]
    %v2259 = vld [vmem:[%s0 + $0x8] sm:$0xf]
    %v2260 = vld [vmem:[%s0 + $0xc] sm:$0xf]
    %v2261 = vld [vmem:[%s0 + $0x10] sm:$0xf]
    %v2262 = vld [vmem:[%s0 + $0x14] sm:$0xf]
    %v2263 = vld [vmem:[%s0 + $0x18] sm:$0xf]
    %v2264 = vld [vmem:[%s0 + $0x1c] sm:$0xf]
    %v2265 = vld [vmem:[%s0 + $0x20] sm:$0xf]
    %v2266 = vld [vmem:[%s0 + $0x24] sm:$0xf]
    %v2267 = vld [vmem:[%s0 + $0x28] sm:$0xf]
    %v2268 = vld [vmem:[%s0 + $0x2c] sm:$0xf]
    %v2269 = vld [vmem:[%s0 + $0x30] sm:$0xf]
    %v2270 = vld [vmem:[%s0 + $0x34] sm:$0xf]
    %v2271 = vld [vmem:[%s0 + $0x38] sm:$0xf]
    %v2272 = vld [vmem:[%s0 + $0x3c] sm:$0xf]
    %v2273 = vld [vmem:[%s1] sm:$0xf]
    %v2274 = vld [vmem:[%s1 + $0x4] sm:$0xf]
    %v2275 = vld [vmem:[%s1 + $0x8] sm:$0xf]
    %v2276 = vld [vmem:[%s1 + $0xc] sm:$0xf]
    %v2277 = vld [vmem:[%s1 + $0x10] sm:$0xf]
    %v2278 = vld [vmem:[%s1 + $0x14] sm:$0xf]
    %v2279 = vld [vmem:[#allocation16] sm:$0x1]
    %v2281 = vlaneseq
    %v2282 = vshrl.u32 %v2281, 7
    %v2283 = vsub.s32 0, %v2282
    %v2284 = vrot.slane %v2279, %v2283
    %v2302 = vunpack.c.l.b16 %v2257
    %v2303 = vunpack.c.l.b16 %v2258
    %v2304 = vunpack.c.l.b16 %v2259
    %v2305 = vunpack.c.l.b16 %v2260
    %v2306 = vunpack.c.l.b16 %v2261
    %v2307 = vunpack.c.l.b16 %v2262
    %v2308 = vunpack.c.l.b16 %v2263
    %v2309 = vunpack.c.l.b16 %v2264
    %v2310 = vunpack.c.l.b16 %v2265
    %v2311 = vunpack.c.l.b16 %v2266
    %v2312 = vunpack.c.l.b16 %v2267
    %v2313 = vunpack.c.l.b16 %v2268
    %v2314 = vunpack.c.l.b16 %v2269
    %v2315 = vunpack.c.l.b16 %v2270
    %v2316 = vunpack.c.l.b16 %v2271
    %v2317 = vunpack.c.l.b16 %v2272
    %v2318 = vpack.c.b16 %v2303, %v2302
    %v2319 = vpack.c.b16 %v2305, %v2304
    %v2320 = vpack.c.b16 %v2307, %v2306
    %v2321 = vpack.c.b16 %v2309, %v2308
    %v2322 = vpack.c.b16 %v2311, %v2310
    %v2323 = vpack.c.b16 %v2313, %v2312
    %v2324 = vpack.c.b16 %v2315, %v2314
    %v2325 = vpack.c.b16 %v2317, %v2316
    %v2332 = vunpack.c.l.b16 %v2273
    %v2333 = vunpack.c.l.b16 %v2274
    %v2334 = vunpack.c.l.b16 %v2275
    %v2335 = vunpack.c.l.b16 %v2276
    %v2336 = vunpack.c.l.b16 %v2277
    %v2337 = vunpack.c.l.b16 %v2278
    %v2338 = vpack.c.b16 %v2333, %v2332
    %v2339 = vpack.c.b16 %v2335, %v2334
    %v2340 = vpack.c.b16 %v2337, %v2336
    %vm2344 = vcmask 392192
    %v2346 = vsel %vm2344, %v2318, 0
    %v2349 = vsel %vm2344, %v2319, 0
    %v2352 = vsel %vm2344, %v2320, 0
    %v2355 = vsel %vm2344, %v2321, 0
    %v2358 = vsel %vm2344, %v2322, 0
    %v2361 = vsel %vm2344, %v2323, 0
    %v2364 = vsel %vm2344, %v2324, 0
    %v2367 = vsel %vm2344, %v2325, 0
    %2369 = vmatprep.subr.bf16.mxu0 0
    %2370 = vmatpush1.bf16.msra.mxu0 %v2338
    %2371 = vmatprep.subr.bf16.mxu0 0
    %2372 = vmatpush1.bf16.msra.mxu0 %v2339
    %2373 = vmatprep.subr.bf16.mxu0 0
    %2374 = vmatpush1.bf16.msra.mxu0 %v2340
    %2375 = vmatprep.subr.bf16.mxu0 0
    %2376 = vmatpush1.bf16.msra.mxu0 0
    %2377 = vmatprep.subr.bf16.mxu0 0
    %2378 = vmatpush1.bf16.msra.mxu0 0
    %2379 = vmatprep.subr.bf16.mxu0 0
    %2380 = vmatpush1.bf16.msra.mxu0 0
    %2381 = vmatprep.subr.bf16.mxu0 0
    %2382 = vmatpush1.bf16.msra.mxu0 0
    %2383 = vmatprep.subr.bf16.mxu0 0
    %2384 = vmatpush1.bf16.msra.mxu0 0
    %2385 = vmatprep.subr.bf16.mxu0 0
    %2386 = vmatpush1.bf16.msra.mxu0 0
    %2387 = vmatprep.subr.bf16.mxu0 0
    %2388 = vmatpush1.bf16.msra.mxu0 0
    %2389 = vmatprep.subr.bf16.mxu0 0
    %2390 = vmatpush1.bf16.msra.mxu0 0
    %2391 = vmatprep.subr.bf16.mxu0 0
    %2392 = vmatpush1.bf16.msra.mxu0 0
    %2393 = vmatprep.subr.bf16.mxu0 0
    %2394 = vmatpush1.bf16.msra.mxu0 0
    %2395 = vmatprep.subr.bf16.mxu0 0
    %2396 = vmatpush1.bf16.msra.mxu0 0
    %2397 = vmatprep.subr.bf16.mxu0 0
    %2398 = vmatpush1.bf16.msra.mxu0 0
    %2399 = vmatprep.subr.bf16.mxu0 0
    %2400 = vmatpush1.bf16.msra.mxu0 0
    %2401 = vmatprep.mubr.bf16.mxu0 0
    %2402 = vmatmul.mubr.bf16.gmra.mrb[0].mxu0 %v2346
    %v2403 = vpop.f32.mrb[0].mxu0
    %v2404 = vadd.f32 %v2284, %v2403
    %v2405 = vpop.f32.mrb[0].mxu0
    %v2406 = vpop.f32.mrb[0].mxu0
    %v2407 = vadd.f32 %v2284, %v2406
    %v2408 = vpop.f32.mrb[0].mxu0
    %2409 = vmatprep.mubr.bf16.mxu0 0
    %2410 = vmatmul.mubr.bf16.gmra.mrb[0].mxu0 %v2349
    %v2411 = vpop.f32.mrb[0].mxu0
    %v2412 = vadd.f32 %v2284, %v2411
    %v2413 = vpop.f32.mrb[0].mxu0
    %v2414 = vpop.f32.mrb[0].mxu0
    %v2415 = vadd.f32 %v2284, %v2414
    %v2416 = vpop.f32.mrb[0].mxu0
    %2417 = vmatprep.mubr.bf16.mxu0 0
    %2418 = vmatmul.mubr.bf16.gmra.mrb[0].mxu0 %v2352
    %v2419 = vpop.f32.mrb[0].mxu0
    %v2420 = vadd.f32 %v2284, %v2419
    %v2421 = vpop.f32.mrb[0].mxu0
    %v2422 = vpop.f32.mrb[0].mxu0
    %v2423 = vadd.f32 %v2284, %v2422
    %v2424 = vpop.f32.mrb[0].mxu0
    %2425 = vmatprep.mubr.bf16.mxu0 0
    %2426 = vmatmul.mubr.bf16.gmra.mrb[0].mxu0 %v2355
    %v2427 = vpop.f32.mrb[0].mxu0
    %v2428 = vadd.f32 %v2284, %v2427
    %v2429 = vpop.f32.mrb[0].mxu0
    %v2430 = vpop.f32.mrb[0].mxu0
    %v2431 = vadd.f32 %v2284, %v2430
    %v2432 = vpop.f32.mrb[0].mxu0
    %2433 = vmatprep.mubr.bf16.mxu0 0
    %2434 = vmatmul.mubr.bf16.gmra.mrb[0].mxu0 %v2358
    %v2435 = vpop.f32.mrb[0].mxu0
    %v2436 = vadd.f32 %v2284, %v2435
    %v2437 = vpop.f32.mrb[0].mxu0
    %v2438 = vpop.f32.mrb[0].mxu0
    %v2439 = vadd.f32 %v2284, %v2438
    %v2440 = vpop.f32.mrb[0].mxu0
    %2441 = vmatprep.mubr.bf16.mxu0 0
    %2442 = vmatmul.mubr.bf16.gmra.mrb[0].mxu0 %v2361
    %v2443 = vpop.f32.mrb[0].mxu0
    %v2444 = vadd.f32 %v2284, %v2443
    %v2445 = vpop.f32.mrb[0].mxu0
    %v2446 = vpop.f32.mrb[0].mxu0
    %v2447 = vadd.f32 %v2284, %v2446
    %v2448 = vpop.f32.mrb[0].mxu0
    %2449 = vmatprep.mubr.bf16.mxu0 0
    %2450 = vmatmul.mubr.bf16.gmra.mrb[0].mxu0 %v2364
    %v2451 = vpop.f32.mrb[0].mxu0
    %v2452 = vadd.f32 %v2284, %v2451
    %v2453 = vpop.f32.mrb[0].mxu0
    %v2454 = vpop.f32.mrb[0].mxu0
    %v2455 = vadd.f32 %v2284, %v2454
    %v2456 = vpop.f32.mrb[0].mxu0
    %2457 = vmatprep.mubr.bf16.mxu0 0
    %2458 = vmatmul.mubr.bf16.gmra.mrb[0].mxu0 %v2367
    %v2459 = vpop.f32.mrb[0].mxu0
    %v2460 = vadd.f32 %v2284, %v2459
    %v2461 = vpop.f32.mrb[0].mxu0
    %v2462 = vpop.f32.mrb[0].mxu0
    %v2463 = vadd.f32 %v2284, %v2462
    %v2464 = vpop.f32.mrb[0].mxu0
    %2465 = vdwg.mxu0
    %v2466 = vmax.f32 %v2404, 0.0
    %v2467 = vmax.f32 %v2407, 0.0
    %v2468 = vmax.f32 %v2412, 0.0
    %v2469 = vmax.f32 %v2415, 0.0
    %v2470 = vmax.f32 %v2420, 0.0
    %v2471 = vmax.f32 %v2423, 0.0
    %v2472 = vmax.f32 %v2428, 0.0
    %v2473 = vmax.f32 %v2431, 0.0
    %v2474 = vmax.f32 %v2436, 0.0
    %v2475 = vmax.f32 %v2439, 0.0
    %v2476 = vmax.f32 %v2444, 0.0
    %v2477 = vmax.f32 %v2447, 0.0
    %v2478 = vmax.f32 %v2452, 0.0
    %v2479 = vmax.f32 %v2455, 0.0
    %v2480 = vmax.f32 %v2460, 0.0
    %v2481 = vmax.f32 %v2463, 0.0
    %v2482 = vpack.c.bf16 %v2467, %v2466
    %v2483 = vpack.c.bf16 %v2469, %v2468
    %v2484 = vpack.c.bf16 %v2471, %v2470
    %v2485 = vpack.c.bf16 %v2473, %v2472
    %v2486 = vpack.c.bf16 %v2475, %v2474
    %v2487 = vpack.c.bf16 %v2477, %v2476
    %v2488 = vpack.c.bf16 %v2479, %v2478
    %v2489 = vpack.c.bf16 %v2481, %v2480
    %v2490 = vld [vmem:[%s3] sm:$0xf]
    %v2491 = vld [vmem:[%s3 + $0x4] sm:$0xf]
    %v2492 = vld [vmem:[%s3 + $0x8] sm:$0xf]
    %v2493 = vld [vmem:[%s3 + $0xc] sm:$0xf]
    %v2494 = vld [vmem:[%s3 + $0x10] sm:$0xf]
    %v2495 = vld [vmem:[%s3 + $0x14] sm:$0xf]
    %v2496 = vld [vmem:[%s3 + $0x18] sm:$0xf]
    %v2497 = vld [vmem:[%s3 + $0x1c] sm:$0xf]
    %v2498 = vld [vmem:[%s3 + $0x20] sm:$0xf]
    %v2499 = vld [vmem:[%s3 + $0x24] sm:$0xf]
    %v2500 = vld [vmem:[%s3 + $0x28] sm:$0xf]
    %v2501 = vld [vmem:[%s3 + $0x2c] sm:$0xf]
    %v2502 = vld [vmem:[%s3 + $0x30] sm:$0xf]
    %v2503 = vld [vmem:[%s3 + $0x34] sm:$0xf]
    %v2504 = vld [vmem:[%s3 + $0x38] sm:$0xf]
    %v2505 = vld [vmem:[%s3 + $0x3c] sm:$0xf]
    %v2506 = vld [vmem:[%s3 + $0x40] sm:$0xf]
    %v2507 = vld [vmem:[%s3 + $0x44] sm:$0xf]
    %v2508 = vld [vmem:[%s3 + $0x48] sm:$0xf]
    %v2509 = vld [vmem:[%s3 + $0x4c] sm:$0xf]
    %v2510 = vld [vmem:[%s3 + $0x50] sm:$0xf]
    %v2511 = vld [vmem:[%s3 + $0x54] sm:$0xf]
    %v2512 = vld [vmem:[%s3 + $0x58] sm:$0xf]
    %v2513 = vld [vmem:[%s3 + $0x5c] sm:$0xf]
    %v2514 = vld [vmem:[%s3 + $0x60] sm:$0xf]
    %v2515 = vld [vmem:[%s3 + $0x64] sm:$0xf]
    %v2516 = vld [vmem:[%s3 + $0x68] sm:$0xf]
    %v2517 = vld [vmem:[%s3 + $0x6c] sm:$0xf]
    %v2518 = vld [vmem:[%s3 + $0x70] sm:$0xf]
    %v2519 = vld [vmem:[%s3 + $0x74] sm:$0xf]
    %v2520 = vld [vmem:[%s3 + $0x78] sm:$0xf]
    %v2521 = vld [vmem:[%s3 + $0x7c] sm:$0xf]
    %v2522 = vld [vmem:[%s3 + $0x80] sm:$0xf]
    %v2523 = vld [vmem:[%s3 + $0x84] sm:$0xf]
    %v2524 = vld [vmem:[%s3 + $0x88] sm:$0xf]
    %v2525 = vld [vmem:[%s3 + $0x8c] sm:$0xf]
    %v2526 = vld [vmem:[%s3 + $0x90] sm:$0xf]
    %v2527 = vld [vmem:[%s3 + $0x94] sm:$0xf]
    %v2528 = vld [vmem:[%s3 + $0x98] sm:$0xf]
    %v2529 = vld [vmem:[%s3 + $0x9c] sm:$0xf]
    %v2530 = vld [vmem:[%s3 + $0xa0] sm:$0xf]
    %v2531 = vld [vmem:[%s3 + $0xa4] sm:$0xf]
    %v2532 = vld [vmem:[%s3 + $0xa8] sm:$0xf]
    %v2533 = vld [vmem:[%s3 + $0xac] sm:$0xf]
    %v2534 = vld [vmem:[%s3 + $0xb0] sm:$0xf]
    %v2535 = vld [vmem:[%s3 + $0xb4] sm:$0xf]
    %v2536 = vld [vmem:[%s3 + $0xb8] sm:$0xf]
    %v2537 = vld [vmem:[%s3 + $0xbc] sm:$0xf]
    %v2538 = vld [vmem:[%s3 + $0xc0] sm:$0xf]
    %v2539 = vld [vmem:[%s3 + $0xc4] sm:$0xf]
    %v2540 = vld [vmem:[%s3 + $0xc8] sm:$0xf]
    %v2541 = vld [vmem:[%s3 + $0xcc] sm:$0xf]
    %v2542 = vld [vmem:[%s3 + $0xd0] sm:$0xf]
    %v2543 = vld [vmem:[%s3 + $0xd4] sm:$0xf]
    %v2544 = vld [vmem:[%s3 + $0xd8] sm:$0xf]
    %v2545 = vld [vmem:[%s3 + $0xdc] sm:$0xf]
    %v2546 = vld [vmem:[%s3 + $0xe0] sm:$0xf]
    %v2547 = vld [vmem:[%s3 + $0xe4] sm:$0xf]
    %v2548 = vld [vmem:[%s3 + $0xe8] sm:$0xf]
    %v2549 = vld [vmem:[%s3 + $0xec] sm:$0xf]
    %v2550 = vld [vmem:[%s3 + $0xf0] sm:$0xf]
    %v2551 = vld [vmem:[%s3 + $0xf4] sm:$0xf]
    %v2552 = vld [vmem:[%s3 + $0xf8] sm:$0xf]
    %v2553 = vld [vmem:[%s3 + $0xfc] sm:$0xf]
    %v2618 = vunpack.c.l.b16 %v2490
    %v2619 = vunpack.c.l.b16 %v2491
    %v2620 = vunpack.c.l.b16 %v2492
    %v2621 = vunpack.c.l.b16 %v2493
    %v2622 = vunpack.c.l.b16 %v2494
    %v2623 = vunpack.c.l.b16 %v2495
    %v2624 = vunpack.c.l.b16 %v2496
    %v2625 = vunpack.c.l.b16 %v2497
    %v2626 = vunpack.c.l.b16 %v2498
    %v2627 = vunpack.c.l.b16 %v2499
    %v2628 = vunpack.c.l.b16 %v2500
    %v2629 = vunpack.c.l.b16 %v2501
    %v2630 = vunpack.c.l.b16 %v2502
    %v2631 = vunpack.c.l.b16 %v2503
    %v2632 = vunpack.c.l.b16 %v2504
    %v2633 = vunpack.c.l.b16 %v2505
    %v2634 = vunpack.c.l.b16 %v2506
    %v2635 = vunpack.c.l.b16 %v2507
    %v2636 = vunpack.c.l.b16 %v2508
    %v2637 = vunpack.c.l.b16 %v2509
    %v2638 = vunpack.c.l.b16 %v2510
    %v2639 = vunpack.c.l.b16 %v2511
    %v2640 = vunpack.c.l.b16 %v2512
    %v2641 = vunpack.c.l.b16 %v2513
    %v2642 = vunpack.c.l.b16 %v2514
    %v2643 = vunpack.c.l.b16 %v2515
    %v2644 = vunpack.c.l.b16 %v2516
    %v2645 = vunpack.c.l.b16 %v2517
    %v2646 = vunpack.c.l.b16 %v2518
    %v2647 = vunpack.c.l.b16 %v2519
    %v2648 = vunpack.c.l.b16 %v2520
    %v2649 = vunpack.c.l.b16 %v2521
    %v2650 = vunpack.c.l.b16 %v2522
    %v2651 = vunpack.c.l.b16 %v2523
    %v2652 = vunpack.c.l.b16 %v2524
    %v2653 = vunpack.c.l.b16 %v2525
    %v2654 = vunpack.c.l.b16 %v2526
    %v2655 = vunpack.c.l.b16 %v2527
    %v2656 = vunpack.c.l.b16 %v2528
    %v2657 = vunpack.c.l.b16 %v2529
    %v2658 = vunpack.c.l.b16 %v2530
    %v2659 = vunpack.c.l.b16 %v2531
    %v2660 = vunpack.c.l.b16 %v2532
    %v2661 = vunpack.c.l.b16 %v2533
    %v2662 = vunpack.c.l.b16 %v2534
    %v2663 = vunpack.c.l.b16 %v2535
    %v2664 = vunpack.c.l.b16 %v2536
    %v2665 = vunpack.c.l.b16 %v2537
    %v2666 = vunpack.c.l.b16 %v2538
    %v2667 = vunpack.c.l.b16 %v2539
    %v2668 = vunpack.c.l.b16 %v2540
    %v2669 = vunpack.c.l.b16 %v2541
    %v2670 = vunpack.c.l.b16 %v2542
    %v2671 = vunpack.c.l.b16 %v2543
    %v2672 = vunpack.c.l.b16 %v2544
    %v2673 = vunpack.c.l.b16 %v2545
    %v2674 = vunpack.c.l.b16 %v2546
    %v2675 = vunpack.c.l.b16 %v2547
    %v2676 = vunpack.c.l.b16 %v2548
    %v2677 = vunpack.c.l.b16 %v2549
    %v2678 = vunpack.c.l.b16 %v2550
    %v2679 = vunpack.c.l.b16 %v2551
    %v2680 = vunpack.c.l.b16 %v2552
    %v2681 = vunpack.c.l.b16 %v2553
    %v2682 = vpack.c.b16 %v2619, %v2618
    %v2683 = vpack.c.b16 %v2621, %v2620
    %v2684 = vpack.c.b16 %v2623, %v2622
    %v2685 = vpack.c.b16 %v2625, %v2624
    %v2686 = vpack.c.b16 %v2627, %v2626
    %v2687 = vpack.c.b16 %v2629, %v2628
    %v2688 = vpack.c.b16 %v2631, %v2630
    %v2689 = vpack.c.b16 %v2633, %v2632
    %v2690 = vpack.c.b16 %v2635, %v2634
    %v2691 = vpack.c.b16 %v2637, %v2636
    %v2692 = vpack.c.b16 %v2639, %v2638
    %v2693 = vpack.c.b16 %v2641, %v2640
    %v2694 = vpack.c.b16 %v2643, %v2642
    %v2695 = vpack.c.b16 %v2645, %v2644
    %v2696 = vpack.c.b16 %v2647, %v2646
    %v2697 = vpack.c.b16 %v2649, %v2648
    %v2698 = vpack.c.b16 %v2651, %v2650
    %v2699 = vpack.c.b16 %v2653, %v2652
    %v2700 = vpack.c.b16 %v2655, %v2654
    %v2701 = vpack.c.b16 %v2657, %v2656
    %v2702 = vpack.c.b16 %v2659, %v2658
    %v2703 = vpack.c.b16 %v2661, %v2660
    %v2704 = vpack.c.b16 %v2663, %v2662
    %v2705 = vpack.c.b16 %v2665, %v2664
    %v2706 = vpack.c.b16 %v2667, %v2666
    %v2707 = vpack.c.b16 %v2669, %v2668
    %v2708 = vpack.c.b16 %v2671, %v2670
    %v2709 = vpack.c.b16 %v2673, %v2672
    %v2710 = vpack.c.b16 %v2675, %v2674
    %v2711 = vpack.c.b16 %v2677, %v2676
    %v2712 = vpack.c.b16 %v2679, %v2678
    %v2713 = vpack.c.b16 %v2681, %v2680
    %2746 = vmatprep.subr.bf16.mxu0 0
    %2747 = vmatpush1.bf16.msra.mxu0 %v2482
    %2748 = vmatprep.subr.bf16.mxu0 0
    %2749 = vmatpush1.bf16.msra.mxu0 %v2483
    %2750 = vmatprep.subr.bf16.mxu0 0
    %2751 = vmatpush1.bf16.msra.mxu0 %v2484
    %2752 = vmatprep.subr.bf16.mxu0 0
    %2753 = vmatpush1.bf16.msra.mxu0 %v2485
    %2754 = vmatprep.subr.bf16.mxu0 0
    %2755 = vmatpush1.bf16.msra.mxu0 %v2486
    %2756 = vmatprep.subr.bf16.mxu0 0
    %2757 = vmatpush1.bf16.msra.mxu0 %v2487
    %2758 = vmatprep.subr.bf16.mxu0 0
    %2759 = vmatpush1.bf16.msra.mxu0 %v2488
    %2760 = vmatprep.subr.bf16.mxu0 0
    %2761 = vmatpush1.bf16.msra.mxu0 %v2489
    %2762 = vmatprep.subr.bf16.mxu0 0
    %2763 = vmatpush1.bf16.msra.mxu0 0
    %2764 = vmatprep.subr.bf16.mxu0 0
    %2765 = vmatpush1.bf16.msra.mxu0 0
    %2766 = vmatprep.subr.bf16.mxu0 0
    %2767 = vmatpush1.bf16.msra.mxu0 0
    %2768 = vmatprep.subr.bf16.mxu0 0
    %2769 = vmatpush1.bf16.msra.mxu0 0
    %2770 = vmatprep.subr.bf16.mxu0 0
    %2771 = vmatpush1.bf16.msra.mxu0 0
    %2772 = vmatprep.subr.bf16.mxu0 0
    %2773 = vmatpush1.bf16.msra.mxu0 0
    %2774 = vmatprep.subr.bf16.mxu0 0
    %2775 = vmatpush1.bf16.msra.mxu0 0
    %2776 = vmatprep.subr.bf16.mxu0 0
    %2777 = vmatpush1.bf16.msra.mxu0 0
    %2778 = vmatprep.mubr.bf16.mxu0 0
    %2779 = vmatmul.mubr.bf16.gmra.mrb[0].mxu0 %v2682
    %v2780 = vpop.f32.mrb[0].mxu0
    %v2781 = vadd.f32 0.0, %v2780
    %v2782 = vpop.f32.mrb[0].mxu0
    %v2783 = vpop.f32.mrb[0].mxu0
    %v2784 = vadd.f32 0.0, %v2783
    %v2785 = vpop.f32.mrb[0].mxu0
    %2786 = vmatprep.mubr.bf16.mxu0 0
    %2787 = vmatmul.mubr.bf16.gmra.mrb[0].mxu0 %v2683
    %v2788 = vpop.f32.mrb[0].mxu0
    %v2789 = vadd.f32 0.0, %v2788
    %v2790 = vpop.f32.mrb[0].mxu0
    %v2791 = vpop.f32.mrb[0].mxu0
    %v2792 = vadd.f32 0.0, %v2791
    %v2793 = vpop.f32.mrb[0].mxu0
    %2794 = vmatprep.mubr.bf16.mxu0 0
    %2795 = vmatmul.mubr.bf16.gmra.mrb[0].mxu0 %v2684
    %v2796 = vpop.f32.mrb[0].mxu0
    %v2797 = vadd.f32 0.0, %v2796
    %v2798 = vpop.f32.mrb[0].mxu0
    %v2799 = vpop.f32.mrb[0].mxu0
    %v2800 = vadd.f32 0.0, %v2799
    %v2801 = vpop.f32.mrb[0].mxu0
    %2802 = vmatprep.mubr.bf16.mxu0 0
    %2803 = vmatmul.mubr.bf16.gmra.mrb[0].mxu0 %v2685
    %v2804 = vpop.f32.mrb[0].mxu0
    %v2805 = vadd.f32 0.0, %v2804
    %v2806 = vpop.f32.mrb[0].mxu0
    %v2807 = vpop.f32.mrb[0].mxu0
    %v2808 = vadd.f32 0.0, %v2807
    %v2809 = vpop.f32.mrb[0].mxu0
    %2810 = vmatprep.mubr.bf16.mxu0 0
    %2811 = vmatmul.mubr.bf16.gmra.mrb[0].mxu0 %v2686
    %v2812 = vpop.f32.mrb[0].mxu0
    %v2813 = vadd.f32 0.0, %v2812
    %v2814 = vpop.f32.mrb[0].mxu0
    %v2815 = vpop.f32.mrb[0].mxu0
    %v2816 = vadd.f32 0.0, %v2815
    %v2817 = vpop.f32.mrb[0].mxu0
    %2818 = vmatprep.mubr.bf16.mxu0 0
    %2819 = vmatmul.mubr.bf16.gmra.mrb[0].mxu0 %v2687
    %v2820 = vpop.f32.mrb[0].mxu0
    %v2821 = vadd.f32 0.0, %v2820
    %v2822 = vpop.f32.mrb[0].mxu0
    %v2823 = vpop.f32.mrb[0].mxu0
    %v2824 = vadd.f32 0.0, %v2823
    %v2825 = vpop.f32.mrb[0].mxu0
    %2826 = vmatprep.mubr.bf16.mxu0 0
    %2827 = vmatmul.mubr.bf16.gmra.mrb[0].mxu0 %v2688
    %v2828 = vpop.f32.mrb[0].mxu0
    %v2829 = vadd.f32 0.0, %v2828
    %v2830 = vpop.f32.mrb[0].mxu0
    %v2831 = vpop.f32.mrb[0].mxu0
    %v2832 = vadd.f32 0.0, %v2831
    %v2833 = vpop.f32.mrb[0].mxu0
    %2834 = vmatprep.mubr.bf16.mxu0 0
    %2835 = vmatmul.mubr.bf16.gmra.mrb[0].mxu0 %v2689
    %v2836 = vpop.f32.mrb[0].mxu0
    %v2837 = vadd.f32 0.0, %v2836
    %v2838 = vpop.f32.mrb[0].mxu0
    %v2839 = vpop.f32.mrb[0].mxu0
    %v2840 = vadd.f32 0.0, %v2839
    %v2841 = vpop.f32.mrb[0].mxu0
    %2842 = vmatprep.mubr.bf16.mxu0 0
    %2843 = vmatmul.mubr.bf16.gmra.mrb[0].mxu0 %v2690
    %v2844 = vpop.f32.mrb[0].mxu0
    %v2845 = vadd.f32 0.0, %v2844
    %v2846 = vpop.f32.mrb[0].mxu0
    %v2847 = vpop.f32.mrb[0].mxu0
    %v2848 = vadd.f32 0.0, %v2847
    %v2849 = vpop.f32.mrb[0].mxu0
    %2850 = vmatprep.mubr.bf16.mxu0 0
    %2851 = vmatmul.mubr.bf16.gmra.mrb[0].mxu0 %v2691
    %v2852 = vpop.f32.mrb[0].mxu0
    %v2853 = vadd.f32 0.0, %v2852
    %v2854 = vpop.f32.mrb[0].mxu0
    %v2855 = vpop.f32.mrb[0].mxu0
    %v2856 = vadd.f32 0.0, %v2855
    %v2857 = vpop.f32.mrb[0].mxu0
    %2858 = vmatprep.mubr.bf16.mxu0 0
    %2859 = vmatmul.mubr.bf16.gmra.mrb[0].mxu0 %v2692
    %v2860 = vpop.f32.mrb[0].mxu0
    %v2861 = vadd.f32 0.0, %v2860
    %v2862 = vpop.f32.mrb[0].mxu0
    %v2863 = vpop.f32.mrb[0].mxu0
    %v2864 = vadd.f32 0.0, %v2863
    %v2865 = vpop.f32.mrb[0].mxu0
    %2866 = vmatprep.mubr.bf16.mxu0 0
    %2867 = vmatmul.mubr.bf16.gmra.mrb[0].mxu0 %v2693
    %v2868 = vpop.f32.mrb[0].mxu0
    %v2869 = vadd.f32 0.0, %v2868
    %v2870 = vpop.f32.mrb[0].mxu0
    %v2871 = vpop.f32.mrb[0].mxu0
    %v2872 = vadd.f32 0.0, %v2871
    %v2873 = vpop.f32.mrb[0].mxu0
    %2874 = vmatprep.mubr.bf16.mxu0 0
    %2875 = vmatmul.mubr.bf16.gmra.mrb[0].mxu0 %v2694
    %v2876 = vpop.f32.mrb[0].mxu0
    %v2877 = vadd.f32 0.0, %v2876
    %v2878 = vpop.f32.mrb[0].mxu0
    %v2879 = vpop.f32.mrb[0].mxu0
    %v2880 = vadd.f32 0.0, %v2879
    %v2881 = vpop.f32.mrb[0].mxu0
    %2882 = vmatprep.mubr.bf16.mxu0 0
    %2883 = vmatmul.mubr.bf16.gmra.mrb[0].mxu0 %v2695
    %v2884 = vpop.f32.mrb[0].mxu0
    %v2885 = vadd.f32 0.0, %v2884
    %v2886 = vpop.f32.mrb[0].mxu0
    %v2887 = vpop.f32.mrb[0].mxu0
    %v2888 = vadd.f32 0.0, %v2887
    %v2889 = vpop.f32.mrb[0].mxu0
    %2890 = vmatprep.mubr.bf16.mxu0 0
    %2891 = vmatmul.mubr.bf16.gmra.mrb[0].mxu0 %v2696
    %v2892 = vpop.f32.mrb[0].mxu0
    %v2893 = vadd.f32 0.0, %v2892
    %v2894 = vpop.f32.mrb[0].mxu0
    %v2895 = vpop.f32.mrb[0].mxu0
    %v2896 = vadd.f32 0.0, %v2895
    %v2897 = vpop.f32.mrb[0].mxu0
    %2898 = vmatprep.mubr.bf16.mxu0 0
    %2899 = vmatmul.mubr.bf16.gmra.mrb[0].mxu0 %v2697
    %v2900 = vpop.f32.mrb[0].mxu0
    %v2901 = vadd.f32 0.0, %v2900
    %v2902 = vpop.f32.mrb[0].mxu0
    %v2903 = vpop.f32.mrb[0].mxu0
    %v2904 = vadd.f32 0.0, %v2903
    %v2905 = vpop.f32.mrb[0].mxu0
    %2906 = vmatprep.mubr.bf16.mxu0 0
    %2907 = vmatmul.mubr.bf16.gmra.mrb[0].mxu0 %v2698
    %v2908 = vpop.f32.mrb[0].mxu0
    %v2909 = vadd.f32 0.0, %v2908
    %v2910 = vpop.f32.mrb[0].mxu0
    %v2911 = vpop.f32.mrb[0].mxu0
    %v2912 = vadd.f32 0.0, %v2911
    %v2913 = vpop.f32.mrb[0].mxu0
    %2914 = vmatprep.mubr.bf16.mxu0 0
    %2915 = vmatmul.mubr.bf16.gmra.mrb[0].mxu0 %v2699
    %v2916 = vpop.f32.mrb[0].mxu0
    %v2917 = vadd.f32 0.0, %v2916
    %v2918 = vpop.f32.mrb[0].mxu0
    %v2919 = vpop.f32.mrb[0].mxu0
    %v2920 = vadd.f32 0.0, %v2919
    %v2921 = vpop.f32.mrb[0].mxu0
    %2922 = vmatprep.mubr.bf16.mxu0 0
    %2923 = vmatmul.mubr.bf16.gmra.mrb[0].mxu0 %v2700
    %v2924 = vpop.f32.mrb[0].mxu0
    %v2925 = vadd.f32 0.0, %v2924
    %v2926 = vpop.f32.mrb[0].mxu0
    %v2927 = vpop.f32.mrb[0].mxu0
    %v2928 = vadd.f32 0.0, %v2927
    %v2929 = vpop.f32.mrb[0].mxu0
    %2930 = vmatprep.mubr.bf16.mxu0 0
    %2931 = vmatmul.mubr.bf16.gmra.mrb[0].mxu0 %v2701
    %v2932 = vpop.f32.mrb[0].mxu0
    %v2933 = vadd.f32 0.0, %v2932
    %v2934 = vpop.f32.mrb[0].mxu0
    %v2935 = vpop.f32.mrb[0].mxu0
    %v2936 = vadd.f32 0.0, %v2935
    %v2937 = vpop.f32.mrb[0].mxu0
    %2938 = vmatprep.mubr.bf16.mxu0 0
    %2939 = vmatmul.mubr.bf16.gmra.mrb[0].mxu0 %v2702
    %v2940 = vpop.f32.mrb[0].mxu0
    %v2941 = vadd.f32 0.0, %v2940
    %v2942 = vpop.f32.mrb[0].mxu0
    %v2943 = vpop.f32.mrb[0].mxu0
    %v2944 = vadd.f32 0.0, %v2943
    %v2945 = vpop.f32.mrb[0].mxu0
    %2946 = vmatprep.mubr.bf16.mxu0 0
    %2947 = vmatmul.mubr.bf16.gmra.mrb[0].mxu0 %v2703
    %v2948 = vpop.f32.mrb[0].mxu0
    %v2949 = vadd.f32 0.0, %v2948
    %v2950 = vpop.f32.mrb[0].mxu0
    %v2951 = vpop.f32.mrb[0].mxu0
    %v2952 = vadd.f32 0.0, %v2951
    %v2953 = vpop.f32.mrb[0].mxu0
    %2954 = vmatprep.mubr.bf16.mxu0 0
    %2955 = vmatmul.mubr.bf16.gmra.mrb[0].mxu0 %v2704
    %v2956 = vpop.f32.mrb[0].mxu0
    %v2957 = vadd.f32 0.0, %v2956
    %v2958 = vpop.f32.mrb[0].mxu0
    %v2959 = vpop.f32.mrb[0].mxu0
    %v2960 = vadd.f32 0.0, %v2959
    %v2961 = vpop.f32.mrb[0].mxu0
    %2962 = vmatprep.mubr.bf16.mxu0 0
    %2963 = vmatmul.mubr.bf16.gmra.mrb[0].mxu0 %v2705
    %v2964 = vpop.f32.mrb[0].mxu0
    %v2965 = vadd.f32 0.0, %v2964
    %v2966 = vpop.f32.mrb[0].mxu0
    %v2967 = vpop.f32.mrb[0].mxu0
    %v2968 = vadd.f32 0.0, %v2967
    %v2969 = vpop.f32.mrb[0].mxu0
    %2970 = vmatprep.mubr.bf16.mxu0 0
    %2971 = vmatmul.mubr.bf16.gmra.mrb[0].mxu0 %v2706
    %v2972 = vpop.f32.mrb[0].mxu0
    %v2973 = vadd.f32 0.0, %v2972
    %v2974 = vpop.f32.mrb[0].mxu0
    %v2975 = vpop.f32.mrb[0].mxu0
    %v2976 = vadd.f32 0.0, %v2975
    %v2977 = vpop.f32.mrb[0].mxu0
    %2978 = vmatprep.mubr.bf16.mxu0 0
    %2979 = vmatmul.mubr.bf16.gmra.mrb[0].mxu0 %v2707
    %v2980 = vpop.f32.mrb[0].mxu0
    %v2981 = vadd.f32 0.0, %v2980
    %v2982 = vpop.f32.mrb[0].mxu0
    %v2983 = vpop.f32.mrb[0].mxu0
    %v2984 = vadd.f32 0.0, %v2983
    %v2985 = vpop.f32.mrb[0].mxu0
    %2986 = vmatprep.mubr.bf16.mxu0 0
    %2987 = vmatmul.mubr.bf16.gmra.mrb[0].mxu0 %v2708
    %v2988 = vpop.f32.mrb[0].mxu0
    %v2989 = vadd.f32 0.0, %v2988
    %v2990 = vpop.f32.mrb[0].mxu0
    %v2991 = vpop.f32.mrb[0].mxu0
    %v2992 = vadd.f32 0.0, %v2991
    %v2993 = vpop.f32.mrb[0].mxu0
    %2994 = vmatprep.mubr.bf16.mxu0 0
    %2995 = vmatmul.mubr.bf16.gmra.mrb[0].mxu0 %v2709
    %v2996 = vpop.f32.mrb[0].mxu0
    %v2997 = vadd.f32 0.0, %v2996
    %v2998 = vpop.f32.mrb[0].mxu0
    %v2999 = vpop.f32.mrb[0].mxu0
    %v3000 = vadd.f32 0.0, %v2999
    %v3001 = vpop.f32.mrb[0].mxu0
    %3002 = vmatprep.mubr.bf16.mxu0 0
    %3003 = vmatmul.mubr.bf16.gmra.mrb[0].mxu0 %v2710
    %v3004 = vpop.f32.mrb[0].mxu0
    %v3005 = vadd.f32 0.0, %v3004
    %v3006 = vpop.f32.mrb[0].mxu0
    %v3007 = vpop.f32.mrb[0].mxu0
    %v3008 = vadd.f32 0.0, %v3007
    %v3009 = vpop.f32.mrb[0].mxu0
    %3010 = vmatprep.mubr.bf16.mxu0 0
    %3011 = vmatmul.mubr.bf16.gmra.mrb[0].mxu0 %v2711
    %v3012 = vpop.f32.mrb[0].mxu0
    %v3013 = vadd.f32 0.0, %v3012
    %v3014 = vpop.f32.mrb[0].mxu0
    %v3015 = vpop.f32.mrb[0].mxu0
    %v3016 = vadd.f32 0.0, %v3015
    %v3017 = vpop.f32.mrb[0].mxu0
    %3018 = vmatprep.mubr.bf16.mxu0 0
    %3019 = vmatmul.mubr.bf16.gmra.mrb[0].mxu0 %v2712
    %v3020 = vpop.f32.mrb[0].mxu0
    %v3021 = vadd.f32 0.0, %v3020
    %v3022 = vpop.f32.mrb[0].mxu0
    %v3023 = vpop.f32.mrb[0].mxu0
    %v3024 = vadd.f32 0.0, %v3023
    %v3025 = vpop.f32.mrb[0].mxu0
    %3026 = vmatprep.mubr.bf16.mxu0 0
    %3027 = vmatmul.mubr.bf16.gmra.mrb[0].mxu0 %v2713
    %v3028 = vpop.f32.mrb[0].mxu0
    %v3029 = vadd.f32 0.0, %v3028
    %v3030 = vpop.f32.mrb[0].mxu0
    %v3031 = vpop.f32.mrb[0].mxu0
    %v3032 = vadd.f32 0.0, %v3031
    %v3033 = vpop.f32.mrb[0].mxu0
    %3034 = vdwg.mxu0
    %v3035 = vpack.c.bf16 %v2784, %v2781
    %v3036 = vpack.c.bf16 %v2792, %v2789
    %v3037 = vpack.c.bf16 %v2800, %v2797
    %v3038 = vpack.c.bf16 %v2808, %v2805
    %v3039 = vpack.c.bf16 %v2816, %v2813
    %v3040 = vpack.c.bf16 %v2824, %v2821
    %v3041 = vpack.c.bf16 %v2832, %v2829
    %v3042 = vpack.c.bf16 %v2840, %v2837
    %v3043 = vpack.c.bf16 %v2848, %v2845
    %v3044 = vpack.c.bf16 %v2856, %v2853
    %v3045 = vpack.c.bf16 %v2864, %v2861
    %v3046 = vpack.c.bf16 %v2872, %v2869
    %v3047 = vpack.c.bf16 %v2880, %v2877
    %v3048 = vpack.c.bf16 %v2888, %v2885
    %v3049 = vpack.c.bf16 %v2896, %v2893
    %v3050 = vpack.c.bf16 %v2904, %v2901
    %v3051 = vpack.c.bf16 %v2912, %v2909
    %v3052 = vpack.c.bf16 %v2920, %v2917
    %v3053 = vpack.c.bf16 %v2928, %v2925
    %v3054 = vpack.c.bf16 %v2936, %v2933
    %v3055 = vpack.c.bf16 %v2944, %v2941
    %v3056 = vpack.c.bf16 %v2952, %v2949
    %v3057 = vpack.c.bf16 %v2960, %v2957
    %v3058 = vpack.c.bf16 %v2968, %v2965
    %v3059 = vpack.c.bf16 %v2976, %v2973
    %v3060 = vpack.c.bf16 %v2984, %v2981
    %v3061 = vpack.c.bf16 %v2992, %v2989
    %v3062 = vpack.c.bf16 %v3000, %v2997
    %v3063 = vpack.c.bf16 %v3008, %v3005
    %v3064 = vpack.c.bf16 %v3016, %v3013
    %v3065 = vpack.c.bf16 %v3024, %v3021
    %v3066 = vpack.c.bf16 %v3032, %v3029
    %vm3067 = vcmask 261120
    %3068 = vst.msk [vmem:[#allocation2] sm:$0xff] %vm3067, %v3035
    %3069 = vst.msk [vmem:[#allocation2 + $0x20] sm:$0xff] %vm3067, %v3036
    %3072 = vrot.lane.b32.xlu0 %v3037, 32
    %v3073 = vpop.permute.xlu0 %3072
    %3074 = vrot.lane.b32.xlu0 %v3038, 32
    %v3075 = vpop.permute.xlu0 %3074
    %vm3078 = vcmask 523520
    %3079 = vst.msk [vmem:[#allocation2] sm:$0xff] %vm3078, %v3073
    %3080 = vst.msk [vmem:[#allocation2 + $0x20] sm:$0xff] %vm3078, %v3075
    %3083 = vrot.lane.b32.xlu0 %v3039, 64
    %v3084 = vpop.permute.xlu0 %3083
    %3085 = vrot.lane.b32.xlu0 %v3040, 64
    %v3086 = vpop.permute.xlu0 %3085
    %vm3089 = vcmask 785920
    %3090 = vst.msk [vmem:[#allocation2] sm:$0xff] %vm3089, %v3084
    %3091 = vst.msk [vmem:[#allocation2 + $0x20] sm:$0xff] %vm3089, %v3086
    %3094 = vrot.lane.b32.xlu0 %v3041, 96
    %v3095 = vpop.permute.xlu0 %3094
    %3096 = vrot.lane.b32.xlu0 %v3042, 96
    %v3097 = vpop.permute.xlu0 %3096
    %vm3100 = vcmask 1048320
    %3101 = vst.msk [vmem:[#allocation2] sm:$0xff] %vm3100, %v3095
    %3102 = vst.msk [vmem:[#allocation2 + $0x20] sm:$0xff] %vm3100, %v3097
    %3103 = vst.msk [vmem:[#allocation2 + $0x8] sm:$0xff] %vm3067, %v3043
    %3104 = vst.msk [vmem:[#allocation2 + $0x28] sm:$0xff] %vm3067, %v3044
    %3107 = vrot.lane.b32.xlu0 %v3045, 32
    %v3108 = vpop.permute.xlu0 %3107
    %3109 = vrot.lane.b32.xlu0 %v3046, 32
    %v3110 = vpop.permute.xlu0 %3109
    %3113 = vst.msk [vmem:[#allocation2 + $0x8] sm:$0xff] %vm3078, %v3108
    %3114 = vst.msk [vmem:[#allocation2 + $0x28] sm:$0xff] %vm3078, %v3110
    %3117 = vrot.lane.b32.xlu0 %v3047, 64
    %v3118 = vpop.permute.xlu0 %3117
    %3119 = vrot.lane.b32.xlu0 %v3048, 64
    %v3120 = vpop.permute.xlu0 %3119
    %3123 = vst.msk [vmem:[#allocation2 + $0x8] sm:$0xff] %vm3089, %v3118
    %3124 = vst.msk [vmem:[#allocation2 + $0x28] sm:$0xff] %vm3089, %v3120
    %3127 = vrot.lane.b32.xlu0 %v3049, 96
    %v3128 = vpop.permute.xlu0 %3127
    %3129 = vrot.lane.b32.xlu0 %v3050, 96
    %v3130 = vpop.permute.xlu0 %3129
    %3133 = vst.msk [vmem:[#allocation2 + $0x8] sm:$0xff] %vm3100, %v3128
    %3134 = vst.msk [vmem:[#allocation2 + $0x28] sm:$0xff] %vm3100, %v3130
    %3135 = vst.msk [vmem:[#allocation2 + $0x10] sm:$0xff] %vm3067, %v3051
    %3136 = vst.msk [vmem:[#allocation2 + $0x30] sm:$0xff] %vm3067, %v3052
    %3139 = vrot.lane.b32.xlu0 %v3053, 32
    %v3140 = vpop.permute.xlu0 %3139
    %3141 = vrot.lane.b32.xlu0 %v3054, 32
    %v3142 = vpop.permute.xlu0 %3141
    %3145 = vst.msk [vmem:[#allocation2 + $0x10] sm:$0xff] %vm3078, %v3140
    %3146 = vst.msk [vmem:[#allocation2 + $0x30] sm:$0xff] %vm3078, %v3142
    %3149 = vrot.lane.b32.xlu0 %v3055, 64
    %v3150 = vpop.permute.xlu0 %3149
    %3151 = vrot.lane.b32.xlu0 %v3056, 64
    %v3152 = vpop.permute.xlu0 %3151
    %3155 = vst.msk [vmem:[#allocation2 + $0x10] sm:$0xff] %vm3089, %v3150
    %3156 = vst.msk [vmem:[#allocation2 + $0x30] sm:$0xff] %vm3089, %v3152
    %3159 = vrot.lane.b32.xlu0 %v3057, 96
    %v3160 = vpop.permute.xlu0 %3159
    %3161 = vrot.lane.b32.xlu0 %v3058, 96
    %v3162 = vpop.permute.xlu0 %3161
    %3165 = vst.msk [vmem:[#allocation2 + $0x10] sm:$0xff] %vm3100, %v3160
    %3166 = vst.msk [vmem:[#allocation2 + $0x30] sm:$0xff] %vm3100, %v3162
    %3167 = vst.msk [vmem:[#allocation2 + $0x18] sm:$0xff] %vm3067, %v3059
    %3168 = vst.msk [vmem:[#allocation2 + $0x38] sm:$0xff] %vm3067, %v3060
    %3171 = vrot.lane.b32.xlu0 %v3061, 32
    %v3172 = vpop.permute.xlu0 %3171
    %3173 = vrot.lane.b32.xlu0 %v3062, 32
    %v3174 = vpop.permute.xlu0 %3173
    %3177 = vst.msk [vmem:[#allocation2 + $0x18] sm:$0xff] %vm3078, %v3172
    %3178 = vst.msk [vmem:[#allocation2 + $0x38] sm:$0xff] %vm3078, %v3174
    %3181 = vrot.lane.b32.xlu0 %v3063, 64
    %v3182 = vpop.permute.xlu0 %3181
    %3183 = vrot.lane.b32.xlu0 %v3064, 64
    %v3184 = vpop.permute.xlu0 %3183
    %3187 = vst.msk [vmem:[#allocation2 + $0x18] sm:$0xff] %vm3089, %v3182
    %3188 = vst.msk [vmem:[#allocation2 + $0x38] sm:$0xff] %vm3089, %v3184
    %3191 = vrot.lane.b32.xlu0 %v3065, 96
    %v3192 = vpop.permute.xlu0 %3191
    %3193 = vrot.lane.b32.xlu0 %v3066, 96
    %v3194 = vpop.permute.xlu0 %3193
    %3197 = vst.msk [vmem:[#allocation2 + $0x18] sm:$0xff] %vm3100, %v3192
    %3198 = vst.msk [vmem:[#allocation2 + $0x38] sm:$0xff] %vm3100, %v3194
    %v3199 = vld [vmem:[#allocation2] sm:$0xff]
    %v3200 = vld [vmem:[#allocation2 + $0x8] sm:$0xff]
    %v3201 = vld [vmem:[#allocation2 + $0x10] sm:$0xff]
    %v3202 = vld [vmem:[#allocation2 + $0x18] sm:$0xff]
    %v3203 = vld [vmem:[#allocation2 + $0x20] sm:$0xff]
    %v3204 = vld [vmem:[#allocation2 + $0x28] sm:$0xff]
    %v3205 = vld [vmem:[#allocation2 + $0x30] sm:$0xff]
    %v3206 = vld [vmem:[#allocation2 + $0x38] sm:$0xff]
    %v3207 = vld [vmem:[%s4] sm:$0xf]
    %v3208 = vld [vmem:[%s4 + $0x4] sm:$0xf]
    %v3209 = vld [vmem:[%s4 + $0x8] sm:$0xf]
    %v3210 = vld [vmem:[%s4 + $0xc] sm:$0xf]
    %v3211 = vld [vmem:[%s4 + $0x10] sm:$0xf]
    %v3212 = vld [vmem:[%s4 + $0x14] sm:$0xf]
    %v3213 = vld [vmem:[%s4 + $0x18] sm:$0xf]
    %v3214 = vld [vmem:[%s4 + $0x1c] sm:$0xf]
    %v3215 = vld [vmem:[%s4 + $0x20] sm:$0xf]
    %v3216 = vld [vmem:[%s4 + $0x24] sm:$0xf]
    %v3217 = vld [vmem:[%s4 + $0x28] sm:$0xf]
    %v3218 = vld [vmem:[%s4 + $0x2c] sm:$0xf]
    %v3219 = vld [vmem:[%s4 + $0x30] sm:$0xf]
    %v3220 = vld [vmem:[%s4 + $0x34] sm:$0xf]
    %v3221 = vld [vmem:[%s4 + $0x38] sm:$0xf]
    %v3222 = vld [vmem:[%s4 + $0x3c] sm:$0xf]
    %v3223 = vld [vmem:[%s4 + $0x40] sm:$0xf]
    %v3224 = vld [vmem:[%s4 + $0x44] sm:$0xf]
    %v3225 = vld [vmem:[%s4 + $0x48] sm:$0xf]
    %v3226 = vld [vmem:[%s4 + $0x4c] sm:$0xf]
    %v3227 = vld [vmem:[%s4 + $0x50] sm:$0xf]
    %v3228 = vld [vmem:[%s4 + $0x54] sm:$0xf]
    %v3229 = vld [vmem:[%s4 + $0x58] sm:$0xf]
    %v3230 = vld [vmem:[%s4 + $0x5c] sm:$0xf]
    %v3231 = vld [vmem:[%s4 + $0x60] sm:$0xf]
    %v3232 = vld [vmem:[%s4 + $0x64] sm:$0xf]
    %v3233 = vld [vmem:[%s4 + $0x68] sm:$0xf]
    %v3234 = vld [vmem:[%s4 + $0x6c] sm:$0xf]
    %v3235 = vld [vmem:[%s4 + $0x70] sm:$0xf]
    %v3236 = vld [vmem:[%s4 + $0x74] sm:$0xf]
    %v3237 = vld [vmem:[%s4 + $0x78] sm:$0xf]
    %v3238 = vld [vmem:[%s4 + $0x7c] sm:$0xf]
    %v3239 = vld [vmem:[%s4 + $0x80] sm:$0xf]
    %v3240 = vld [vmem:[%s4 + $0x84] sm:$0xf]
    %v3241 = vld [vmem:[%s4 + $0x88] sm:$0xf]
    %v3242 = vld [vmem:[%s4 + $0x8c] sm:$0xf]
    %v3243 = vld [vmem:[%s4 + $0x90] sm:$0xf]
    %v3244 = vld [vmem:[%s4 + $0x94] sm:$0xf]
    %v3245 = vld [vmem:[%s4 + $0x98] sm:$0xf]
    %v3246 = vld [vmem:[%s4 + $0x9c] sm:$0xf]
    %v3247 = vld [vmem:[%s4 + $0xa0] sm:$0xf]
    %v3248 = vld [vmem:[%s4 + $0xa4] sm:$0xf]
    %v3249 = vld [vmem:[%s4 + $0xa8] sm:$0xf]
    %v3250 = vld [vmem:[%s4 + $0xac] sm:$0xf]
    %v3251 = vld [vmem:[%s4 + $0xb0] sm:$0xf]
    %v3252 = vld [vmem:[%s4 + $0xb4] sm:$0xf]
    %v3253 = vld [vmem:[%s4 + $0xb8] sm:$0xf]
    %v3254 = vld [vmem:[%s4 + $0xbc] sm:$0xf]
    %v3255 = vld [vmem:[%s4 + $0xc0] sm:$0xf]
    %v3256 = vld [vmem:[%s4 + $0xc4] sm:$0xf]
    %v3257 = vld [vmem:[%s4 + $0xc8] sm:$0xf]
    %v3258 = vld [vmem:[%s4 + $0xcc] sm:$0xf]
    %v3259 = vld [vmem:[%s4 + $0xd0] sm:$0xf]
    %v3260 = vld [vmem:[%s4 + $0xd4] sm:$0xf]
    %v3261 = vld [vmem:[%s4 + $0xd8] sm:$0xf]
    %v3262 = vld [vmem:[%s4 + $0xdc] sm:$0xf]
    %v3263 = vld [vmem:[%s4 + $0xe0] sm:$0xf]
    %v3264 = vld [vmem:[%s4 + $0xe4] sm:$0xf]
    %v3265 = vld [vmem:[%s4 + $0xe8] sm:$0xf]
    %v3266 = vld [vmem:[%s4 + $0xec] sm:$0xf]
    %v3267 = vld [vmem:[%s4 + $0xf0] sm:$0xf]
    %v3268 = vld [vmem:[%s4 + $0xf4] sm:$0xf]
    %v3269 = vld [vmem:[%s4 + $0xf8] sm:$0xf]
    %v3270 = vld [vmem:[%s4 + $0xfc] sm:$0xf]
    %v3271 = vld [vmem:[#allocation19] sm:$0x1]
    %v3273 = vlaneseq
    %v3274 = vshrl.u32 %v3273, 7
    %v3275 = vsub.s32 0, %v3274
    %v3276 = vrot.slane %v3271, %v3275
    %v3342 = vunpack.c.l.b16 %v3207
    %v3343 = vunpack.c.l.b16 %v3208
    %v3344 = vunpack.c.l.b16 %v3209
    %v3345 = vunpack.c.l.b16 %v3210
    %v3346 = vunpack.c.l.b16 %v3211
    %v3347 = vunpack.c.l.b16 %v3212
    %v3348 = vunpack.c.l.b16 %v3213
    %v3349 = vunpack.c.l.b16 %v3214
    %v3350 = vunpack.c.l.b16 %v3215
    %v3351 = vunpack.c.l.b16 %v3216
    %v3352 = vunpack.c.l.b16 %v3217
    %v3353 = vunpack.c.l.b16 %v3218
    %v3354 = vunpack.c.l.b16 %v3219
    %v3355 = vunpack.c.l.b16 %v3220
    %v3356 = vunpack.c.l.b16 %v3221
    %v3357 = vunpack.c.l.b16 %v3222
    %v3358 = vunpack.c.l.b16 %v3223
    %v3359 = vunpack.c.l.b16 %v3224
    %v3360 = vunpack.c.l.b16 %v3225
    %v3361 = vunpack.c.l.b16 %v3226
    %v3362 = vunpack.c.l.b16 %v3227
    %v3363 = vunpack.c.l.b16 %v3228
    %v3364 = vunpack.c.l.b16 %v3229
    %v3365 = vunpack.c.l.b16 %v3230
    %v3366 = vunpack.c.l.b16 %v3231
    %v3367 = vunpack.c.l.b16 %v3232
    %v3368 = vunpack.c.l.b16 %v3233
    %v3369 = vunpack.c.l.b16 %v3234
    %v3370 = vunpack.c.l.b16 %v3235
    %v3371 = vunpack.c.l.b16 %v3236
    %v3372 = vunpack.c.l.b16 %v3237
    %v3373 = vunpack.c.l.b16 %v3238
    %v3374 = vunpack.c.l.b16 %v3239
    %v3375 = vunpack.c.l.b16 %v3240
    %v3376 = vunpack.c.l.b16 %v3241
    %v3377 = vunpack.c.l.b16 %v3242
    %v3378 = vunpack.c.l.b16 %v3243
    %v3379 = vunpack.c.l.b16 %v3244
    %v3380 = vunpack.c.l.b16 %v3245
    %v3381 = vunpack.c.l.b16 %v3246
    %v3382 = vunpack.c.l.b16 %v3247
    %v3383 = vunpack.c.l.b16 %v3248
    %v3384 = vunpack.c.l.b16 %v3249
    %v3385 = vunpack.c.l.b16 %v3250
    %v3386 = vunpack.c.l.b16 %v3251
    %v3387 = vunpack.c.l.b16 %v3252
    %v3388 = vunpack.c.l.b16 %v3253
    %v3389 = vunpack.c.l.b16 %v3254
    %v3390 = vunpack.c.l.b16 %v3255
    %v3391 = vunpack.c.l.b16 %v3256
    %v3392 = vunpack.c.l.b16 %v3257
    %v3393 = vunpack.c.l.b16 %v3258
    %v3394 = vunpack.c.l.b16 %v3259
    %v3395 = vunpack.c.l.b16 %v3260
    %v3396 = vunpack.c.l.b16 %v3261
    %v3397 = vunpack.c.l.b16 %v3262
    %v3398 = vunpack.c.l.b16 %v3263
    %v3399 = vunpack.c.l.b16 %v3264
    %v3400 = vunpack.c.l.b16 %v3265
    %v3401 = vunpack.c.l.b16 %v3266
    %v3402 = vunpack.c.l.b16 %v3267
    %v3403 = vunpack.c.l.b16 %v3268
    %v3404 = vunpack.c.l.b16 %v3269
    %v3405 = vunpack.c.l.b16 %v3270
    %v3406 = vpack.c.b16 %v3343, %v3342
    %v3407 = vpack.c.b16 %v3345, %v3344
    %v3408 = vpack.c.b16 %v3347, %v3346
    %v3409 = vpack.c.b16 %v3349, %v3348
    %v3410 = vpack.c.b16 %v3351, %v3350
    %v3411 = vpack.c.b16 %v3353, %v3352
    %v3412 = vpack.c.b16 %v3355, %v3354
    %v3413 = vpack.c.b16 %v3357, %v3356
    %v3414 = vpack.c.b16 %v3359, %v3358
    %v3415 = vpack.c.b16 %v3361, %v3360
    %v3416 = vpack.c.b16 %v3363, %v3362
    %v3417 = vpack.c.b16 %v3365, %v3364
    %v3418 = vpack.c.b16 %v3367, %v3366
    %v3419 = vpack.c.b16 %v3369, %v3368
    %v3420 = vpack.c.b16 %v3371, %v3370
    %v3421 = vpack.c.b16 %v3373, %v3372
    %v3422 = vpack.c.b16 %v3375, %v3374
    %v3423 = vpack.c.b16 %v3377, %v3376
    %v3424 = vpack.c.b16 %v3379, %v3378
    %v3425 = vpack.c.b16 %v3381, %v3380
    %v3426 = vpack.c.b16 %v3383, %v3382
    %v3427 = vpack.c.b16 %v3385, %v3384
    %v3428 = vpack.c.b16 %v3387, %v3386
    %v3429 = vpack.c.b16 %v3389, %v3388
    %v3430 = vpack.c.b16 %v3391, %v3390
    %v3431 = vpack.c.b16 %v3393, %v3392
    %v3432 = vpack.c.b16 %v3395, %v3394
    %v3433 = vpack.c.b16 %v3397, %v3396
    %v3434 = vpack.c.b16 %v3399, %v3398
    %v3435 = vpack.c.b16 %v3401, %v3400
    %v3436 = vpack.c.b16 %v3403, %v3402
    %v3437 = vpack.c.b16 %v3405, %v3404
    %3470 = vmatprep.subr.bf16.mxu0 0
    %3471 = vmatpush1.bf16.msra.mxu0 %v3406
    %3472 = vmatprep.subr.bf16.mxu0 0
    %3473 = vmatpush1.bf16.msra.mxu0 %v3407
    %3474 = vmatprep.subr.bf16.mxu0 0
    %3475 = vmatpush1.bf16.msra.mxu0 %v3408
    %3476 = vmatprep.subr.bf16.mxu0 0
    %3477 = vmatpush1.bf16.msra.mxu0 %v3409
    %3478 = vmatprep.subr.bf16.mxu0 0
    %3479 = vmatpush1.bf16.msra.mxu0 %v3410
    %3480 = vmatprep.subr.bf16.mxu0 0
    %3481 = vmatpush1.bf16.msra.mxu0 %v3411
    %3482 = vmatprep.subr.bf16.mxu0 0
    %3483 = vmatpush1.bf16.msra.mxu0 %v3412
    %3484 = vmatprep.subr.bf16.mxu0 0
    %3485 = vmatpush1.bf16.msra.mxu0 %v3413
    %3486 = vmatprep.subr.bf16.mxu0 0
    %3487 = vmatpush1.bf16.msra.mxu0 %v3414
    %3488 = vmatprep.subr.bf16.mxu0 0
    %3489 = vmatpush1.bf16.msra.mxu0 %v3415
    %3490 = vmatprep.subr.bf16.mxu0 0
    %3491 = vmatpush1.bf16.msra.mxu0 %v3416
    %3492 = vmatprep.subr.bf16.mxu0 0
    %3493 = vmatpush1.bf16.msra.mxu0 %v3417
    %3494 = vmatprep.subr.bf16.mxu0 0
    %3495 = vmatpush1.bf16.msra.mxu0 %v3418
    %3496 = vmatprep.subr.bf16.mxu0 0
    %3497 = vmatpush1.bf16.msra.mxu0 %v3419
    %3498 = vmatprep.subr.bf16.mxu0 0
    %3499 = vmatpush1.bf16.msra.mxu0 %v3420
    %3500 = vmatprep.subr.bf16.mxu0 0
    %3501 = vmatpush1.bf16.msra.mxu0 %v3421
    %3502 = vmatprep.mubr.bf16.mxu0 %v3200
    %3503 = vmatmul.mubr.bf16.gmra.mrb[0].mxu0 %v3199
    %v3504 = vpop.f32.mrb[0].mxu0
    %v3505 = vadd.f32 %v3276, %v3504
    %v3506 = vpop.f32.mrb[0].mxu0
    %v3507 = vpop.f32.mrb[0].mxu0
    %v3508 = vadd.f32 %v3276, %v3507
    %v3509 = vpop.f32.mrb[0].mxu0
    %3510 = vmatprep.mubr.bf16.mxu0 %v3204
    %3511 = vmatmul.mubr.bf16.gmra.mrb[0].mxu0 %v3203
    %v3512 = vpop.f32.mrb[0].mxu0
    %v3513 = vadd.f32 %v3276, %v3512
    %v3514 = vpop.f32.mrb[0].mxu0
    %v3515 = vpop.f32.mrb[0].mxu0
    %v3516 = vadd.f32 %v3276, %v3515
    %v3517 = vpop.f32.mrb[0].mxu0
    %3518 = vdwg.mxu0
    %3519 = vmatprep.subr.bf16.mxu0 0
    %3520 = vmatpush1.bf16.msra.mxu0 %v3422
    %3521 = vmatprep.subr.bf16.mxu0 0
    %3522 = vmatpush1.bf16.msra.mxu0 %v3423
    %3523 = vmatprep.subr.bf16.mxu0 0
    %3524 = vmatpush1.bf16.msra.mxu0 %v3424
    %3525 = vmatprep.subr.bf16.mxu0 0
    %3526 = vmatpush1.bf16.msra.mxu0 %v3425
    %3527 = vmatprep.subr.bf16.mxu0 0
    %3528 = vmatpush1.bf16.msra.mxu0 %v3426
    %3529 = vmatprep.subr.bf16.mxu0 0
    %3530 = vmatpush1.bf16.msra.mxu0 %v3427
    %3531 = vmatprep.subr.bf16.mxu0 0
    %3532 = vmatpush1.bf16.msra.mxu0 %v3428
    %3533 = vmatprep.subr.bf16.mxu0 0
    %3534 = vmatpush1.bf16.msra.mxu0 %v3429
    %3535 = vmatprep.subr.bf16.mxu0 0
    %3536 = vmatpush1.bf16.msra.mxu0 %v3430
    %3537 = vmatprep.subr.bf16.mxu0 0
    %3538 = vmatpush1.bf16.msra.mxu0 %v3431
    %3539 = vmatprep.subr.bf16.mxu0 0
    %3540 = vmatpush1.bf16.msra.mxu0 %v3432
    %3541 = vmatprep.subr.bf16.mxu0 0
    %3542 = vmatpush1.bf16.msra.mxu0 %v3433
    %3543 = vmatprep.subr.bf16.mxu0 0
    %3544 = vmatpush1.bf16.msra.mxu0 %v3434
    %3545 = vmatprep.subr.bf16.mxu0 0
    %3546 = vmatpush1.bf16.msra.mxu0 %v3435
    %3547 = vmatprep.subr.bf16.mxu0 0
    %3548 = vmatpush1.bf16.msra.mxu0 %v3436
    %3549 = vmatprep.subr.bf16.mxu0 0
    %3550 = vmatpush1.bf16.msra.mxu0 %v3437
    %3551 = vmatprep.mubr.bf16.mxu0 %v3202
    %3552 = vmatmul.mubr.bf16.gmra.mrb[0].mxu0 %v3201
    %v3553 = vpop.f32.mrb[0].mxu0
    %v3554 = vadd.f32 %v3505, %v3553
    %v3555 = vpop.f32.mrb[0].mxu0
    %v3556 = vpop.f32.mrb[0].mxu0
    %v3557 = vadd.f32 %v3508, %v3556
    %v3558 = vpop.f32.mrb[0].mxu0
    %3559 = vmatprep.mubr.bf16.mxu0 %v3206
    %3560 = vmatmul.mubr.bf16.gmra.mrb[0].mxu0 %v3205
    %v3561 = vpop.f32.mrb[0].mxu0
    %v3562 = vadd.f32 %v3513, %v3561
    %v3563 = vpop.f32.mrb[0].mxu0
    %v3564 = vpop.f32.mrb[0].mxu0
    %v3565 = vadd.f32 %v3516, %v3564
    %v3566 = vpop.f32.mrb[0].mxu0
    %3567 = vdwg.mxu0
    %v3568 = vmax.f32 %v3554, 0.0
    %v3569 = vmax.f32 %v3557, 0.0
    %v3570 = vmax.f32 %v3562, 0.0
    %v3571 = vmax.f32 %v3565, 0.0
    %v3572 = vpack.c.bf16 %v3569, %v3568
    %v3573 = vpack.c.bf16 %v3571, %v3570
    %v3574 = vld [vmem:[%s6] sm:$0xf]
    %v3575 = vld [vmem:[%s6 + $0x4] sm:$0xf]
    %v3576 = vld [vmem:[%s6 + $0x8] sm:$0xf]
    %v3577 = vld [vmem:[%s6 + $0xc] sm:$0xf]
    %v3578 = vld [vmem:[%s6 + $0x10] sm:$0xf]
    %v3579 = vld [vmem:[%s6 + $0x14] sm:$0xf]
    %v3580 = vld [vmem:[%s6 + $0x18] sm:$0xf]
    %v3581 = vld [vmem:[%s6 + $0x1c] sm:$0xf]
    %v3582 = vld [vmem:[%s6 + $0x20] sm:$0xf]
    %v3583 = vld [vmem:[%s6 + $0x24] sm:$0xf]
    %v3584 = vld [vmem:[%s6 + $0x28] sm:$0xf]
    %v3585 = vld [vmem:[%s6 + $0x2c] sm:$0xf]
    %v3586 = vld [vmem:[%s6 + $0x30] sm:$0xf]
    %v3587 = vld [vmem:[%s6 + $0x34] sm:$0xf]
    %v3588 = vld [vmem:[%s6 + $0x38] sm:$0xf]
    %v3589 = vld [vmem:[%s6 + $0x3c] sm:$0xf]
    %v3606 = vunpack.c.l.b16 %v3574
    %v3607 = vunpack.c.l.b16 %v3575
    %v3608 = vunpack.c.l.b16 %v3576
    %v3609 = vunpack.c.l.b16 %v3577
    %v3610 = vunpack.c.l.b16 %v3578
    %v3611 = vunpack.c.l.b16 %v3579
    %v3612 = vunpack.c.l.b16 %v3580
    %v3613 = vunpack.c.l.b16 %v3581
    %v3614 = vunpack.c.l.b16 %v3582
    %v3615 = vunpack.c.l.b16 %v3583
    %v3616 = vunpack.c.l.b16 %v3584
    %v3617 = vunpack.c.l.b16 %v3585
    %v3618 = vunpack.c.l.b16 %v3586
    %v3619 = vunpack.c.l.b16 %v3587
    %v3620 = vunpack.c.l.b16 %v3588
    %v3621 = vunpack.c.l.b16 %v3589
    %v3622 = vpack.c.b16 %v3607, %v3606
    %v3623 = vpack.c.b16 %v3609, %v3608
    %v3624 = vpack.c.b16 %v3611, %v3610
    %v3625 = vpack.c.b16 %v3613, %v3612
    %v3626 = vpack.c.b16 %v3615, %v3614
    %v3627 = vpack.c.b16 %v3617, %v3616
    %v3628 = vpack.c.b16 %v3619, %v3618
    %v3629 = vpack.c.b16 %v3621, %v3620
    %v3631 = vsel %vm3067, %v3622, 0
    %v3634 = vsel %vm3067, %v3623, 0
    %v3637 = vsel %vm3067, %v3624, 0
    %v3640 = vsel %vm3067, %v3625, 0
    %v3643 = vsel %vm3067, %v3626, 0
    %v3646 = vsel %vm3067, %v3627, 0
    %v3649 = vsel %vm3067, %v3628, 0
    %v3652 = vsel %vm3067, %v3629, 0
    %3654 = vmatprep.subr.bf16.mxu0 0
    %3655 = vmatpush1.bf16.msra.mxu0 %v3572
    %3656 = vmatprep.subr.bf16.mxu0 0
    %3657 = vmatpush1.bf16.msra.mxu0 %v3573
    %3658 = vmatprep.subr.bf16.mxu0 0
    %3659 = vmatpush1.bf16.msra.mxu0 0
    %3660 = vmatprep.subr.bf16.mxu0 0
    %3661 = vmatpush1.bf16.msra.mxu0 0
    %3662 = vmatprep.subr.bf16.mxu0 0
    %3663 = vmatpush1.bf16.msra.mxu0 0
    %3664 = vmatprep.subr.bf16.mxu0 0
    %3665 = vmatpush1.bf16.msra.mxu0 0
    %3666 = vmatprep.subr.bf16.mxu0 0
    %3667 = vmatpush1.bf16.msra.mxu0 0
    %3668 = vmatprep.subr.bf16.mxu0 0
    %3669 = vmatpush1.bf16.msra.mxu0 0
    %3670 = vmatprep.subr.bf16.mxu0 0
    %3671 = vmatpush1.bf16.msra.mxu0 0
    %3672 = vmatprep.subr.bf16.mxu0 0
    %3673 = vmatpush1.bf16.msra.mxu0 0
    %3674 = vmatprep.subr.bf16.mxu0 0
    %3675 = vmatpush1.bf16.msra.mxu0 0
    %3676 = vmatprep.subr.bf16.mxu0 0
    %3677 = vmatpush1.bf16.msra.mxu0 0
    %3678 = vmatprep.subr.bf16.mxu0 0
    %3679 = vmatpush1.bf16.msra.mxu0 0
    %3680 = vmatprep.subr.bf16.mxu0 0
    %3681 = vmatpush1.bf16.msra.mxu0 0
    %3682 = vmatprep.subr.bf16.mxu0 0
    %3683 = vmatpush1.bf16.msra.mxu0 0
    %3684 = vmatprep.subr.bf16.mxu0 0
    %3685 = vmatpush1.bf16.msra.mxu0 0
    %3686 = vmatprep.mubr.bf16.mxu0 0
    %3687 = vmatmul.mubr.bf16.gmra.mrb[0].mxu0 %v3631
    %v3688 = vpop.f32.mrb[0].mxu0
    %v3689 = vadd.f32 0.0, %v3688
    %v3690 = vpop.f32.mrb[0].mxu0
    %v3691 = vpop.f32.mrb[0].mxu0
    %v3692 = vadd.f32 0.0, %v3691
    %v3693 = vpop.f32.mrb[0].mxu0
    %3694 = vmatprep.mubr.bf16.mxu0 0
    %3695 = vmatmul.mubr.bf16.gmra.mrb[0].mxu0 %v3634
    %v3696 = vpop.f32.mrb[0].mxu0
    %v3697 = vadd.f32 0.0, %v3696
    %v3698 = vpop.f32.mrb[0].mxu0
    %v3699 = vpop.f32.mrb[0].mxu0
    %v3700 = vadd.f32 0.0, %v3699
    %v3701 = vpop.f32.mrb[0].mxu0
    %3702 = vmatprep.mubr.bf16.mxu0 0
    %3703 = vmatmul.mubr.bf16.gmra.mrb[0].mxu0 %v3637
    %v3704 = vpop.f32.mrb[0].mxu0
    %v3705 = vadd.f32 0.0, %v3704
    %v3706 = vpop.f32.mrb[0].mxu0
    %v3707 = vpop.f32.mrb[0].mxu0
    %v3708 = vadd.f32 0.0, %v3707
    %v3709 = vpop.f32.mrb[0].mxu0
    %3710 = vmatprep.mubr.bf16.mxu0 0
    %3711 = vmatmul.mubr.bf16.gmra.mrb[0].mxu0 %v3640
    %v3712 = vpop.f32.mrb[0].mxu0
    %v3713 = vadd.f32 0.0, %v3712
    %v3714 = vpop.f32.mrb[0].mxu0
    %v3715 = vpop.f32.mrb[0].mxu0
    %v3716 = vadd.f32 0.0, %v3715
    %v3717 = vpop.f32.mrb[0].mxu0
    %3718 = vmatprep.mubr.bf16.mxu0 0
    %3719 = vmatmul.mubr.bf16.gmra.mrb[0].mxu0 %v3643
    %v3720 = vpop.f32.mrb[0].mxu0
    %v3721 = vadd.f32 0.0, %v3720
    %v3722 = vpop.f32.mrb[0].mxu0
    %v3723 = vpop.f32.mrb[0].mxu0
    %v3724 = vadd.f32 0.0, %v3723
    %v3725 = vpop.f32.mrb[0].mxu0
    %3726 = vmatprep.mubr.bf16.mxu0 0
    %3727 = vmatmul.mubr.bf16.gmra.mrb[0].mxu0 %v3646
    %v3728 = vpop.f32.mrb[0].mxu0
    %v3729 = vadd.f32 0.0, %v3728
    %v3730 = vpop.f32.mrb[0].mxu0
    %v3731 = vpop.f32.mrb[0].mxu0
    %v3732 = vadd.f32 0.0, %v3731
    %v3733 = vpop.f32.mrb[0].mxu0
    %3734 = vmatprep.mubr.bf16.mxu0 0
    %3735 = vmatmul.mubr.bf16.gmra.mrb[0].mxu0 %v3649
    %v3736 = vpop.f32.mrb[0].mxu0
    %v3737 = vadd.f32 0.0, %v3736
    %v3738 = vpop.f32.mrb[0].mxu0
    %v3739 = vpop.f32.mrb[0].mxu0
    %v3740 = vadd.f32 0.0, %v3739
    %v3741 = vpop.f32.mrb[0].mxu0
    %3742 = vmatprep.mubr.bf16.mxu0 0
    %3743 = vmatmul.mubr.bf16.gmra.mrb[0].mxu0 %v3652
    %v3744 = vpop.f32.mrb[0].mxu0
    %v3745 = vadd.f32 0.0, %v3744
    %v3746 = vpop.f32.mrb[0].mxu0
    %v3747 = vpop.f32.mrb[0].mxu0
    %v3748 = vadd.f32 0.0, %v3747
    %v3749 = vpop.f32.mrb[0].mxu0
    %3750 = vdwg.mxu0
    %v3751 = vpack.c.bf16 %v3692, %v3689
    %v3752 = vpack.c.bf16 %v3700, %v3697
    %v3753 = vpack.c.bf16 %v3708, %v3705
    %v3754 = vpack.c.bf16 %v3716, %v3713
    %v3755 = vpack.c.bf16 %v3724, %v3721
    %v3756 = vpack.c.bf16 %v3732, %v3729
    %v3757 = vpack.c.bf16 %v3740, %v3737
    %v3758 = vpack.c.bf16 %v3748, %v3745
    %vm3759 = vcmask 519168
    %3760 = vst.msk [vmem:[#allocation3] sm:$0xf] %vm3759, %v3751
    %v3762 = vunpack.c.h.b16 %v3751
    %v3763 = vpack.c.b16 %v3762, %v3762
    %3764 = vrot.lane.b32.xlu0 %v3763, 64
    %v3765 = vpop.permute.xlu0 %3764
    %vm3767 = vcmask 1043968
    %3768 = vst.msk [vmem:[#allocation3] sm:$0xf] %vm3767, %v3765
    %3769 = vst.msk [vmem:[#allocation3 + $0x4] sm:$0xf] %vm3759, %v3752
    %v3771 = vunpack.c.h.b16 %v3752
    %v3772 = vpack.c.b16 %v3771, %v3771
    %3773 = vrot.lane.b32.xlu0 %v3772, 64
    %v3774 = vpop.permute.xlu0 %3773
    %3776 = vst.msk [vmem:[#allocation3 + $0x4] sm:$0xf] %vm3767, %v3774
    %3777 = vst.msk [vmem:[#allocation3 + $0x8] sm:$0xf] %vm3759, %v3753
    %v3779 = vunpack.c.h.b16 %v3753
    %v3780 = vpack.c.b16 %v3779, %v3779
    %3781 = vrot.lane.b32.xlu0 %v3780, 64
    %v3782 = vpop.permute.xlu0 %3781
    %3784 = vst.msk [vmem:[#allocation3 + $0x8] sm:$0xf] %vm3767, %v3782
    %3785 = vst.msk [vmem:[#allocation3 + $0xc] sm:$0xf] %vm3759, %v3754
    %v3787 = vunpack.c.h.b16 %v3754
    %v3788 = vpack.c.b16 %v3787, %v3787
    %3789 = vrot.lane.b32.xlu0 %v3788, 64
    %v3790 = vpop.permute.xlu0 %3789
    %3792 = vst.msk [vmem:[#allocation3 + $0xc] sm:$0xf] %vm3767, %v3790
    %3793 = vst.msk [vmem:[#allocation3 + $0x10] sm:$0xf] %vm3759, %v3755
    %v3795 = vunpack.c.h.b16 %v3755
    %v3796 = vpack.c.b16 %v3795, %v3795
    %3797 = vrot.lane.b32.xlu0 %v3796, 64
    %v3798 = vpop.permute.xlu0 %3797
    %3800 = vst.msk [vmem:[#allocation3 + $0x10] sm:$0xf] %vm3767, %v3798
    %3801 = vst.msk [vmem:[#allocation3 + $0x14] sm:$0xf] %vm3759, %v3756
    %v3803 = vunpack.c.h.b16 %v3756
    %v3804 = vpack.c.b16 %v3803, %v3803
    %3805 = vrot.lane.b32.xlu0 %v3804, 64
    %v3806 = vpop.permute.xlu0 %3805
    %3808 = vst.msk [vmem:[#allocation3 + $0x14] sm:$0xf] %vm3767, %v3806
    %3809 = vst.msk [vmem:[#allocation3 + $0x18] sm:$0xf] %vm3759, %v3757
    %v3811 = vunpack.c.h.b16 %v3757
    %v3812 = vpack.c.b16 %v3811, %v3811
    %3813 = vrot.lane.b32.xlu0 %v3812, 64
    %v3814 = vpop.permute.xlu0 %3813
    %3816 = vst.msk [vmem:[#allocation3 + $0x18] sm:$0xf] %vm3767, %v3814
    %3817 = vst.msk [vmem:[#allocation3 + $0x1c] sm:$0xf] %vm3759, %v3758
    %v3819 = vunpack.c.h.b16 %v3758
    %v3820 = vpack.c.b16 %v3819, %v3819
    %3821 = vrot.lane.b32.xlu0 %v3820, 64
    %v3822 = vpop.permute.xlu0 %3821
    %3824 = vst.msk [vmem:[#allocation3 + $0x1c] sm:$0xf] %vm3767, %v3822
    %v3825 = vld [vmem:[#allocation3] sm:$0xff]
    %v3826 = vld [vmem:[#allocation3 + $0x8] sm:$0xff]
    %v3827 = vld [vmem:[#allocation3 + $0x10] sm:$0xff]
    %v3828 = vld [vmem:[#allocation3 + $0x18] sm:$0xff]
    %v3829 = vld [vmem:[%s7] sm:$0xf]
    %v3830 = vld [vmem:[%s7 + $0x4] sm:$0xf]
    %v3831 = vld [vmem:[%s7 + $0x8] sm:$0xf]
    %v3832 = vld [vmem:[%s7 + $0xc] sm:$0xf]
    %v3833 = vld [vmem:[%s7 + $0x10] sm:$0xf]
    %v3834 = vld [vmem:[%s7 + $0x14] sm:$0xf]
    %v3835 = vld [vmem:[%s7 + $0x18] sm:$0xf]
    %v3836 = vld [vmem:[%s7 + $0x1c] sm:$0xf]
    %v3837 = vld [vmem:[%s7 + $0x20] sm:$0xf]
    %v3838 = vld [vmem:[%s7 + $0x24] sm:$0xf]
    %v3839 = vld [vmem:[%s7 + $0x28] sm:$0xf]
    %v3840 = vld [vmem:[%s7 + $0x2c] sm:$0xf]
    %v3841 = vld [vmem:[%s7 + $0x30] sm:$0xf]
    %v3842 = vld [vmem:[%s7 + $0x34] sm:$0xf]
    %v3843 = vld [vmem:[%s7 + $0x38] sm:$0xf]
    %v3844 = vld [vmem:[%s7 + $0x3c] sm:$0xf]
    %v3845 = vld [vmem:[%s7 + $0x40] sm:$0xf]
    %v3846 = vld [vmem:[%s7 + $0x44] sm:$0xf]
    %v3847 = vld [vmem:[%s7 + $0x48] sm:$0xf]
    %v3848 = vld [vmem:[%s7 + $0x4c] sm:$0xf]
    %v3849 = vld [vmem:[%s7 + $0x50] sm:$0xf]
    %v3850 = vld [vmem:[%s7 + $0x54] sm:$0xf]
    %v3851 = vld [vmem:[%s7 + $0x58] sm:$0xf]
    %v3852 = vld [vmem:[%s7 + $0x5c] sm:$0xf]
    %v3853 = vld [vmem:[%s7 + $0x60] sm:$0xf]
    %v3854 = vld [vmem:[%s7 + $0x64] sm:$0xf]
    %v3855 = vld [vmem:[%s7 + $0x68] sm:$0xf]
    %v3856 = vld [vmem:[%s7 + $0x6c] sm:$0xf]
    %v3857 = vld [vmem:[%s7 + $0x70] sm:$0xf]
    %v3858 = vld [vmem:[%s7 + $0x74] sm:$0xf]
    %v3859 = vld [vmem:[%s7 + $0x78] sm:$0xf]
    %v3860 = vld [vmem:[%s7 + $0x7c] sm:$0xf]
    %v3861 = vld [vmem:[%s7 + $0x80] sm:$0xf]
    %v3862 = vld [vmem:[%s7 + $0x84] sm:$0xf]
    %v3863 = vld [vmem:[%s7 + $0x88] sm:$0xf]
    %v3864 = vld [vmem:[%s7 + $0x8c] sm:$0xf]
    %v3865 = vld [vmem:[%s7 + $0x90] sm:$0xf]
    %v3866 = vld [vmem:[%s7 + $0x94] sm:$0xf]
    %v3867 = vld [vmem:[%s7 + $0x98] sm:$0xf]
    %v3868 = vld [vmem:[%s7 + $0x9c] sm:$0xf]
    %v3869 = vld [vmem:[%s7 + $0xa0] sm:$0xf]
    %v3870 = vld [vmem:[%s7 + $0xa4] sm:$0xf]
    %v3871 = vld [vmem:[%s7 + $0xa8] sm:$0xf]
    %v3872 = vld [vmem:[%s7 + $0xac] sm:$0xf]
    %v3873 = vld [vmem:[%s7 + $0xb0] sm:$0xf]
    %v3874 = vld [vmem:[%s7 + $0xb4] sm:$0xf]
    %v3875 = vld [vmem:[%s7 + $0xb8] sm:$0xf]
    %v3876 = vld [vmem:[%s7 + $0xbc] sm:$0xf]
    %v3877 = vld [vmem:[%s7 + $0xc0] sm:$0xf]
    %v3878 = vld [vmem:[%s7 + $0xc4] sm:$0xf]
    %v3879 = vld [vmem:[%s7 + $0xc8] sm:$0xf]
    %v3880 = vld [vmem:[%s7 + $0xcc] sm:$0xf]
    %v3881 = vld [vmem:[%s7 + $0xd0] sm:$0xf]
    %v3882 = vld [vmem:[%s7 + $0xd4] sm:$0xf]
    %v3883 = vld [vmem:[%s7 + $0xd8] sm:$0xf]
    %v3884 = vld [vmem:[%s7 + $0xdc] sm:$0xf]
    %v3885 = vld [vmem:[%s7 + $0xe0] sm:$0xf]
    %v3886 = vld [vmem:[%s7 + $0xe4] sm:$0xf]
    %v3887 = vld [vmem:[%s7 + $0xe8] sm:$0xf]
    %v3888 = vld [vmem:[%s7 + $0xec] sm:$0xf]
    %v3889 = vld [vmem:[%s7 + $0xf0] sm:$0xf]
    %v3890 = vld [vmem:[%s7 + $0xf4] sm:$0xf]
    %v3891 = vld [vmem:[%s7 + $0xf8] sm:$0xf]
    %v3892 = vld [vmem:[%s7 + $0xfc] sm:$0xf]
    %v3893 = vld [vmem:[%s7 + $0x100] sm:$0xf]
    %v3894 = vld [vmem:[%s7 + $0x104] sm:$0xf]
    %v3895 = vld [vmem:[%s7 + $0x108] sm:$0xf]
    %v3896 = vld [vmem:[%s7 + $0x10c] sm:$0xf]
    %v3897 = vld [vmem:[%s7 + $0x110] sm:$0xf]
    %v3898 = vld [vmem:[%s7 + $0x114] sm:$0xf]
    %v3899 = vld [vmem:[%s7 + $0x118] sm:$0xf]
    %v3900 = vld [vmem:[%s7 + $0x11c] sm:$0xf]
    %v3901 = vld [vmem:[%s7 + $0x120] sm:$0xf]
    %v3902 = vld [vmem:[%s7 + $0x124] sm:$0xf]
    %v3903 = vld [vmem:[%s7 + $0x128] sm:$0xf]
    %v3904 = vld [vmem:[%s7 + $0x12c] sm:$0xf]
    %v3905 = vld [vmem:[%s7 + $0x130] sm:$0xf]
    %v3906 = vld [vmem:[%s7 + $0x134] sm:$0xf]
    %v3907 = vld [vmem:[%s7 + $0x138] sm:$0xf]
    %v3908 = vld [vmem:[%s7 + $0x13c] sm:$0xf]
    %v3909 = vld [vmem:[%s7 + $0x140] sm:$0xf]
    %v3910 = vld [vmem:[%s7 + $0x144] sm:$0xf]
    %v3911 = vld [vmem:[%s7 + $0x148] sm:$0xf]
    %v3912 = vld [vmem:[%s7 + $0x14c] sm:$0xf]
    %v3913 = vld [vmem:[%s7 + $0x150] sm:$0xf]
    %v3914 = vld [vmem:[%s7 + $0x154] sm:$0xf]
    %v3915 = vld [vmem:[%s7 + $0x158] sm:$0xf]
    %v3916 = vld [vmem:[%s7 + $0x15c] sm:$0xf]
    %v3917 = vld [vmem:[%s7 + $0x160] sm:$0xf]
    %v3918 = vld [vmem:[%s7 + $0x164] sm:$0xf]
    %v3919 = vld [vmem:[%s7 + $0x168] sm:$0xf]
    %v3920 = vld [vmem:[%s7 + $0x16c] sm:$0xf]
    %v3921 = vld [vmem:[%s7 + $0x170] sm:$0xf]
    %v3922 = vld [vmem:[%s7 + $0x174] sm:$0xf]
    %v3923 = vld [vmem:[%s7 + $0x178] sm:$0xf]
    %v3924 = vld [vmem:[%s7 + $0x17c] sm:$0xf]
    %v3925 = vld [vmem:[%s7 + $0x180] sm:$0xf]
    %v3926 = vld [vmem:[%s7 + $0x184] sm:$0xf]
    %v3927 = vld [vmem:[%s7 + $0x188] sm:$0xf]
    %v3928 = vld [vmem:[%s7 + $0x18c] sm:$0xf]
    %v3929 = vld [vmem:[%s7 + $0x190] sm:$0xf]
    %v3930 = vld [vmem:[%s7 + $0x194] sm:$0xf]
    %v3931 = vld [vmem:[%s7 + $0x198] sm:$0xf]
    %v3932 = vld [vmem:[%s7 + $0x19c] sm:$0xf]
    %v3933 = vld [vmem:[%s7 + $0x1a0] sm:$0xf]
    %v3934 = vld [vmem:[%s7 + $0x1a4] sm:$0xf]
    %v3935 = vld [vmem:[%s7 + $0x1a8] sm:$0xf]
    %v3936 = vld [vmem:[%s7 + $0x1ac] sm:$0xf]
    %v3937 = vld [vmem:[%s7 + $0x1b0] sm:$0xf]
    %v3938 = vld [vmem:[%s7 + $0x1b4] sm:$0xf]
    %v3939 = vld [vmem:[%s7 + $0x1b8] sm:$0xf]
    %v3940 = vld [vmem:[%s7 + $0x1bc] sm:$0xf]
    %v3941 = vld [vmem:[%s7 + $0x1c0] sm:$0xf]
    %v3942 = vld [vmem:[%s7 + $0x1c4] sm:$0xf]
    %v3943 = vld [vmem:[%s7 + $0x1c8] sm:$0xf]
    %v3944 = vld [vmem:[%s7 + $0x1cc] sm:$0xf]
    %v3945 = vld [vmem:[%s7 + $0x1d0] sm:$0xf]
    %v3946 = vld [vmem:[%s7 + $0x1d4] sm:$0xf]
    %v3947 = vld [vmem:[%s7 + $0x1d8] sm:$0xf]
    %v3948 = vld [vmem:[%s7 + $0x1dc] sm:$0xf]
    %v3949 = vld [vmem:[%s7 + $0x1e0] sm:$0xf]
    %v3950 = vld [vmem:[%s7 + $0x1e4] sm:$0xf]
    %v3951 = vld [vmem:[%s7 + $0x1e8] sm:$0xf]
    %v3952 = vld [vmem:[%s7 + $0x1ec] sm:$0xf]
    %v3953 = vld [vmem:[%s7 + $0x1f0] sm:$0xf]
    %v3954 = vld [vmem:[%s7 + $0x1f4] sm:$0xf]
    %v3955 = vld [vmem:[%s7 + $0x1f8] sm:$0xf]
    %v3956 = vld [vmem:[%s7 + $0x1fc] sm:$0xf]
    %v3957 = vld [vmem:[#allocation21] sm:$0x1]
    %v3959 = vlaneseq
    %v3960 = vshrl.u32 %v3959, 7
    %v3961 = vsub.s32 0, %v3960
    %v3962 = vrot.slane %v3957, %v3961
    %v3968 = vunpack.c.l.b16 %v3825
    %v3969 = vunpack.c.h.b16 %v3825
    %v3970 = vunpack.c.l.b16 %v3826
    %v3971 = vunpack.c.h.b16 %v3826
    %v3972 = vunpack.c.l.b16 %v3827
    %v3973 = vunpack.c.h.b16 %v3827
    %v3974 = vunpack.c.l.b16 %v3828
    %v3975 = vunpack.c.h.b16 %v3828
    %v3976 = vpack.c.b16 %v3968, %v3968
    %v3977 = vpack.c.b16 %v3969, %v3969
    %v3978 = vpack.c.b16 %v3970, %v3970
    %v3979 = vpack.c.b16 %v3971, %v3971
    %v3980 = vpack.c.b16 %v3972, %v3972
    %v3981 = vpack.c.b16 %v3973, %v3973
    %v3982 = vpack.c.b16 %v3974, %v3974
    %v3983 = vpack.c.b16 %v3975, %v3975
    %v4120 = vunpack.c.l.b16 %v3829
    %v4121 = vunpack.c.l.b16 %v3830
    %v4122 = vunpack.c.l.b16 %v3831
    %v4123 = vunpack.c.l.b16 %v3832
    %v4124 = vunpack.c.l.b16 %v3833
    %v4125 = vunpack.c.l.b16 %v3834
    %v4126 = vunpack.c.l.b16 %v3835
    %v4127 = vunpack.c.l.b16 %v3836
    %v4128 = vunpack.c.l.b16 %v3837
    %v4129 = vunpack.c.l.b16 %v3838
    %v4130 = vunpack.c.l.b16 %v3839
    %v4131 = vunpack.c.l.b16 %v3840
    %v4132 = vunpack.c.l.b16 %v3841
    %v4133 = vunpack.c.l.b16 %v3842
    %v4134 = vunpack.c.l.b16 %v3843
    %v4135 = vunpack.c.l.b16 %v3844
    %v4136 = vunpack.c.l.b16 %v3845
    %v4137 = vunpack.c.l.b16 %v3846
    %v4138 = vunpack.c.l.b16 %v3847
    %v4139 = vunpack.c.l.b16 %v3848
    %v4140 = vunpack.c.l.b16 %v3849
    %v4141 = vunpack.c.l.b16 %v3850
    %v4142 = vunpack.c.l.b16 %v3851
    %v4143 = vunpack.c.l.b16 %v3852
    %v4144 = vunpack.c.l.b16 %v3853
    %v4145 = vunpack.c.l.b16 %v3854
    %v4146 = vunpack.c.l.b16 %v3855
    %v4147 = vunpack.c.l.b16 %v3856
    %v4148 = vunpack.c.l.b16 %v3857
    %v4149 = vunpack.c.l.b16 %v3858
    %v4150 = vunpack.c.l.b16 %v3859
    %v4151 = vunpack.c.l.b16 %v3860
    %v4152 = vunpack.c.l.b16 %v3861
    %v4153 = vunpack.c.l.b16 %v3862
    %v4154 = vunpack.c.l.b16 %v3863
    %v4155 = vunpack.c.l.b16 %v3864
    %v4156 = vunpack.c.l.b16 %v3865
    %v4157 = vunpack.c.l.b16 %v3866
    %v4158 = vunpack.c.l.b16 %v3867
    %v4159 = vunpack.c.l.b16 %v3868
    %v4160 = vunpack.c.l.b16 %v3869
    %v4161 = vunpack.c.l.b16 %v3870
    %v4162 = vunpack.c.l.b16 %v3871
    %v4163 = vunpack.c.l.b16 %v3872
    %v4164 = vunpack.c.l.b16 %v3873
    %v4165 = vunpack.c.l.b16 %v3874
    %v4166 = vunpack.c.l.b16 %v3875
    %v4167 = vunpack.c.l.b16 %v3876
    %v4168 = vunpack.c.l.b16 %v3877
    %v4169 = vunpack.c.l.b16 %v3878
    %v4170 = vunpack.c.l.b16 %v3879
    %v4171 = vunpack.c.l.b16 %v3880
    %v4172 = vunpack.c.l.b16 %v3881
    %v4173 = vunpack.c.l.b16 %v3882
    %v4174 = vunpack.c.l.b16 %v3883
    %v4175 = vunpack.c.l.b16 %v3884
    %v4176 = vunpack.c.l.b16 %v3885
    %v4177 = vunpack.c.l.b16 %v3886
    %v4178 = vunpack.c.l.b16 %v3887
    %v4179 = vunpack.c.l.b16 %v3888
    %v4180 = vunpack.c.l.b16 %v3889
    %v4181 = vunpack.c.l.b16 %v3890
    %v4182 = vunpack.c.l.b16 %v3891
    %v4183 = vunpack.c.l.b16 %v3892
    %v4184 = vunpack.c.l.b16 %v3893
    %v4185 = vunpack.c.l.b16 %v3894
    %v4186 = vunpack.c.l.b16 %v3895
    %v4187 = vunpack.c.l.b16 %v3896
    %v4188 = vunpack.c.l.b16 %v3897
    %v4189 = vunpack.c.l.b16 %v3898
    %v4190 = vunpack.c.l.b16 %v3899
    %v4191 = vunpack.c.l.b16 %v3900
    %v4192 = vunpack.c.l.b16 %v3901
    %v4193 = vunpack.c.l.b16 %v3902
    %v4194 = vunpack.c.l.b16 %v3903
    %v4195 = vunpack.c.l.b16 %v3904
    %v4196 = vunpack.c.l.b16 %v3905
    %v4197 = vunpack.c.l.b16 %v3906
    %v4198 = vunpack.c.l.b16 %v3907
    %v4199 = vunpack.c.l.b16 %v3908
    %v4200 = vunpack.c.l.b16 %v3909
    %v4201 = vunpack.c.l.b16 %v3910
    %v4202 = vunpack.c.l.b16 %v3911
    %v4203 = vunpack.c.l.b16 %v3912
    %v4204 = vunpack.c.l.b16 %v3913
    %v4205 = vunpack.c.l.b16 %v3914
    %v4206 = vunpack.c.l.b16 %v3915
    %v4207 = vunpack.c.l.b16 %v3916
    %v4208 = vunpack.c.l.b16 %v3917
    %v4209 = vunpack.c.l.b16 %v3918
    %v4210 = vunpack.c.l.b16 %v3919
    %v4211 = vunpack.c.l.b16 %v3920
    %v4212 = vunpack.c.l.b16 %v3921
    %v4213 = vunpack.c.l.b16 %v3922
    %v4214 = vunpack.c.l.b16 %v3923
    %v4215 = vunpack.c.l.b16 %v3924
    %v4216 = vunpack.c.l.b16 %v3925
    %v4217 = vunpack.c.l.b16 %v3926
    %v4218 = vunpack.c.l.b16 %v3927
    %v4219 = vunpack.c.l.b16 %v3928
    %v4220 = vunpack.c.l.b16 %v3929
    %v4221 = vunpack.c.l.b16 %v3930
    %v4222 = vunpack.c.l.b16 %v3931
    %v4223 = vunpack.c.l.b16 %v3932
    %v4224 = vunpack.c.l.b16 %v3933
    %v4225 = vunpack.c.l.b16 %v3934
    %v4226 = vunpack.c.l.b16 %v3935
    %v4227 = vunpack.c.l.b16 %v3936
    %v4228 = vunpack.c.l.b16 %v3937
    %v4229 = vunpack.c.l.b16 %v3938
    %v4230 = vunpack.c.l.b16 %v3939
    %v4231 = vunpack.c.l.b16 %v3940
    %v4232 = vunpack.c.l.b16 %v3941
    %v4233 = vunpack.c.l.b16 %v3942
    %v4234 = vunpack.c.l.b16 %v3943
    %v4235 = vunpack.c.l.b16 %v3944
    %v4236 = vunpack.c.l.b16 %v3945
    %v4237 = vunpack.c.l.b16 %v3946
    %v4238 = vunpack.c.l.b16 %v3947
    %v4239 = vunpack.c.l.b16 %v3948
    %v4240 = vunpack.c.l.b16 %v3949
    %v4241 = vunpack.c.l.b16 %v3950
    %v4242 = vunpack.c.l.b16 %v3951
    %v4243 = vunpack.c.l.b16 %v3952
    %v4244 = vunpack.c.l.b16 %v3953
    %v4245 = vunpack.c.l.b16 %v3954
    %v4246 = vunpack.c.l.b16 %v3955
    %v4247 = vunpack.c.l.b16 %v3956
    %v4248 = vpack.c.b16 %v4121, %v4120
    %v4249 = vpack.c.b16 %v4123, %v4122
    %v4250 = vpack.c.b16 %v4125, %v4124
    %v4251 = vpack.c.b16 %v4127, %v4126
    %v4252 = vpack.c.b16 %v4129, %v4128
    %v4253 = vpack.c.b16 %v4131, %v4130
    %v4254 = vpack.c.b16 %v4133, %v4132
    %v4255 = vpack.c.b16 %v4135, %v4134
    %v4256 = vpack.c.b16 %v4137, %v4136
    %v4257 = vpack.c.b16 %v4139, %v4138
    %v4258 = vpack.c.b16 %v4141, %v4140
    %v4259 = vpack.c.b16 %v4143, %v4142
    %v4260 = vpack.c.b16 %v4145, %v4144
    %v4261 = vpack.c.b16 %v4147, %v4146
    %v4262 = vpack.c.b16 %v4149, %v4148
    %v4263 = vpack.c.b16 %v4151, %v4150
    %v4264 = vpack.c.b16 %v4153, %v4152
    %v4265 = vpack.c.b16 %v4155, %v4154
    %v4266 = vpack.c.b16 %v4157, %v4156
    %v4267 = vpack.c.b16 %v4159, %v4158
    %v4268 = vpack.c.b16 %v4161, %v4160
    %v4269 = vpack.c.b16 %v4163, %v4162
    %v4270 = vpack.c.b16 %v4165, %v4164
    %v4271 = vpack.c.b16 %v4167, %v4166
    %v4272 = vpack.c.b16 %v4169, %v4168
    %v4273 = vpack.c.b16 %v4171, %v4170
    %v4274 = vpack.c.b16 %v4173, %v4172
    %v4275 = vpack.c.b16 %v4175, %v4174
    %v4276 = vpack.c.b16 %v4177, %v4176
    %v4277 = vpack.c.b16 %v4179, %v4178
    %v4278 = vpack.c.b16 %v4181, %v4180
    %v4279 = vpack.c.b16 %v4183, %v4182
    %v4280 = vpack.c.b16 %v4185, %v4184
    %v4281 = vpack.c.b16 %v4187, %v4186
    %v4282 = vpack.c.b16 %v4189, %v4188
    %v4283 = vpack.c.b16 %v4191, %v4190
    %v4284 = vpack.c.b16 %v4193, %v4192
    %v4285 = vpack.c.b16 %v4195, %v4194
    %v4286 = vpack.c.b16 %v4197, %v4196
    %v4287 = vpack.c.b16 %v4199, %v4198
    %v4288 = vpack.c.b16 %v4201, %v4200
    %v4289 = vpack.c.b16 %v4203, %v4202
    %v4290 = vpack.c.b16 %v4205, %v4204
    %v4291 = vpack.c.b16 %v4207, %v4206
    %v4292 = vpack.c.b16 %v4209, %v4208
    %v4293 = vpack.c.b16 %v4211, %v4210
    %v4294 = vpack.c.b16 %v4213, %v4212
    %v4295 = vpack.c.b16 %v4215, %v4214
    %v4296 = vpack.c.b16 %v4217, %v4216
    %v4297 = vpack.c.b16 %v4219, %v4218
    %v4298 = vpack.c.b16 %v4221, %v4220
    %v4299 = vpack.c.b16 %v4223, %v4222
    %v4300 = vpack.c.b16 %v4225, %v4224
    %v4301 = vpack.c.b16 %v4227, %v4226
    %v4302 = vpack.c.b16 %v4229, %v4228
    %v4303 = vpack.c.b16 %v4231, %v4230
    %v4304 = vpack.c.b16 %v4233, %v4232
    %v4305 = vpack.c.b16 %v4235, %v4234
    %v4306 = vpack.c.b16 %v4237, %v4236
    %v4307 = vpack.c.b16 %v4239, %v4238
    %v4308 = vpack.c.b16 %v4241, %v4240
    %v4309 = vpack.c.b16 %v4243, %v4242
    %v4310 = vpack.c.b16 %v4245, %v4244
    %v4311 = vpack.c.b16 %v4247, %v4246
    %4376 = vmatprep.subr.bf16.mxu0 0
    %4377 = vmatpush1.bf16.msra.mxu0 %v4248
    %4378 = vmatprep.subr.bf16.mxu0 0
    %4379 = vmatpush1.bf16.msra.mxu0 %v4249
    %4380 = vmatprep.subr.bf16.mxu0 0
    %4381 = vmatpush1.bf16.msra.mxu0 %v4250
    %4382 = vmatprep.subr.bf16.mxu0 0
    %4383 = vmatpush1.bf16.msra.mxu0 %v4251
    %4384 = vmatprep.subr.bf16.mxu0 0
    %4385 = vmatpush1.bf16.msra.mxu0 %v4252
    %4386 = vmatprep.subr.bf16.mxu0 0
    %4387 = vmatpush1.bf16.msra.mxu0 %v4253
    %4388 = vmatprep.subr.bf16.mxu0 0
    %4389 = vmatpush1.bf16.msra.mxu0 %v4254
    %4390 = vmatprep.subr.bf16.mxu0 0
    %4391 = vmatpush1.bf16.msra.mxu0 %v4255
    %4392 = vmatprep.subr.bf16.mxu0 0
    %4393 = vmatpush1.bf16.msra.mxu0 %v4256
    %4394 = vmatprep.subr.bf16.mxu0 0
    %4395 = vmatpush1.bf16.msra.mxu0 %v4257
    %4396 = vmatprep.subr.bf16.mxu0 0
    %4397 = vmatpush1.bf16.msra.mxu0 %v4258
    %4398 = vmatprep.subr.bf16.mxu0 0
    %4399 = vmatpush1.bf16.msra.mxu0 %v4259
    %4400 = vmatprep.subr.bf16.mxu0 0
    %4401 = vmatpush1.bf16.msra.mxu0 %v4260
    %4402 = vmatprep.subr.bf16.mxu0 0
    %4403 = vmatpush1.bf16.msra.mxu0 %v4261
    %4404 = vmatprep.subr.bf16.mxu0 0
    %4405 = vmatpush1.bf16.msra.mxu0 %v4262
    %4406 = vmatprep.subr.bf16.mxu0 0
    %4407 = vmatpush1.bf16.msra.mxu0 %v4263
    %4408 = vmatprep.mubr.bf16.mxu0 %v3977
    %4409 = vmatmul.mubr.bf16.gmra.mrb[0].mxu0 %v3976
    %v4410 = vpop.f32.mrb[0].mxu0
    %v4411 = vadd.f32 %v3962, %v4410
    %v4412 = vpop.f32.mrb[0].mxu0
    %v4413 = vpop.f32.mrb[0].mxu0
    %v4414 = vpop.f32.mrb[0].mxu0
    %4415 = vdwg.mxu0
    %4416 = vmatprep.subr.bf16.mxu0 0
    %4417 = vmatpush1.bf16.msra.mxu0 %v4264
    %4418 = vmatprep.subr.bf16.mxu0 0
    %4419 = vmatpush1.bf16.msra.mxu0 %v4265
    %4420 = vmatprep.subr.bf16.mxu0 0
    %4421 = vmatpush1.bf16.msra.mxu0 %v4266
    %4422 = vmatprep.subr.bf16.mxu0 0
    %4423 = vmatpush1.bf16.msra.mxu0 %v4267
    %4424 = vmatprep.subr.bf16.mxu0 0
    %4425 = vmatpush1.bf16.msra.mxu0 %v4268
    %4426 = vmatprep.subr.bf16.mxu0 0
    %4427 = vmatpush1.bf16.msra.mxu0 %v4269
    %4428 = vmatprep.subr.bf16.mxu0 0
    %4429 = vmatpush1.bf16.msra.mxu0 %v4270
    %4430 = vmatprep.subr.bf16.mxu0 0
    %4431 = vmatpush1.bf16.msra.mxu0 %v4271
    %4432 = vmatprep.subr.bf16.mxu0 0
    %4433 = vmatpush1.bf16.msra.mxu0 %v4272
    %4434 = vmatprep.subr.bf16.mxu0 0
    %4435 = vmatpush1.bf16.msra.mxu0 %v4273
    %4436 = vmatprep.subr.bf16.mxu0 0
    %4437 = vmatpush1.bf16.msra.mxu0 %v4274
    %4438 = vmatprep.subr.bf16.mxu0 0
    %4439 = vmatpush1.bf16.msra.mxu0 %v4275
    %4440 = vmatprep.subr.bf16.mxu0 0
    %4441 = vmatpush1.bf16.msra.mxu0 %v4276
    %4442 = vmatprep.subr.bf16.mxu0 0
    %4443 = vmatpush1.bf16.msra.mxu0 %v4277
    %4444 = vmatprep.subr.bf16.mxu0 0
    %4445 = vmatpush1.bf16.msra.mxu0 %v4278
    %4446 = vmatprep.subr.bf16.mxu0 0
    %4447 = vmatpush1.bf16.msra.mxu0 %v4279
    %4448 = vmatprep.mubr.bf16.mxu0 %v3979
    %4449 = vmatmul.mubr.bf16.gmra.mrb[0].mxu0 %v3978
    %v4450 = vpop.f32.mrb[0].mxu0
    %v4451 = vadd.f32 %v4411, %v4450
    %v4452 = vpop.f32.mrb[0].mxu0
    %v4453 = vpop.f32.mrb[0].mxu0
    %v4454 = vpop.f32.mrb[0].mxu0
    %4455 = vdwg.mxu0
    %4456 = vmatprep.subr.bf16.mxu0 0
    %4457 = vmatpush1.bf16.msra.mxu0 %v4280
    %4458 = vmatprep.subr.bf16.mxu0 0
    %4459 = vmatpush1.bf16.msra.mxu0 %v4281
    %4460 = vmatprep.subr.bf16.mxu0 0
    %4461 = vmatpush1.bf16.msra.mxu0 %v4282
    %4462 = vmatprep.subr.bf16.mxu0 0
    %4463 = vmatpush1.bf16.msra.mxu0 %v4283
    %4464 = vmatprep.subr.bf16.mxu0 0
    %4465 = vmatpush1.bf16.msra.mxu0 %v4284
    %4466 = vmatprep.subr.bf16.mxu0 0
    %4467 = vmatpush1.bf16.msra.mxu0 %v4285
    %4468 = vmatprep.subr.bf16.mxu0 0
    %4469 = vmatpush1.bf16.msra.mxu0 %v4286
    %4470 = vmatprep.subr.bf16.mxu0 0
    %4471 = vmatpush1.bf16.msra.mxu0 %v4287
    %4472 = vmatprep.subr.bf16.mxu0 0
    %4473 = vmatpush1.bf16.msra.mxu0 %v4288
    %4474 = vmatprep.subr.bf16.mxu0 0
    %4475 = vmatpush1.bf16.msra.mxu0 %v4289
    %4476 = vmatprep.subr.bf16.mxu0 0
    %4477 = vmatpush1.bf16.msra.mxu0 %v4290
    %4478 = vmatprep.subr.bf16.mxu0 0
    %4479 = vmatpush1.bf16.msra.mxu0 %v4291
    %4480 = vmatprep.subr.bf16.mxu0 0
    %4481 = vmatpush1.bf16.msra.mxu0 %v4292
    %4482 = vmatprep.subr.bf16.mxu0 0
    %4483 = vmatpush1.bf16.msra.mxu0 %v4293
    %4484 = vmatprep.subr.bf16.mxu0 0
    %4485 = vmatpush1.bf16.msra.mxu0 %v4294
    %4486 = vmatprep.subr.bf16.mxu0 0
    %4487 = vmatpush1.bf16.msra.mxu0 %v4295
    %4488 = vmatprep.mubr.bf16.mxu0 %v3981
    %4489 = vmatmul.mubr.bf16.gmra.mrb[0].mxu0 %v3980
    %v4490 = vpop.f32.mrb[0].mxu0
    %v4491 = vadd.f32 %v4451, %v4490
    %v4492 = vpop.f32.mrb[0].mxu0
    %v4493 = vpop.f32.mrb[0].mxu0
    %v4494 = vpop.f32.mrb[0].mxu0
    %4495 = vdwg.mxu0
    %4496 = vmatprep.subr.bf16.mxu0 0
    %4497 = vmatpush1.bf16.msra.mxu0 %v4296
    %4498 = vmatprep.subr.bf16.mxu0 0
    %4499 = vmatpush1.bf16.msra.mxu0 %v4297
    %4500 = vmatprep.subr.bf16.mxu0 0
    %4501 = vmatpush1.bf16.msra.mxu0 %v4298
    %4502 = vmatprep.subr.bf16.mxu0 0
    %4503 = vmatpush1.bf16.msra.mxu0 %v4299
    %4504 = vmatprep.subr.bf16.mxu0 0
    %4505 = vmatpush1.bf16.msra.mxu0 %v4300
    %4506 = vmatprep.subr.bf16.mxu0 0
    %4507 = vmatpush1.bf16.msra.mxu0 %v4301
    %4508 = vmatprep.subr.bf16.mxu0 0
    %4509 = vmatpush1.bf16.msra.mxu0 %v4302
    %4510 = vmatprep.subr.bf16.mxu0 0
    %4511 = vmatpush1.bf16.msra.mxu0 %v4303
    %4512 = vmatprep.subr.bf16.mxu0 0
    %4513 = vmatpush1.bf16.msra.mxu0 %v4304
    %4514 = vmatprep.subr.bf16.mxu0 0
    %4515 = vmatpush1.bf16.msra.mxu0 %v4305
    %4516 = vmatprep.subr.bf16.mxu0 0
    %4517 = vmatpush1.bf16.msra.mxu0 %v4306
    %4518 = vmatprep.subr.bf16.mxu0 0
    %4519 = vmatpush1.bf16.msra.mxu0 %v4307
    %4520 = vmatprep.subr.bf16.mxu0 0
    %4521 = vmatpush1.bf16.msra.mxu0 %v4308
    %4522 = vmatprep.subr.bf16.mxu0 0
    %4523 = vmatpush1.bf16.msra.mxu0 %v4309
    %4524 = vmatprep.subr.bf16.mxu0 0
    %4525 = vmatpush1.bf16.msra.mxu0 %v4310
    %4526 = vmatprep.subr.bf16.mxu0 0
    %4527 = vmatpush1.bf16.msra.mxu0 %v4311
    %4528 = vmatprep.mubr.bf16.mxu0 %v3983
    %4529 = vmatmul.mubr.bf16.gmra.mrb[0].mxu0 %v3982
    %v4530 = vpop.f32.mrb[0].mxu0
    %v4531 = vadd.f32 %v4491, %v4530
    %v4532 = vpop.f32.mrb[0].mxu0
    %v4533 = vpop.f32.mrb[0].mxu0
    %v4534 = vpop.f32.mrb[0].mxu0
    %4535 = vdwg.mxu0
    %v4536 = vmax.f32 %v4531, 0.0
    %v4537 = vpack.c.bf16 %v4536, %v4536
    %v4538 = vld [vmem:[%s9] sm:$0xf]
    %vm4539 = vcmask 64512
    %v4541 = vsel %vm4539, %v4538, 0
    %vm4543 = vcmask 1043456
    %v4545 = vsel %vm4543, %v4537, 0
    %4547 = vmatprep.subr.bf16.mxu0 0
    %4548 = vmatpush1.bf16.msra.mxu0 %v4545
    %4549 = vmatprep.subr.bf16.mxu0 0
    %4550 = vmatpush1.bf16.msra.mxu0 0
    %4551 = vmatprep.subr.bf16.mxu0 0
    %4552 = vmatpush1.bf16.msra.mxu0 0
    %4553 = vmatprep.subr.bf16.mxu0 0
    %4554 = vmatpush1.bf16.msra.mxu0 0
    %4555 = vmatprep.subr.bf16.mxu0 0
    %4556 = vmatpush1.bf16.msra.mxu0 0
    %4557 = vmatprep.subr.bf16.mxu0 0
    %4558 = vmatpush1.bf16.msra.mxu0 0
    %4559 = vmatprep.subr.bf16.mxu0 0
    %4560 = vmatpush1.bf16.msra.mxu0 0
    %4561 = vmatprep.subr.bf16.mxu0 0
    %4562 = vmatpush1.bf16.msra.mxu0 0
    %4563 = vmatprep.subr.bf16.mxu0 0
    %4564 = vmatpush1.bf16.msra.mxu0 0
    %4565 = vmatprep.subr.bf16.mxu0 0
    %4566 = vmatpush1.bf16.msra.mxu0 0
    %4567 = vmatprep.subr.bf16.mxu0 0
    %4568 = vmatpush1.bf16.msra.mxu0 0
    %4569 = vmatprep.subr.bf16.mxu0 0
    %4570 = vmatpush1.bf16.msra.mxu0 0
    %4571 = vmatprep.subr.bf16.mxu0 0
    %4572 = vmatpush1.bf16.msra.mxu0 0
    %4573 = vmatprep.subr.bf16.mxu0 0
    %4574 = vmatpush1.bf16.msra.mxu0 0
    %4575 = vmatprep.subr.bf16.mxu0 0
    %4576 = vmatpush1.bf16.msra.mxu0 0
    %4577 = vmatprep.subr.bf16.mxu0 0
    %4578 = vmatpush1.bf16.msra.mxu0 0
    %4579 = vmatprep.mubr.bf16.mxu0 0
    %4580 = vmatmul.mubr.bf16.gmra.mrb[0].mxu0 %v4541
    %v4581 = vpop.f32.mrb[0].mxu0
    %v4582 = vadd.f32 0.0, %v4581
    %v4583 = vpop.f32.mrb[0].mxu0
    %v4584 = vpop.f32.mrb[0].mxu0
    %v4585 = vpop.f32.mrb[0].mxu0
    %4586 = vdwg.mxu0
    %v4587 = vpack.c.bf16 %v4582, %v4582
    %4588 = vst [vmem:[#allocation4] sm:$0x1] %v4587
    %v4591 = vunpack.c.l.s4 1966171168
    %v4592 = vunpack.c.0.s8 %v4591
    %v4593 = vlaneseq
    %v4594 = vshrl.u32 %v4593, 7
    %v4595 = vsub.s32 %v4592, %v4594
    %v4596 = vrot.slane %v4587, %v4595
    %v4597 = vcombine.high %v4596, %v4596
    %v4599 = vunpack.c.l.s4 1966171168
    %v4600 = vunpack.c.0.s8 %v4599
    %v4601 = vlaneseq
    %v4602 = vshrl.u32 %v4601, 7
    %v4603 = vsub.s32 %v4600, %v4602
    %v4604 = vrot.slane %v4596, %v4603
    %v4606 = vunpack.c.l.s4 1966171168
    %v4607 = vunpack.c.0.s8 %v4606
    %v4608 = vlaneseq
    %v4609 = vshrl.u32 %v4608, 7
    %v4610 = vsub.s32 %v4607, %v4609
    %v4611 = vrot.slane %v4597, %v4610
    %4613 = vst [vmem:[#allocation4 + $0x1] sm:$0x1] %v4611
    %v4614 = vcombine.high %v4604, %v4604
    %4616 = vst [vmem:[#allocation4 + $0x2] sm:$0x1] %v4614
    %v4617 = vcombine.high %v4611, %v4611
    %4619 = vst [vmem:[#allocation4 + $0x3] sm:$0x1] %v4617
    %v4620 = vld [vmem:[#allocation4] sm:$0xf]
    %v4621 = vld [vmem:[%s10] sm:$0xff]
    %v4622 = vld [vmem:[%s10 + $0x8] sm:$0xff]
    %v4623 = vld [vmem:[%s10 + $0x10] sm:$0xff]
    %v4624 = vld [vmem:[%s10 + $0x18] sm:$0xff]
    %v4625 = vld [vmem:[%s10 + $0x20] sm:$0xff]
    %v4626 = vld [vmem:[%s10 + $0x28] sm:$0xff]
    %v4627 = vld [vmem:[%s10 + $0x30] sm:$0xff]
    %v4628 = vld [vmem:[%s10 + $0x38] sm:$0xff]
    %v4629 = vld [vmem:[%s10 + $0x40] sm:$0xff]
    %v4630 = vld [vmem:[%s10 + $0x48] sm:$0xff]
    %v4631 = vld [vmem:[%s10 + $0x50] sm:$0xff]
    %v4632 = vld [vmem:[%s10 + $0x58] sm:$0xff]
    %v4633 = vld [vmem:[%s10 + $0x60] sm:$0xff]
    %v4634 = vld [vmem:[%s10 + $0x68] sm:$0xff]
    %v4635 = vld [vmem:[%s10 + $0x70] sm:$0xff]
    %v4636 = vld [vmem:[%s10 + $0x78] sm:$0xff]
    %v4637 = vld [vmem:[%s10 + $0x80] sm:$0xff]
    %v4638 = vld [vmem:[%s10 + $0x88] sm:$0xff]
    %v4639 = vld [vmem:[%s10 + $0x90] sm:$0xff]
    %v4640 = vld [vmem:[%s10 + $0x98] sm:$0xff]
    %v4641 = vld [vmem:[%s10 + $0xa0] sm:$0xff]
    %v4642 = vld [vmem:[%s10 + $0xa8] sm:$0xff]
    %v4643 = vld [vmem:[%s10 + $0xb0] sm:$0xff]
    %v4644 = vld [vmem:[%s10 + $0xb8] sm:$0xff]
    %v4645 = vld [vmem:[%s10 + $0xc0] sm:$0xff]
    %v4646 = vld [vmem:[%s10 + $0xc8] sm:$0xff]
    %v4647 = vld [vmem:[%s10 + $0xd0] sm:$0xff]
    %v4648 = vld [vmem:[%s10 + $0xd8] sm:$0xff]
    %v4649 = vld [vmem:[%s10 + $0xe0] sm:$0xff]
    %v4650 = vld [vmem:[%s10 + $0xe8] sm:$0xff]
    %v4651 = vld [vmem:[%s10 + $0xf0] sm:$0xff]
    %v4652 = vld [vmem:[%s10 + $0xf8] sm:$0xff]
    %v4653 = vld [vmem:[%s10 + $0x100] sm:$0xff]
    %v4654 = vld [vmem:[%s10 + $0x108] sm:$0xff]
    %v4655 = vld [vmem:[%s10 + $0x110] sm:$0xff]
    %v4656 = vld [vmem:[%s10 + $0x118] sm:$0xff]
    %v4657 = vld [vmem:[%s10 + $0x120] sm:$0xff]
    %v4658 = vld [vmem:[%s10 + $0x128] sm:$0xff]
    %v4659 = vld [vmem:[%s10 + $0x130] sm:$0xff]
    %v4660 = vld [vmem:[%s10 + $0x138] sm:$0xff]
    %v4661 = vld [vmem:[%s10 + $0x140] sm:$0xff]
    %v4662 = vld [vmem:[%s10 + $0x148] sm:$0xff]
    %v4663 = vld [vmem:[%s10 + $0x150] sm:$0xff]
    %v4664 = vld [vmem:[%s10 + $0x158] sm:$0xff]
    %v4665 = vld [vmem:[%s10 + $0x160] sm:$0xff]
    %v4666 = vld [vmem:[%s10 + $0x168] sm:$0xff]
    %v4667 = vld [vmem:[%s10 + $0x170] sm:$0xff]
    %v4668 = vld [vmem:[%s10 + $0x178] sm:$0xff]
    %v4669 = vld [vmem:[%s10 + $0x180] sm:$0xff]
    %v4670 = vld [vmem:[%s10 + $0x188] sm:$0xff]
    %v4671 = vld [vmem:[%s10 + $0x190] sm:$0xff]
    %v4672 = vld [vmem:[%s10 + $0x198] sm:$0xff]
    %v4673 = vld [vmem:[%s10 + $0x1a0] sm:$0xff]
    %v4674 = vld [vmem:[%s10 + $0x1a8] sm:$0xff]
    %v4675 = vld [vmem:[%s10 + $0x1b0] sm:$0xff]
    %v4676 = vld [vmem:[%s10 + $0x1b8] sm:$0xff]
    %v4677 = vld [vmem:[%s10 + $0x1c0] sm:$0xff]
    %v4678 = vld [vmem:[%s10 + $0x1c8] sm:$0xff]
    %v4679 = vld [vmem:[%s10 + $0x1d0] sm:$0xff]
    %v4680 = vld [vmem:[%s10 + $0x1d8] sm:$0xff]
    %v4681 = vld [vmem:[%s10 + $0x1e0] sm:$0xff]
    %v4682 = vld [vmem:[%s10 + $0x1e8] sm:$0xff]
    %v4683 = vld [vmem:[%s10 + $0x1f0] sm:$0xff]
    %v4684 = vld [vmem:[%s10 + $0x1f8] sm:$0xff]
    %v4685 = vld [vmem:[%s11] sm:$0x3]
    %v4687 = vlaneseq
    %v4688 = vshrl.u32 %v4687, 7
    %v4689 = vsub.s32 0, %v4688
    %v4690 = vrot.slane %v4685, %v4689
    %v4691 = vlaneseq
    %v4692 = vshrl.u32 %v4691, 7
    %v4693 = vsub.s32 1, %v4692
    %v4694 = vrot.slane %v4685, %v4693
    %v4699 = vunpack.c.l.s4 1966171168
    %v4700 = vunpack.c.0.s8 %v4699
    %v4701 = vlaneseq
    %v4702 = vshrl.u32 %v4701, 7
    %v4703 = vsub.s32 %v4700, %v4702
    %v4704 = vrot.slane %v4620, %v4703
    %v4705 = vcombine.high %v4704, %v4704
    %v4707 = vunpack.c.l.s4 1966171168
    %v4708 = vunpack.c.0.s8 %v4707
    %v4709 = vlaneseq
    %v4710 = vshrl.u32 %v4709, 7
    %v4711 = vsub.s32 %v4708, %v4710
    %v4712 = vrot.slane %v4704, %v4711
    %v4714 = vunpack.c.l.s4 1966171168
    %v4715 = vunpack.c.0.s8 %v4714
    %v4716 = vlaneseq
    %v4717 = vshrl.u32 %v4716, 7
    %v4718 = vsub.s32 %v4715, %v4717
    %v4719 = vrot.slane %v4705, %v4718
    %v4720 = vcombine.high %v4712, %v4712
    %v4721 = vcombine.high %v4719, %v4719
    %v4790 = vunpack.c.l.b16 %v4621
    %v4791 = vunpack.c.h.b16 %v4621
    %v4792 = vunpack.c.l.b16 %v4622
    %v4793 = vunpack.c.h.b16 %v4622
    %v4794 = vunpack.c.l.b16 %v4623
    %v4795 = vunpack.c.h.b16 %v4623
    %v4796 = vunpack.c.l.b16 %v4624
    %v4797 = vunpack.c.h.b16 %v4624
    %v4798 = vunpack.c.l.b16 %v4625
    %v4799 = vunpack.c.h.b16 %v4625
    %v4800 = vunpack.c.l.b16 %v4626
    %v4801 = vunpack.c.h.b16 %v4626
    %v4802 = vunpack.c.l.b16 %v4627
    %v4803 = vunpack.c.h.b16 %v4627
    %v4804 = vunpack.c.l.b16 %v4628
    %v4805 = vunpack.c.h.b16 %v4628
    %v4806 = vunpack.c.l.b16 %v4629
    %v4807 = vunpack.c.h.b16 %v4629
    %v4808 = vunpack.c.l.b16 %v4630
    %v4809 = vunpack.c.h.b16 %v4630
    %v4810 = vunpack.c.l.b16 %v4631
    %v4811 = vunpack.c.h.b16 %v4631
    %v4812 = vunpack.c.l.b16 %v4632
    %v4813 = vunpack.c.h.b16 %v4632
    %v4814 = vunpack.c.l.b16 %v4633
    %v4815 = vunpack.c.h.b16 %v4633
    %v4816 = vunpack.c.l.b16 %v4634
    %v4817 = vunpack.c.h.b16 %v4634
    %v4818 = vunpack.c.l.b16 %v4635
    %v4819 = vunpack.c.h.b16 %v4635
    %v4820 = vunpack.c.l.b16 %v4636
    %v4821 = vunpack.c.h.b16 %v4636
    %v4822 = vunpack.c.l.b16 %v4637
    %v4823 = vunpack.c.h.b16 %v4637
    %v4824 = vunpack.c.l.b16 %v4638
    %v4825 = vunpack.c.h.b16 %v4638
    %v4826 = vunpack.c.l.b16 %v4639
    %v4827 = vunpack.c.h.b16 %v4639
    %v4828 = vunpack.c.l.b16 %v4640
    %v4829 = vunpack.c.h.b16 %v4640
    %v4830 = vunpack.c.l.b16 %v4641
    %v4831 = vunpack.c.h.b16 %v4641
    %v4832 = vunpack.c.l.b16 %v4642
    %v4833 = vunpack.c.h.b16 %v4642
    %v4834 = vunpack.c.l.b16 %v4643
    %v4835 = vunpack.c.h.b16 %v4643
    %v4836 = vunpack.c.l.b16 %v4644
    %v4837 = vunpack.c.h.b16 %v4644
    %v4838 = vunpack.c.l.b16 %v4645
    %v4839 = vunpack.c.h.b16 %v4645
    %v4840 = vunpack.c.l.b16 %v4646
    %v4841 = vunpack.c.h.b16 %v4646
    %v4842 = vunpack.c.l.b16 %v4647
    %v4843 = vunpack.c.h.b16 %v4647
    %v4844 = vunpack.c.l.b16 %v4648
    %v4845 = vunpack.c.h.b16 %v4648
    %v4846 = vunpack.c.l.b16 %v4649
    %v4847 = vunpack.c.h.b16 %v4649
    %v4848 = vunpack.c.l.b16 %v4650
    %v4849 = vunpack.c.h.b16 %v4650
    %v4850 = vunpack.c.l.b16 %v4651
    %v4851 = vunpack.c.h.b16 %v4651
    %v4852 = vunpack.c.l.b16 %v4652
    %v4853 = vunpack.c.h.b16 %v4652
    %v4854 = vunpack.c.l.b16 %v4653
    %v4855 = vunpack.c.h.b16 %v4653
    %v4856 = vunpack.c.l.b16 %v4654
    %v4857 = vunpack.c.h.b16 %v4654
    %v4858 = vunpack.c.l.b16 %v4655
    %v4859 = vunpack.c.h.b16 %v4655
    %v4860 = vunpack.c.l.b16 %v4656
    %v4861 = vunpack.c.h.b16 %v4656
    %v4862 = vunpack.c.l.b16 %v4657
    %v4863 = vunpack.c.h.b16 %v4657
    %v4864 = vunpack.c.l.b16 %v4658
    %v4865 = vunpack.c.h.b16 %v4658
    %v4866 = vunpack.c.l.b16 %v4659
    %v4867 = vunpack.c.h.b16 %v4659
    %v4868 = vunpack.c.l.b16 %v4660
    %v4869 = vunpack.c.h.b16 %v4660
    %v4870 = vunpack.c.l.b16 %v4661
    %v4871 = vunpack.c.h.b16 %v4661
    %v4872 = vunpack.c.l.b16 %v4662
    %v4873 = vunpack.c.h.b16 %v4662
    %v4874 = vunpack.c.l.b16 %v4663
    %v4875 = vunpack.c.h.b16 %v4663
    %v4876 = vunpack.c.l.b16 %v4664
    %v4877 = vunpack.c.h.b16 %v4664
    %v4878 = vunpack.c.l.b16 %v4665
    %v4879 = vunpack.c.h.b16 %v4665
    %v4880 = vunpack.c.l.b16 %v4666
    %v4881 = vunpack.c.h.b16 %v4666
    %v4882 = vunpack.c.l.b16 %v4667
    %v4883 = vunpack.c.h.b16 %v4667
    %v4884 = vunpack.c.l.b16 %v4668
    %v4885 = vunpack.c.h.b16 %v4668
    %v4886 = vunpack.c.l.b16 %v4669
    %v4887 = vunpack.c.h.b16 %v4669
    %v4888 = vunpack.c.l.b16 %v4670
    %v4889 = vunpack.c.h.b16 %v4670
    %v4890 = vunpack.c.l.b16 %v4671
    %v4891 = vunpack.c.h.b16 %v4671
    %v4892 = vunpack.c.l.b16 %v4672
    %v4893 = vunpack.c.h.b16 %v4672
    %v4894 = vunpack.c.l.b16 %v4673
    %v4895 = vunpack.c.h.b16 %v4673
    %v4896 = vunpack.c.l.b16 %v4674
    %v4897 = vunpack.c.h.b16 %v4674
    %v4898 = vunpack.c.l.b16 %v4675
    %v4899 = vunpack.c.h.b16 %v4675
    %v4900 = vunpack.c.l.b16 %v4676
    %v4901 = vunpack.c.h.b16 %v4676
    %v4902 = vunpack.c.l.b16 %v4677
    %v4903 = vunpack.c.h.b16 %v4677
    %v4904 = vunpack.c.l.b16 %v4678
    %v4905 = vunpack.c.h.b16 %v4678
    %v4906 = vunpack.c.l.b16 %v4679
    %v4907 = vunpack.c.h.b16 %v4679
    %v4908 = vunpack.c.l.b16 %v4680
    %v4909 = vunpack.c.h.b16 %v4680
    %v4910 = vunpack.c.l.b16 %v4681
    %v4911 = vunpack.c.h.b16 %v4681
    %v4912 = vunpack.c.l.b16 %v4682
    %v4913 = vunpack.c.h.b16 %v4682
    %v4914 = vunpack.c.l.b16 %v4683
    %v4915 = vunpack.c.h.b16 %v4683
    %v4916 = vunpack.c.l.b16 %v4684
    %v4917 = vunpack.c.h.b16 %v4684
    %v4918 = vpack.c.b16 %v4792, %v4790
    %v4919 = vpack.c.b16 %v4793, %v4791
    %v4920 = vpack.c.b16 %v4796, %v4794
    %v4921 = vpack.c.b16 %v4797, %v4795
    %v4922 = vpack.c.b16 %v4800, %v4798
    %v4923 = vpack.c.b16 %v4801, %v4799
    %v4924 = vpack.c.b16 %v4804, %v4802
    %v4925 = vpack.c.b16 %v4805, %v4803
    %v4926 = vpack.c.b16 %v4808, %v4806
    %v4927 = vpack.c.b16 %v4809, %v4807
    %v4928 = vpack.c.b16 %v4812, %v4810
    %v4929 = vpack.c.b16 %v4813, %v4811
    %v4930 = vpack.c.b16 %v4816, %v4814
    %v4931 = vpack.c.b16 %v4817, %v4815
    %v4932 = vpack.c.b16 %v4820, %v4818
    %v4933 = vpack.c.b16 %v4821, %v4819
    %v4934 = vpack.c.b16 %v4824, %v4822
    %v4935 = vpack.c.b16 %v4825, %v4823
    %v4936 = vpack.c.b16 %v4828, %v4826
    %v4937 = vpack.c.b16 %v4829, %v4827
    %v4938 = vpack.c.b16 %v4832, %v4830
    %v4939 = vpack.c.b16 %v4833, %v4831
    %v4940 = vpack.c.b16 %v4836, %v4834
    %v4941 = vpack.c.b16 %v4837, %v4835
    %v4942 = vpack.c.b16 %v4840, %v4838
    %v4943 = vpack.c.b16 %v4841, %v4839
    %v4944 = vpack.c.b16 %v4844, %v4842
    %v4945 = vpack.c.b16 %v4845, %v4843
    %v4946 = vpack.c.b16 %v4848, %v4846
    %v4947 = vpack.c.b16 %v4849, %v4847
    %v4948 = vpack.c.b16 %v4852, %v4850
    %v4949 = vpack.c.b16 %v4853, %v4851
    %v4950 = vpack.c.b16 %v4856, %v4854
    %v4951 = vpack.c.b16 %v4857, %v4855
    %v4952 = vpack.c.b16 %v4860, %v4858
    %v4953 = vpack.c.b16 %v4861, %v4859
    %v4954 = vpack.c.b16 %v4864, %v4862
    %v4955 = vpack.c.b16 %v4865, %v4863
    %v4956 = vpack.c.b16 %v4868, %v4866
    %v4957 = vpack.c.b16 %v4869, %v4867
    %v4958 = vpack.c.b16 %v4872, %v4870
    %v4959 = vpack.c.b16 %v4873, %v4871
    %v4960 = vpack.c.b16 %v4876, %v4874
    %v4961 = vpack.c.b16 %v4877, %v4875
    %v4962 = vpack.c.b16 %v4880, %v4878
    %v4963 = vpack.c.b16 %v4881, %v4879
    %v4964 = vpack.c.b16 %v4884, %v4882
    %v4965 = vpack.c.b16 %v4885, %v4883
    %v4966 = vpack.c.b16 %v4888, %v4886
    %v4967 = vpack.c.b16 %v4889, %v4887
    %v4968 = vpack.c.b16 %v4892, %v4890
    %v4969 = vpack.c.b16 %v4893, %v4891
    %v4970 = vpack.c.b16 %v4896, %v4894
    %v4971 = vpack.c.b16 %v4897, %v4895
    %v4972 = vpack.c.b16 %v4900, %v4898
    %v4973 = vpack.c.b16 %v4901, %v4899
    %v4974 = vpack.c.b16 %v4904, %v4902
    %v4975 = vpack.c.b16 %v4905, %v4903
    %v4976 = vpack.c.b16 %v4908, %v4906
    %v4977 = vpack.c.b16 %v4909, %v4907
    %v4978 = vpack.c.b16 %v4912, %v4910
    %v4979 = vpack.c.b16 %v4913, %v4911
    %v4980 = vpack.c.b16 %v4916, %v4914
    %v4981 = vpack.c.b16 %v4917, %v4915
    %5046 = vmatprep.subr.bf16.mxu0 %v4919
    %5047 = vmatpush1.bf16.msra.mxu0 %v4918
    %5048 = vmatprep.subr.bf16.mxu0 %v4921
    %5049 = vmatpush1.bf16.msra.mxu0 %v4920
    %5050 = vmatprep.subr.bf16.mxu0 %v4923
    %5051 = vmatpush1.bf16.msra.mxu0 %v4922
    %5052 = vmatprep.subr.bf16.mxu0 %v4925
    %5053 = vmatpush1.bf16.msra.mxu0 %v4924
    %5054 = vmatprep.subr.bf16.mxu0 %v4927
    %5055 = vmatpush1.bf16.msra.mxu0 %v4926
    %5056 = vmatprep.subr.bf16.mxu0 %v4929
    %5057 = vmatpush1.bf16.msra.mxu0 %v4928
    %5058 = vmatprep.subr.bf16.mxu0 %v4931
    %5059 = vmatpush1.bf16.msra.mxu0 %v4930
    %5060 = vmatprep.subr.bf16.mxu0 %v4933
    %5061 = vmatpush1.bf16.msra.mxu0 %v4932
    %5062 = vmatprep.subr.bf16.mxu0 %v4935
    %5063 = vmatpush1.bf16.msra.mxu0 %v4934
    %5064 = vmatprep.subr.bf16.mxu0 %v4937
    %5065 = vmatpush1.bf16.msra.mxu0 %v4936
    %5066 = vmatprep.subr.bf16.mxu0 %v4939
    %5067 = vmatpush1.bf16.msra.mxu0 %v4938
    %5068 = vmatprep.subr.bf16.mxu0 %v4941
    %5069 = vmatpush1.bf16.msra.mxu0 %v4940
    %5070 = vmatprep.subr.bf16.mxu0 %v4943
    %5071 = vmatpush1.bf16.msra.mxu0 %v4942
    %5072 = vmatprep.subr.bf16.mxu0 %v4945
    %5073 = vmatpush1.bf16.msra.mxu0 %v4944
    %5074 = vmatprep.subr.bf16.mxu0 %v4947
    %5075 = vmatpush1.bf16.msra.mxu0 %v4946
    %5076 = vmatprep.subr.bf16.mxu0 %v4949
    %5077 = vmatpush1.bf16.msra.mxu0 %v4948
    %5078 = vmatprep.mubr.bf16.mxu0 %v4719
    %5079 = vmatmul.mubr.bf16.gmra.mrb[0].mxu0 %v4712
    %v5080 = vpop.f32.mrb[0].mxu0
    %v5081 = vadd.f32 %v4690, %v5080
    %v5082 = vpop.f32.mrb[0].mxu0
    %v5083 = vadd.f32 %v4694, %v5082
    %v5084 = vpop.f32.mrb[0].mxu0
    %v5085 = vpop.f32.mrb[0].mxu0
    %5086 = vdwg.mxu0
    %5087 = vmatprep.subr.bf16.mxu0 %v4951
    %5088 = vmatpush1.bf16.msra.mxu0 %v4950
    %5089 = vmatprep.subr.bf16.mxu0 %v4953
    %5090 = vmatpush1.bf16.msra.mxu0 %v4952
    %5091 = vmatprep.subr.bf16.mxu0 %v4955
    %5092 = vmatpush1.bf16.msra.mxu0 %v4954
    %5093 = vmatprep.subr.bf16.mxu0 %v4957
    %5094 = vmatpush1.bf16.msra.mxu0 %v4956
    %5095 = vmatprep.subr.bf16.mxu0 %v4959
    %5096 = vmatpush1.bf16.msra.mxu0 %v4958
    %5097 = vmatprep.subr.bf16.mxu0 %v4961
    %5098 = vmatpush1.bf16.msra.mxu0 %v4960
    %5099 = vmatprep.subr.bf16.mxu0 %v4963
    %5100 = vmatpush1.bf16.msra.mxu0 %v4962
    %5101 = vmatprep.subr.bf16.mxu0 %v4965
    %5102 = vmatpush1.bf16.msra.mxu0 %v4964
    %5103 = vmatprep.subr.bf16.mxu0 %v4967
    %5104 = vmatpush1.bf16.msra.mxu0 %v4966
    %5105 = vmatprep.subr.bf16.mxu0 %v4969
    %5106 = vmatpush1.bf16.msra.mxu0 %v4968
    %5107 = vmatprep.subr.bf16.mxu0 %v4971
    %5108 = vmatpush1.bf16.msra.mxu0 %v4970
    %5109 = vmatprep.subr.bf16.mxu0 %v4973
    %5110 = vmatpush1.bf16.msra.mxu0 %v4972
    %5111 = vmatprep.subr.bf16.mxu0 %v4975
    %5112 = vmatpush1.bf16.msra.mxu0 %v4974
    %5113 = vmatprep.subr.bf16.mxu0 %v4977
    %5114 = vmatpush1.bf16.msra.mxu0 %v4976
    %5115 = vmatprep.subr.bf16.mxu0 %v4979
    %5116 = vmatpush1.bf16.msra.mxu0 %v4978
    %5117 = vmatprep.subr.bf16.mxu0 %v4981
    %5118 = vmatpush1.bf16.msra.mxu0 %v4980
    %5119 = vmatprep.mubr.bf16.mxu0 %v4721
    %5120 = vmatmul.mubr.bf16.gmra.mrb[0].mxu0 %v4720
    %v5121 = vpop.f32.mrb[0].mxu0
    %v5122 = vadd.f32 %v5081, %v5121
    %v5123 = vpop.f32.mrb[0].mxu0
    %v5124 = vadd.f32 %v5083, %v5123
    %v5125 = vpop.f32.mrb[0].mxu0
    %v5126 = vpop.f32.mrb[0].mxu0
    %5127 = vdwg.mxu0
    %v5128 = vmax.f32 %v5122, 0.0
    %v5129 = vmax.f32 %v5124, 0.0
    %v5130 = vpack.c.bf16 %v5128, %v5128
    %v5131 = vpack.c.bf16 %v5129, %v5129
    %v5132 = vld [vmem:[%s12] sm:$0xf]
    %v5133 = vld [vmem:[%s12 + $0x4] sm:$0xf]
    %v5134 = vld [vmem:[%s12 + $0x8] sm:$0xf]
    %v5135 = vld [vmem:[%s12 + $0xc] sm:$0xf]
    %v5136 = vld [vmem:[%s12 + $0x10] sm:$0xf]
    %v5137 = vld [vmem:[%s12 + $0x14] sm:$0xf]
    %v5138 = vld [vmem:[%s12 + $0x18] sm:$0xf]
    %v5139 = vld [vmem:[%s12 + $0x1c] sm:$0xf]
    %v5140 = vld [vmem:[%s12 + $0x20] sm:$0xf]
    %v5141 = vld [vmem:[%s12 + $0x24] sm:$0xf]
    %v5142 = vld [vmem:[%s12 + $0x28] sm:$0xf]
    %v5143 = vld [vmem:[%s12 + $0x2c] sm:$0xf]
    %v5144 = vld [vmem:[%s12 + $0x30] sm:$0xf]
    %v5145 = vld [vmem:[%s12 + $0x34] sm:$0xf]
    %v5146 = vld [vmem:[%s12 + $0x38] sm:$0xf]
    %v5147 = vld [vmem:[%s12 + $0x3c] sm:$0xf]
    %v5148 = vld [vmem:[%s12 + $0x40] sm:$0xf]
    %v5149 = vld [vmem:[%s12 + $0x44] sm:$0xf]
    %v5150 = vld [vmem:[%s12 + $0x48] sm:$0xf]
    %v5151 = vld [vmem:[%s12 + $0x4c] sm:$0xf]
    %v5152 = vld [vmem:[%s12 + $0x50] sm:$0xf]
    %v5153 = vld [vmem:[%s12 + $0x54] sm:$0xf]
    %v5154 = vld [vmem:[%s12 + $0x58] sm:$0xf]
    %v5155 = vld [vmem:[%s12 + $0x5c] sm:$0xf]
    %v5156 = vld [vmem:[%s12 + $0x60] sm:$0xf]
    %v5157 = vld [vmem:[%s12 + $0x64] sm:$0xf]
    %v5158 = vld [vmem:[%s12 + $0x68] sm:$0xf]
    %v5159 = vld [vmem:[%s12 + $0x6c] sm:$0xf]
    %v5160 = vld [vmem:[%s12 + $0x70] sm:$0xf]
    %v5161 = vld [vmem:[%s12 + $0x74] sm:$0xf]
    %v5162 = vld [vmem:[%s12 + $0x78] sm:$0xf]
    %v5163 = vld [vmem:[%s12 + $0x7c] sm:$0xf]
    %v5164 = vld [vmem:[#allocation22] sm:$0x1]
    %v5166 = vlaneseq
    %v5167 = vshrl.u32 %v5166, 7
    %v5168 = vsub.s32 0, %v5167
    %v5169 = vrot.slane %v5164, %v5168
    %v5203 = vunpack.c.l.b16 %v5132
    %v5204 = vunpack.c.l.b16 %v5133
    %v5205 = vunpack.c.l.b16 %v5134
    %v5206 = vunpack.c.l.b16 %v5135
    %v5207 = vunpack.c.l.b16 %v5136
    %v5208 = vunpack.c.l.b16 %v5137
    %v5209 = vunpack.c.l.b16 %v5138
    %v5210 = vunpack.c.l.b16 %v5139
    %v5211 = vunpack.c.l.b16 %v5140
    %v5212 = vunpack.c.l.b16 %v5141
    %v5213 = vunpack.c.l.b16 %v5142
    %v5214 = vunpack.c.l.b16 %v5143
    %v5215 = vunpack.c.l.b16 %v5144
    %v5216 = vunpack.c.l.b16 %v5145
    %v5217 = vunpack.c.l.b16 %v5146
    %v5218 = vunpack.c.l.b16 %v5147
    %v5219 = vunpack.c.l.b16 %v5148
    %v5220 = vunpack.c.l.b16 %v5149
    %v5221 = vunpack.c.l.b16 %v5150
    %v5222 = vunpack.c.l.b16 %v5151
    %v5223 = vunpack.c.l.b16 %v5152
    %v5224 = vunpack.c.l.b16 %v5153
    %v5225 = vunpack.c.l.b16 %v5154
    %v5226 = vunpack.c.l.b16 %v5155
    %v5227 = vunpack.c.l.b16 %v5156
    %v5228 = vunpack.c.l.b16 %v5157
    %v5229 = vunpack.c.l.b16 %v5158
    %v5230 = vunpack.c.l.b16 %v5159
    %v5231 = vunpack.c.l.b16 %v5160
    %v5232 = vunpack.c.l.b16 %v5161
    %v5233 = vunpack.c.l.b16 %v5162
    %v5234 = vunpack.c.l.b16 %v5163
    %v5235 = vpack.c.b16 %v5204, %v5203
    %v5236 = vpack.c.b16 %v5206, %v5205
    %v5237 = vpack.c.b16 %v5208, %v5207
    %v5238 = vpack.c.b16 %v5210, %v5209
    %v5239 = vpack.c.b16 %v5212, %v5211
    %v5240 = vpack.c.b16 %v5214, %v5213
    %v5241 = vpack.c.b16 %v5216, %v5215
    %v5242 = vpack.c.b16 %v5218, %v5217
    %v5243 = vpack.c.b16 %v5220, %v5219
    %v5244 = vpack.c.b16 %v5222, %v5221
    %v5245 = vpack.c.b16 %v5224, %v5223
    %v5246 = vpack.c.b16 %v5226, %v5225
    %v5247 = vpack.c.b16 %v5228, %v5227
    %v5248 = vpack.c.b16 %v5230, %v5229
    %v5249 = vpack.c.b16 %v5232, %v5231
    %v5250 = vpack.c.b16 %v5234, %v5233
    %5267 = vmatprep.subr.bf16.mxu0 0
    %5268 = vmatpush1.bf16.msra.mxu0 %v5235
    %5269 = vmatprep.subr.bf16.mxu0 0
    %5270 = vmatpush1.bf16.msra.mxu0 %v5236
    %5271 = vmatprep.subr.bf16.mxu0 0
    %5272 = vmatpush1.bf16.msra.mxu0 %v5237
    %5273 = vmatprep.subr.bf16.mxu0 0
    %5274 = vmatpush1.bf16.msra.mxu0 %v5238
    %5275 = vmatprep.subr.bf16.mxu0 0
    %5276 = vmatpush1.bf16.msra.mxu0 %v5239
    %5277 = vmatprep.subr.bf16.mxu0 0
    %5278 = vmatpush1.bf16.msra.mxu0 %v5240
    %5279 = vmatprep.subr.bf16.mxu0 0
    %5280 = vmatpush1.bf16.msra.mxu0 %v5241
    %5281 = vmatprep.subr.bf16.mxu0 0
    %5282 = vmatpush1.bf16.msra.mxu0 %v5242
    %5283 = vmatprep.subr.bf16.mxu0 0
    %5284 = vmatpush1.bf16.msra.mxu0 %v5243
    %5285 = vmatprep.subr.bf16.mxu0 0
    %5286 = vmatpush1.bf16.msra.mxu0 %v5244
    %5287 = vmatprep.subr.bf16.mxu0 0
    %5288 = vmatpush1.bf16.msra.mxu0 %v5245
    %5289 = vmatprep.subr.bf16.mxu0 0
    %5290 = vmatpush1.bf16.msra.mxu0 %v5246
    %5291 = vmatprep.subr.bf16.mxu0 0
    %5292 = vmatpush1.bf16.msra.mxu0 %v5247
    %5293 = vmatprep.subr.bf16.mxu0 0
    %5294 = vmatpush1.bf16.msra.mxu0 %v5248
    %5295 = vmatprep.subr.bf16.mxu0 0
    %5296 = vmatpush1.bf16.msra.mxu0 %v5249
    %5297 = vmatprep.subr.bf16.mxu0 0
    %5298 = vmatpush1.bf16.msra.mxu0 %v5250
    %5299 = vmatprep.mubr.bf16.mxu0 %v5131
    %5300 = vmatmul.mubr.bf16.gmra.mrb[0].mxu0 %v5130
    %v5301 = vpop.f32.mrb[0].mxu0
    %v5302 = vadd.f32 %v5169, %v5301
    %v5303 = vpop.f32.mrb[0].mxu0
    %v5304 = vpop.f32.mrb[0].mxu0
    %v5305 = vpop.f32.mrb[0].mxu0
    %5306 = vdwg.mxu0
    %vm5307 = vcmask 58368
    %5308 = vst.msk [vmem:[#allocation33] sm:$0x3] %vm5307, %v5302
    %v5309 = vpack.c.bf16 %v5302, %v5302
    %v5310 = vld [vmem:[#allocation24] sm:$0xff]
    %v5311 = vld [vmem:[#allocation25] sm:$0x3]
    %v5313 = vlaneseq
    %v5314 = vshrl.u32 %v5313, 7
    %v5315 = vsub.s32 0, %v5314
    %v5316 = vrot.slane %v5311, %v5315
    %v5317 = vlaneseq
    %v5318 = vshrl.u32 %v5317, 7
    %v5319 = vsub.s32 1, %v5318
    %v5320 = vrot.slane %v5311, %v5319
    %v5324 = vunpack.c.l.b16 %v5310
    %v5325 = vunpack.c.h.b16 %v5310
    %v5326 = vpack.c.b16 %v5324, %v5324
    %v5327 = vpack.c.b16 %v5325, %v5325
    %v5329 = vsel %vm4539, %v5309, 0
    %v5332 = vsel %vm4543, %v5326, 0
    %v5335 = vsel %vm4543, %v5327, 0
    %5337 = vmatprep.subr.bf16.mxu0 %v5335
    %5338 = vmatpush1.bf16.msra.mxu0 %v5332
    %5339 = vmatprep.subr.bf16.mxu0 0
    %5340 = vmatpush1.bf16.msra.mxu0 0
    %5341 = vmatprep.subr.bf16.mxu0 0
    %5342 = vmatpush1.bf16.msra.mxu0 0
    %5343 = vmatprep.subr.bf16.mxu0 0
    %5344 = vmatpush1.bf16.msra.mxu0 0
    %5345 = vmatprep.subr.bf16.mxu0 0
    %5346 = vmatpush1.bf16.msra.mxu0 0
    %5347 = vmatprep.subr.bf16.mxu0 0
    %5348 = vmatpush1.bf16.msra.mxu0 0
    %5349 = vmatprep.subr.bf16.mxu0 0
    %5350 = vmatpush1.bf16.msra.mxu0 0
    %5351 = vmatprep.subr.bf16.mxu0 0
    %5352 = vmatpush1.bf16.msra.mxu0 0
    %5353 = vmatprep.subr.bf16.mxu0 0
    %5354 = vmatpush1.bf16.msra.mxu0 0
    %5355 = vmatprep.subr.bf16.mxu0 0
    %5356 = vmatpush1.bf16.msra.mxu0 0
    %5357 = vmatprep.subr.bf16.mxu0 0
    %5358 = vmatpush1.bf16.msra.mxu0 0
    %5359 = vmatprep.subr.bf16.mxu0 0
    %5360 = vmatpush1.bf16.msra.mxu0 0
    %5361 = vmatprep.subr.bf16.mxu0 0
    %5362 = vmatpush1.bf16.msra.mxu0 0
    %5363 = vmatprep.subr.bf16.mxu0 0
    %5364 = vmatpush1.bf16.msra.mxu0 0
    %5365 = vmatprep.subr.bf16.mxu0 0
    %5366 = vmatpush1.bf16.msra.mxu0 0
    %5367 = vmatprep.subr.bf16.mxu0 0
    %5368 = vmatpush1.bf16.msra.mxu0 0
    %5369 = vmatprep.mubr.bf16.mxu0 0
    %5370 = vmatmul.mubr.bf16.gmra.mrb[0].mxu0 %v5329
    %v5371 = vpop.f32.mrb[0].mxu0
    %v5372 = vadd.f32 %v5316, %v5371
    %v5373 = vpop.f32.mrb[0].mxu0
    %v5374 = vadd.f32 %v5320, %v5373
    %v5375 = vpop.f32.mrb[0].mxu0
    %v5376 = vpop.f32.mrb[0].mxu0
    %5377 = vdwg.mxu0
    %v5378 = vmax.f32 %v5372, 0.0
    %v5379 = vmax.f32 %v5374, 0.0
    %v5380 = vpack.c.bf16 %v5378, %v5378
    %v5381 = vpack.c.bf16 %v5379, %v5379
    %s5382 = smul.u32 4, 32
    %s5383 = smul.u32 %s5382, 4
    %s5384 = sshll.u32 %s5383, 4
    %5385 = dma.done [#allocation15], %s5384
    %v5386 = vld [vmem:[#allocation11] sm:$0xff]
    %v5387 = vld [vmem:[#allocation11 + $0x8] sm:$0xff]
    %v5388 = vld [vmem:[#allocation11 + $0x10] sm:$0xff]
    %v5389 = vld [vmem:[#allocation11 + $0x18] sm:$0xff]
    %v5390 = vld [vmem:[#allocation11 + $0x20] sm:$0xff]
    %v5391 = vld [vmem:[#allocation11 + $0x28] sm:$0xff]
    %v5392 = vld [vmem:[#allocation11 + $0x30] sm:$0xff]
    %v5393 = vld [vmem:[#allocation11 + $0x38] sm:$0xff]
    %v5394 = vld [vmem:[#allocation11 + $0x40] sm:$0xff]
    %v5395 = vld [vmem:[#allocation11 + $0x48] sm:$0xff]
    %v5396 = vld [vmem:[#allocation11 + $0x50] sm:$0xff]
    %v5397 = vld [vmem:[#allocation11 + $0x58] sm:$0xff]
    %v5398 = vld [vmem:[#allocation11 + $0x60] sm:$0xff]
    %v5399 = vld [vmem:[#allocation11 + $0x68] sm:$0xff]
    %v5400 = vld [vmem:[#allocation11 + $0x70] sm:$0xff]
    %v5401 = vld [vmem:[#allocation11 + $0x78] sm:$0xff]
    %v5402 = vld [vmem:[#allocation11 + $0x80] sm:$0xff]
    %v5403 = vld [vmem:[#allocation11 + $0x88] sm:$0xff]
    %v5404 = vld [vmem:[#allocation11 + $0x90] sm:$0xff]
    %v5405 = vld [vmem:[#allocation11 + $0x98] sm:$0xff]
    %v5406 = vld [vmem:[#allocation11 + $0xa0] sm:$0xff]
    %v5407 = vld [vmem:[#allocation11 + $0xa8] sm:$0xff]
    %v5408 = vld [vmem:[#allocation11 + $0xb0] sm:$0xff]
    %v5409 = vld [vmem:[#allocation11 + $0xb8] sm:$0xff]
    %v5410 = vld [vmem:[#allocation11 + $0xc0] sm:$0xff]
    %v5411 = vld [vmem:[#allocation11 + $0xc8] sm:$0xff]
    %v5412 = vld [vmem:[#allocation11 + $0xd0] sm:$0xff]
    %v5413 = vld [vmem:[#allocation11 + $0xd8] sm:$0xff]
    %v5414 = vld [vmem:[#allocation11 + $0xe0] sm:$0xff]
    %v5415 = vld [vmem:[#allocation11 + $0xe8] sm:$0xff]
    %v5416 = vld [vmem:[#allocation11 + $0xf0] sm:$0xff]
    %v5417 = vld [vmem:[#allocation11 + $0xf8] sm:$0xff]
    %v5418 = vld [vmem:[#allocation11 + $0x100] sm:$0xff]
    %v5419 = vld [vmem:[#allocation11 + $0x108] sm:$0xff]
    %v5420 = vld [vmem:[#allocation11 + $0x110] sm:$0xff]
    %v5421 = vld [vmem:[#allocation11 + $0x118] sm:$0xff]
    %v5422 = vld [vmem:[#allocation11 + $0x120] sm:$0xff]
    %v5423 = vld [vmem:[#allocation11 + $0x128] sm:$0xff]
    %v5424 = vld [vmem:[#allocation11 + $0x130] sm:$0xff]
    %v5425 = vld [vmem:[#allocation11 + $0x138] sm:$0xff]
    %v5426 = vld [vmem:[#allocation11 + $0x140] sm:$0xff]
    %v5427 = vld [vmem:[#allocation11 + $0x148] sm:$0xff]
    %v5428 = vld [vmem:[#allocation11 + $0x150] sm:$0xff]
    %v5429 = vld [vmem:[#allocation11 + $0x158] sm:$0xff]
    %v5430 = vld [vmem:[#allocation11 + $0x160] sm:$0xff]
    %v5431 = vld [vmem:[#allocation11 + $0x168] sm:$0xff]
    %v5432 = vld [vmem:[#allocation11 + $0x170] sm:$0xff]
    %v5433 = vld [vmem:[#allocation11 + $0x178] sm:$0xff]
    %v5434 = vld [vmem:[#allocation11 + $0x180] sm:$0xff]
    %v5435 = vld [vmem:[#allocation11 + $0x188] sm:$0xff]
    %v5436 = vld [vmem:[#allocation11 + $0x190] sm:$0xff]
    %v5437 = vld [vmem:[#allocation11 + $0x198] sm:$0xff]
    %v5438 = vld [vmem:[#allocation11 + $0x1a0] sm:$0xff]
    %v5439 = vld [vmem:[#allocation11 + $0x1a8] sm:$0xff]
    %v5440 = vld [vmem:[#allocation11 + $0x1b0] sm:$0xff]
    %v5441 = vld [vmem:[#allocation11 + $0x1b8] sm:$0xff]
    %v5442 = vld [vmem:[#allocation11 + $0x1c0] sm:$0xff]
    %v5443 = vld [vmem:[#allocation11 + $0x1c8] sm:$0xff]
    %v5444 = vld [vmem:[#allocation11 + $0x1d0] sm:$0xff]
    %v5445 = vld [vmem:[#allocation11 + $0x1d8] sm:$0xff]
    %v5446 = vld [vmem:[#allocation11 + $0x1e0] sm:$0xff]
    %v5447 = vld [vmem:[#allocation11 + $0x1e8] sm:$0xff]
    %v5448 = vld [vmem:[#allocation11 + $0x1f0] sm:$0xff]
    %v5449 = vld [vmem:[#allocation11 + $0x1f8] sm:$0xff]
    %v5450 = vld [vmem:[#allocation27] sm:$0xf]
    %v5452 = vlaneseq
    %v5453 = vshrl.u32 %v5452, 7
    %v5454 = vsub.s32 0, %v5453
    %v5455 = vrot.slane %v5450, %v5454
    %v5456 = vlaneseq
    %v5457 = vshrl.u32 %v5456, 7
    %v5458 = vsub.s32 1, %v5457
    %v5459 = vrot.slane %v5450, %v5458
    %v5460 = vlaneseq
    %v5461 = vshrl.u32 %v5460, 7
    %v5462 = vsub.s32 2, %v5461
    %v5463 = vrot.slane %v5450, %v5462
    %v5464 = vlaneseq
    %v5465 = vshrl.u32 %v5464, 7
    %v5466 = vsub.s32 3, %v5465
    %v5467 = vrot.slane %v5450, %v5466
    %5472 = vmatprep.subr.bf16.mxu0 %v5387
    %5473 = vmatpush1.bf16.msra.mxu0 %v5386
    %5474 = vmatprep.subr.bf16.mxu0 %v5391
    %5475 = vmatpush1.bf16.msra.mxu0 %v5390
    %5476 = vmatprep.subr.bf16.mxu0 %v5395
    %5477 = vmatpush1.bf16.msra.mxu0 %v5394
    %5478 = vmatprep.subr.bf16.mxu0 %v5399
    %5479 = vmatpush1.bf16.msra.mxu0 %v5398
    %5480 = vmatprep.subr.bf16.mxu0 %v5403
    %5481 = vmatpush1.bf16.msra.mxu0 %v5402
    %5482 = vmatprep.subr.bf16.mxu0 %v5407
    %5483 = vmatpush1.bf16.msra.mxu0 %v5406
    %5484 = vmatprep.subr.bf16.mxu0 %v5411
    %5485 = vmatpush1.bf16.msra.mxu0 %v5410
    %5486 = vmatprep.subr.bf16.mxu0 %v5415
    %5487 = vmatpush1.bf16.msra.mxu0 %v5414
    %5488 = vmatprep.subr.bf16.mxu0 %v5419
    %5489 = vmatpush1.bf16.msra.mxu0 %v5418
    %5490 = vmatprep.subr.bf16.mxu0 %v5423
    %5491 = vmatpush1.bf16.msra.mxu0 %v5422
    %5492 = vmatprep.subr.bf16.mxu0 %v5427
    %5493 = vmatpush1.bf16.msra.mxu0 %v5426
    %5494 = vmatprep.subr.bf16.mxu0 %v5431
    %5495 = vmatpush1.bf16.msra.mxu0 %v5430
    %5496 = vmatprep.subr.bf16.mxu0 %v5435
    %5497 = vmatpush1.bf16.msra.mxu0 %v5434
    %5498 = vmatprep.subr.bf16.mxu0 %v5439
    %5499 = vmatpush1.bf16.msra.mxu0 %v5438
    %5500 = vmatprep.subr.bf16.mxu0 %v5443
    %5501 = vmatpush1.bf16.msra.mxu0 %v5442
    %5502 = vmatprep.subr.bf16.mxu0 %v5447
    %5503 = vmatpush1.bf16.msra.mxu0 %v5446
    %5504 = vmatprep.mubr.bf16.mxu0 %v5381
    %5505 = vmatmul.mubr.bf16.gmra.mrb[0].mxu0 %v5380
    %v5506 = vpop.f32.mrb[0].mxu0
    %v5507 = vadd.f32 %v5455, %v5506
    %v5508 = vpop.f32.mrb[0].mxu0
    %v5509 = vadd.f32 %v5459, %v5508
    %v5510 = vpop.f32.mrb[0].mxu0
    %v5511 = vpop.f32.mrb[0].mxu0
    %5512 = vdwg.mxu0
    %5513 = vmatprep.subr.bf16.mxu0 %v5389
    %5514 = vmatpush1.bf16.msra.mxu0 %v5388
    %5515 = vmatprep.subr.bf16.mxu0 %v5393
    %5516 = vmatpush1.bf16.msra.mxu0 %v5392
    %5517 = vmatprep.subr.bf16.mxu0 %v5397
    %5518 = vmatpush1.bf16.msra.mxu0 %v5396
    %5519 = vmatprep.subr.bf16.mxu0 %v5401
    %5520 = vmatpush1.bf16.msra.mxu0 %v5400
    %5521 = vmatprep.subr.bf16.mxu0 %v5405
    %5522 = vmatpush1.bf16.msra.mxu0 %v5404
    %5523 = vmatprep.subr.bf16.mxu0 %v5409
    %5524 = vmatpush1.bf16.msra.mxu0 %v5408
    %5525 = vmatprep.subr.bf16.mxu0 %v5413
    %5526 = vmatpush1.bf16.msra.mxu0 %v5412
    %5527 = vmatprep.subr.bf16.mxu0 %v5417
    %5528 = vmatpush1.bf16.msra.mxu0 %v5416
    %5529 = vmatprep.subr.bf16.mxu0 %v5421
    %5530 = vmatpush1.bf16.msra.mxu0 %v5420
    %5531 = vmatprep.subr.bf16.mxu0 %v5425
    %5532 = vmatpush1.bf16.msra.mxu0 %v5424
    %5533 = vmatprep.subr.bf16.mxu0 %v5429
    %5534 = vmatpush1.bf16.msra.mxu0 %v5428
    %5535 = vmatprep.subr.bf16.mxu0 %v5433
    %5536 = vmatpush1.bf16.msra.mxu0 %v5432
    %5537 = vmatprep.subr.bf16.mxu0 %v5437
    %5538 = vmatpush1.bf16.msra.mxu0 %v5436
    %5539 = vmatprep.subr.bf16.mxu0 %v5441
    %5540 = vmatpush1.bf16.msra.mxu0 %v5440
    %5541 = vmatprep.subr.bf16.mxu0 %v5445
    %5542 = vmatpush1.bf16.msra.mxu0 %v5444
    %5543 = vmatprep.subr.bf16.mxu0 %v5449
    %5544 = vmatpush1.bf16.msra.mxu0 %v5448
    %5545 = vmatprep.mubr.bf16.mxu0 %v5381
    %5546 = vmatmul.mubr.bf16.gmra.mrb[0].mxu0 %v5380
    %v5547 = vpop.f32.mrb[0].mxu0
    %v5548 = vadd.f32 %v5463, %v5547
    %v5549 = vpop.f32.mrb[0].mxu0
    %v5550 = vadd.f32 %v5467, %v5549
    %v5551 = vpop.f32.mrb[0].mxu0
    %v5552 = vpop.f32.mrb[0].mxu0
    %5553 = vdwg.mxu0
    %v5554 = vmax.f32 %v5507, 0.0
    %v5555 = vmax.f32 %v5509, 0.0
    %v5556 = vmax.f32 %v5548, 0.0
    %v5557 = vmax.f32 %v5550, 0.0
    %v5558 = vpack.c.bf16 %v5554, %v5554
    %v5559 = vpack.c.bf16 %v5555, %v5555
    %v5560 = vpack.c.bf16 %v5556, %v5556
    %v5561 = vpack.c.bf16 %v5557, %v5557
    %5562 = vst [vmem:[#allocation5] sm:$0x1] %v5558
    %v5564 = vunpack.c.l.b16 %v5559
    %v5565 = vpack.c.b16 %v5564, %v5564
    %v5566 = vrot.slane %v5565, 7
    %5568 = vst [vmem:[#allocation5] sm:$0x2] %v5566
    %v5570 = vunpack.c.l.b16 %v5560
    %v5571 = vpack.c.b16 %v5570, %v5570
    %v5572 = vrot.slane %v5571, 6
    %5574 = vst [vmem:[#allocation5] sm:$0x4] %v5572
    %v5576 = vunpack.c.l.b16 %v5561
    %v5577 = vpack.c.b16 %v5576, %v5576
    %v5578 = vrot.slane %v5577, 5
    %5580 = vst [vmem:[#allocation5] sm:$0x8] %v5578
    %v5581 = vld [vmem:[#allocation5] sm:$0xf]
    %v5582 = vld [vmem:[%s18] sm:$0xf]
    %v5583 = vld [vmem:[%s18 + $0x4] sm:$0xf]
    %v5584 = vld [vmem:[%s18 + $0x8] sm:$0xf]
    %v5585 = vld [vmem:[%s18 + $0xc] sm:$0xf]
    %v5586 = vld [vmem:[%s18 + $0x10] sm:$0xf]
    %v5587 = vld [vmem:[%s18 + $0x14] sm:$0xf]
    %v5588 = vld [vmem:[%s18 + $0x18] sm:$0xf]
    %v5589 = vld [vmem:[%s18 + $0x1c] sm:$0xf]
    %v5590 = vld [vmem:[%s18 + $0x20] sm:$0xf]
    %v5600 = vunpack.c.l.b16 %v5582
    %v5601 = vunpack.c.l.b16 %v5583
    %v5602 = vunpack.c.l.b16 %v5584
    %v5603 = vunpack.c.l.b16 %v5585
    %v5604 = vunpack.c.l.b16 %v5586
    %v5605 = vunpack.c.l.b16 %v5587
    %v5606 = vunpack.c.l.b16 %v5588
    %v5607 = vunpack.c.l.b16 %v5589
    %v5608 = vunpack.c.l.b16 %v5590
    %v5609 = vpack.c.b16 %v5601, %v5600
    %v5610 = vpack.c.b16 %v5603, %v5602
    %v5611 = vpack.c.b16 %v5605, %v5604
    %v5612 = vpack.c.b16 %v5607, %v5606
    %v5613 = vpack.c.b16 %v5608, %v5608
    %v5615 = vsel %vm4539, %v5609, 0
    %v5618 = vsel %vm4539, %v5610, 0
    %v5621 = vsel %vm4539, %v5611, 0
    %v5624 = vsel %vm4539, %v5612, 0
    %v5627 = vsel %vm4539, %v5613, 0
    %v5630 = vsel %vm4543, %v5581, 0
    %5632 = vmatprep.subr.bf16.mxu0 0
    %5633 = vmatpush1.bf16.msra.mxu0 %v5630
    %5634 = vmatprep.subr.bf16.mxu0 0
    %5635 = vmatpush1.bf16.msra.mxu0 0
    %5636 = vmatprep.subr.bf16.mxu0 0
    %5637 = vmatpush1.bf16.msra.mxu0 0
    %5638 = vmatprep.subr.bf16.mxu0 0
    %5639 = vmatpush1.bf16.msra.mxu0 0
    %5640 = vmatprep.subr.bf16.mxu0 0
    %5641 = vmatpush1.bf16.msra.mxu0 0
    %5642 = vmatprep.subr.bf16.mxu0 0
    %5643 = vmatpush1.bf16.msra.mxu0 0
    %5644 = vmatprep.subr.bf16.mxu0 0
    %5645 = vmatpush1.bf16.msra.mxu0 0
    %5646 = vmatprep.subr.bf16.mxu0 0
    %5647 = vmatpush1.bf16.msra.mxu0 0
    %5648 = vmatprep.subr.bf16.mxu0 0
    %5649 = vmatpush1.bf16.msra.mxu0 0
    %5650 = vmatprep.subr.bf16.mxu0 0
    %5651 = vmatpush1.bf16.msra.mxu0 0
    %5652 = vmatprep.subr.bf16.mxu0 0
    %5653 = vmatpush1.bf16.msra.mxu0 0
    %5654 = vmatprep.subr.bf16.mxu0 0
    %5655 = vmatpush1.bf16.msra.mxu0 0
    %5656 = vmatprep.subr.bf16.mxu0 0
    %5657 = vmatpush1.bf16.msra.mxu0 0
    %5658 = vmatprep.subr.bf16.mxu0 0
    %5659 = vmatpush1.bf16.msra.mxu0 0
    %5660 = vmatprep.subr.bf16.mxu0 0
    %5661 = vmatpush1.bf16.msra.mxu0 0
    %5662 = vmatprep.subr.bf16.mxu0 0
    %5663 = vmatpush1.bf16.msra.mxu0 0
    %5664 = vmatprep.mubr.bf16.mxu0 0
    %5665 = vmatmul.mubr.bf16.gmra.mrb[0].mxu0 %v5615
    %v5666 = vpop.f32.mrb[0].mxu0
    %v5667 = vadd.f32 0.0, %v5666
    %v5668 = vpop.f32.mrb[0].mxu0
    %v5669 = vpop.f32.mrb[0].mxu0
    %v5670 = vadd.f32 0.0, %v5669
    %v5671 = vpop.f32.mrb[0].mxu0
    %5672 = vmatprep.mubr.bf16.mxu0 0
    %5673 = vmatmul.mubr.bf16.gmra.mrb[0].mxu0 %v5618
    %v5674 = vpop.f32.mrb[0].mxu0
    %v5675 = vadd.f32 0.0, %v5674
    %v5676 = vpop.f32.mrb[0].mxu0
    %v5677 = vpop.f32.mrb[0].mxu0
    %v5678 = vadd.f32 0.0, %v5677
    %v5679 = vpop.f32.mrb[0].mxu0
    %5680 = vmatprep.mubr.bf16.mxu0 0
    %5681 = vmatmul.mubr.bf16.gmra.mrb[0].mxu0 %v5621
    %v5682 = vpop.f32.mrb[0].mxu0
    %v5683 = vadd.f32 0.0, %v5682
    %v5684 = vpop.f32.mrb[0].mxu0
    %v5685 = vpop.f32.mrb[0].mxu0
    %v5686 = vadd.f32 0.0, %v5685
    %v5687 = vpop.f32.mrb[0].mxu0
    %5688 = vmatprep.mubr.bf16.mxu0 0
    %5689 = vmatmul.mubr.bf16.gmra.mrb[0].mxu0 %v5624
    %v5690 = vpop.f32.mrb[0].mxu0
    %v5691 = vadd.f32 0.0, %v5690
    %v5692 = vpop.f32.mrb[0].mxu0
    %v5693 = vpop.f32.mrb[0].mxu0
    %v5694 = vadd.f32 0.0, %v5693
    %v5695 = vpop.f32.mrb[0].mxu0
    %5696 = vmatprep.mubr.bf16.mxu0 0
    %5697 = vmatmul.mubr.bf16.gmra.mrb[0].mxu0 %v5627
    %v5698 = vpop.f32.mrb[0].mxu0
    %v5699 = vadd.f32 0.0, %v5698
    %v5700 = vpop.f32.mrb[0].mxu0
    %v5701 = vpop.f32.mrb[0].mxu0
    %v5702 = vpop.f32.mrb[0].mxu0
    %5703 = vdwg.mxu0
    %v5704 = vpack.c.bf16 %v5670, %v5667
    %v5705 = vpack.c.bf16 %v5678, %v5675
    %v5706 = vpack.c.bf16 %v5686, %v5683
    %v5707 = vpack.c.bf16 %v5694, %v5691
    %v5708 = vpack.c.bf16 %v5699, %v5699
    %5709 = vst [vmem:[#allocation6] sm:$0xf] %v5704
    %v5711 = vunpack.c.h.b16 %v5704
    %v5712 = vpack.c.b16 %v5711, %v5711
    %5714 = vst [vmem:[#allocation6 + $0x4] sm:$0xf] %v5712
    %5715 = vst [vmem:[#allocation6 + $0x8] sm:$0xf] %v5705
    %v5717 = vunpack.c.h.b16 %v5705
    %v5718 = vpack.c.b16 %v5717, %v5717
    %5720 = vst [vmem:[#allocation6 + $0xc] sm:$0xf] %v5718
    %5721 = vst [vmem:[#allocation6 + $0x10] sm:$0xf] %v5706
    %v5723 = vunpack.c.h.b16 %v5706
    %v5724 = vpack.c.b16 %v5723, %v5723
    %5726 = vst [vmem:[#allocation6 + $0x14] sm:$0xf] %v5724
    %5727 = vst [vmem:[#allocation6 + $0x18] sm:$0xf] %v5707
    %v5729 = vunpack.c.h.b16 %v5707
    %v5730 = vpack.c.b16 %v5729, %v5729
    %5732 = vst [vmem:[#allocation6 + $0x1c] sm:$0xf] %v5730
    %5733 = vst [vmem:[#allocation6 + $0x20] sm:$0xf] %v5708
    %v5734 = vld [vmem:[#allocation6] sm:$0xff]
    %v5735 = vld [vmem:[#allocation6 + $0x8] sm:$0xff]
    %v5736 = vld [vmem:[#allocation6 + $0x10] sm:$0xff]
    %v5737 = vld [vmem:[#allocation6 + $0x18] sm:$0xff]
    %v5738 = vld [vmem:[#allocation6 + $0x20] sm:$0xf]
    %s5739 = smul.u32 4, 144
    %s5740 = smul.u32 %s5739, 2
    %s5741 = sshll.u32 %s5740, 4
    %5742 = dma.done %s758, %s5741
    %v5743 = vld [vmem:[#allocation12] sm:$0xff]
    %v5744 = vld [vmem:[#allocation12 + $0x8] sm:$0xff]
    %v5745 = vld [vmem:[#allocation12 + $0x10] sm:$0xff]
    %v5746 = vld [vmem:[#allocation12 + $0x18] sm:$0xff]
    %v5747 = vld [vmem:[#allocation12 + $0x20] sm:$0xff]
    %v5748 = vld [vmem:[#allocation12 + $0x28] sm:$0xff]
    %v5749 = vld [vmem:[#allocation12 + $0x30] sm:$0xff]
    %v5750 = vld [vmem:[#allocation12 + $0x38] sm:$0xff]
    %v5751 = vld [vmem:[#allocation12 + $0x40] sm:$0xff]
    %v5752 = vld [vmem:[#allocation12 + $0x48] sm:$0xff]
    %v5753 = vld [vmem:[#allocation12 + $0x50] sm:$0xff]
    %v5754 = vld [vmem:[#allocation12 + $0x58] sm:$0xff]
    %v5755 = vld [vmem:[#allocation12 + $0x60] sm:$0xff]
    %v5756 = vld [vmem:[#allocation12 + $0x68] sm:$0xff]
    %v5757 = vld [vmem:[#allocation12 + $0x70] sm:$0xff]
    %v5758 = vld [vmem:[#allocation12 + $0x78] sm:$0xff]
    %v5759 = vld [vmem:[#allocation12 + $0x80] sm:$0xff]
    %v5760 = vld [vmem:[#allocation12 + $0x88] sm:$0xff]
    %v5761 = vld [vmem:[#allocation12 + $0x90] sm:$0xff]
    %v5762 = vld [vmem:[#allocation12 + $0x98] sm:$0xff]
    %v5763 = vld [vmem:[#allocation12 + $0xa0] sm:$0xff]
    %v5764 = vld [vmem:[#allocation12 + $0xa8] sm:$0xff]
    %v5765 = vld [vmem:[#allocation12 + $0xb0] sm:$0xff]
    %v5766 = vld [vmem:[#allocation12 + $0xb8] sm:$0xff]
    %v5767 = vld [vmem:[#allocation12 + $0xc0] sm:$0xff]
    %v5768 = vld [vmem:[#allocation12 + $0xc8] sm:$0xff]
    %v5769 = vld [vmem:[#allocation12 + $0xd0] sm:$0xff]
    %v5770 = vld [vmem:[#allocation12 + $0xd8] sm:$0xff]
    %v5771 = vld [vmem:[#allocation12 + $0xe0] sm:$0xff]
    %v5772 = vld [vmem:[#allocation12 + $0xe8] sm:$0xff]
    %v5773 = vld [vmem:[#allocation12 + $0xf0] sm:$0xff]
    %v5774 = vld [vmem:[#allocation12 + $0xf8] sm:$0xff]
    %v5775 = vld [vmem:[#allocation12 + $0x100] sm:$0xff]
    %v5776 = vld [vmem:[#allocation12 + $0x108] sm:$0xff]
    %v5777 = vld [vmem:[#allocation12 + $0x110] sm:$0xff]
    %v5778 = vld [vmem:[#allocation12 + $0x118] sm:$0xff]
    %v5779 = vld [vmem:[#allocation12 + $0x120] sm:$0xff]
    %v5780 = vld [vmem:[#allocation12 + $0x128] sm:$0xff]
    %v5781 = vld [vmem:[#allocation12 + $0x130] sm:$0xff]
    %v5782 = vld [vmem:[#allocation12 + $0x138] sm:$0xff]
    %v5783 = vld [vmem:[#allocation12 + $0x140] sm:$0xff]
    %v5784 = vld [vmem:[#allocation12 + $0x148] sm:$0xff]
    %v5785 = vld [vmem:[#allocation12 + $0x150] sm:$0xff]
    %v5786 = vld [vmem:[#allocation12 + $0x158] sm:$0xff]
    %v5787 = vld [vmem:[#allocation12 + $0x160] sm:$0xff]
    %v5788 = vld [vmem:[#allocation12 + $0x168] sm:$0xff]
    %v5789 = vld [vmem:[#allocation12 + $0x170] sm:$0xff]
    %v5790 = vld [vmem:[#allocation12 + $0x178] sm:$0xff]
    %v5791 = vld [vmem:[#allocation12 + $0x180] sm:$0xff]
    %v5792 = vld [vmem:[#allocation12 + $0x188] sm:$0xff]
    %v5793 = vld [vmem:[#allocation12 + $0x190] sm:$0xff]
    %v5794 = vld [vmem:[#allocation12 + $0x198] sm:$0xff]
    %v5795 = vld [vmem:[#allocation12 + $0x1a0] sm:$0xff]
    %v5796 = vld [vmem:[#allocation12 + $0x1a8] sm:$0xff]
    %v5797 = vld [vmem:[#allocation12 + $0x1b0] sm:$0xff]
    %v5798 = vld [vmem:[#allocation12 + $0x1b8] sm:$0xff]
    %v5799 = vld [vmem:[#allocation12 + $0x1c0] sm:$0xff]
    %v5800 = vld [vmem:[#allocation12 + $0x1c8] sm:$0xff]
    %v5801 = vld [vmem:[#allocation12 + $0x1d0] sm:$0xff]
    %v5802 = vld [vmem:[#allocation12 + $0x1d8] sm:$0xff]
    %v5803 = vld [vmem:[#allocation12 + $0x1e0] sm:$0xff]
    %v5804 = vld [vmem:[#allocation12 + $0x1e8] sm:$0xff]
    %v5805 = vld [vmem:[#allocation12 + $0x1f0] sm:$0xff]
    %v5806 = vld [vmem:[#allocation12 + $0x1f8] sm:$0xff]
    %v5807 = vld [vmem:[#allocation12 + $0x200] sm:$0xff]
    %v5808 = vld [vmem:[#allocation12 + $0x208] sm:$0xff]
    %v5809 = vld [vmem:[#allocation12 + $0x210] sm:$0xff]
    %v5810 = vld [vmem:[#allocation12 + $0x218] sm:$0xff]
    %v5811 = vld [vmem:[#allocation12 + $0x220] sm:$0xff]
    %v5812 = vld [vmem:[#allocation12 + $0x228] sm:$0xff]
    %v5813 = vld [vmem:[#allocation12 + $0x230] sm:$0xff]
    %v5814 = vld [vmem:[#allocation12 + $0x238] sm:$0xff]
    %v5815 = vld [vmem:[#allocation12 + $0x240] sm:$0xff]
    %v5816 = vld [vmem:[#allocation12 + $0x248] sm:$0xff]
    %v5817 = vld [vmem:[#allocation12 + $0x250] sm:$0xff]
    %v5818 = vld [vmem:[#allocation12 + $0x258] sm:$0xff]
    %v5819 = vld [vmem:[#allocation12 + $0x260] sm:$0xff]
    %v5820 = vld [vmem:[#allocation12 + $0x268] sm:$0xff]
    %v5821 = vld [vmem:[#allocation12 + $0x270] sm:$0xff]
    %v5822 = vld [vmem:[#allocation12 + $0x278] sm:$0xff]
    %v5823 = vld [vmem:[#allocation12 + $0x280] sm:$0xff]
    %v5824 = vld [vmem:[#allocation12 + $0x288] sm:$0xff]
    %v5825 = vld [vmem:[#allocation12 + $0x290] sm:$0xff]
    %v5826 = vld [vmem:[#allocation12 + $0x298] sm:$0xff]
    %v5827 = vld [vmem:[#allocation12 + $0x2a0] sm:$0xff]
    %v5828 = vld [vmem:[#allocation12 + $0x2a8] sm:$0xff]
    %v5829 = vld [vmem:[#allocation12 + $0x2b0] sm:$0xff]
    %v5830 = vld [vmem:[#allocation12 + $0x2b8] sm:$0xff]
    %v5831 = vld [vmem:[#allocation12 + $0x2c0] sm:$0xff]
    %v5832 = vld [vmem:[#allocation12 + $0x2c8] sm:$0xff]
    %v5833 = vld [vmem:[#allocation12 + $0x2d0] sm:$0xff]
    %v5834 = vld [vmem:[#allocation12 + $0x2d8] sm:$0xff]
    %v5835 = vld [vmem:[#allocation12 + $0x2e0] sm:$0xff]
    %v5836 = vld [vmem:[#allocation12 + $0x2e8] sm:$0xff]
    %v5837 = vld [vmem:[#allocation12 + $0x2f0] sm:$0xff]
    %v5838 = vld [vmem:[#allocation12 + $0x2f8] sm:$0xff]
    %v5839 = vld [vmem:[#allocation12 + $0x300] sm:$0xff]
    %v5840 = vld [vmem:[#allocation12 + $0x308] sm:$0xff]
    %v5841 = vld [vmem:[#allocation12 + $0x310] sm:$0xff]
    %v5842 = vld [vmem:[#allocation12 + $0x318] sm:$0xff]
    %v5843 = vld [vmem:[#allocation12 + $0x320] sm:$0xff]
    %v5844 = vld [vmem:[#allocation12 + $0x328] sm:$0xff]
    %v5845 = vld [vmem:[#allocation12 + $0x330] sm:$0xff]
    %v5846 = vld [vmem:[#allocation12 + $0x338] sm:$0xff]
    %v5847 = vld [vmem:[#allocation12 + $0x340] sm:$0xff]
    %v5848 = vld [vmem:[#allocation12 + $0x348] sm:$0xff]
    %v5849 = vld [vmem:[#allocation12 + $0x350] sm:$0xff]
    %v5850 = vld [vmem:[#allocation12 + $0x358] sm:$0xff]
    %v5851 = vld [vmem:[#allocation12 + $0x360] sm:$0xff]
    %v5852 = vld [vmem:[#allocation12 + $0x368] sm:$0xff]
    %v5853 = vld [vmem:[#allocation12 + $0x370] sm:$0xff]
    %v5854 = vld [vmem:[#allocation12 + $0x378] sm:$0xff]
    %v5855 = vld [vmem:[#allocation12 + $0x380] sm:$0xff]
    %v5856 = vld [vmem:[#allocation12 + $0x388] sm:$0xff]
    %v5857 = vld [vmem:[#allocation12 + $0x390] sm:$0xff]
    %v5858 = vld [vmem:[#allocation12 + $0x398] sm:$0xff]
    %v5859 = vld [vmem:[#allocation12 + $0x3a0] sm:$0xff]
    %v5860 = vld [vmem:[#allocation12 + $0x3a8] sm:$0xff]
    %v5861 = vld [vmem:[#allocation12 + $0x3b0] sm:$0xff]
    %v5862 = vld [vmem:[#allocation12 + $0x3b8] sm:$0xff]
    %v5863 = vld [vmem:[#allocation12 + $0x3c0] sm:$0xff]
    %v5864 = vld [vmem:[#allocation12 + $0x3c8] sm:$0xff]
    %v5865 = vld [vmem:[#allocation12 + $0x3d0] sm:$0xff]
    %v5866 = vld [vmem:[#allocation12 + $0x3d8] sm:$0xff]
    %v5867 = vld [vmem:[#allocation12 + $0x3e0] sm:$0xff]
    %v5868 = vld [vmem:[#allocation12 + $0x3e8] sm:$0xff]
    %v5869 = vld [vmem:[#allocation12 + $0x3f0] sm:$0xff]
    %v5870 = vld [vmem:[#allocation12 + $0x3f8] sm:$0xff]
    %v5871 = vld [vmem:[#allocation12 + $0x400] sm:$0xff]
    %v5872 = vld [vmem:[#allocation12 + $0x408] sm:$0xff]
    %v5873 = vld [vmem:[#allocation12 + $0x410] sm:$0xff]
    %v5874 = vld [vmem:[#allocation12 + $0x418] sm:$0xff]
    %v5875 = vld [vmem:[#allocation12 + $0x420] sm:$0xff]
    %v5876 = vld [vmem:[#allocation12 + $0x428] sm:$0xff]
    %v5877 = vld [vmem:[#allocation12 + $0x430] sm:$0xff]
    %v5878 = vld [vmem:[#allocation12 + $0x438] sm:$0xff]
    %v5879 = vld [vmem:[#allocation12 + $0x440] sm:$0xff]
    %v5880 = vld [vmem:[#allocation12 + $0x448] sm:$0xff]
    %v5881 = vld [vmem:[#allocation12 + $0x450] sm:$0xff]
    %v5882 = vld [vmem:[#allocation12 + $0x458] sm:$0xff]
    %v5883 = vld [vmem:[#allocation12 + $0x460] sm:$0xff]
    %v5884 = vld [vmem:[#allocation12 + $0x468] sm:$0xff]
    %v5885 = vld [vmem:[#allocation12 + $0x470] sm:$0xff]
    %v5886 = vld [vmem:[#allocation12 + $0x478] sm:$0xff]
    %v5887 = vld [vmem:[#allocation28] sm:$0x3]
    %v5889 = vlaneseq
    %v5890 = vshrl.u32 %v5889, 7
    %v5891 = vsub.s32 0, %v5890
    %v5892 = vrot.slane %v5887, %v5891
    %v5893 = vlaneseq
    %v5894 = vshrl.u32 %v5893, 7
    %v5895 = vsub.s32 1, %v5894
    %v5896 = vrot.slane %v5887, %v5895
    %v5904 = vunpack.c.l.b16 %v5734
    %v5905 = vunpack.c.h.b16 %v5734
    %v5906 = vunpack.c.l.b16 %v5735
    %v5907 = vunpack.c.h.b16 %v5735
    %v5908 = vunpack.c.l.b16 %v5736
    %v5909 = vunpack.c.h.b16 %v5736
    %v5910 = vunpack.c.l.b16 %v5737
    %v5911 = vunpack.c.h.b16 %v5737
    %v5912 = vunpack.c.l.b16 %v5738
    %v5913 = vpack.c.b16 %v5904, %v5904
    %v5914 = vpack.c.b16 %v5905, %v5905
    %v5915 = vpack.c.b16 %v5906, %v5906
    %v5916 = vpack.c.b16 %v5907, %v5907
    %v5917 = vpack.c.b16 %v5908, %v5908
    %v5918 = vpack.c.b16 %v5909, %v5909
    %v5919 = vpack.c.b16 %v5910, %v5910
    %v5920 = vpack.c.b16 %v5911, %v5911
    %v5921 = vpack.c.b16 %v5912, %v5912
    %5931 = vmatprep.subr.bf16.mxu0 %v5744
    %5932 = vmatpush1.bf16.msra.mxu0 %v5743
    %5933 = vmatprep.subr.bf16.mxu0 %v5746
    %5934 = vmatpush1.bf16.msra.mxu0 %v5745
    %5935 = vmatprep.subr.bf16.mxu0 %v5748
    %5936 = vmatpush1.bf16.msra.mxu0 %v5747
    %5937 = vmatprep.subr.bf16.mxu0 %v5750
    %5938 = vmatpush1.bf16.msra.mxu0 %v5749
    %5939 = vmatprep.subr.bf16.mxu0 %v5752
    %5940 = vmatpush1.bf16.msra.mxu0 %v5751
    %5941 = vmatprep.subr.bf16.mxu0 %v5754
    %5942 = vmatpush1.bf16.msra.mxu0 %v5753
    %5943 = vmatprep.subr.bf16.mxu0 %v5756
    %5944 = vmatpush1.bf16.msra.mxu0 %v5755
    %5945 = vmatprep.subr.bf16.mxu0 %v5758
    %5946 = vmatpush1.bf16.msra.mxu0 %v5757
    %5947 = vmatprep.subr.bf16.mxu0 %v5760
    %5948 = vmatpush1.bf16.msra.mxu0 %v5759
    %5949 = vmatprep.subr.bf16.mxu0 %v5762
    %5950 = vmatpush1.bf16.msra.mxu0 %v5761
    %5951 = vmatprep.subr.bf16.mxu0 %v5764
    %5952 = vmatpush1.bf16.msra.mxu0 %v5763
    %5953 = vmatprep.subr.bf16.mxu0 %v5766
    %5954 = vmatpush1.bf16.msra.mxu0 %v5765
    %5955 = vmatprep.subr.bf16.mxu0 %v5768
    %5956 = vmatpush1.bf16.msra.mxu0 %v5767
    %5957 = vmatprep.subr.bf16.mxu0 %v5770
    %5958 = vmatpush1.bf16.msra.mxu0 %v5769
    %5959 = vmatprep.subr.bf16.mxu0 %v5772
    %5960 = vmatpush1.bf16.msra.mxu0 %v5771
    %5961 = vmatprep.subr.bf16.mxu0 %v5774
    %5962 = vmatpush1.bf16.msra.mxu0 %v5773
    %5963 = vmatprep.mubr.bf16.mxu0 %v5914
    %5964 = vmatmul.mubr.bf16.gmra.mrb[0].mxu0 %v5913
    %v5965 = vpop.f32.mrb[0].mxu0
    %v5966 = vadd.f32 %v5892, %v5965
    %v5967 = vpop.f32.mrb[0].mxu0
    %v5968 = vadd.f32 %v5896, %v5967
    %v5969 = vpop.f32.mrb[0].mxu0
    %v5970 = vpop.f32.mrb[0].mxu0
    %5971 = vdwg.mxu0
    %5972 = vmatprep.subr.bf16.mxu0 %v5776
    %5973 = vmatpush1.bf16.msra.mxu0 %v5775
    %5974 = vmatprep.subr.bf16.mxu0 %v5778
    %5975 = vmatpush1.bf16.msra.mxu0 %v5777
    %5976 = vmatprep.subr.bf16.mxu0 %v5780
    %5977 = vmatpush1.bf16.msra.mxu0 %v5779
    %5978 = vmatprep.subr.bf16.mxu0 %v5782
    %5979 = vmatpush1.bf16.msra.mxu0 %v5781
    %5980 = vmatprep.subr.bf16.mxu0 %v5784
    %5981 = vmatpush1.bf16.msra.mxu0 %v5783
    %5982 = vmatprep.subr.bf16.mxu0 %v5786
    %5983 = vmatpush1.bf16.msra.mxu0 %v5785
    %5984 = vmatprep.subr.bf16.mxu0 %v5788
    %5985 = vmatpush1.bf16.msra.mxu0 %v5787
    %5986 = vmatprep.subr.bf16.mxu0 %v5790
    %5987 = vmatpush1.bf16.msra.mxu0 %v5789
    %5988 = vmatprep.subr.bf16.mxu0 %v5792
    %5989 = vmatpush1.bf16.msra.mxu0 %v5791
    %5990 = vmatprep.subr.bf16.mxu0 %v5794
    %5991 = vmatpush1.bf16.msra.mxu0 %v5793
    %5992 = vmatprep.subr.bf16.mxu0 %v5796
    %5993 = vmatpush1.bf16.msra.mxu0 %v5795
    %5994 = vmatprep.subr.bf16.mxu0 %v5798
    %5995 = vmatpush1.bf16.msra.mxu0 %v5797
    %5996 = vmatprep.subr.bf16.mxu0 %v5800
    %5997 = vmatpush1.bf16.msra.mxu0 %v5799
    %5998 = vmatprep.subr.bf16.mxu0 %v5802
    %5999 = vmatpush1.bf16.msra.mxu0 %v5801
    %6000 = vmatprep.subr.bf16.mxu0 %v5804
    %6001 = vmatpush1.bf16.msra.mxu0 %v5803
    %6002 = vmatprep.subr.bf16.mxu0 %v5806
    %6003 = vmatpush1.bf16.msra.mxu0 %v5805
    %6004 = vmatprep.mubr.bf16.mxu0 %v5916
    %6005 = vmatmul.mubr.bf16.gmra.mrb[0].mxu0 %v5915
    %v6006 = vpop.f32.mrb[0].mxu0
    %v6007 = vadd.f32 %v5966, %v6006
    %v6008 = vpop.f32.mrb[0].mxu0
    %v6009 = vadd.f32 %v5968, %v6008
    %v6010 = vpop.f32.mrb[0].mxu0
    %v6011 = vpop.f32.mrb[0].mxu0
    %6012 = vdwg.mxu0
    %6013 = vmatprep.subr.bf16.mxu0 %v5808
    %6014 = vmatpush1.bf16.msra.mxu0 %v5807
    %6015 = vmatprep.subr.bf16.mxu0 %v5810
    %6016 = vmatpush1.bf16.msra.mxu0 %v5809
    %6017 = vmatprep.subr.bf16.mxu0 %v5812
    %6018 = vmatpush1.bf16.msra.mxu0 %v5811
    %6019 = vmatprep.subr.bf16.mxu0 %v5814
    %6020 = vmatpush1.bf16.msra.mxu0 %v5813
    %6021 = vmatprep.subr.bf16.mxu0 %v5816
    %6022 = vmatpush1.bf16.msra.mxu0 %v5815
    %6023 = vmatprep.subr.bf16.mxu0 %v5818
    %6024 = vmatpush1.bf16.msra.mxu0 %v5817
    %6025 = vmatprep.subr.bf16.mxu0 %v5820
    %6026 = vmatpush1.bf16.msra.mxu0 %v5819
    %6027 = vmatprep.subr.bf16.mxu0 %v5822
    %6028 = vmatpush1.bf16.msra.mxu0 %v5821
    %6029 = vmatprep.subr.bf16.mxu0 %v5824
    %6030 = vmatpush1.bf16.msra.mxu0 %v5823
    %6031 = vmatprep.subr.bf16.mxu0 %v5826
    %6032 = vmatpush1.bf16.msra.mxu0 %v5825
    %6033 = vmatprep.subr.bf16.mxu0 %v5828
    %6034 = vmatpush1.bf16.msra.mxu0 %v5827
    %6035 = vmatprep.subr.bf16.mxu0 %v5830
    %6036 = vmatpush1.bf16.msra.mxu0 %v5829
    %6037 = vmatprep.subr.bf16.mxu0 %v5832
    %6038 = vmatpush1.bf16.msra.mxu0 %v5831
    %6039 = vmatprep.subr.bf16.mxu0 %v5834
    %6040 = vmatpush1.bf16.msra.mxu0 %v5833
    %6041 = vmatprep.subr.bf16.mxu0 %v5836
    %6042 = vmatpush1.bf16.msra.mxu0 %v5835
    %6043 = vmatprep.subr.bf16.mxu0 %v5838
    %6044 = vmatpush1.bf16.msra.mxu0 %v5837
    %6045 = vmatprep.mubr.bf16.mxu0 %v5918
    %6046 = vmatmul.mubr.bf16.gmra.mrb[0].mxu0 %v5917
    %v6047 = vpop.f32.mrb[0].mxu0
    %v6048 = vadd.f32 %v6007, %v6047
    %v6049 = vpop.f32.mrb[0].mxu0
    %v6050 = vadd.f32 %v6009, %v6049
    %v6051 = vpop.f32.mrb[0].mxu0
    %v6052 = vpop.f32.mrb[0].mxu0
    %6053 = vdwg.mxu0
    %6054 = vmatprep.subr.bf16.mxu0 %v5840
    %6055 = vmatpush1.bf16.msra.mxu0 %v5839
    %6056 = vmatprep.subr.bf16.mxu0 %v5842
    %6057 = vmatpush1.bf16.msra.mxu0 %v5841
    %6058 = vmatprep.subr.bf16.mxu0 %v5844
    %6059 = vmatpush1.bf16.msra.mxu0 %v5843
    %6060 = vmatprep.subr.bf16.mxu0 %v5846
    %6061 = vmatpush1.bf16.msra.mxu0 %v5845
    %6062 = vmatprep.subr.bf16.mxu0 %v5848
    %6063 = vmatpush1.bf16.msra.mxu0 %v5847
    %6064 = vmatprep.subr.bf16.mxu0 %v5850
    %6065 = vmatpush1.bf16.msra.mxu0 %v5849
    %6066 = vmatprep.subr.bf16.mxu0 %v5852
    %6067 = vmatpush1.bf16.msra.mxu0 %v5851
    %6068 = vmatprep.subr.bf16.mxu0 %v5854
    %6069 = vmatpush1.bf16.msra.mxu0 %v5853
    %6070 = vmatprep.subr.bf16.mxu0 %v5856
    %6071 = vmatpush1.bf16.msra.mxu0 %v5855
    %6072 = vmatprep.subr.bf16.mxu0 %v5858
    %6073 = vmatpush1.bf16.msra.mxu0 %v5857
    %6074 = vmatprep.subr.bf16.mxu0 %v5860
    %6075 = vmatpush1.bf16.msra.mxu0 %v5859
    %6076 = vmatprep.subr.bf16.mxu0 %v5862
    %6077 = vmatpush1.bf16.msra.mxu0 %v5861
    %6078 = vmatprep.subr.bf16.mxu0 %v5864
    %6079 = vmatpush1.bf16.msra.mxu0 %v5863
    %6080 = vmatprep.subr.bf16.mxu0 %v5866
    %6081 = vmatpush1.bf16.msra.mxu0 %v5865
    %6082 = vmatprep.subr.bf16.mxu0 %v5868
    %6083 = vmatpush1.bf16.msra.mxu0 %v5867
    %6084 = vmatprep.subr.bf16.mxu0 %v5870
    %6085 = vmatpush1.bf16.msra.mxu0 %v5869
    %6086 = vmatprep.mubr.bf16.mxu0 %v5920
    %6087 = vmatmul.mubr.bf16.gmra.mrb[0].mxu0 %v5919
    %v6088 = vpop.f32.mrb[0].mxu0
    %v6089 = vadd.f32 %v6048, %v6088
    %v6090 = vpop.f32.mrb[0].mxu0
    %v6091 = vadd.f32 %v6050, %v6090
    %v6092 = vpop.f32.mrb[0].mxu0
    %v6093 = vpop.f32.mrb[0].mxu0
    %6094 = vdwg.mxu0
    %6095 = vmatprep.subr.bf16.mxu0 %v5872
    %6096 = vmatpush1.bf16.msra.mxu0 %v5871
    %6097 = vmatprep.subr.bf16.mxu0 %v5874
    %6098 = vmatpush1.bf16.msra.mxu0 %v5873
    %6099 = vmatprep.subr.bf16.mxu0 %v5876
    %6100 = vmatpush1.bf16.msra.mxu0 %v5875
    %6101 = vmatprep.subr.bf16.mxu0 %v5878
    %6102 = vmatpush1.bf16.msra.mxu0 %v5877
    %6103 = vmatprep.subr.bf16.mxu0 %v5880
    %6104 = vmatpush1.bf16.msra.mxu0 %v5879
    %6105 = vmatprep.subr.bf16.mxu0 %v5882
    %6106 = vmatpush1.bf16.msra.mxu0 %v5881
    %6107 = vmatprep.subr.bf16.mxu0 %v5884
    %6108 = vmatpush1.bf16.msra.mxu0 %v5883
    %6109 = vmatprep.subr.bf16.mxu0 %v5886
    %6110 = vmatpush1.bf16.msra.mxu0 %v5885
    %6111 = vmatprep.subr.bf16.mxu0 0
    %6112 = vmatpush1.bf16.msra.mxu0 0
    %6113 = vmatprep.subr.bf16.mxu0 0
    %6114 = vmatpush1.bf16.msra.mxu0 0
    %6115 = vmatprep.subr.bf16.mxu0 0
    %6116 = vmatpush1.bf16.msra.mxu0 0
    %6117 = vmatprep.subr.bf16.mxu0 0
    %6118 = vmatpush1.bf16.msra.mxu0 0
    %6119 = vmatprep.subr.bf16.mxu0 0
    %6120 = vmatpush1.bf16.msra.mxu0 0
    %6121 = vmatprep.subr.bf16.mxu0 0
    %6122 = vmatpush1.bf16.msra.mxu0 0
    %6123 = vmatprep.subr.bf16.mxu0 0
    %6124 = vmatpush1.bf16.msra.mxu0 0
    %6125 = vmatprep.subr.bf16.mxu0 0
    %6126 = vmatpush1.bf16.msra.mxu0 0
    %6127 = vmatprep.mubr.bf16.mxu0 0
    %6128 = vmatmul.mubr.bf16.gmra.mrb[0].mxu0 %v5921
    %v6129 = vpop.f32.mrb[0].mxu0
    %v6130 = vadd.f32 %v6089, %v6129
    %v6131 = vpop.f32.mrb[0].mxu0
    %v6132 = vadd.f32 %v6091, %v6131
    %v6133 = vpop.f32.mrb[0].mxu0
    %v6134 = vpop.f32.mrb[0].mxu0
    %6135 = vdwg.mxu0
    %v6136 = vmax.f32 %v6130, 0.0
    %v6137 = vmax.f32 %v6132, 0.0
    %v6138 = vpack.c.bf16 %v6136, %v6136
    %v6139 = vpack.c.bf16 %v6137, %v6137
    %6140 = vst.msk [vmem:[#allocation7] sm:$0xf] %vm3759, %v6138
    %v6142 = vrot.slane %v6138, 4
    %6143 = vrot.lane.b32.xlu0 %v6142, 64
    %v6144 = vpop.permute.xlu0 %6143
    %vm6146 = vcmask 523268
    %6147 = vst.msk [vmem:[#allocation7] sm:$0xf0] %vm6146, %v6144
    %6148 = vst.msk [vmem:[#allocation7 + $0x8] sm:$0xf] %vm3759, %v6139
    %v6150 = vrot.slane %v6139, 4
    %6151 = vrot.lane.b32.xlu0 %v6150, 64
    %v6152 = vpop.permute.xlu0 %6151
    %6154 = vst.msk [vmem:[#allocation7 + $0x8] sm:$0xf0] %vm6146, %v6152
    %v6155 = vld [vmem:[#allocation7] sm:$0xff]
    %v6156 = vld [vmem:[#allocation7 + $0x8] sm:$0xff]
    %v6157 = vld [vmem:[%s21] sm:$0xf]
    %v6158 = vld [vmem:[%s21 + $0x4] sm:$0xf]
    %v6159 = vld [vmem:[%s21 + $0x8] sm:$0xf]
    %v6160 = vld [vmem:[%s21 + $0xc] sm:$0xf]
    %v6161 = vld [vmem:[%s21 + $0x10] sm:$0xf]
    %v6162 = vld [vmem:[%s21 + $0x14] sm:$0xf]
    %v6163 = vld [vmem:[%s21 + $0x18] sm:$0xf]
    %v6164 = vld [vmem:[%s21 + $0x1c] sm:$0xf]
    %v6165 = vld [vmem:[%s21 + $0x20] sm:$0xf]
    %v6166 = vld [vmem:[%s21 + $0x24] sm:$0xf]
    %v6167 = vld [vmem:[%s21 + $0x28] sm:$0xf]
    %v6168 = vld [vmem:[%s21 + $0x2c] sm:$0xf]
    %v6169 = vld [vmem:[%s21 + $0x30] sm:$0xf]
    %v6170 = vld [vmem:[%s21 + $0x34] sm:$0xf]
    %v6171 = vld [vmem:[%s21 + $0x38] sm:$0xf]
    %v6172 = vld [vmem:[%s21 + $0x3c] sm:$0xf]
    %v6173 = vld [vmem:[%s21 + $0x40] sm:$0xf]
    %v6174 = vld [vmem:[%s21 + $0x44] sm:$0xf]
    %v6175 = vld [vmem:[%s21 + $0x48] sm:$0xf]
    %v6176 = vld [vmem:[%s21 + $0x4c] sm:$0xf]
    %v6177 = vld [vmem:[%s21 + $0x50] sm:$0xf]
    %v6178 = vld [vmem:[%s21 + $0x54] sm:$0xf]
    %v6179 = vld [vmem:[%s21 + $0x58] sm:$0xf]
    %v6180 = vld [vmem:[%s21 + $0x5c] sm:$0xf]
    %v6181 = vld [vmem:[%s21 + $0x60] sm:$0xf]
    %v6182 = vld [vmem:[%s21 + $0x64] sm:$0xf]
    %v6183 = vld [vmem:[%s21 + $0x68] sm:$0xf]
    %v6184 = vld [vmem:[%s21 + $0x6c] sm:$0xf]
    %v6185 = vld [vmem:[%s21 + $0x70] sm:$0xf]
    %v6186 = vld [vmem:[%s21 + $0x74] sm:$0xf]
    %v6187 = vld [vmem:[%s21 + $0x78] sm:$0xf]
    %v6188 = vld [vmem:[%s21 + $0x7c] sm:$0xf]
    %v6189 = vld [vmem:[%s21 + $0x80] sm:$0xf]
    %v6190 = vld [vmem:[%s21 + $0x84] sm:$0xf]
    %v6191 = vld [vmem:[%s21 + $0x88] sm:$0xf]
    %v6192 = vld [vmem:[%s21 + $0x8c] sm:$0xf]
    %v6229 = vunpack.c.l.b16 %v6157
    %v6230 = vunpack.c.l.b16 %v6158
    %v6231 = vunpack.c.l.b16 %v6159
    %v6232 = vunpack.c.l.b16 %v6160
    %v6233 = vunpack.c.l.b16 %v6161
    %v6234 = vunpack.c.l.b16 %v6162
    %v6235 = vunpack.c.l.b16 %v6163
    %v6236 = vunpack.c.l.b16 %v6164
    %v6237 = vunpack.c.l.b16 %v6165
    %v6238 = vunpack.c.l.b16 %v6166
    %v6239 = vunpack.c.l.b16 %v6167
    %v6240 = vunpack.c.l.b16 %v6168
    %v6241 = vunpack.c.l.b16 %v6169
    %v6242 = vunpack.c.l.b16 %v6170
    %v6243 = vunpack.c.l.b16 %v6171
    %v6244 = vunpack.c.l.b16 %v6172
    %v6245 = vunpack.c.l.b16 %v6173
    %v6246 = vunpack.c.l.b16 %v6174
    %v6247 = vunpack.c.l.b16 %v6175
    %v6248 = vunpack.c.l.b16 %v6176
    %v6249 = vunpack.c.l.b16 %v6177
    %v6250 = vunpack.c.l.b16 %v6178
    %v6251 = vunpack.c.l.b16 %v6179
    %v6252 = vunpack.c.l.b16 %v6180
    %v6253 = vunpack.c.l.b16 %v6181
    %v6254 = vunpack.c.l.b16 %v6182
    %v6255 = vunpack.c.l.b16 %v6183
    %v6256 = vunpack.c.l.b16 %v6184
    %v6257 = vunpack.c.l.b16 %v6185
    %v6258 = vunpack.c.l.b16 %v6186
    %v6259 = vunpack.c.l.b16 %v6187
    %v6260 = vunpack.c.l.b16 %v6188
    %v6261 = vunpack.c.l.b16 %v6189
    %v6262 = vunpack.c.l.b16 %v6190
    %v6263 = vunpack.c.l.b16 %v6191
    %v6264 = vunpack.c.l.b16 %v6192
    %v6265 = vpack.c.b16 %v6230, %v6229
    %v6266 = vpack.c.b16 %v6232, %v6231
    %v6267 = vpack.c.b16 %v6234, %v6233
    %v6268 = vpack.c.b16 %v6236, %v6235
    %v6269 = vpack.c.b16 %v6238, %v6237
    %v6270 = vpack.c.b16 %v6240, %v6239
    %v6271 = vpack.c.b16 %v6242, %v6241
    %v6272 = vpack.c.b16 %v6244, %v6243
    %v6273 = vpack.c.b16 %v6246, %v6245
    %v6274 = vpack.c.b16 %v6248, %v6247
    %v6275 = vpack.c.b16 %v6250, %v6249
    %v6276 = vpack.c.b16 %v6252, %v6251
    %v6277 = vpack.c.b16 %v6254, %v6253
    %v6278 = vpack.c.b16 %v6256, %v6255
    %v6279 = vpack.c.b16 %v6258, %v6257
    %v6280 = vpack.c.b16 %v6260, %v6259
    %v6281 = vpack.c.b16 %v6262, %v6261
    %v6282 = vpack.c.b16 %v6264, %v6263
    %v6284 = vsel %vm3067, %v6265, 0
    %v6287 = vsel %vm3067, %v6266, 0
    %v6290 = vsel %vm3067, %v6267, 0
    %v6293 = vsel %vm3067, %v6268, 0
    %v6296 = vsel %vm3067, %v6269, 0
    %v6299 = vsel %vm3067, %v6270, 0
    %v6302 = vsel %vm3067, %v6271, 0
    %v6305 = vsel %vm3067, %v6272, 0
    %v6308 = vsel %vm3067, %v6273, 0
    %v6311 = vsel %vm3067, %v6274, 0
    %v6314 = vsel %vm3067, %v6275, 0
    %v6317 = vsel %vm3067, %v6276, 0
    %v6320 = vsel %vm3067, %v6277, 0
    %v6323 = vsel %vm3067, %v6278, 0
    %v6326 = vsel %vm3067, %v6279, 0
    %v6329 = vsel %vm3067, %v6280, 0
    %v6332 = vsel %vm3067, %v6281, 0
    %v6335 = vsel %vm3067, %v6282, 0
    %6337 = vmatprep.subr.bf16.mxu0 0
    %6338 = vmatpush1.bf16.msra.mxu0 %v6155
    %6339 = vmatprep.subr.bf16.mxu0 0
    %6340 = vmatpush1.bf16.msra.mxu0 %v6156
    %6341 = vmatprep.subr.bf16.mxu0 0
    %6342 = vmatpush1.bf16.msra.mxu0 0
    %6343 = vmatprep.subr.bf16.mxu0 0
    %6344 = vmatpush1.bf16.msra.mxu0 0
    %6345 = vmatprep.subr.bf16.mxu0 0
    %6346 = vmatpush1.bf16.msra.mxu0 0
    %6347 = vmatprep.subr.bf16.mxu0 0
    %6348 = vmatpush1.bf16.msra.mxu0 0
    %6349 = vmatprep.subr.bf16.mxu0 0
    %6350 = vmatpush1.bf16.msra.mxu0 0
    %6351 = vmatprep.subr.bf16.mxu0 0
    %6352 = vmatpush1.bf16.msra.mxu0 0
    %6353 = vmatprep.subr.bf16.mxu0 0
    %6354 = vmatpush1.bf16.msra.mxu0 0
    %6355 = vmatprep.subr.bf16.mxu0 0
    %6356 = vmatpush1.bf16.msra.mxu0 0
    %6357 = vmatprep.subr.bf16.mxu0 0
    %6358 = vmatpush1.bf16.msra.mxu0 0
    %6359 = vmatprep.subr.bf16.mxu0 0
    %6360 = vmatpush1.bf16.msra.mxu0 0
    %6361 = vmatprep.subr.bf16.mxu0 0
    %6362 = vmatpush1.bf16.msra.mxu0 0
    %6363 = vmatprep.subr.bf16.mxu0 0
    %6364 = vmatpush1.bf16.msra.mxu0 0
    %6365 = vmatprep.subr.bf16.mxu0 0
    %6366 = vmatpush1.bf16.msra.mxu0 0
    %6367 = vmatprep.subr.bf16.mxu0 0
    %6368 = vmatpush1.bf16.msra.mxu0 0
    %6369 = vmatprep.mubr.bf16.mxu0 0
    %6370 = vmatmul.mubr.bf16.gmra.mrb[0].mxu0 %v6284
    %v6371 = vpop.f32.mrb[0].mxu0
    %v6372 = vadd.f32 0.0, %v6371
    %v6373 = vpop.f32.mrb[0].mxu0
    %v6374 = vpop.f32.mrb[0].mxu0
    %v6375 = vadd.f32 0.0, %v6374
    %v6376 = vpop.f32.mrb[0].mxu0
    %6377 = vmatprep.mubr.bf16.mxu0 0
    %6378 = vmatmul.mubr.bf16.gmra.mrb[0].mxu0 %v6287
    %v6379 = vpop.f32.mrb[0].mxu0
    %v6380 = vadd.f32 0.0, %v6379
    %v6381 = vpop.f32.mrb[0].mxu0
    %v6382 = vpop.f32.mrb[0].mxu0
    %v6383 = vadd.f32 0.0, %v6382
    %v6384 = vpop.f32.mrb[0].mxu0
    %6385 = vmatprep.mubr.bf16.mxu0 0
    %6386 = vmatmul.mubr.bf16.gmra.mrb[0].mxu0 %v6290
    %v6387 = vpop.f32.mrb[0].mxu0
    %v6388 = vadd.f32 0.0, %v6387
    %v6389 = vpop.f32.mrb[0].mxu0
    %v6390 = vpop.f32.mrb[0].mxu0
    %v6391 = vadd.f32 0.0, %v6390
    %v6392 = vpop.f32.mrb[0].mxu0
    %6393 = vmatprep.mubr.bf16.mxu0 0
    %6394 = vmatmul.mubr.bf16.gmra.mrb[0].mxu0 %v6293
    %v6395 = vpop.f32.mrb[0].mxu0
    %v6396 = vadd.f32 0.0, %v6395
    %v6397 = vpop.f32.mrb[0].mxu0
    %v6398 = vpop.f32.mrb[0].mxu0
    %v6399 = vadd.f32 0.0, %v6398
    %v6400 = vpop.f32.mrb[0].mxu0
    %6401 = vmatprep.mubr.bf16.mxu0 0
    %6402 = vmatmul.mubr.bf16.gmra.mrb[0].mxu0 %v6296
    %v6403 = vpop.f32.mrb[0].mxu0
    %v6404 = vadd.f32 0.0, %v6403
    %v6405 = vpop.f32.mrb[0].mxu0
    %v6406 = vpop.f32.mrb[0].mxu0
    %v6407 = vadd.f32 0.0, %v6406
    %v6408 = vpop.f32.mrb[0].mxu0
    %6409 = vmatprep.mubr.bf16.mxu0 0
    %6410 = vmatmul.mubr.bf16.gmra.mrb[0].mxu0 %v6299
    %v6411 = vpop.f32.mrb[0].mxu0
    %v6412 = vadd.f32 0.0, %v6411
    %v6413 = vpop.f32.mrb[0].mxu0
    %v6414 = vpop.f32.mrb[0].mxu0
    %v6415 = vadd.f32 0.0, %v6414
    %v6416 = vpop.f32.mrb[0].mxu0
    %6417 = vmatprep.mubr.bf16.mxu0 0
    %6418 = vmatmul.mubr.bf16.gmra.mrb[0].mxu0 %v6302
    %v6419 = vpop.f32.mrb[0].mxu0
    %v6420 = vadd.f32 0.0, %v6419
    %v6421 = vpop.f32.mrb[0].mxu0
    %v6422 = vpop.f32.mrb[0].mxu0
    %v6423 = vadd.f32 0.0, %v6422
    %v6424 = vpop.f32.mrb[0].mxu0
    %6425 = vmatprep.mubr.bf16.mxu0 0
    %6426 = vmatmul.mubr.bf16.gmra.mrb[0].mxu0 %v6305
    %v6427 = vpop.f32.mrb[0].mxu0
    %v6428 = vadd.f32 0.0, %v6427
    %v6429 = vpop.f32.mrb[0].mxu0
    %v6430 = vpop.f32.mrb[0].mxu0
    %v6431 = vadd.f32 0.0, %v6430
    %v6432 = vpop.f32.mrb[0].mxu0
    %6433 = vmatprep.mubr.bf16.mxu0 0
    %6434 = vmatmul.mubr.bf16.gmra.mrb[0].mxu0 %v6308
    %v6435 = vpop.f32.mrb[0].mxu0
    %v6436 = vadd.f32 0.0, %v6435
    %v6437 = vpop.f32.mrb[0].mxu0
    %v6438 = vpop.f32.mrb[0].mxu0
    %v6439 = vadd.f32 0.0, %v6438
    %v6440 = vpop.f32.mrb[0].mxu0
    %6441 = vmatprep.mubr.bf16.mxu0 0
    %6442 = vmatmul.mubr.bf16.gmra.mrb[0].mxu0 %v6311
    %v6443 = vpop.f32.mrb[0].mxu0
    %v6444 = vadd.f32 0.0, %v6443
    %v6445 = vpop.f32.mrb[0].mxu0
    %v6446 = vpop.f32.mrb[0].mxu0
    %v6447 = vadd.f32 0.0, %v6446
    %v6448 = vpop.f32.mrb[0].mxu0
    %6449 = vmatprep.mubr.bf16.mxu0 0
    %6450 = vmatmul.mubr.bf16.gmra.mrb[0].mxu0 %v6314
    %v6451 = vpop.f32.mrb[0].mxu0
    %v6452 = vadd.f32 0.0, %v6451
    %v6453 = vpop.f32.mrb[0].mxu0
    %v6454 = vpop.f32.mrb[0].mxu0
    %v6455 = vadd.f32 0.0, %v6454
    %v6456 = vpop.f32.mrb[0].mxu0
    %6457 = vmatprep.mubr.bf16.mxu0 0
    %6458 = vmatmul.mubr.bf16.gmra.mrb[0].mxu0 %v6317
    %v6459 = vpop.f32.mrb[0].mxu0
    %v6460 = vadd.f32 0.0, %v6459
    %v6461 = vpop.f32.mrb[0].mxu0
    %v6462 = vpop.f32.mrb[0].mxu0
    %v6463 = vadd.f32 0.0, %v6462
    %v6464 = vpop.f32.mrb[0].mxu0
    %6465 = vmatprep.mubr.bf16.mxu0 0
    %6466 = vmatmul.mubr.bf16.gmra.mrb[0].mxu0 %v6320
    %v6467 = vpop.f32.mrb[0].mxu0
    %v6468 = vadd.f32 0.0, %v6467
    %v6469 = vpop.f32.mrb[0].mxu0
    %v6470 = vpop.f32.mrb[0].mxu0
    %v6471 = vadd.f32 0.0, %v6470
    %v6472 = vpop.f32.mrb[0].mxu0
    %6473 = vmatprep.mubr.bf16.mxu0 0
    %6474 = vmatmul.mubr.bf16.gmra.mrb[0].mxu0 %v6323
    %v6475 = vpop.f32.mrb[0].mxu0
    %v6476 = vadd.f32 0.0, %v6475
    %v6477 = vpop.f32.mrb[0].mxu0
    %v6478 = vpop.f32.mrb[0].mxu0
    %v6479 = vadd.f32 0.0, %v6478
    %v6480 = vpop.f32.mrb[0].mxu0
    %6481 = vmatprep.mubr.bf16.mxu0 0
    %6482 = vmatmul.mubr.bf16.gmra.mrb[0].mxu0 %v6326
    %v6483 = vpop.f32.mrb[0].mxu0
    %v6484 = vadd.f32 0.0, %v6483
    %v6485 = vpop.f32.mrb[0].mxu0
    %v6486 = vpop.f32.mrb[0].mxu0
    %v6487 = vadd.f32 0.0, %v6486
    %v6488 = vpop.f32.mrb[0].mxu0
    %6489 = vmatprep.mubr.bf16.mxu0 0
    %6490 = vmatmul.mubr.bf16.gmra.mrb[0].mxu0 %v6329
    %v6491 = vpop.f32.mrb[0].mxu0
    %v6492 = vadd.f32 0.0, %v6491
    %v6493 = vpop.f32.mrb[0].mxu0
    %v6494 = vpop.f32.mrb[0].mxu0
    %v6495 = vadd.f32 0.0, %v6494
    %v6496 = vpop.f32.mrb[0].mxu0
    %6497 = vmatprep.mubr.bf16.mxu0 0
    %6498 = vmatmul.mubr.bf16.gmra.mrb[0].mxu0 %v6332
    %v6499 = vpop.f32.mrb[0].mxu0
    %v6500 = vadd.f32 0.0, %v6499
    %v6501 = vpop.f32.mrb[0].mxu0
    %v6502 = vpop.f32.mrb[0].mxu0
    %v6503 = vadd.f32 0.0, %v6502
    %v6504 = vpop.f32.mrb[0].mxu0
    %6505 = vmatprep.mubr.bf16.mxu0 0
    %6506 = vmatmul.mubr.bf16.gmra.mrb[0].mxu0 %v6335
    %v6507 = vpop.f32.mrb[0].mxu0
    %v6508 = vadd.f32 0.0, %v6507
    %v6509 = vpop.f32.mrb[0].mxu0
    %v6510 = vpop.f32.mrb[0].mxu0
    %v6511 = vadd.f32 0.0, %v6510
    %v6512 = vpop.f32.mrb[0].mxu0
    %6513 = vdwg.mxu0
    %v6514 = vpack.c.bf16 %v6375, %v6372
    %v6515 = vpack.c.bf16 %v6383, %v6380
    %v6516 = vpack.c.bf16 %v6391, %v6388
    %v6517 = vpack.c.bf16 %v6399, %v6396
    %v6518 = vpack.c.bf16 %v6407, %v6404
    %v6519 = vpack.c.bf16 %v6415, %v6412
    %v6520 = vpack.c.bf16 %v6423, %v6420
    %v6521 = vpack.c.bf16 %v6431, %v6428
    %v6522 = vpack.c.bf16 %v6439, %v6436
    %v6523 = vpack.c.bf16 %v6447, %v6444
    %v6524 = vpack.c.bf16 %v6455, %v6452
    %v6525 = vpack.c.bf16 %v6463, %v6460
    %v6526 = vpack.c.bf16 %v6471, %v6468
    %v6527 = vpack.c.bf16 %v6479, %v6476
    %v6528 = vpack.c.bf16 %v6487, %v6484
    %v6529 = vpack.c.bf16 %v6495, %v6492
    %v6530 = vpack.c.bf16 %v6503, %v6500
    %v6531 = vpack.c.bf16 %v6511, %v6508
    %vm6532 = vcmask 523264
    %6533 = vst.msk [vmem:[#allocation8] sm:$0xff] %vm6532, %v6514
    %6534 = vst.msk [vmem:[#allocation8 + $0x28] sm:$0xff] %vm6532, %v6515
    %6537 = vrot.lane.b32.xlu0 %v6516, 64
    %v6538 = vpop.permute.xlu0 %6537
    %6539 = vrot.lane.b32.xlu0 %v6517, 64
    %v6540 = vpop.permute.xlu0 %6539
    %vm6543 = vcmask 1048064
    %6544 = vst.msk [vmem:[#allocation8] sm:$0xff] %vm6543, %v6538
    %6545 = vst.msk [vmem:[#allocation8 + $0x28] sm:$0xff] %vm6543, %v6540
    %6546 = vst.msk [vmem:[#allocation8 + $0x8] sm:$0xff] %vm6532, %v6518
    %6547 = vst.msk [vmem:[#allocation8 + $0x30] sm:$0xff] %vm6532, %v6519
    %6550 = vrot.lane.b32.xlu0 %v6520, 64
    %v6551 = vpop.permute.xlu0 %6550
    %6552 = vrot.lane.b32.xlu0 %v6521, 64
    %v6553 = vpop.permute.xlu0 %6552
    %6556 = vst.msk [vmem:[#allocation8 + $0x8] sm:$0xff] %vm6543, %v6551
    %6557 = vst.msk [vmem:[#allocation8 + $0x30] sm:$0xff] %vm6543, %v6553
    %6558 = vst.msk [vmem:[#allocation8 + $0x10] sm:$0xff] %vm6532, %v6522
    %6559 = vst.msk [vmem:[#allocation8 + $0x38] sm:$0xff] %vm6532, %v6523
    %6562 = vrot.lane.b32.xlu0 %v6524, 64
    %v6563 = vpop.permute.xlu0 %6562
    %6564 = vrot.lane.b32.xlu0 %v6525, 64
    %v6565 = vpop.permute.xlu0 %6564
    %6568 = vst.msk [vmem:[#allocation8 + $0x10] sm:$0xff] %vm6543, %v6563
    %6569 = vst.msk [vmem:[#allocation8 + $0x38] sm:$0xff] %vm6543, %v6565
    %6570 = vst.msk [vmem:[#allocation8 + $0x18] sm:$0xff] %vm6532, %v6526
    %6571 = vst.msk [vmem:[#allocation8 + $0x40] sm:$0xff] %vm6532, %v6527
    %6574 = vrot.lane.b32.xlu0 %v6528, 64
    %v6575 = vpop.permute.xlu0 %6574
    %6576 = vrot.lane.b32.xlu0 %v6529, 64
    %v6577 = vpop.permute.xlu0 %6576
    %6580 = vst.msk [vmem:[#allocation8 + $0x18] sm:$0xff] %vm6543, %v6575
    %6581 = vst.msk [vmem:[#allocation8 + $0x40] sm:$0xff] %vm6543, %v6577
    %6582 = vst.msk [vmem:[#allocation8 + $0x20] sm:$0xff] %vm6532, %v6530
    %6583 = vst.msk [vmem:[#allocation8 + $0x48] sm:$0xff] %vm6532, %v6531
    %v6584 = vld [vmem:[#allocation8] sm:$0xff]
    %v6585 = vld [vmem:[#allocation8 + $0x8] sm:$0xff]
    %v6586 = vld [vmem:[#allocation8 + $0x10] sm:$0xff]
    %v6587 = vld [vmem:[#allocation8 + $0x18] sm:$0xff]
    %v6588 = vld [vmem:[#allocation8 + $0x20] sm:$0xff]
    %v6589 = vld [vmem:[#allocation8 + $0x28] sm:$0xff]
    %v6590 = vld [vmem:[#allocation8 + $0x30] sm:$0xff]
    %v6591 = vld [vmem:[#allocation8 + $0x38] sm:$0xff]
    %v6592 = vld [vmem:[#allocation8 + $0x40] sm:$0xff]
    %v6593 = vld [vmem:[#allocation8 + $0x48] sm:$0xff]
    %s6594 = smul.u32 4, 72
    %s6595 = smul.u32 %s6594, 1
    %s6596 = sshll.u32 %s6595, 4
    %6597 = dma.done %s1959, %s6596
    %v6598 = vld [vmem:[#allocation13] sm:$0xff]
    %v6599 = vld [vmem:[#allocation13 + $0x8] sm:$0xff]
    %v6600 = vld [vmem:[#allocation13 + $0x10] sm:$0xff]
    %v6601 = vld [vmem:[#allocation13 + $0x18] sm:$0xff]
    %v6602 = vld [vmem:[#allocation13 + $0x20] sm:$0xff]
    %v6603 = vld [vmem:[#allocation13 + $0x28] sm:$0xff]
    %v6604 = vld [vmem:[#allocation13 + $0x30] sm:$0xff]
    %v6605 = vld [vmem:[#allocation13 + $0x38] sm:$0xff]
    %v6606 = vld [vmem:[#allocation13 + $0x40] sm:$0xff]
    %v6607 = vld [vmem:[#allocation13 + $0x48] sm:$0xff]
    %v6608 = vld [vmem:[#allocation13 + $0x50] sm:$0xff]
    %v6609 = vld [vmem:[#allocation13 + $0x58] sm:$0xff]
    %v6610 = vld [vmem:[#allocation13 + $0x60] sm:$0xff]
    %v6611 = vld [vmem:[#allocation13 + $0x68] sm:$0xff]
    %v6612 = vld [vmem:[#allocation13 + $0x70] sm:$0xff]
    %v6613 = vld [vmem:[#allocation13 + $0x78] sm:$0xff]
    %v6614 = vld [vmem:[#allocation13 + $0x80] sm:$0xff]
    %v6615 = vld [vmem:[#allocation13 + $0x88] sm:$0xff]
    %v6616 = vld [vmem:[#allocation13 + $0x90] sm:$0xff]
    %v6617 = vld [vmem:[#allocation13 + $0x98] sm:$0xff]
    %v6618 = vld [vmem:[#allocation13 + $0xa0] sm:$0xff]
    %v6619 = vld [vmem:[#allocation13 + $0xa8] sm:$0xff]
    %v6620 = vld [vmem:[#allocation13 + $0xb0] sm:$0xff]
    %v6621 = vld [vmem:[#allocation13 + $0xb8] sm:$0xff]
    %v6622 = vld [vmem:[#allocation13 + $0xc0] sm:$0xff]
    %v6623 = vld [vmem:[#allocation13 + $0xc8] sm:$0xff]
    %v6624 = vld [vmem:[#allocation13 + $0xd0] sm:$0xff]
    %v6625 = vld [vmem:[#allocation13 + $0xd8] sm:$0xff]
    %v6626 = vld [vmem:[#allocation13 + $0xe0] sm:$0xff]
    %v6627 = vld [vmem:[#allocation13 + $0xe8] sm:$0xff]
    %v6628 = vld [vmem:[#allocation13 + $0xf0] sm:$0xff]
    %v6629 = vld [vmem:[#allocation13 + $0xf8] sm:$0xff]
    %v6630 = vld [vmem:[#allocation13 + $0x100] sm:$0xff]
    %v6631 = vld [vmem:[#allocation13 + $0x108] sm:$0xff]
    %v6632 = vld [vmem:[#allocation13 + $0x110] sm:$0xff]
    %v6633 = vld [vmem:[#allocation13 + $0x118] sm:$0xff]
    %v6634 = vld [vmem:[#allocation30] sm:$0x1]
    %v6636 = vlaneseq
    %v6637 = vshrl.u32 %v6636, 7
    %v6638 = vsub.s32 0, %v6637
    %v6639 = vrot.slane %v6634, %v6638
    %v6642 = vsel %vm6532, %v6588, 0
    %v6645 = vsel %vm6532, %v6593, 0
    %6647 = vmatprep.subr.bf16.mxu0 0
    %6648 = vmatpush1.bf16.msra.mxu0 %v6598
    %6649 = vmatprep.subr.bf16.mxu0 0
    %6650 = vmatpush1.bf16.msra.mxu0 %v6599
    %6651 = vmatprep.subr.bf16.mxu0 0
    %6652 = vmatpush1.bf16.msra.mxu0 %v6600
    %6653 = vmatprep.subr.bf16.mxu0 0
    %6654 = vmatpush1.bf16.msra.mxu0 %v6601
    %6655 = vmatprep.subr.bf16.mxu0 0
    %6656 = vmatpush1.bf16.msra.mxu0 %v6602
    %6657 = vmatprep.subr.bf16.mxu0 0
    %6658 = vmatpush1.bf16.msra.mxu0 %v6603
    %6659 = vmatprep.subr.bf16.mxu0 0
    %6660 = vmatpush1.bf16.msra.mxu0 %v6604
    %6661 = vmatprep.subr.bf16.mxu0 0
    %6662 = vmatpush1.bf16.msra.mxu0 %v6605
    %6663 = vmatprep.subr.bf16.mxu0 0
    %6664 = vmatpush1.bf16.msra.mxu0 %v6606
    %6665 = vmatprep.subr.bf16.mxu0 0
    %6666 = vmatpush1.bf16.msra.mxu0 %v6607
    %6667 = vmatprep.subr.bf16.mxu0 0
    %6668 = vmatpush1.bf16.msra.mxu0 %v6608
    %6669 = vmatprep.subr.bf16.mxu0 0
    %6670 = vmatpush1.bf16.msra.mxu0 %v6609
    %6671 = vmatprep.subr.bf16.mxu0 0
    %6672 = vmatpush1.bf16.msra.mxu0 %v6610
    %6673 = vmatprep.subr.bf16.mxu0 0
    %6674 = vmatpush1.bf16.msra.mxu0 %v6611
    %6675 = vmatprep.subr.bf16.mxu0 0
    %6676 = vmatpush1.bf16.msra.mxu0 %v6612
    %6677 = vmatprep.subr.bf16.mxu0 0
    %6678 = vmatpush1.bf16.msra.mxu0 %v6613
    %6679 = vmatprep.mubr.bf16.mxu0 %v6585
    %6680 = vmatmul.mubr.bf16.gmra.mrb[0].mxu0 %v6584
    %v6681 = vpop.f32.mrb[0].mxu0
    %v6682 = vadd.f32 %v6639, %v6681
    %v6683 = vpop.f32.mrb[0].mxu0
    %v6684 = vpop.f32.mrb[0].mxu0
    %v6685 = vadd.f32 %v6639, %v6684
    %v6686 = vpop.f32.mrb[0].mxu0
    %6687 = vmatprep.mubr.bf16.mxu0 %v6590
    %6688 = vmatmul.mubr.bf16.gmra.mrb[0].mxu0 %v6589
    %v6689 = vpop.f32.mrb[0].mxu0
    %v6690 = vadd.f32 %v6639, %v6689
    %v6691 = vpop.f32.mrb[0].mxu0
    %v6692 = vpop.f32.mrb[0].mxu0
    %v6693 = vadd.f32 %v6639, %v6692
    %v6694 = vpop.f32.mrb[0].mxu0
    %6695 = vdwg.mxu0
    %6696 = vmatprep.subr.bf16.mxu0 0
    %6697 = vmatpush1.bf16.msra.mxu0 %v6614
    %6698 = vmatprep.subr.bf16.mxu0 0
    %6699 = vmatpush1.bf16.msra.mxu0 %v6615
    %6700 = vmatprep.subr.bf16.mxu0 0
    %6701 = vmatpush1.bf16.msra.mxu0 %v6616
    %6702 = vmatprep.subr.bf16.mxu0 0
    %6703 = vmatpush1.bf16.msra.mxu0 %v6617
    %6704 = vmatprep.subr.bf16.mxu0 0
    %6705 = vmatpush1.bf16.msra.mxu0 %v6618
    %6706 = vmatprep.subr.bf16.mxu0 0
    %6707 = vmatpush1.bf16.msra.mxu0 %v6619
    %6708 = vmatprep.subr.bf16.mxu0 0
    %6709 = vmatpush1.bf16.msra.mxu0 %v6620
    %6710 = vmatprep.subr.bf16.mxu0 0
    %6711 = vmatpush1.bf16.msra.mxu0 %v6621
    %6712 = vmatprep.subr.bf16.mxu0 0
    %6713 = vmatpush1.bf16.msra.mxu0 %v6622
    %6714 = vmatprep.subr.bf16.mxu0 0
    %6715 = vmatpush1.bf16.msra.mxu0 %v6623
    %6716 = vmatprep.subr.bf16.mxu0 0
    %6717 = vmatpush1.bf16.msra.mxu0 %v6624
    %6718 = vmatprep.subr.bf16.mxu0 0
    %6719 = vmatpush1.bf16.msra.mxu0 %v6625
    %6720 = vmatprep.subr.bf16.mxu0 0
    %6721 = vmatpush1.bf16.msra.mxu0 %v6626
    %6722 = vmatprep.subr.bf16.mxu0 0
    %6723 = vmatpush1.bf16.msra.mxu0 %v6627
    %6724 = vmatprep.subr.bf16.mxu0 0
    %6725 = vmatpush1.bf16.msra.mxu0 %v6628
    %6726 = vmatprep.subr.bf16.mxu0 0
    %6727 = vmatpush1.bf16.msra.mxu0 %v6629
    %6728 = vmatprep.mubr.bf16.mxu0 %v6587
    %6729 = vmatmul.mubr.bf16.gmra.mrb[0].mxu0 %v6586
    %v6730 = vpop.f32.mrb[0].mxu0
    %v6731 = vadd.f32 %v6682, %v6730
    %v6732 = vpop.f32.mrb[0].mxu0
    %v6733 = vpop.f32.mrb[0].mxu0
    %v6734 = vadd.f32 %v6685, %v6733
    %v6735 = vpop.f32.mrb[0].mxu0
    %6736 = vmatprep.mubr.bf16.mxu0 %v6592
    %6737 = vmatmul.mubr.bf16.gmra.mrb[0].mxu0 %v6591
    %v6738 = vpop.f32.mrb[0].mxu0
    %v6739 = vadd.f32 %v6690, %v6738
    %v6740 = vpop.f32.mrb[0].mxu0
    %v6741 = vpop.f32.mrb[0].mxu0
    %v6742 = vadd.f32 %v6693, %v6741
    %v6743 = vpop.f32.mrb[0].mxu0
    %6744 = vdwg.mxu0
    %6745 = vmatprep.subr.bf16.mxu0 0
    %6746 = vmatpush1.bf16.msra.mxu0 %v6630
    %6747 = vmatprep.subr.bf16.mxu0 0
    %6748 = vmatpush1.bf16.msra.mxu0 %v6631
    %6749 = vmatprep.subr.bf16.mxu0 0
    %6750 = vmatpush1.bf16.msra.mxu0 %v6632
    %6751 = vmatprep.subr.bf16.mxu0 0
    %6752 = vmatpush1.bf16.msra.mxu0 %v6633
    %6753 = vmatprep.subr.bf16.mxu0 0
    %6754 = vmatpush1.bf16.msra.mxu0 0
    %6755 = vmatprep.subr.bf16.mxu0 0
    %6756 = vmatpush1.bf16.msra.mxu0 0
    %6757 = vmatprep.subr.bf16.mxu0 0
    %6758 = vmatpush1.bf16.msra.mxu0 0
    %6759 = vmatprep.subr.bf16.mxu0 0
    %6760 = vmatpush1.bf16.msra.mxu0 0
    %6761 = vmatprep.subr.bf16.mxu0 0
    %6762 = vmatpush1.bf16.msra.mxu0 0
    %6763 = vmatprep.subr.bf16.mxu0 0
    %6764 = vmatpush1.bf16.msra.mxu0 0
    %6765 = vmatprep.subr.bf16.mxu0 0
    %6766 = vmatpush1.bf16.msra.mxu0 0
    %6767 = vmatprep.subr.bf16.mxu0 0
    %6768 = vmatpush1.bf16.msra.mxu0 0
    %6769 = vmatprep.subr.bf16.mxu0 0
    %6770 = vmatpush1.bf16.msra.mxu0 0
    %6771 = vmatprep.subr.bf16.mxu0 0
    %6772 = vmatpush1.bf16.msra.mxu0 0
    %6773 = vmatprep.subr.bf16.mxu0 0
    %6774 = vmatpush1.bf16.msra.mxu0 0
    %6775 = vmatprep.subr.bf16.mxu0 0
    %6776 = vmatpush1.bf16.msra.mxu0 0
    %6777 = vmatprep.mubr.bf16.mxu0 0
    %6778 = vmatmul.mubr.bf16.gmra.mrb[0].mxu0 %v6642
    %v6779 = vpop.f32.mrb[0].mxu0
    %v6780 = vadd.f32 %v6731, %v6779
    %v6781 = vpop.f32.mrb[0].mxu0
    %v6782 = vpop.f32.mrb[0].mxu0
    %v6783 = vadd.f32 %v6734, %v6782
    %v6784 = vpop.f32.mrb[0].mxu0
    %6785 = vmatprep.mubr.bf16.mxu0 0
    %6786 = vmatmul.mubr.bf16.gmra.mrb[0].mxu0 %v6645
    %v6787 = vpop.f32.mrb[0].mxu0
    %v6788 = vadd.f32 %v6739, %v6787
    %v6789 = vpop.f32.mrb[0].mxu0
    %v6790 = vpop.f32.mrb[0].mxu0
    %v6791 = vadd.f32 %v6742, %v6790
    %v6792 = vpop.f32.mrb[0].mxu0
    %6793 = vdwg.mxu0
    %v6794 = vmax.f32 %v6780, 0.0
    %v6795 = vmax.f32 %v6783, 0.0
    %v6796 = vmax.f32 %v6788, 0.0
    %v6797 = vmax.f32 %v6791, 0.0
    %v6798 = vpack.c.bf16 %v6795, %v6794
    %v6799 = vpack.c.bf16 %v6797, %v6796
    %6800 = vst.msk [vmem:[#allocation9] sm:$0xff] %vm3067, %v6798
    %6801 = vst.msk [vmem:[#allocation9 + $0x8] sm:$0xff] %vm3067, %v6799
    %6804 = vrot.lane.b32.xlu0 %v6798, 96
    %v6805 = vpop.permute.xlu0 %6804
    %6806 = vrot.lane.b32.xlu0 %v6799, 96
    %v6807 = vpop.permute.xlu0 %6806
    %6810 = vst.msk [vmem:[#allocation9 + $0x10] sm:$0xff] %vm3067, %v6805
    %6811 = vst.msk [vmem:[#allocation9 + $0x18] sm:$0xff] %vm3067, %v6807
    %6812 = vrot.lane.b32.xlu0 %v6798, 64
    %v6813 = vpop.permute.xlu0 %6812
    %6814 = vrot.lane.b32.xlu0 %v6799, 64
    %v6815 = vpop.permute.xlu0 %6814
    %6818 = vst.msk [vmem:[#allocation9 + $0x20] sm:$0xff] %vm3067, %v6813
    %6819 = vst.msk [vmem:[#allocation9 + $0x28] sm:$0xff] %vm3067, %v6815
    %6820 = vrot.lane.b32.xlu0 %v6798, 32
    %v6821 = vpop.permute.xlu0 %6820
    %6822 = vrot.lane.b32.xlu0 %v6799, 32
    %v6823 = vpop.permute.xlu0 %6822
    %6826 = vst.msk [vmem:[#allocation9 + $0x30] sm:$0xff] %vm3067, %v6821
    %6827 = vst.msk [vmem:[#allocation9 + $0x38] sm:$0xff] %vm3067, %v6823
    %v6828 = vld [vmem:[#allocation9] sm:$0xff]
    %v6829 = vld [vmem:[#allocation9 + $0x8] sm:$0xff]
    %v6830 = vld [vmem:[#allocation9 + $0x10] sm:$0xff]
    %v6831 = vld [vmem:[#allocation9 + $0x18] sm:$0xff]
    %v6832 = vld [vmem:[#allocation9 + $0x20] sm:$0xff]
    %v6833 = vld [vmem:[#allocation9 + $0x28] sm:$0xff]
    %v6834 = vld [vmem:[#allocation9 + $0x30] sm:$0xff]
    %v6835 = vld [vmem:[#allocation9 + $0x38] sm:$0xff]
    %s6836 = smul.u32 %s5739, 1
    %s6837 = sshll.u32 %s6836, 4
    %6838 = dma.done %s2072, %s6837
    %v6839 = vld [vmem:[#allocation14] sm:$0xff]
    %v6840 = vld [vmem:[#allocation14 + $0x8] sm:$0xff]
    %v6841 = vld [vmem:[#allocation14 + $0x10] sm:$0xff]
    %v6842 = vld [vmem:[#allocation14 + $0x18] sm:$0xff]
    %v6843 = vld [vmem:[#allocation14 + $0x20] sm:$0xff]
    %v6844 = vld [vmem:[#allocation14 + $0x28] sm:$0xff]
    %v6845 = vld [vmem:[#allocation14 + $0x30] sm:$0xff]
    %v6846 = vld [vmem:[#allocation14 + $0x38] sm:$0xff]
    %v6847 = vld [vmem:[#allocation14 + $0x40] sm:$0xff]
    %v6848 = vld [vmem:[#allocation14 + $0x48] sm:$0xff]
    %v6849 = vld [vmem:[#allocation14 + $0x50] sm:$0xff]
    %v6850 = vld [vmem:[#allocation14 + $0x58] sm:$0xff]
    %v6851 = vld [vmem:[#allocation14 + $0x60] sm:$0xff]
    %v6852 = vld [vmem:[#allocation14 + $0x68] sm:$0xff]
    %v6853 = vld [vmem:[#allocation14 + $0x70] sm:$0xff]
    %v6854 = vld [vmem:[#allocation14 + $0x78] sm:$0xff]
    %v6855 = vld [vmem:[#allocation14 + $0x80] sm:$0xff]
    %v6856 = vld [vmem:[#allocation14 + $0x88] sm:$0xff]
    %v6857 = vld [vmem:[#allocation14 + $0x90] sm:$0xff]
    %v6858 = vld [vmem:[#allocation14 + $0x98] sm:$0xff]
    %v6859 = vld [vmem:[#allocation14 + $0xa0] sm:$0xff]
    %v6860 = vld [vmem:[#allocation14 + $0xa8] sm:$0xff]
    %v6861 = vld [vmem:[#allocation14 + $0xb0] sm:$0xff]
    %v6862 = vld [vmem:[#allocation14 + $0xb8] sm:$0xff]
    %v6863 = vld [vmem:[#allocation14 + $0xc0] sm:$0xff]
    %v6864 = vld [vmem:[#allocation14 + $0xc8] sm:$0xff]
    %v6865 = vld [vmem:[#allocation14 + $0xd0] sm:$0xff]
    %v6866 = vld [vmem:[#allocation14 + $0xd8] sm:$0xff]
    %v6867 = vld [vmem:[#allocation14 + $0xe0] sm:$0xff]
    %v6868 = vld [vmem:[#allocation14 + $0xe8] sm:$0xff]
    %v6869 = vld [vmem:[#allocation14 + $0xf0] sm:$0xff]
    %v6870 = vld [vmem:[#allocation14 + $0xf8] sm:$0xff]
    %v6871 = vld [vmem:[#allocation14 + $0x100] sm:$0xff]
    %v6872 = vld [vmem:[#allocation14 + $0x108] sm:$0xff]
    %v6873 = vld [vmem:[#allocation14 + $0x110] sm:$0xff]
    %v6874 = vld [vmem:[#allocation14 + $0x118] sm:$0xff]
    %v6875 = vld [vmem:[#allocation14 + $0x120] sm:$0xff]
    %v6876 = vld [vmem:[#allocation14 + $0x128] sm:$0xff]
    %v6877 = vld [vmem:[#allocation14 + $0x130] sm:$0xff]
    %v6878 = vld [vmem:[#allocation14 + $0x138] sm:$0xff]
    %v6879 = vld [vmem:[#allocation14 + $0x140] sm:$0xff]
    %v6880 = vld [vmem:[#allocation14 + $0x148] sm:$0xff]
    %v6881 = vld [vmem:[#allocation14 + $0x150] sm:$0xff]
    %v6882 = vld [vmem:[#allocation14 + $0x158] sm:$0xff]
    %v6883 = vld [vmem:[#allocation14 + $0x160] sm:$0xff]
    %v6884 = vld [vmem:[#allocation14 + $0x168] sm:$0xff]
    %v6885 = vld [vmem:[#allocation14 + $0x170] sm:$0xff]
    %v6886 = vld [vmem:[#allocation14 + $0x178] sm:$0xff]
    %v6887 = vld [vmem:[#allocation14 + $0x180] sm:$0xff]
    %v6888 = vld [vmem:[#allocation14 + $0x188] sm:$0xff]
    %v6889 = vld [vmem:[#allocation14 + $0x190] sm:$0xff]
    %v6890 = vld [vmem:[#allocation14 + $0x198] sm:$0xff]
    %v6891 = vld [vmem:[#allocation14 + $0x1a0] sm:$0xff]
    %v6892 = vld [vmem:[#allocation14 + $0x1a8] sm:$0xff]
    %v6893 = vld [vmem:[#allocation14 + $0x1b0] sm:$0xff]
    %v6894 = vld [vmem:[#allocation14 + $0x1b8] sm:$0xff]
    %v6895 = vld [vmem:[#allocation14 + $0x1c0] sm:$0xff]
    %v6896 = vld [vmem:[#allocation14 + $0x1c8] sm:$0xff]
    %v6897 = vld [vmem:[#allocation14 + $0x1d0] sm:$0xff]
    %v6898 = vld [vmem:[#allocation14 + $0x1d8] sm:$0xff]
    %v6899 = vld [vmem:[#allocation14 + $0x1e0] sm:$0xff]
    %v6900 = vld [vmem:[#allocation14 + $0x1e8] sm:$0xff]
    %v6901 = vld [vmem:[#allocation14 + $0x1f0] sm:$0xff]
    %v6902 = vld [vmem:[#allocation14 + $0x1f8] sm:$0xff]
    %v6903 = vld [vmem:[#allocation14 + $0x200] sm:$0xff]
    %v6904 = vld [vmem:[#allocation14 + $0x208] sm:$0xff]
    %v6905 = vld [vmem:[#allocation14 + $0x210] sm:$0xff]
    %v6906 = vld [vmem:[#allocation14 + $0x218] sm:$0xff]
    %v6907 = vld [vmem:[#allocation14 + $0x220] sm:$0xff]
    %v6908 = vld [vmem:[#allocation14 + $0x228] sm:$0xff]
    %v6909 = vld [vmem:[#allocation14 + $0x230] sm:$0xff]
    %v6910 = vld [vmem:[#allocation14 + $0x238] sm:$0xff]
    %6911 = vmatprep.subr.bf16.mxu0 0
    %6912 = vmatpush1.bf16.msra.mxu0 %v6828
    %6913 = vmatprep.subr.bf16.mxu0 0
    %6914 = vmatpush1.bf16.msra.mxu0 %v6829
    %6915 = vmatprep.subr.bf16.mxu0 0
    %6916 = vmatpush1.bf16.msra.mxu0 %v6830
    %6917 = vmatprep.subr.bf16.mxu0 0
    %6918 = vmatpush1.bf16.msra.mxu0 %v6831
    %6919 = vmatprep.subr.bf16.mxu0 0
    %6920 = vmatpush1.bf16.msra.mxu0 %v6832
    %6921 = vmatprep.subr.bf16.mxu0 0
    %6922 = vmatpush1.bf16.msra.mxu0 %v6833
    %6923 = vmatprep.subr.bf16.mxu0 0
    %6924 = vmatpush1.bf16.msra.mxu0 %v6834
    %6925 = vmatprep.subr.bf16.mxu0 0
    %6926 = vmatpush1.bf16.msra.mxu0 %v6835
    %6927 = vmatprep.subr.bf16.mxu0 0
    %6928 = vmatpush1.bf16.msra.mxu0 0
    %6929 = vmatprep.subr.bf16.mxu0 0
    %6930 = vmatpush1.bf16.msra.mxu0 0
    %6931 = vmatprep.subr.bf16.mxu0 0
    %6932 = vmatpush1.bf16.msra.mxu0 0
    %6933 = vmatprep.subr.bf16.mxu0 0
    %6934 = vmatpush1.bf16.msra.mxu0 0
    %6935 = vmatprep.subr.bf16.mxu0 0
    %6936 = vmatpush1.bf16.msra.mxu0 0
    %6937 = vmatprep.subr.bf16.mxu0 0
    %6938 = vmatpush1.bf16.msra.mxu0 0
    %6939 = vmatprep.subr.bf16.mxu0 0
    %6940 = vmatpush1.bf16.msra.mxu0 0
    %6941 = vmatprep.subr.bf16.mxu0 0
    %6942 = vmatpush1.bf16.msra.mxu0 0
    %6943 = vmatprep.mubr.bf16.mxu0 0
    %6944 = vmatmul.mubr.bf16.gmra.mrb[0].mxu0 %v6839
    %v6945 = vpop.f32.mrb[0].mxu0
    %v6946 = vadd.f32 0.0, %v6945
    %v6947 = vpop.f32.mrb[0].mxu0
    %v6948 = vpop.f32.mrb[0].mxu0
    %v6949 = vadd.f32 0.0, %v6948
    %v6950 = vpop.f32.mrb[0].mxu0
    %6951 = vmatprep.mubr.bf16.mxu0 0
    %6952 = vmatmul.mubr.bf16.gmra.mrb[0].mxu0 %v6840
    %v6953 = vpop.f32.mrb[0].mxu0
    %v6954 = vadd.f32 0.0, %v6953
    %v6955 = vpop.f32.mrb[0].mxu0
    %v6956 = vpop.f32.mrb[0].mxu0
    %v6957 = vadd.f32 0.0, %v6956
    %v6958 = vpop.f32.mrb[0].mxu0
    %6959 = vmatprep.mubr.bf16.mxu0 0
    %6960 = vmatmul.mubr.bf16.gmra.mrb[0].mxu0 %v6841
    %v6961 = vpop.f32.mrb[0].mxu0
    %v6962 = vadd.f32 0.0, %v6961
    %v6963 = vpop.f32.mrb[0].mxu0
    %v6964 = vpop.f32.mrb[0].mxu0
    %v6965 = vadd.f32 0.0, %v6964
    %v6966 = vpop.f32.mrb[0].mxu0
    %6967 = vmatprep.mubr.bf16.mxu0 0
    %6968 = vmatmul.mubr.bf16.gmra.mrb[0].mxu0 %v6842
    %v6969 = vpop.f32.mrb[0].mxu0
    %v6970 = vadd.f32 0.0, %v6969
    %v6971 = vpop.f32.mrb[0].mxu0
    %v6972 = vpop.f32.mrb[0].mxu0
    %v6973 = vadd.f32 0.0, %v6972
    %v6974 = vpop.f32.mrb[0].mxu0
    %6975 = vmatprep.mubr.bf16.mxu0 0
    %6976 = vmatmul.mubr.bf16.gmra.mrb[0].mxu0 %v6843
    %v6977 = vpop.f32.mrb[0].mxu0
    %v6978 = vadd.f32 0.0, %v6977
    %v6979 = vpop.f32.mrb[0].mxu0
    %v6980 = vpop.f32.mrb[0].mxu0
    %v6981 = vadd.f32 0.0, %v6980
    %v6982 = vpop.f32.mrb[0].mxu0
    %6983 = vmatprep.mubr.bf16.mxu0 0
    %6984 = vmatmul.mubr.bf16.gmra.mrb[0].mxu0 %v6844
    %v6985 = vpop.f32.mrb[0].mxu0
    %v6986 = vadd.f32 0.0, %v6985
    %v6987 = vpop.f32.mrb[0].mxu0
    %v6988 = vpop.f32.mrb[0].mxu0
    %v6989 = vadd.f32 0.0, %v6988
    %v6990 = vpop.f32.mrb[0].mxu0
    %6991 = vmatprep.mubr.bf16.mxu0 0
    %6992 = vmatmul.mubr.bf16.gmra.mrb[0].mxu0 %v6845
    %v6993 = vpop.f32.mrb[0].mxu0
    %v6994 = vadd.f32 0.0, %v6993
    %v6995 = vpop.f32.mrb[0].mxu0
    %v6996 = vpop.f32.mrb[0].mxu0
    %v6997 = vadd.f32 0.0, %v6996
    %v6998 = vpop.f32.mrb[0].mxu0
    %6999 = vmatprep.mubr.bf16.mxu0 0
    %7000 = vmatmul.mubr.bf16.gmra.mrb[0].mxu0 %v6846
    %v7001 = vpop.f32.mrb[0].mxu0
    %v7002 = vadd.f32 0.0, %v7001
    %v7003 = vpop.f32.mrb[0].mxu0
    %v7004 = vpop.f32.mrb[0].mxu0
    %v7005 = vadd.f32 0.0, %v7004
    %v7006 = vpop.f32.mrb[0].mxu0
    %7007 = vmatprep.mubr.bf16.mxu0 0
    %7008 = vmatmul.mubr.bf16.gmra.mrb[0].mxu0 %v6847
    %v7009 = vpop.f32.mrb[0].mxu0
    %v7010 = vadd.f32 0.0, %v7009
    %v7011 = vpop.f32.mrb[0].mxu0
    %v7012 = vpop.f32.mrb[0].mxu0
    %v7013 = vadd.f32 0.0, %v7012
    %v7014 = vpop.f32.mrb[0].mxu0
    %7015 = vmatprep.mubr.bf16.mxu0 0
    %7016 = vmatmul.mubr.bf16.gmra.mrb[0].mxu0 %v6848
    %v7017 = vpop.f32.mrb[0].mxu0
    %v7018 = vadd.f32 0.0, %v7017
    %v7019 = vpop.f32.mrb[0].mxu0
    %v7020 = vpop.f32.mrb[0].mxu0
    %v7021 = vadd.f32 0.0, %v7020
    %v7022 = vpop.f32.mrb[0].mxu0
    %7023 = vmatprep.mubr.bf16.mxu0 0
    %7024 = vmatmul.mubr.bf16.gmra.mrb[0].mxu0 %v6849
    %v7025 = vpop.f32.mrb[0].mxu0
    %v7026 = vadd.f32 0.0, %v7025
    %v7027 = vpop.f32.mrb[0].mxu0
    %v7028 = vpop.f32.mrb[0].mxu0
    %v7029 = vadd.f32 0.0, %v7028
    %v7030 = vpop.f32.mrb[0].mxu0
    %7031 = vmatprep.mubr.bf16.mxu0 0
    %7032 = vmatmul.mubr.bf16.gmra.mrb[0].mxu0 %v6850
    %v7033 = vpop.f32.mrb[0].mxu0
    %v7034 = vadd.f32 0.0, %v7033
    %v7035 = vpop.f32.mrb[0].mxu0
    %v7036 = vpop.f32.mrb[0].mxu0
    %v7037 = vadd.f32 0.0, %v7036
    %v7038 = vpop.f32.mrb[0].mxu0
    %7039 = vmatprep.mubr.bf16.mxu0 0
    %7040 = vmatmul.mubr.bf16.gmra.mrb[0].mxu0 %v6851
    %v7041 = vpop.f32.mrb[0].mxu0
    %v7042 = vadd.f32 0.0, %v7041
    %v7043 = vpop.f32.mrb[0].mxu0
    %v7044 = vpop.f32.mrb[0].mxu0
    %v7045 = vadd.f32 0.0, %v7044
    %v7046 = vpop.f32.mrb[0].mxu0
    %7047 = vmatprep.mubr.bf16.mxu0 0
    %7048 = vmatmul.mubr.bf16.gmra.mrb[0].mxu0 %v6852
    %v7049 = vpop.f32.mrb[0].mxu0
    %v7050 = vadd.f32 0.0, %v7049
    %v7051 = vpop.f32.mrb[0].mxu0
    %v7052 = vpop.f32.mrb[0].mxu0
    %v7053 = vadd.f32 0.0, %v7052
    %v7054 = vpop.f32.mrb[0].mxu0
    %7055 = vmatprep.mubr.bf16.mxu0 0
    %7056 = vmatmul.mubr.bf16.gmra.mrb[0].mxu0 %v6853
    %v7057 = vpop.f32.mrb[0].mxu0
    %v7058 = vadd.f32 0.0, %v7057
    %v7059 = vpop.f32.mrb[0].mxu0
    %v7060 = vpop.f32.mrb[0].mxu0
    %v7061 = vadd.f32 0.0, %v7060
    %v7062 = vpop.f32.mrb[0].mxu0
    %7063 = vmatprep.mubr.bf16.mxu0 0
    %7064 = vmatmul.mubr.bf16.gmra.mrb[0].mxu0 %v6854
    %v7065 = vpop.f32.mrb[0].mxu0
    %v7066 = vadd.f32 0.0, %v7065
    %v7067 = vpop.f32.mrb[0].mxu0
    %v7068 = vpop.f32.mrb[0].mxu0
    %v7069 = vadd.f32 0.0, %v7068
    %v7070 = vpop.f32.mrb[0].mxu0
    %7071 = vmatprep.mubr.bf16.mxu0 0
    %7072 = vmatmul.mubr.bf16.gmra.mrb[0].mxu0 %v6855
    %v7073 = vpop.f32.mrb[0].mxu0
    %v7074 = vadd.f32 0.0, %v7073
    %v7075 = vpop.f32.mrb[0].mxu0
    %v7076 = vpop.f32.mrb[0].mxu0
    %v7077 = vadd.f32 0.0, %v7076
    %v7078 = vpop.f32.mrb[0].mxu0
    %7079 = vmatprep.mubr.bf16.mxu0 0
    %7080 = vmatmul.mubr.bf16.gmra.mrb[0].mxu0 %v6856
    %v7081 = vpop.f32.mrb[0].mxu0
    %v7082 = vadd.f32 0.0, %v7081
    %v7083 = vpop.f32.mrb[0].mxu0
    %v7084 = vpop.f32.mrb[0].mxu0
    %v7085 = vadd.f32 0.0, %v7084
    %v7086 = vpop.f32.mrb[0].mxu0
    %7087 = vmatprep.mubr.bf16.mxu0 0
    %7088 = vmatmul.mubr.bf16.gmra.mrb[0].mxu0 %v6857
    %v7089 = vpop.f32.mrb[0].mxu0
    %v7090 = vadd.f32 0.0, %v7089
    %v7091 = vpop.f32.mrb[0].mxu0
    %v7092 = vpop.f32.mrb[0].mxu0
    %v7093 = vadd.f32 0.0, %v7092
    %v7094 = vpop.f32.mrb[0].mxu0
    %7095 = vmatprep.mubr.bf16.mxu0 0
    %7096 = vmatmul.mubr.bf16.gmra.mrb[0].mxu0 %v6858
    %v7097 = vpop.f32.mrb[0].mxu0
    %v7098 = vadd.f32 0.0, %v7097
    %v7099 = vpop.f32.mrb[0].mxu0
    %v7100 = vpop.f32.mrb[0].mxu0
    %v7101 = vadd.f32 0.0, %v7100
    %v7102 = vpop.f32.mrb[0].mxu0
    %7103 = vmatprep.mubr.bf16.mxu0 0
    %7104 = vmatmul.mubr.bf16.gmra.mrb[0].mxu0 %v6859
    %v7105 = vpop.f32.mrb[0].mxu0
    %v7106 = vadd.f32 0.0, %v7105
    %v7107 = vpop.f32.mrb[0].mxu0
    %v7108 = vpop.f32.mrb[0].mxu0
    %v7109 = vadd.f32 0.0, %v7108
    %v7110 = vpop.f32.mrb[0].mxu0
    %7111 = vmatprep.mubr.bf16.mxu0 0
    %7112 = vmatmul.mubr.bf16.gmra.mrb[0].mxu0 %v6860
    %v7113 = vpop.f32.mrb[0].mxu0
    %v7114 = vadd.f32 0.0, %v7113
    %v7115 = vpop.f32.mrb[0].mxu0
    %v7116 = vpop.f32.mrb[0].mxu0
    %v7117 = vadd.f32 0.0, %v7116
    %v7118 = vpop.f32.mrb[0].mxu0
    %7119 = vmatprep.mubr.bf16.mxu0 0
    %7120 = vmatmul.mubr.bf16.gmra.mrb[0].mxu0 %v6861
    %v7121 = vpop.f32.mrb[0].mxu0
    %v7122 = vadd.f32 0.0, %v7121
    %v7123 = vpop.f32.mrb[0].mxu0
    %v7124 = vpop.f32.mrb[0].mxu0
    %v7125 = vadd.f32 0.0, %v7124
    %v7126 = vpop.f32.mrb[0].mxu0
    %7127 = vmatprep.mubr.bf16.mxu0 0
    %7128 = vmatmul.mubr.bf16.gmra.mrb[0].mxu0 %v6862
    %v7129 = vpop.f32.mrb[0].mxu0
    %v7130 = vadd.f32 0.0, %v7129
    %v7131 = vpop.f32.mrb[0].mxu0
    %v7132 = vpop.f32.mrb[0].mxu0
    %v7133 = vadd.f32 0.0, %v7132
    %v7134 = vpop.f32.mrb[0].mxu0
    %7135 = vmatprep.mubr.bf16.mxu0 0
    %7136 = vmatmul.mubr.bf16.gmra.mrb[0].mxu0 %v6863
    %v7137 = vpop.f32.mrb[0].mxu0
    %v7138 = vadd.f32 0.0, %v7137
    %v7139 = vpop.f32.mrb[0].mxu0
    %v7140 = vpop.f32.mrb[0].mxu0
    %v7141 = vadd.f32 0.0, %v7140
    %v7142 = vpop.f32.mrb[0].mxu0
    %7143 = vmatprep.mubr.bf16.mxu0 0
    %7144 = vmatmul.mubr.bf16.gmra.mrb[0].mxu0 %v6864
    %v7145 = vpop.f32.mrb[0].mxu0
    %v7146 = vadd.f32 0.0, %v7145
    %v7147 = vpop.f32.mrb[0].mxu0
    %v7148 = vpop.f32.mrb[0].mxu0
    %v7149 = vadd.f32 0.0, %v7148
    %v7150 = vpop.f32.mrb[0].mxu0
    %7151 = vmatprep.mubr.bf16.mxu0 0
    %7152 = vmatmul.mubr.bf16.gmra.mrb[0].mxu0 %v6865
    %v7153 = vpop.f32.mrb[0].mxu0
    %v7154 = vadd.f32 0.0, %v7153
    %v7155 = vpop.f32.mrb[0].mxu0
    %v7156 = vpop.f32.mrb[0].mxu0
    %v7157 = vadd.f32 0.0, %v7156
    %v7158 = vpop.f32.mrb[0].mxu0
    %7159 = vmatprep.mubr.bf16.mxu0 0
    %7160 = vmatmul.mubr.bf16.gmra.mrb[0].mxu0 %v6866
    %v7161 = vpop.f32.mrb[0].mxu0
    %v7162 = vadd.f32 0.0, %v7161
    %v7163 = vpop.f32.mrb[0].mxu0
    %v7164 = vpop.f32.mrb[0].mxu0
    %v7165 = vadd.f32 0.0, %v7164
    %v7166 = vpop.f32.mrb[0].mxu0
    %7167 = vmatprep.mubr.bf16.mxu0 0
    %7168 = vmatmul.mubr.bf16.gmra.mrb[0].mxu0 %v6867
    %v7169 = vpop.f32.mrb[0].mxu0
    %v7170 = vadd.f32 0.0, %v7169
    %v7171 = vpop.f32.mrb[0].mxu0
    %v7172 = vpop.f32.mrb[0].mxu0
    %v7173 = vadd.f32 0.0, %v7172
    %v7174 = vpop.f32.mrb[0].mxu0
    %7175 = vmatprep.mubr.bf16.mxu0 0
    %7176 = vmatmul.mubr.bf16.gmra.mrb[0].mxu0 %v6868
    %v7177 = vpop.f32.mrb[0].mxu0
    %v7178 = vadd.f32 0.0, %v7177
    %v7179 = vpop.f32.mrb[0].mxu0
    %v7180 = vpop.f32.mrb[0].mxu0
    %v7181 = vadd.f32 0.0, %v7180
    %v7182 = vpop.f32.mrb[0].mxu0
    %7183 = vmatprep.mubr.bf16.mxu0 0
    %7184 = vmatmul.mubr.bf16.gmra.mrb[0].mxu0 %v6869
    %v7185 = vpop.f32.mrb[0].mxu0
    %v7186 = vadd.f32 0.0, %v7185
    %v7187 = vpop.f32.mrb[0].mxu0
    %v7188 = vpop.f32.mrb[0].mxu0
    %v7189 = vadd.f32 0.0, %v7188
    %v7190 = vpop.f32.mrb[0].mxu0
    %7191 = vmatprep.mubr.bf16.mxu0 0
    %7192 = vmatmul.mubr.bf16.gmra.mrb[0].mxu0 %v6870
    %v7193 = vpop.f32.mrb[0].mxu0
    %v7194 = vadd.f32 0.0, %v7193
    %v7195 = vpop.f32.mrb[0].mxu0
    %v7196 = vpop.f32.mrb[0].mxu0
    %v7197 = vadd.f32 0.0, %v7196
    %v7198 = vpop.f32.mrb[0].mxu0
    %7199 = vmatprep.mubr.bf16.mxu0 0
    %7200 = vmatmul.mubr.bf16.gmra.mrb[0].mxu0 %v6871
    %v7201 = vpop.f32.mrb[0].mxu0
    %v7202 = vadd.f32 0.0, %v7201
    %v7203 = vpop.f32.mrb[0].mxu0
    %v7204 = vpop.f32.mrb[0].mxu0
    %v7205 = vadd.f32 0.0, %v7204
    %v7206 = vpop.f32.mrb[0].mxu0
    %7207 = vmatprep.mubr.bf16.mxu0 0
    %7208 = vmatmul.mubr.bf16.gmra.mrb[0].mxu0 %v6872
    %v7209 = vpop.f32.mrb[0].mxu0
    %v7210 = vadd.f32 0.0, %v7209
    %v7211 = vpop.f32.mrb[0].mxu0
    %v7212 = vpop.f32.mrb[0].mxu0
    %v7213 = vadd.f32 0.0, %v7212
    %v7214 = vpop.f32.mrb[0].mxu0
    %7215 = vmatprep.mubr.bf16.mxu0 0
    %7216 = vmatmul.mubr.bf16.gmra.mrb[0].mxu0 %v6873
    %v7217 = vpop.f32.mrb[0].mxu0
    %v7218 = vadd.f32 0.0, %v7217
    %v7219 = vpop.f32.mrb[0].mxu0
    %v7220 = vpop.f32.mrb[0].mxu0
    %v7221 = vadd.f32 0.0, %v7220
    %v7222 = vpop.f32.mrb[0].mxu0
    %7223 = vmatprep.mubr.bf16.mxu0 0
    %7224 = vmatmul.mubr.bf16.gmra.mrb[0].mxu0 %v6874
    %v7225 = vpop.f32.mrb[0].mxu0
    %v7226 = vadd.f32 0.0, %v7225
    %v7227 = vpop.f32.mrb[0].mxu0
    %v7228 = vpop.f32.mrb[0].mxu0
    %v7229 = vadd.f32 0.0, %v7228
    %v7230 = vpop.f32.mrb[0].mxu0
    %7231 = vmatprep.mubr.bf16.mxu0 0
    %7232 = vmatmul.mubr.bf16.gmra.mrb[0].mxu0 %v6875
    %v7233 = vpop.f32.mrb[0].mxu0
    %v7234 = vadd.f32 0.0, %v7233
    %v7235 = vpop.f32.mrb[0].mxu0
    %v7236 = vpop.f32.mrb[0].mxu0
    %v7237 = vadd.f32 0.0, %v7236
    %v7238 = vpop.f32.mrb[0].mxu0
    %7239 = vmatprep.mubr.bf16.mxu0 0
    %7240 = vmatmul.mubr.bf16.gmra.mrb[0].mxu0 %v6876
    %v7241 = vpop.f32.mrb[0].mxu0
    %v7242 = vadd.f32 0.0, %v7241
    %v7243 = vpop.f32.mrb[0].mxu0
    %v7244 = vpop.f32.mrb[0].mxu0
    %v7245 = vadd.f32 0.0, %v7244
    %v7246 = vpop.f32.mrb[0].mxu0
    %7247 = vmatprep.mubr.bf16.mxu0 0
    %7248 = vmatmul.mubr.bf16.gmra.mrb[0].mxu0 %v6877
    %v7249 = vpop.f32.mrb[0].mxu0
    %v7250 = vadd.f32 0.0, %v7249
    %v7251 = vpop.f32.mrb[0].mxu0
    %v7252 = vpop.f32.mrb[0].mxu0
    %v7253 = vadd.f32 0.0, %v7252
    %v7254 = vpop.f32.mrb[0].mxu0
    %7255 = vmatprep.mubr.bf16.mxu0 0
    %7256 = vmatmul.mubr.bf16.gmra.mrb[0].mxu0 %v6878
    %v7257 = vpop.f32.mrb[0].mxu0
    %v7258 = vadd.f32 0.0, %v7257
    %v7259 = vpop.f32.mrb[0].mxu0
    %v7260 = vpop.f32.mrb[0].mxu0
    %v7261 = vadd.f32 0.0, %v7260
    %v7262 = vpop.f32.mrb[0].mxu0
    %7263 = vmatprep.mubr.bf16.mxu0 0
    %7264 = vmatmul.mubr.bf16.gmra.mrb[0].mxu0 %v6879
    %v7265 = vpop.f32.mrb[0].mxu0
    %v7266 = vadd.f32 0.0, %v7265
    %v7267 = vpop.f32.mrb[0].mxu0
    %v7268 = vpop.f32.mrb[0].mxu0
    %v7269 = vadd.f32 0.0, %v7268
    %v7270 = vpop.f32.mrb[0].mxu0
    %7271 = vmatprep.mubr.bf16.mxu0 0
    %7272 = vmatmul.mubr.bf16.gmra.mrb[0].mxu0 %v6880
    %v7273 = vpop.f32.mrb[0].mxu0
    %v7274 = vadd.f32 0.0, %v7273
    %v7275 = vpop.f32.mrb[0].mxu0
    %v7276 = vpop.f32.mrb[0].mxu0
    %v7277 = vadd.f32 0.0, %v7276
    %v7278 = vpop.f32.mrb[0].mxu0
    %7279 = vmatprep.mubr.bf16.mxu0 0
    %7280 = vmatmul.mubr.bf16.gmra.mrb[0].mxu0 %v6881
    %v7281 = vpop.f32.mrb[0].mxu0
    %v7282 = vadd.f32 0.0, %v7281
    %v7283 = vpop.f32.mrb[0].mxu0
    %v7284 = vpop.f32.mrb[0].mxu0
    %v7285 = vadd.f32 0.0, %v7284
    %v7286 = vpop.f32.mrb[0].mxu0
    %7287 = vmatprep.mubr.bf16.mxu0 0
    %7288 = vmatmul.mubr.bf16.gmra.mrb[0].mxu0 %v6882
    %v7289 = vpop.f32.mrb[0].mxu0
    %v7290 = vadd.f32 0.0, %v7289
    %v7291 = vpop.f32.mrb[0].mxu0
    %v7292 = vpop.f32.mrb[0].mxu0
    %v7293 = vadd.f32 0.0, %v7292
    %v7294 = vpop.f32.mrb[0].mxu0
    %7295 = vmatprep.mubr.bf16.mxu0 0
    %7296 = vmatmul.mubr.bf16.gmra.mrb[0].mxu0 %v6883
    %v7297 = vpop.f32.mrb[0].mxu0
    %v7298 = vadd.f32 0.0, %v7297
    %v7299 = vpop.f32.mrb[0].mxu0
    %v7300 = vpop.f32.mrb[0].mxu0
    %v7301 = vadd.f32 0.0, %v7300
    %v7302 = vpop.f32.mrb[0].mxu0
    %7303 = vmatprep.mubr.bf16.mxu0 0
    %7304 = vmatmul.mubr.bf16.gmra.mrb[0].mxu0 %v6884
    %v7305 = vpop.f32.mrb[0].mxu0
    %v7306 = vadd.f32 0.0, %v7305
    %v7307 = vpop.f32.mrb[0].mxu0
    %v7308 = vpop.f32.mrb[0].mxu0
    %v7309 = vadd.f32 0.0, %v7308
    %v7310 = vpop.f32.mrb[0].mxu0
    %7311 = vmatprep.mubr.bf16.mxu0 0
    %7312 = vmatmul.mubr.bf16.gmra.mrb[0].mxu0 %v6885
    %v7313 = vpop.f32.mrb[0].mxu0
    %v7314 = vadd.f32 0.0, %v7313
    %v7315 = vpop.f32.mrb[0].mxu0
    %v7316 = vpop.f32.mrb[0].mxu0
    %v7317 = vadd.f32 0.0, %v7316
    %v7318 = vpop.f32.mrb[0].mxu0
    %7319 = vmatprep.mubr.bf16.mxu0 0
    %7320 = vmatmul.mubr.bf16.gmra.mrb[0].mxu0 %v6886
    %v7321 = vpop.f32.mrb[0].mxu0
    %v7322 = vadd.f32 0.0, %v7321
    %v7323 = vpop.f32.mrb[0].mxu0
    %v7324 = vpop.f32.mrb[0].mxu0
    %v7325 = vadd.f32 0.0, %v7324
    %v7326 = vpop.f32.mrb[0].mxu0
    %7327 = vmatprep.mubr.bf16.mxu0 0
    %7328 = vmatmul.mubr.bf16.gmra.mrb[0].mxu0 %v6887
    %v7329 = vpop.f32.mrb[0].mxu0
    %v7330 = vadd.f32 0.0, %v7329
    %v7331 = vpop.f32.mrb[0].mxu0
    %v7332 = vpop.f32.mrb[0].mxu0
    %v7333 = vadd.f32 0.0, %v7332
    %v7334 = vpop.f32.mrb[0].mxu0
    %7335 = vmatprep.mubr.bf16.mxu0 0
    %7336 = vmatmul.mubr.bf16.gmra.mrb[0].mxu0 %v6888
    %v7337 = vpop.f32.mrb[0].mxu0
    %v7338 = vadd.f32 0.0, %v7337
    %v7339 = vpop.f32.mrb[0].mxu0
    %v7340 = vpop.f32.mrb[0].mxu0
    %v7341 = vadd.f32 0.0, %v7340
    %v7342 = vpop.f32.mrb[0].mxu0
    %7343 = vmatprep.mubr.bf16.mxu0 0
    %7344 = vmatmul.mubr.bf16.gmra.mrb[0].mxu0 %v6889
    %v7345 = vpop.f32.mrb[0].mxu0
    %v7346 = vadd.f32 0.0, %v7345
    %v7347 = vpop.f32.mrb[0].mxu0
    %v7348 = vpop.f32.mrb[0].mxu0
    %v7349 = vadd.f32 0.0, %v7348
    %v7350 = vpop.f32.mrb[0].mxu0
    %7351 = vmatprep.mubr.bf16.mxu0 0
    %7352 = vmatmul.mubr.bf16.gmra.mrb[0].mxu0 %v6890
    %v7353 = vpop.f32.mrb[0].mxu0
    %v7354 = vadd.f32 0.0, %v7353
    %v7355 = vpop.f32.mrb[0].mxu0
    %v7356 = vpop.f32.mrb[0].mxu0
    %v7357 = vadd.f32 0.0, %v7356
    %v7358 = vpop.f32.mrb[0].mxu0
    %7359 = vmatprep.mubr.bf16.mxu0 0
    %7360 = vmatmul.mubr.bf16.gmra.mrb[0].mxu0 %v6891
    %v7361 = vpop.f32.mrb[0].mxu0
    %v7362 = vadd.f32 0.0, %v7361
    %v7363 = vpop.f32.mrb[0].mxu0
    %v7364 = vpop.f32.mrb[0].mxu0
    %v7365 = vadd.f32 0.0, %v7364
    %v7366 = vpop.f32.mrb[0].mxu0
    %7367 = vmatprep.mubr.bf16.mxu0 0
    %7368 = vmatmul.mubr.bf16.gmra.mrb[0].mxu0 %v6892
    %v7369 = vpop.f32.mrb[0].mxu0
    %v7370 = vadd.f32 0.0, %v7369
    %v7371 = vpop.f32.mrb[0].mxu0
    %v7372 = vpop.f32.mrb[0].mxu0
    %v7373 = vadd.f32 0.0, %v7372
    %v7374 = vpop.f32.mrb[0].mxu0
    %7375 = vmatprep.mubr.bf16.mxu0 0
    %7376 = vmatmul.mubr.bf16.gmra.mrb[0].mxu0 %v6893
    %v7377 = vpop.f32.mrb[0].mxu0
    %v7378 = vadd.f32 0.0, %v7377
    %v7379 = vpop.f32.mrb[0].mxu0
    %v7380 = vpop.f32.mrb[0].mxu0
    %v7381 = vadd.f32 0.0, %v7380
    %v7382 = vpop.f32.mrb[0].mxu0
    %7383 = vmatprep.mubr.bf16.mxu0 0
    %7384 = vmatmul.mubr.bf16.gmra.mrb[0].mxu0 %v6894
    %v7385 = vpop.f32.mrb[0].mxu0
    %v7386 = vadd.f32 0.0, %v7385
    %v7387 = vpop.f32.mrb[0].mxu0
    %v7388 = vpop.f32.mrb[0].mxu0
    %v7389 = vadd.f32 0.0, %v7388
    %v7390 = vpop.f32.mrb[0].mxu0
    %7391 = vmatprep.mubr.bf16.mxu0 0
    %7392 = vmatmul.mubr.bf16.gmra.mrb[0].mxu0 %v6895
    %v7393 = vpop.f32.mrb[0].mxu0
    %v7394 = vadd.f32 0.0, %v7393
    %v7395 = vpop.f32.mrb[0].mxu0
    %v7396 = vpop.f32.mrb[0].mxu0
    %v7397 = vadd.f32 0.0, %v7396
    %v7398 = vpop.f32.mrb[0].mxu0
    %7399 = vmatprep.mubr.bf16.mxu0 0
    %7400 = vmatmul.mubr.bf16.gmra.mrb[0].mxu0 %v6896
    %v7401 = vpop.f32.mrb[0].mxu0
    %v7402 = vadd.f32 0.0, %v7401
    %v7403 = vpop.f32.mrb[0].mxu0
    %v7404 = vpop.f32.mrb[0].mxu0
    %v7405 = vadd.f32 0.0, %v7404
    %v7406 = vpop.f32.mrb[0].mxu0
    %7407 = vmatprep.mubr.bf16.mxu0 0
    %7408 = vmatmul.mubr.bf16.gmra.mrb[0].mxu0 %v6897
    %v7409 = vpop.f32.mrb[0].mxu0
    %v7410 = vadd.f32 0.0, %v7409
    %v7411 = vpop.f32.mrb[0].mxu0
    %v7412 = vpop.f32.mrb[0].mxu0
    %v7413 = vadd.f32 0.0, %v7412
    %v7414 = vpop.f32.mrb[0].mxu0
    %7415 = vmatprep.mubr.bf16.mxu0 0
    %7416 = vmatmul.mubr.bf16.gmra.mrb[0].mxu0 %v6898
    %v7417 = vpop.f32.mrb[0].mxu0
    %v7418 = vadd.f32 0.0, %v7417
    %v7419 = vpop.f32.mrb[0].mxu0
    %v7420 = vpop.f32.mrb[0].mxu0
    %v7421 = vadd.f32 0.0, %v7420
    %v7422 = vpop.f32.mrb[0].mxu0
    %7423 = vmatprep.mubr.bf16.mxu0 0
    %7424 = vmatmul.mubr.bf16.gmra.mrb[0].mxu0 %v6899
    %v7425 = vpop.f32.mrb[0].mxu0
    %v7426 = vadd.f32 0.0, %v7425
    %v7427 = vpop.f32.mrb[0].mxu0
    %v7428 = vpop.f32.mrb[0].mxu0
    %v7429 = vadd.f32 0.0, %v7428
    %v7430 = vpop.f32.mrb[0].mxu0
    %7431 = vmatprep.mubr.bf16.mxu0 0
    %7432 = vmatmul.mubr.bf16.gmra.mrb[0].mxu0 %v6900
    %v7433 = vpop.f32.mrb[0].mxu0
    %v7434 = vadd.f32 0.0, %v7433
    %v7435 = vpop.f32.mrb[0].mxu0
    %v7436 = vpop.f32.mrb[0].mxu0
    %v7437 = vadd.f32 0.0, %v7436
    %v7438 = vpop.f32.mrb[0].mxu0
    %7439 = vmatprep.mubr.bf16.mxu0 0
    %7440 = vmatmul.mubr.bf16.gmra.mrb[0].mxu0 %v6901
    %v7441 = vpop.f32.mrb[0].mxu0
    %v7442 = vadd.f32 0.0, %v7441
    %v7443 = vpop.f32.mrb[0].mxu0
    %v7444 = vpop.f32.mrb[0].mxu0
    %v7445 = vadd.f32 0.0, %v7444
    %v7446 = vpop.f32.mrb[0].mxu0
    %7447 = vmatprep.mubr.bf16.mxu0 0
    %7448 = vmatmul.mubr.bf16.gmra.mrb[0].mxu0 %v6902
    %v7449 = vpop.f32.mrb[0].mxu0
    %v7450 = vadd.f32 0.0, %v7449
    %v7451 = vpop.f32.mrb[0].mxu0
    %v7452 = vpop.f32.mrb[0].mxu0
    %v7453 = vadd.f32 0.0, %v7452
    %v7454 = vpop.f32.mrb[0].mxu0
    %7455 = vmatprep.mubr.bf16.mxu0 0
    %7456 = vmatmul.mubr.bf16.gmra.mrb[0].mxu0 %v6903
    %v7457 = vpop.f32.mrb[0].mxu0
    %v7458 = vadd.f32 0.0, %v7457
    %v7459 = vpop.f32.mrb[0].mxu0
    %v7460 = vpop.f32.mrb[0].mxu0
    %v7461 = vadd.f32 0.0, %v7460
    %v7462 = vpop.f32.mrb[0].mxu0
    %7463 = vmatprep.mubr.bf16.mxu0 0
    %7464 = vmatmul.mubr.bf16.gmra.mrb[0].mxu0 %v6904
    %v7465 = vpop.f32.mrb[0].mxu0
    %v7466 = vadd.f32 0.0, %v7465
    %v7467 = vpop.f32.mrb[0].mxu0
    %v7468 = vpop.f32.mrb[0].mxu0
    %v7469 = vadd.f32 0.0, %v7468
    %v7470 = vpop.f32.mrb[0].mxu0
    %7471 = vmatprep.mubr.bf16.mxu0 0
    %7472 = vmatmul.mubr.bf16.gmra.mrb[0].mxu0 %v6905
    %v7473 = vpop.f32.mrb[0].mxu0
    %v7474 = vadd.f32 0.0, %v7473
    %v7475 = vpop.f32.mrb[0].mxu0
    %v7476 = vpop.f32.mrb[0].mxu0
    %v7477 = vadd.f32 0.0, %v7476
    %v7478 = vpop.f32.mrb[0].mxu0
    %7479 = vmatprep.mubr.bf16.mxu0 0
    %7480 = vmatmul.mubr.bf16.gmra.mrb[0].mxu0 %v6906
    %v7481 = vpop.f32.mrb[0].mxu0
    %v7482 = vadd.f32 0.0, %v7481
    %v7483 = vpop.f32.mrb[0].mxu0
    %v7484 = vpop.f32.mrb[0].mxu0
    %v7485 = vadd.f32 0.0, %v7484
    %v7486 = vpop.f32.mrb[0].mxu0
    %7487 = vmatprep.mubr.bf16.mxu0 0
    %7488 = vmatmul.mubr.bf16.gmra.mrb[0].mxu0 %v6907
    %v7489 = vpop.f32.mrb[0].mxu0
    %v7490 = vadd.f32 0.0, %v7489
    %v7491 = vpop.f32.mrb[0].mxu0
    %v7492 = vpop.f32.mrb[0].mxu0
    %v7493 = vadd.f32 0.0, %v7492
    %v7494 = vpop.f32.mrb[0].mxu0
    %7495 = vmatprep.mubr.bf16.mxu0 0
    %7496 = vmatmul.mubr.bf16.gmra.mrb[0].mxu0 %v6908
    %v7497 = vpop.f32.mrb[0].mxu0
    %v7498 = vadd.f32 0.0, %v7497
    %v7499 = vpop.f32.mrb[0].mxu0
    %v7500 = vpop.f32.mrb[0].mxu0
    %v7501 = vadd.f32 0.0, %v7500
    %v7502 = vpop.f32.mrb[0].mxu0
    %7503 = vmatprep.mubr.bf16.mxu0 0
    %7504 = vmatmul.mubr.bf16.gmra.mrb[0].mxu0 %v6909
    %v7505 = vpop.f32.mrb[0].mxu0
    %v7506 = vadd.f32 0.0, %v7505
    %v7507 = vpop.f32.mrb[0].mxu0
    %v7508 = vpop.f32.mrb[0].mxu0
    %v7509 = vadd.f32 0.0, %v7508
    %v7510 = vpop.f32.mrb[0].mxu0
    %7511 = vmatprep.mubr.bf16.mxu0 0
    %7512 = vmatmul.mubr.bf16.gmra.mrb[0].mxu0 %v6910
    %v7513 = vpop.f32.mrb[0].mxu0
    %v7514 = vadd.f32 0.0, %v7513
    %v7515 = vpop.f32.mrb[0].mxu0
    %v7516 = vpop.f32.mrb[0].mxu0
    %v7517 = vadd.f32 0.0, %v7516
    %v7518 = vpop.f32.mrb[0].mxu0
    %7519 = vdwg.mxu0
    %v7520 = vpack.c.bf16 %v6949, %v6946
    %v7521 = vpack.c.bf16 %v6957, %v6954
    %v7522 = vpack.c.bf16 %v6965, %v6962
    %v7523 = vpack.c.bf16 %v6973, %v6970
    %v7524 = vpack.c.bf16 %v6981, %v6978
    %v7525 = vpack.c.bf16 %v6989, %v6986
    %v7526 = vpack.c.bf16 %v6997, %v6994
    %v7527 = vpack.c.bf16 %v7005, %v7002
    %v7528 = vpack.c.bf16 %v7013, %v7010
    %v7529 = vpack.c.bf16 %v7021, %v7018
    %v7530 = vpack.c.bf16 %v7029, %v7026
    %v7531 = vpack.c.bf16 %v7037, %v7034
    %v7532 = vpack.c.bf16 %v7045, %v7042
    %v7533 = vpack.c.bf16 %v7053, %v7050
    %v7534 = vpack.c.bf16 %v7061, %v7058
    %v7535 = vpack.c.bf16 %v7069, %v7066
    %v7536 = vpack.c.bf16 %v7077, %v7074
    %v7537 = vpack.c.bf16 %v7085, %v7082
    %v7538 = vpack.c.bf16 %v7093, %v7090
    %v7539 = vpack.c.bf16 %v7101, %v7098
    %v7540 = vpack.c.bf16 %v7109, %v7106
    %v7541 = vpack.c.bf16 %v7117, %v7114
    %v7542 = vpack.c.bf16 %v7125, %v7122
    %v7543 = vpack.c.bf16 %v7133, %v7130
    %v7544 = vpack.c.bf16 %v7141, %v7138
    %v7545 = vpack.c.bf16 %v7149, %v7146
    %v7546 = vpack.c.bf16 %v7157, %v7154
    %v7547 = vpack.c.bf16 %v7165, %v7162
    %v7548 = vpack.c.bf16 %v7173, %v7170
    %v7549 = vpack.c.bf16 %v7181, %v7178
    %v7550 = vpack.c.bf16 %v7189, %v7186
    %v7551 = vpack.c.bf16 %v7197, %v7194
    %v7552 = vpack.c.bf16 %v7205, %v7202
    %v7553 = vpack.c.bf16 %v7213, %v7210
    %v7554 = vpack.c.bf16 %v7221, %v7218
    %v7555 = vpack.c.bf16 %v7229, %v7226
    %v7556 = vpack.c.bf16 %v7237, %v7234
    %v7557 = vpack.c.bf16 %v7245, %v7242
    %v7558 = vpack.c.bf16 %v7253, %v7250
    %v7559 = vpack.c.bf16 %v7261, %v7258
    %v7560 = vpack.c.bf16 %v7269, %v7266
    %v7561 = vpack.c.bf16 %v7277, %v7274
    %v7562 = vpack.c.bf16 %v7285, %v7282
    %v7563 = vpack.c.bf16 %v7293, %v7290
    %v7564 = vpack.c.bf16 %v7301, %v7298
    %v7565 = vpack.c.bf16 %v7309, %v7306
    %v7566 = vpack.c.bf16 %v7317, %v7314
    %v7567 = vpack.c.bf16 %v7325, %v7322
    %v7568 = vpack.c.bf16 %v7333, %v7330
    %v7569 = vpack.c.bf16 %v7341, %v7338
    %v7570 = vpack.c.bf16 %v7349, %v7346
    %v7571 = vpack.c.bf16 %v7357, %v7354
    %v7572 = vpack.c.bf16 %v7365, %v7362
    %v7573 = vpack.c.bf16 %v7373, %v7370
    %v7574 = vpack.c.bf16 %v7381, %v7378
    %v7575 = vpack.c.bf16 %v7389, %v7386
    %v7576 = vpack.c.bf16 %v7397, %v7394
    %v7577 = vpack.c.bf16 %v7405, %v7402
    %v7578 = vpack.c.bf16 %v7413, %v7410
    %v7579 = vpack.c.bf16 %v7421, %v7418
    %v7580 = vpack.c.bf16 %v7429, %v7426
    %v7581 = vpack.c.bf16 %v7437, %v7434
    %v7582 = vpack.c.bf16 %v7445, %v7442
    %v7583 = vpack.c.bf16 %v7453, %v7450
    %v7584 = vpack.c.bf16 %v7461, %v7458
    %v7585 = vpack.c.bf16 %v7469, %v7466
    %v7586 = vpack.c.bf16 %v7477, %v7474
    %v7587 = vpack.c.bf16 %v7485, %v7482
    %v7588 = vpack.c.bf16 %v7493, %v7490
    %v7589 = vpack.c.bf16 %v7501, %v7498
    %v7590 = vpack.c.bf16 %v7509, %v7506
    %v7591 = vpack.c.bf16 %v7517, %v7514
    %7592 = vst.msk [vmem:[#allocation10] sm:$0xff] %vm3067, %v7520
    %7593 = vst.msk [vmem:[#allocation10 + $0x18] sm:$0xff] %vm3067, %v7521
    %7594 = vst.msk [vmem:[#allocation10 + $0x30] sm:$0xff] %vm3067, %v7522
    %7595 = vst.msk [vmem:[#allocation10 + $0x48] sm:$0xff] %vm3067, %v7523
    %7596 = vst.msk [vmem:[#allocation10 + $0x60] sm:$0xff] %vm3067, %v7524
    %7597 = vst.msk [vmem:[#allocation10 + $0x78] sm:$0xff] %vm3067, %v7525
    %7598 = vst.msk [vmem:[#allocation10 + $0x90] sm:$0xff] %vm3067, %v7526
    %7599 = vst.msk [vmem:[#allocation10 + $0xa8] sm:$0xff] %vm3067, %v7527
    %7608 = vrot.lane.b32.xlu0 %v7528, 32
    %v7609 = vpop.permute.xlu0 %7608
    %7610 = vrot.lane.b32.xlu0 %v7529, 32
    %v7611 = vpop.permute.xlu0 %7610
    %7612 = vrot.lane.b32.xlu0 %v7530, 32
    %v7613 = vpop.permute.xlu0 %7612
    %7614 = vrot.lane.b32.xlu0 %v7531, 32
    %v7615 = vpop.permute.xlu0 %7614
    %7616 = vrot.lane.b32.xlu0 %v7532, 32
    %v7617 = vpop.permute.xlu0 %7616
    %7618 = vrot.lane.b32.xlu0 %v7533, 32
    %v7619 = vpop.permute.xlu0 %7618
    %7620 = vrot.lane.b32.xlu0 %v7534, 32
    %v7621 = vpop.permute.xlu0 %7620
    %7622 = vrot.lane.b32.xlu0 %v7535, 32
    %v7623 = vpop.permute.xlu0 %7622
    %7632 = vst.msk [vmem:[#allocation10] sm:$0xff] %vm3078, %v7609
    %7633 = vst.msk [vmem:[#allocation10 + $0x18] sm:$0xff] %vm3078, %v7611
    %7634 = vst.msk [vmem:[#allocation10 + $0x30] sm:$0xff] %vm3078, %v7613
    %7635 = vst.msk [vmem:[#allocation10 + $0x48] sm:$0xff] %vm3078, %v7615
    %7636 = vst.msk [vmem:[#allocation10 + $0x60] sm:$0xff] %vm3078, %v7617
    %7637 = vst.msk [vmem:[#allocation10 + $0x78] sm:$0xff] %vm3078, %v7619
    %7638 = vst.msk [vmem:[#allocation10 + $0x90] sm:$0xff] %vm3078, %v7621
    %7639 = vst.msk [vmem:[#allocation10 + $0xa8] sm:$0xff] %vm3078, %v7623
    %7648 = vrot.lane.b32.xlu0 %v7536, 64
    %v7649 = vpop.permute.xlu0 %7648
    %7650 = vrot.lane.b32.xlu0 %v7537, 64
    %v7651 = vpop.permute.xlu0 %7650
    %7652 = vrot.lane.b32.xlu0 %v7538, 64
    %v7653 = vpop.permute.xlu0 %7652
    %7654 = vrot.lane.b32.xlu0 %v7539, 64
    %v7655 = vpop.permute.xlu0 %7654
    %7656 = vrot.lane.b32.xlu0 %v7540, 64
    %v7657 = vpop.permute.xlu0 %7656
    %7658 = vrot.lane.b32.xlu0 %v7541, 64
    %v7659 = vpop.permute.xlu0 %7658
    %7660 = vrot.lane.b32.xlu0 %v7542, 64
    %v7661 = vpop.permute.xlu0 %7660
    %7662 = vrot.lane.b32.xlu0 %v7543, 64
    %v7663 = vpop.permute.xlu0 %7662
    %7672 = vst.msk [vmem:[#allocation10] sm:$0xff] %vm3089, %v7649
    %7673 = vst.msk [vmem:[#allocation10 + $0x18] sm:$0xff] %vm3089, %v7651
    %7674 = vst.msk [vmem:[#allocation10 + $0x30] sm:$0xff] %vm3089, %v7653
    %7675 = vst.msk [vmem:[#allocation10 + $0x48] sm:$0xff] %vm3089, %v7655
    %7676 = vst.msk [vmem:[#allocation10 + $0x60] sm:$0xff] %vm3089, %v7657
    %7677 = vst.msk [vmem:[#allocation10 + $0x78] sm:$0xff] %vm3089, %v7659
    %7678 = vst.msk [vmem:[#allocation10 + $0x90] sm:$0xff] %vm3089, %v7661
    %7679 = vst.msk [vmem:[#allocation10 + $0xa8] sm:$0xff] %vm3089, %v7663
    %7688 = vrot.lane.b32.xlu0 %v7544, 96
    %v7689 = vpop.permute.xlu0 %7688
    %7690 = vrot.lane.b32.xlu0 %v7545, 96
    %v7691 = vpop.permute.xlu0 %7690
    %7692 = vrot.lane.b32.xlu0 %v7546, 96
    %v7693 = vpop.permute.xlu0 %7692
    %7694 = vrot.lane.b32.xlu0 %v7547, 96
    %v7695 = vpop.permute.xlu0 %7694
    %7696 = vrot.lane.b32.xlu0 %v7548, 96
    %v7697 = vpop.permute.xlu0 %7696
    %7698 = vrot.lane.b32.xlu0 %v7549, 96
    %v7699 = vpop.permute.xlu0 %7698
    %7700 = vrot.lane.b32.xlu0 %v7550, 96
    %v7701 = vpop.permute.xlu0 %7700
    %7702 = vrot.lane.b32.xlu0 %v7551, 96
    %v7703 = vpop.permute.xlu0 %7702
    %7712 = vst.msk [vmem:[#allocation10] sm:$0xff] %vm3100, %v7689
    %7713 = vst.msk [vmem:[#allocation10 + $0x18] sm:$0xff] %vm3100, %v7691
    %7714 = vst.msk [vmem:[#allocation10 + $0x30] sm:$0xff] %vm3100, %v7693
    %7715 = vst.msk [vmem:[#allocation10 + $0x48] sm:$0xff] %vm3100, %v7695
    %7716 = vst.msk [vmem:[#allocation10 + $0x60] sm:$0xff] %vm3100, %v7697
    %7717 = vst.msk [vmem:[#allocation10 + $0x78] sm:$0xff] %vm3100, %v7699
    %7718 = vst.msk [vmem:[#allocation10 + $0x90] sm:$0xff] %vm3100, %v7701
    %7719 = vst.msk [vmem:[#allocation10 + $0xa8] sm:$0xff] %vm3100, %v7703
    %7720 = vst.msk [vmem:[#allocation10 + $0x8] sm:$0xff] %vm3067, %v7552
    %7721 = vst.msk [vmem:[#allocation10 + $0x20] sm:$0xff] %vm3067, %v7553
    %7722 = vst.msk [vmem:[#allocation10 + $0x38] sm:$0xff] %vm3067, %v7554
    %7723 = vst.msk [vmem:[#allocation10 + $0x50] sm:$0xff] %vm3067, %v7555
    %7724 = vst.msk [vmem:[#allocation10 + $0x68] sm:$0xff] %vm3067, %v7556
    %7725 = vst.msk [vmem:[#allocation10 + $0x80] sm:$0xff] %vm3067, %v7557
    %7726 = vst.msk [vmem:[#allocation10 + $0x98] sm:$0xff] %vm3067, %v7558
    %7727 = vst.msk [vmem:[#allocation10 + $0xb0] sm:$0xff] %vm3067, %v7559
    %7736 = vrot.lane.b32.xlu0 %v7560, 32
    %v7737 = vpop.permute.xlu0 %7736
    %7738 = vrot.lane.b32.xlu0 %v7561, 32
    %v7739 = vpop.permute.xlu0 %7738
    %7740 = vrot.lane.b32.xlu0 %v7562, 32
    %v7741 = vpop.permute.xlu0 %7740
    %7742 = vrot.lane.b32.xlu0 %v7563, 32
    %v7743 = vpop.permute.xlu0 %7742
    %7744 = vrot.lane.b32.xlu0 %v7564, 32
    %v7745 = vpop.permute.xlu0 %7744
    %7746 = vrot.lane.b32.xlu0 %v7565, 32
    %v7747 = vpop.permute.xlu0 %7746
    %7748 = vrot.lane.b32.xlu0 %v7566, 32
    %v7749 = vpop.permute.xlu0 %7748
    %7750 = vrot.lane.b32.xlu0 %v7567, 32
    %v7751 = vpop.permute.xlu0 %7750
    %7760 = vst.msk [vmem:[#allocation10 + $0x8] sm:$0xff] %vm3078, %v7737
    %7761 = vst.msk [vmem:[#allocation10 + $0x20] sm:$0xff] %vm3078, %v7739
    %7762 = vst.msk [vmem:[#allocation10 + $0x38] sm:$0xff] %vm3078, %v7741
    %7763 = vst.msk [vmem:[#allocation10 + $0x50] sm:$0xff] %vm3078, %v7743
    %7764 = vst.msk [vmem:[#allocation10 + $0x68] sm:$0xff] %vm3078, %v7745
    %7765 = vst.msk [vmem:[#allocation10 + $0x80] sm:$0xff] %vm3078, %v7747
    %7766 = vst.msk [vmem:[#allocation10 + $0x98] sm:$0xff] %vm3078, %v7749
    %7767 = vst.msk [vmem:[#allocation10 + $0xb0] sm:$0xff] %vm3078, %v7751
    %7776 = vrot.lane.b32.xlu0 %v7568, 64
    %v7777 = vpop.permute.xlu0 %7776
    %7778 = vrot.lane.b32.xlu0 %v7569, 64
    %v7779 = vpop.permute.xlu0 %7778
    %7780 = vrot.lane.b32.xlu0 %v7570, 64
    %v7781 = vpop.permute.xlu0 %7780
    %7782 = vrot.lane.b32.xlu0 %v7571, 64
    %v7783 = vpop.permute.xlu0 %7782
    %7784 = vrot.lane.b32.xlu0 %v7572, 64
    %v7785 = vpop.permute.xlu0 %7784
    %7786 = vrot.lane.b32.xlu0 %v7573, 64
    %v7787 = vpop.permute.xlu0 %7786
    %7788 = vrot.lane.b32.xlu0 %v7574, 64
    %v7789 = vpop.permute.xlu0 %7788
    %7790 = vrot.lane.b32.xlu0 %v7575, 64
    %v7791 = vpop.permute.xlu0 %7790
    %7800 = vst.msk [vmem:[#allocation10 + $0x8] sm:$0xff] %vm3089, %v7777
    %7801 = vst.msk [vmem:[#allocation10 + $0x20] sm:$0xff] %vm3089, %v7779
    %7802 = vst.msk [vmem:[#allocation10 + $0x38] sm:$0xff] %vm3089, %v7781
    %7803 = vst.msk [vmem:[#allocation10 + $0x50] sm:$0xff] %vm3089, %v7783
    %7804 = vst.msk [vmem:[#allocation10 + $0x68] sm:$0xff] %vm3089, %v7785
    %7805 = vst.msk [vmem:[#allocation10 + $0x80] sm:$0xff] %vm3089, %v7787
    %7806 = vst.msk [vmem:[#allocation10 + $0x98] sm:$0xff] %vm3089, %v7789
    %7807 = vst.msk [vmem:[#allocation10 + $0xb0] sm:$0xff] %vm3089, %v7791
    %7816 = vrot.lane.b32.xlu0 %v7576, 96
    %v7817 = vpop.permute.xlu0 %7816
    %7818 = vrot.lane.b32.xlu0 %v7577, 96
    %v7819 = vpop.permute.xlu0 %7818
    %7820 = vrot.lane.b32.xlu0 %v7578, 96
    %v7821 = vpop.permute.xlu0 %7820
    %7822 = vrot.lane.b32.xlu0 %v7579, 96
    %v7823 = vpop.permute.xlu0 %7822
    %7824 = vrot.lane.b32.xlu0 %v7580, 96
    %v7825 = vpop.permute.xlu0 %7824
    %7826 = vrot.lane.b32.xlu0 %v7581, 96
    %v7827 = vpop.permute.xlu0 %7826
    %7828 = vrot.lane.b32.xlu0 %v7582, 96
    %v7829 = vpop.permute.xlu0 %7828
    %7830 = vrot.lane.b32.xlu0 %v7583, 96
    %v7831 = vpop.permute.xlu0 %7830
    %7840 = vst.msk [vmem:[#allocation10 + $0x8] sm:$0xff] %vm3100, %v7817
    %7841 = vst.msk [vmem:[#allocation10 + $0x20] sm:$0xff] %vm3100, %v7819
    %7842 = vst.msk [vmem:[#allocation10 + $0x38] sm:$0xff] %vm3100, %v7821
    %7843 = vst.msk [vmem:[#allocation10 + $0x50] sm:$0xff] %vm3100, %v7823
    %7844 = vst.msk [vmem:[#allocation10 + $0x68] sm:$0xff] %vm3100, %v7825
    %7845 = vst.msk [vmem:[#allocation10 + $0x80] sm:$0xff] %vm3100, %v7827
    %7846 = vst.msk [vmem:[#allocation10 + $0x98] sm:$0xff] %vm3100, %v7829
    %7847 = vst.msk [vmem:[#allocation10 + $0xb0] sm:$0xff] %vm3100, %v7831
    %7848 = vst.msk [vmem:[#allocation10 + $0x10] sm:$0xff] %vm3067, %v7584
    %7849 = vst.msk [vmem:[#allocation10 + $0x28] sm:$0xff] %vm3067, %v7585
    %7850 = vst.msk [vmem:[#allocation10 + $0x40] sm:$0xff] %vm3067, %v7586
    %7851 = vst.msk [vmem:[#allocation10 + $0x58] sm:$0xff] %vm3067, %v7587
    %7852 = vst.msk [vmem:[#allocation10 + $0x70] sm:$0xff] %vm3067, %v7588
    %7853 = vst.msk [vmem:[#allocation10 + $0x88] sm:$0xff] %vm3067, %v7589
    %7854 = vst.msk [vmem:[#allocation10 + $0xa0] sm:$0xff] %vm3067, %v7590
    %7855 = vst.msk [vmem:[#allocation10 + $0xb8] sm:$0xff] %vm3067, %v7591
    %v7856 = vld [vmem:[#allocation10] sm:$0xff]
    %v7857 = vld [vmem:[#allocation10 + $0x8] sm:$0xff]
    %v7858 = vld [vmem:[#allocation10 + $0x10] sm:$0xff]
    %v7859 = vld [vmem:[#allocation10 + $0x18] sm:$0xff]
    %v7860 = vld [vmem:[#allocation10 + $0x20] sm:$0xff]
    %v7861 = vld [vmem:[#allocation10 + $0x28] sm:$0xff]
    %v7862 = vld [vmem:[#allocation10 + $0x30] sm:$0xff]
    %v7863 = vld [vmem:[#allocation10 + $0x38] sm:$0xff]
    %v7864 = vld [vmem:[#allocation10 + $0x40] sm:$0xff]
    %v7865 = vld [vmem:[#allocation10 + $0x48] sm:$0xff]
    %v7866 = vld [vmem:[#allocation10 + $0x50] sm:$0xff]
    %v7867 = vld [vmem:[#allocation10 + $0x58] sm:$0xff]
    %v7868 = vld [vmem:[#allocation10 + $0x60] sm:$0xff]
    %v7869 = vld [vmem:[#allocation10 + $0x68] sm:$0xff]
    %v7870 = vld [vmem:[#allocation10 + $0x70] sm:$0xff]
    %v7871 = vld [vmem:[#allocation10 + $0x78] sm:$0xff]
    %v7872 = vld [vmem:[#allocation10 + $0x80] sm:$0xff]
    %v7873 = vld [vmem:[#allocation10 + $0x88] sm:$0xff]
    %v7874 = vld [vmem:[#allocation10 + $0x90] sm:$0xff]
    %v7875 = vld [vmem:[#allocation10 + $0x98] sm:$0xff]
    %v7876 = vld [vmem:[#allocation10 + $0xa0] sm:$0xff]
    %v7877 = vld [vmem:[#allocation10 + $0xa8] sm:$0xff]
    %v7878 = vld [vmem:[#allocation10 + $0xb0] sm:$0xff]
    %v7879 = vld [vmem:[#allocation10 + $0xb8] sm:$0xff]
    %v7880 = vld [vmem:[%s25] sm:$0xf]
    %v7881 = vld [vmem:[%s25 + $0x4] sm:$0xf]
    %v7882 = vld [vmem:[%s25 + $0x8] sm:$0xf]
    %v7883 = vld [vmem:[%s25 + $0xc] sm:$0xf]
    %v7884 = vld [vmem:[%s25 + $0x10] sm:$0xf]
    %v7885 = vld [vmem:[%s25 + $0x14] sm:$0xf]
    %v7886 = vld [vmem:[%s25 + $0x18] sm:$0xf]
    %v7887 = vld [vmem:[%s25 + $0x1c] sm:$0xf]
    %v7888 = vld [vmem:[%s25 + $0x20] sm:$0xf]
    %v7889 = vld [vmem:[%s25 + $0x24] sm:$0xf]
    %v7890 = vld [vmem:[%s25 + $0x28] sm:$0xf]
    %v7891 = vld [vmem:[%s25 + $0x2c] sm:$0xf]
    %v7892 = vld [vmem:[%s25 + $0x30] sm:$0xf]
    %v7893 = vld [vmem:[%s25 + $0x34] sm:$0xf]
    %v7894 = vld [vmem:[%s25 + $0x38] sm:$0xf]
    %v7895 = vld [vmem:[%s25 + $0x3c] sm:$0xf]
    %v7896 = vld [vmem:[%s25 + $0x40] sm:$0xf]
    %v7897 = vld [vmem:[%s25 + $0x44] sm:$0xf]
    %v7898 = vld [vmem:[%s25 + $0x48] sm:$0xf]
    %v7899 = vld [vmem:[%s25 + $0x4c] sm:$0xf]
    %v7900 = vld [vmem:[%s25 + $0x50] sm:$0xf]
    %v7901 = vld [vmem:[%s25 + $0x54] sm:$0xf]
    %v7902 = vld [vmem:[%s25 + $0x58] sm:$0xf]
    %v7903 = vld [vmem:[%s25 + $0x5c] sm:$0xf]
    %v7904 = vld [vmem:[%s25 + $0x60] sm:$0xf]
    %v7905 = vld [vmem:[%s25 + $0x64] sm:$0xf]
    %v7906 = vld [vmem:[%s25 + $0x68] sm:$0xf]
    %v7907 = vld [vmem:[%s25 + $0x6c] sm:$0xf]
    %v7908 = vld [vmem:[%s25 + $0x70] sm:$0xf]
    %v7909 = vld [vmem:[%s25 + $0x74] sm:$0xf]
    %v7910 = vld [vmem:[%s25 + $0x78] sm:$0xf]
    %v7911 = vld [vmem:[%s25 + $0x7c] sm:$0xf]
    %v7912 = vld [vmem:[%s25 + $0x80] sm:$0xf]
    %v7913 = vld [vmem:[%s25 + $0x84] sm:$0xf]
    %v7914 = vld [vmem:[%s25 + $0x88] sm:$0xf]
    %v7915 = vld [vmem:[%s25 + $0x8c] sm:$0xf]
    %v7916 = vld [vmem:[#allocation31] sm:$0x1]
    %v7918 = vlaneseq
    %v7919 = vshrl.u32 %v7918, 7
    %v7920 = vsub.s32 0, %v7919
    %v7921 = vrot.slane %v7916, %v7920
    %v7959 = vunpack.c.l.b16 %v7880
    %v7960 = vunpack.c.l.b16 %v7881
    %v7961 = vunpack.c.l.b16 %v7882
    %v7962 = vunpack.c.l.b16 %v7883
    %v7963 = vunpack.c.l.b16 %v7884
    %v7964 = vunpack.c.l.b16 %v7885
    %v7965 = vunpack.c.l.b16 %v7886
    %v7966 = vunpack.c.l.b16 %v7887
    %v7967 = vunpack.c.l.b16 %v7888
    %v7968 = vunpack.c.l.b16 %v7889
    %v7969 = vunpack.c.l.b16 %v7890
    %v7970 = vunpack.c.l.b16 %v7891
    %v7971 = vunpack.c.l.b16 %v7892
    %v7972 = vunpack.c.l.b16 %v7893
    %v7973 = vunpack.c.l.b16 %v7894
    %v7974 = vunpack.c.l.b16 %v7895
    %v7975 = vunpack.c.l.b16 %v7896
    %v7976 = vunpack.c.l.b16 %v7897
    %v7977 = vunpack.c.l.b16 %v7898
    %v7978 = vunpack.c.l.b16 %v7899
    %v7979 = vunpack.c.l.b16 %v7900
    %v7980 = vunpack.c.l.b16 %v7901
    %v7981 = vunpack.c.l.b16 %v7902
    %v7982 = vunpack.c.l.b16 %v7903
    %v7983 = vunpack.c.l.b16 %v7904
    %v7984 = vunpack.c.l.b16 %v7905
    %v7985 = vunpack.c.l.b16 %v7906
    %v7986 = vunpack.c.l.b16 %v7907
    %v7987 = vunpack.c.l.b16 %v7908
    %v7988 = vunpack.c.l.b16 %v7909
    %v7989 = vunpack.c.l.b16 %v7910
    %v7990 = vunpack.c.l.b16 %v7911
    %v7991 = vunpack.c.l.b16 %v7912
    %v7992 = vunpack.c.l.b16 %v7913
    %v7993 = vunpack.c.l.b16 %v7914
    %v7994 = vunpack.c.l.b16 %v7915
    %v7995 = vpack.c.b16 %v7960, %v7959
    %v7996 = vpack.c.b16 %v7962, %v7961
    %v7997 = vpack.c.b16 %v7964, %v7963
    %v7998 = vpack.c.b16 %v7966, %v7965
    %v7999 = vpack.c.b16 %v7968, %v7967
    %v8000 = vpack.c.b16 %v7970, %v7969
    %v8001 = vpack.c.b16 %v7972, %v7971
    %v8002 = vpack.c.b16 %v7974, %v7973
    %v8003 = vpack.c.b16 %v7976, %v7975
    %v8004 = vpack.c.b16 %v7978, %v7977
    %v8005 = vpack.c.b16 %v7980, %v7979
    %v8006 = vpack.c.b16 %v7982, %v7981
    %v8007 = vpack.c.b16 %v7984, %v7983
    %v8008 = vpack.c.b16 %v7986, %v7985
    %v8009 = vpack.c.b16 %v7988, %v7987
    %v8010 = vpack.c.b16 %v7990, %v7989
    %v8011 = vpack.c.b16 %v7992, %v7991
    %v8012 = vpack.c.b16 %v7994, %v7993
    %v8032 = vsel %vm3067, %v7858, 0
    %v8035 = vsel %vm3067, %v7861, 0
    %v8038 = vsel %vm3067, %v7864, 0
    %v8041 = vsel %vm3067, %v7867, 0
    %v8044 = vsel %vm3067, %v7870, 0
    %v8047 = vsel %vm3067, %v7873, 0
    %v8050 = vsel %vm3067, %v7876, 0
    %v8053 = vsel %vm3067, %v7879, 0
    %8055 = vmatprep.subr.bf16.mxu0 0
    %8056 = vmatpush1.bf16.msra.mxu0 %v7995
    %8057 = vmatprep.subr.bf16.mxu0 0
    %8058 = vmatpush1.bf16.msra.mxu0 %v7996
    %8059 = vmatprep.subr.bf16.mxu0 0
    %8060 = vmatpush1.bf16.msra.mxu0 %v7997
    %8061 = vmatprep.subr.bf16.mxu0 0
    %8062 = vmatpush1.bf16.msra.mxu0 %v7998
    %8063 = vmatprep.subr.bf16.mxu0 0
    %8064 = vmatpush1.bf16.msra.mxu0 %v7999
    %8065 = vmatprep.subr.bf16.mxu0 0
    %8066 = vmatpush1.bf16.msra.mxu0 %v8000
    %8067 = vmatprep.subr.bf16.mxu0 0
    %8068 = vmatpush1.bf16.msra.mxu0 %v8001
    %8069 = vmatprep.subr.bf16.mxu0 0
    %8070 = vmatpush1.bf16.msra.mxu0 %v8002
    %8071 = vmatprep.subr.bf16.mxu0 0
    %8072 = vmatpush1.bf16.msra.mxu0 %v8003
    %8073 = vmatprep.subr.bf16.mxu0 0
    %8074 = vmatpush1.bf16.msra.mxu0 %v8004
    %8075 = vmatprep.subr.bf16.mxu0 0
    %8076 = vmatpush1.bf16.msra.mxu0 %v8005
    %8077 = vmatprep.subr.bf16.mxu0 0
    %8078 = vmatpush1.bf16.msra.mxu0 %v8006
    %8079 = vmatprep.subr.bf16.mxu0 0
    %8080 = vmatpush1.bf16.msra.mxu0 %v8007
    %8081 = vmatprep.subr.bf16.mxu0 0
    %8082 = vmatpush1.bf16.msra.mxu0 %v8008
    %8083 = vmatprep.subr.bf16.mxu0 0
    %8084 = vmatpush1.bf16.msra.mxu0 %v8009
    %8085 = vmatprep.subr.bf16.mxu0 0
    %8086 = vmatpush1.bf16.msra.mxu0 %v8010
    %8087 = vmatprep.mubr.bf16.mxu0 %v7857
    %8088 = vmatmul.mubr.bf16.gmra.mrb[0].mxu0 %v7856
    %v8089 = vpop.f32.mrb[0].mxu0
    %v8090 = vadd.f32 %v7921, %v8089
    %v8091 = vpop.f32.mrb[0].mxu0
    %v8092 = vpop.f32.mrb[0].mxu0
    %v8093 = vadd.f32 %v7921, %v8092
    %v8094 = vpop.f32.mrb[0].mxu0
    %8095 = vmatprep.mubr.bf16.mxu0 %v7860
    %8096 = vmatmul.mubr.bf16.gmra.mrb[0].mxu0 %v7859
    %v8097 = vpop.f32.mrb[0].mxu0
    %v8098 = vadd.f32 %v7921, %v8097
    %v8099 = vpop.f32.mrb[0].mxu0
    %v8100 = vpop.f32.mrb[0].mxu0
    %v8101 = vadd.f32 %v7921, %v8100
    %v8102 = vpop.f32.mrb[0].mxu0
    %8103 = vmatprep.mubr.bf16.mxu0 %v7863
    %8104 = vmatmul.mubr.bf16.gmra.mrb[0].mxu0 %v7862
    %v8105 = vpop.f32.mrb[0].mxu0
    %v8106 = vadd.f32 %v7921, %v8105
    %v8107 = vpop.f32.mrb[0].mxu0
    %v8108 = vpop.f32.mrb[0].mxu0
    %v8109 = vadd.f32 %v7921, %v8108
    %v8110 = vpop.f32.mrb[0].mxu0
    %8111 = vmatprep.mubr.bf16.mxu0 %v7866
    %8112 = vmatmul.mubr.bf16.gmra.mrb[0].mxu0 %v7865
    %v8113 = vpop.f32.mrb[0].mxu0
    %v8114 = vadd.f32 %v7921, %v8113
    %v8115 = vpop.f32.mrb[0].mxu0
    %v8116 = vpop.f32.mrb[0].mxu0
    %v8117 = vadd.f32 %v7921, %v8116
    %v8118 = vpop.f32.mrb[0].mxu0
    %8119 = vmatprep.mubr.bf16.mxu0 %v7869
    %8120 = vmatmul.mubr.bf16.gmra.mrb[0].mxu0 %v7868
    %v8121 = vpop.f32.mrb[0].mxu0
    %v8122 = vadd.f32 %v7921, %v8121
    %v8123 = vpop.f32.mrb[0].mxu0
    %v8124 = vpop.f32.mrb[0].mxu0
    %v8125 = vadd.f32 %v7921, %v8124
    %v8126 = vpop.f32.mrb[0].mxu0
    %8127 = vmatprep.mubr.bf16.mxu0 %v7872
    %8128 = vmatmul.mubr.bf16.gmra.mrb[0].mxu0 %v7871
    %v8129 = vpop.f32.mrb[0].mxu0
    %v8130 = vadd.f32 %v7921, %v8129
    %v8131 = vpop.f32.mrb[0].mxu0
    %v8132 = vpop.f32.mrb[0].mxu0
    %v8133 = vadd.f32 %v7921, %v8132
    %v8134 = vpop.f32.mrb[0].mxu0
    %8135 = vmatprep.mubr.bf16.mxu0 %v7875
    %8136 = vmatmul.mubr.bf16.gmra.mrb[0].mxu0 %v7874
    %v8137 = vpop.f32.mrb[0].mxu0
    %v8138 = vadd.f32 %v7921, %v8137
    %v8139 = vpop.f32.mrb[0].mxu0
    %v8140 = vpop.f32.mrb[0].mxu0
    %v8141 = vadd.f32 %v7921, %v8140
    %v8142 = vpop.f32.mrb[0].mxu0
    %8143 = vmatprep.mubr.bf16.mxu0 %v7878
    %8144 = vmatmul.mubr.bf16.gmra.mrb[0].mxu0 %v7877
    %v8145 = vpop.f32.mrb[0].mxu0
    %v8146 = vadd.f32 %v7921, %v8145
    %v8147 = vpop.f32.mrb[0].mxu0
    %v8148 = vpop.f32.mrb[0].mxu0
    %v8149 = vadd.f32 %v7921, %v8148
    %v8150 = vpop.f32.mrb[0].mxu0
    %8151 = vdwg.mxu0
    %8152 = vmatprep.subr.bf16.mxu0 0
    %8153 = vmatpush1.bf16.msra.mxu0 %v8011
    %8154 = vmatprep.subr.bf16.mxu0 0
    %8155 = vmatpush1.bf16.msra.mxu0 %v8012
    %8156 = vmatprep.subr.bf16.mxu0 0
    %8157 = vmatpush1.bf16.msra.mxu0 0
    %8158 = vmatprep.subr.bf16.mxu0 0
    %8159 = vmatpush1.bf16.msra.mxu0 0
    %8160 = vmatprep.subr.bf16.mxu0 0
    %8161 = vmatpush1.bf16.msra.mxu0 0
    %8162 = vmatprep.subr.bf16.mxu0 0
    %8163 = vmatpush1.bf16.msra.mxu0 0
    %8164 = vmatprep.subr.bf16.mxu0 0
    %8165 = vmatpush1.bf16.msra.mxu0 0
    %8166 = vmatprep.subr.bf16.mxu0 0
    %8167 = vmatpush1.bf16.msra.mxu0 0
    %8168 = vmatprep.subr.bf16.mxu0 0
    %8169 = vmatpush1.bf16.msra.mxu0 0
    %8170 = vmatprep.subr.bf16.mxu0 0
    %8171 = vmatpush1.bf16.msra.mxu0 0
    %8172 = vmatprep.subr.bf16.mxu0 0
    %8173 = vmatpush1.bf16.msra.mxu0 0
    %8174 = vmatprep.subr.bf16.mxu0 0
    %8175 = vmatpush1.bf16.msra.mxu0 0
    %8176 = vmatprep.subr.bf16.mxu0 0
    %8177 = vmatpush1.bf16.msra.mxu0 0
    %8178 = vmatprep.subr.bf16.mxu0 0
    %8179 = vmatpush1.bf16.msra.mxu0 0
    %8180 = vmatprep.subr.bf16.mxu0 0
    %8181 = vmatpush1.bf16.msra.mxu0 0
    %8182 = vmatprep.subr.bf16.mxu0 0
    %8183 = vmatpush1.bf16.msra.mxu0 0
    %8184 = vmatprep.mubr.bf16.mxu0 0
    %8185 = vmatmul.mubr.bf16.gmra.mrb[0].mxu0 %v8032
    %v8186 = vpop.f32.mrb[0].mxu0
    %v8187 = vadd.f32 %v8090, %v8186
    %v8188 = vpop.f32.mrb[0].mxu0
    %v8189 = vpop.f32.mrb[0].mxu0
    %v8190 = vadd.f32 %v8093, %v8189
    %v8191 = vpop.f32.mrb[0].mxu0
    %8192 = vmatprep.mubr.bf16.mxu0 0
    %8193 = vmatmul.mubr.bf16.gmra.mrb[0].mxu0 %v8035
    %v8194 = vpop.f32.mrb[0].mxu0
    %v8195 = vadd.f32 %v8098, %v8194
    %v8196 = vpop.f32.mrb[0].mxu0
    %v8197 = vpop.f32.mrb[0].mxu0
    %v8198 = vadd.f32 %v8101, %v8197
    %v8199 = vpop.f32.mrb[0].mxu0
    %8200 = vmatprep.mubr.bf16.mxu0 0
    %8201 = vmatmul.mubr.bf16.gmra.mrb[0].mxu0 %v8038
    %v8202 = vpop.f32.mrb[0].mxu0
    %v8203 = vadd.f32 %v8106, %v8202
    %v8204 = vpop.f32.mrb[0].mxu0
    %v8205 = vpop.f32.mrb[0].mxu0
    %v8206 = vadd.f32 %v8109, %v8205
    %v8207 = vpop.f32.mrb[0].mxu0
    %8208 = vmatprep.mubr.bf16.mxu0 0
    %8209 = vmatmul.mubr.bf16.gmra.mrb[0].mxu0 %v8041
    %v8210 = vpop.f32.mrb[0].mxu0
    %v8211 = vadd.f32 %v8114, %v8210
    %v8212 = vpop.f32.mrb[0].mxu0
    %v8213 = vpop.f32.mrb[0].mxu0
    %v8214 = vadd.f32 %v8117, %v8213
    %v8215 = vpop.f32.mrb[0].mxu0
    %8216 = vmatprep.mubr.bf16.mxu0 0
    %8217 = vmatmul.mubr.bf16.gmra.mrb[0].mxu0 %v8044
    %v8218 = vpop.f32.mrb[0].mxu0
    %v8219 = vadd.f32 %v8122, %v8218
    %v8220 = vpop.f32.mrb[0].mxu0
    %v8221 = vpop.f32.mrb[0].mxu0
    %v8222 = vadd.f32 %v8125, %v8221
    %v8223 = vpop.f32.mrb[0].mxu0
    %8224 = vmatprep.mubr.bf16.mxu0 0
    %8225 = vmatmul.mubr.bf16.gmra.mrb[0].mxu0 %v8047
    %v8226 = vpop.f32.mrb[0].mxu0
    %v8227 = vadd.f32 %v8130, %v8226
    %v8228 = vpop.f32.mrb[0].mxu0
    %v8229 = vpop.f32.mrb[0].mxu0
    %v8230 = vadd.f32 %v8133, %v8229
    %v8231 = vpop.f32.mrb[0].mxu0
    %8232 = vmatprep.mubr.bf16.mxu0 0
    %8233 = vmatmul.mubr.bf16.gmra.mrb[0].mxu0 %v8050
    %v8234 = vpop.f32.mrb[0].mxu0
    %v8235 = vadd.f32 %v8138, %v8234
    %v8236 = vpop.f32.mrb[0].mxu0
    %v8237 = vpop.f32.mrb[0].mxu0
    %v8238 = vadd.f32 %v8141, %v8237
    %v8239 = vpop.f32.mrb[0].mxu0
    %8240 = vmatprep.mubr.bf16.mxu0 0
    %8241 = vmatmul.mubr.bf16.gmra.mrb[0].mxu0 %v8053
    %v8242 = vpop.f32.mrb[0].mxu0
    %v8243 = vadd.f32 %v8146, %v8242
    %v8244 = vpop.f32.mrb[0].mxu0
    %v8245 = vpop.f32.mrb[0].mxu0
    %v8246 = vadd.f32 %v8149, %v8245
    %v8247 = vpop.f32.mrb[0].mxu0
    %8248 = vdwg.mxu0
    %v8249 = vxor.u32 %v8187, 2147483648
    %v8250 = vxor.u32 %v8190, 2147483648
    %v8251 = vxor.u32 %v8195, 2147483648
    %v8252 = vxor.u32 %v8198, 2147483648
    %v8253 = vxor.u32 %v8203, 2147483648
    %v8254 = vxor.u32 %v8206, 2147483648
    %v8255 = vxor.u32 %v8211, 2147483648
    %v8256 = vxor.u32 %v8214, 2147483648
    %v8257 = vxor.u32 %v8219, 2147483648
    %v8258 = vxor.u32 %v8222, 2147483648
    %v8259 = vxor.u32 %v8227, 2147483648
    %v8260 = vxor.u32 %v8230, 2147483648
    %v8261 = vxor.u32 %v8235, 2147483648
    %v8262 = vxor.u32 %v8238, 2147483648
    %v8263 = vxor.u32 %v8243, 2147483648
    %v8264 = vxor.u32 %v8246, 2147483648
    %v8265 = vmul.f32 %v8249, 1.442695
    %v8266 = vpow.pop %v8265
    %v8267 = vmul.f32 %v8250, 1.442695
    %v8268 = vpow.pop %v8267
    %v8269 = vmul.f32 %v8251, 1.442695
    %v8270 = vpow.pop %v8269
    %v8271 = vmul.f32 %v8252, 1.442695
    %v8272 = vpow.pop %v8271
    %v8273 = vmul.f32 %v8253, 1.442695
    %v8274 = vpow.pop %v8273
    %v8275 = vmul.f32 %v8254, 1.442695
    %v8276 = vpow.pop %v8275
    %v8277 = vmul.f32 %v8255, 1.442695
    %v8278 = vpow.pop %v8277
    %v8279 = vmul.f32 %v8256, 1.442695
    %v8280 = vpow.pop %v8279
    %v8281 = vmul.f32 %v8257, 1.442695
    %v8282 = vpow.pop %v8281
    %v8283 = vmul.f32 %v8258, 1.442695
    %v8284 = vpow.pop %v8283
    %v8285 = vmul.f32 %v8259, 1.442695
    %v8286 = vpow.pop %v8285
    %v8287 = vmul.f32 %v8260, 1.442695
    %v8288 = vpow.pop %v8287
    %v8289 = vmul.f32 %v8261, 1.442695
    %v8290 = vpow.pop %v8289
    %v8291 = vmul.f32 %v8262, 1.442695
    %v8292 = vpow.pop %v8291
    %v8293 = vmul.f32 %v8263, 1.442695
    %v8294 = vpow.pop %v8293
    %v8295 = vmul.f32 %v8264, 1.442695
    %v8296 = vpow.pop %v8295
    %v8297 = vadd.f32 %v8266, 1.0
    %v8298 = vadd.f32 %v8268, 1.0
    %v8299 = vadd.f32 %v8270, 1.0
    %v8300 = vadd.f32 %v8272, 1.0
    %v8301 = vadd.f32 %v8274, 1.0
    %v8302 = vadd.f32 %v8276, 1.0
    %v8303 = vadd.f32 %v8278, 1.0
    %v8304 = vadd.f32 %v8280, 1.0
    %v8305 = vadd.f32 %v8282, 1.0
    %v8306 = vadd.f32 %v8284, 1.0
    %v8307 = vadd.f32 %v8286, 1.0
    %v8308 = vadd.f32 %v8288, 1.0
    %v8309 = vadd.f32 %v8290, 1.0
    %v8310 = vadd.f32 %v8292, 1.0
    %v8311 = vadd.f32 %v8294, 1.0
    %v8312 = vadd.f32 %v8296, 1.0
    %v8313 = vrcp.pop %v8297
    %v8314 = vmul.f32 1.0, %v8313
    %v8315 = vrcp.pop %v8298
    %v8316 = vmul.f32 1.0, %v8315
    %v8317 = vrcp.pop %v8299
    %v8318 = vmul.f32 1.0, %v8317
    %v8319 = vrcp.pop %v8300
    %v8320 = vmul.f32 1.0, %v8319
    %v8321 = vrcp.pop %v8301
    %v8322 = vmul.f32 1.0, %v8321
    %v8323 = vrcp.pop %v8302
    %v8324 = vmul.f32 1.0, %v8323
    %v8325 = vrcp.pop %v8303
    %v8326 = vmul.f32 1.0, %v8325
    %v8327 = vrcp.pop %v8304
    %v8328 = vmul.f32 1.0, %v8327
    %v8329 = vrcp.pop %v8305
    %v8330 = vmul.f32 1.0, %v8329
    %v8331 = vrcp.pop %v8306
    %v8332 = vmul.f32 1.0, %v8331
    %v8333 = vrcp.pop %v8307
    %v8334 = vmul.f32 1.0, %v8333
    %v8335 = vrcp.pop %v8308
    %v8336 = vmul.f32 1.0, %v8335
    %v8337 = vrcp.pop %v8309
    %v8338 = vmul.f32 1.0, %v8337
    %v8339 = vrcp.pop %v8310
    %v8340 = vmul.f32 1.0, %v8339
    %v8341 = vrcp.pop %v8311
    %v8342 = vmul.f32 1.0, %v8341
    %v8343 = vrcp.pop %v8312
    %v8344 = vmul.f32 1.0, %v8343
    %8345 = vst.msk [vmem:[%s28] sm:$0xff] %vm3067, %v8314
    %8346 = vst.msk [vmem:[%s28 + $0x8] sm:$0xff] %vm3067, %v8316
    %8347 = vst.msk [vmem:[%s28 + $0x10] sm:$0xff] %vm3067, %v8318
    %8348 = vst.msk [vmem:[%s28 + $0x18] sm:$0xff] %vm3067, %v8320
    %8349 = vst.msk [vmem:[%s28 + $0x20] sm:$0xff] %vm3067, %v8322
    %8350 = vst.msk [vmem:[%s28 + $0x28] sm:$0xff] %vm3067, %v8324
    %8351 = vst.msk [vmem:[%s28 + $0x30] sm:$0xff] %vm3067, %v8326
    %8352 = vst.msk [vmem:[%s28 + $0x38] sm:$0xff] %vm3067, %v8328
    %8353 = vst.msk [vmem:[%s28 + $0x40] sm:$0xff] %vm3067, %v8330
    %8354 = vst.msk [vmem:[%s28 + $0x48] sm:$0xff] %vm3067, %v8332
    %8355 = vst.msk [vmem:[%s28 + $0x50] sm:$0xff] %vm3067, %v8334
    %8356 = vst.msk [vmem:[%s28 + $0x58] sm:$0xff] %vm3067, %v8336
    %8357 = vst.msk [vmem:[%s28 + $0x60] sm:$0xff] %vm3067, %v8338
    %8358 = vst.msk [vmem:[%s28 + $0x68] sm:$0xff] %vm3067, %v8340
    %8359 = vst.msk [vmem:[%s28 + $0x70] sm:$0xff] %vm3067, %v8342
    %8360 = vst.msk [vmem:[%s28 + $0x78] sm:$0xff] %vm3067, %v8344
    // Predicated region
    $region276: #{fwd.1} parent=1 // pred_check
      _
    $region277: #{fwd.1} parent=1 // pred_check_branch
      %8362 = sbr.rel (0) target = $region279
    $region278: #{fwd.1} parent=1 // pred_region
      %s8364 = ssub.s32 32, 32
      %8365 = vsyncadd [#allocation18], %s8364
      %s8367 = sshll.u32 [#allocation33], 4
      %s8368 = int_to_ptr.vmem [resolvable:$true] %s8367
      %8370 = dma.vmem_to_hbm [thread:$0]  %s8368, 32, %s27, [#allocation18]
    $region279: #{fwd.1} parent=1 // pred_fallthru
      _
    // Predicated region
    $region280: #{fwd.1} parent=1 // pred_check
      _
    $region281: #{fwd.1} parent=1 // pred_check_branch
      %8372 = sbr.rel (0) target = $region283
    $region282: #{fwd.1} parent=1 // pred_region
      _
    $region283: #{fwd.1} parent=1 // pred_fallthru
      _
    // Predicated region
    $region284: #{fwd.1} parent=1 // pred_check
      _
    $region285: #{fwd.1} parent=1 // pred_check_branch
      %8374 = sbr.rel (0) target = $region287
    $region286: #{fwd.1} parent=1 // pred_region
      %8375 = dma.done [#allocation18], 32
    $region287: #{fwd.1} parent=1 // pred_fallthru
      _
    // Predicated region
    $region288: #{fwd.1} parent=1 // pred_check
      _
    $region289: #{fwd.1} parent=1 // pred_check_branch
      %8377 = sbr.rel (0) target = $region291
    $region290: #{fwd.1} parent=1 // pred_region
      _
    $region291: #{fwd.1} parent=1 // pred_fallthru
      _
    %8378 = vsyncpa [#allocation17], 1
    %8379 = vsyncpa [#allocation20], 1
    %8380 = vsyncpa [#allocation23], 1
    %8381 = vsyncpa [#allocation26], 1
    %8382 = vsyncpa [#allocation29], 1
    %8383 = vsyncpa [#allocation32], 1
    %8384 = vsyncpa [#allocation18], 1
  %8385 = vsyncmov [#allocation15]
  %s8386 = vpop.sfrf %8385
  %p8387 = scmp.eq.s32.totalorder %s8386, 0
  %p8388 = pneg %p8387
  %8390 = shalt.err (%p8388)
  %s8391 = scalar_lea.sflag [#allocation15], 1
  %8392 = vsyncmov %s8391
  %s8393 = vpop.sfrf %8392
  %p8394 = scmp.eq.s32.totalorder %s8393, 0
  %p8395 = pneg %p8394
  %8397 = shalt.err (%p8395)
  %s8398 = scalar_lea.sflag [#allocation15], 2
  %8399 = vsyncmov %s8398
  %s8400 = vpop.sfrf %8399
  %p8401 = scmp.eq.s32.totalorder %s8400, 0
  %p8402 = pneg %p8401
  %8404 = shalt.err (%p8402)
  %s8405 = scalar_lea.sflag [#allocation15], 3
  %8406 = vsyncmov %s8405
  %s8407 = vpop.sfrf %8406
  %p8408 = scmp.eq.s32.totalorder %s8407, 0
  %p8409 = pneg %p8408
  %8411 = shalt.err (%p8409)

</llo_original>
